<compile_context>
chip_gen: v6e
topology: v6e:2x2x1
jax: 0.10.0
libtpu: 0.0.40
codegen_flags: <defaults>
</compile_context>

<pallas_src>
import functools

import jax
import jax.numpy as jnp
from jax.experimental import pallas as pl
from jax.experimental.pallas import tpu as pltpu

EPS = 1e-5
CMID = 64  # bottleneck mid width (matches nn.Conv2d(..., 64, ...))


# ----------------------------------------------------------------------------
# In-kernel helpers
# ----------------------------------------------------------------------------
def _channel_stats(y):
    """Per-channel [sum, sum-of-squares] of an (..., C) f32 array -> (1, 2, C)."""
    s, sq = y, y * y
    while s.ndim > 2:
        s = jnp.sum(s, axis=0)
        sq = jnp.sum(sq, axis=0)
    s = jnp.sum(s, axis=0, keepdims=True)
    sq = jnp.sum(sq, axis=0, keepdims=True)
    return jnp.concatenate([s, sq], axis=0).reshape(1, 2, s.shape[-1])


# ----------------------------------------------------------------------------
# Kernels
# ----------------------------------------------------------------------------
def _conv1x1_stats_kernel(x_ref, w_ref, y_ref, stats_ref, *, use_fma):
    """y = x @ w (1x1 conv as matmul); emits per-step per-channel sum / sumsq."""
    if use_fma:
        # Tiny contraction (K = Cin): rank-1 broadcast-FMA on the VPU instead
        # of a ~3%-utilized MXU pass.
        x = x_ref[...].astype(jnp.float32)
        w = w_ref[...].astype(jnp.float32)
        y = x[:, 0:1] * w[0:1, :]
        for k in range(1, x.shape[1]):
            y = y + x[:, k:k + 1] * w[k:k + 1, :]
    else:
        y = jnp.dot(x_ref[...], w_ref[...], preferred_element_type=jnp.float32)
    y_ref[...] = y.astype(y_ref.dtype)
    stats_ref[...] = _channel_stats(y)


def _conv3x3_stats_kernel(y1_ref, ss_ref, w_ref, y_ref, stats_ref, apad_ref,
                          *, H, W, Wp, C):
    """Fused bn1+ReLU -> 3x3 conv (pad=1, in-kernel padding) -> sum / sumsq.

    y1_ref   : (IMGB, H, W, C)  bf16 raw conv1 output block.
    ss_ref   : (2, C) f32, row 0 = bn1 scale, row 1 = bn1 shift.
    w_ref    : (3, C, 3C) bf16 conv2 weights; per dy the 3 dx taps are
               concatenated along the output axis.
    y_ref    : (IMGB, H, W, C)  bf16 raw conv2 output block.
    stats_ref: (1, 2, C) f32 per-step partial stats.
    apad_ref : (IMGB, H+2, Wp, C) bf16 persistent padded-activation scratch.
    """
    IMGB = y1_ref.shape[0]

    # Re-zero only the halo strips every step (cheap; keeps the kernel correct
    # under "parallel" grid semantics where a core may never see step 0).
    zrow = jnp.zeros((IMGB, 1, Wp, C), jnp.bfloat16)
    apad_ref[:, 0:1, :, :] = zrow
    apad_ref[:, H + 1:H + 2, :, :] = zrow
    zcol = jnp.zeros((IMGB, H, 1, C), jnp.bfloat16)
    apad_ref[:, 1:H + 1, 0:1, :] = zcol
    apad_ref[:, 1:H + 1, W + 1:W + 2, :] = zcol

    # bn1 + ReLU applied inline, written into the scratch interior.
    a = jnp.maximum(y1_ref[...].astype(jnp.float32) * ss_ref[0:1, :]
                    + ss_ref[1:2, :], 0.0)
    apad_ref[:, 1:H + 1, 1:W + 1, :] = a.astype(jnp.bfloat16)

    # 3x3 conv: one wide (R, C) x (C, 3C) MXU matmul per dy on a contiguous
    # row slab (free reshape: Wp is a multiple of 8), f32 accumulation.
    R = IMGB * H * Wp
    acc = jnp.zeros((R, 3 * C), jnp.float32)
    for dy in range(3):
        slab = apad_ref[:, dy:dy + H, :, :].reshape(R, C)
        acc = acc + jnp.dot(slab, w_ref[dy], preferred_element_type=jnp.float32)

    # Recombine the dx taps: shift along the padded-column axis and add.
    acc4 = acc.reshape(IMGB, H, Wp, 3 * C)
    out = (acc4[:, :, 0:W, 0:C]
           + acc4[:, :, 1:W + 1, C:2 * C]
           + acc4[:, :, 2:W + 2, 2 * C:3 * C])

    y_ref[...] = out.astype(y_ref.dtype)
    stats_ref[...] = _channel_stats(out)


def _bnrelu_conv1x1_stats_kernel(y_ref, ss_ref, w_ref, o_ref, stats_ref):
    """Fused bn2+ReLU -> 1x1 conv (64 -> Cout) -> per-step sum / sumsq."""
    a = jnp.maximum(y_ref[...].astype(jnp.float32) * ss_ref[0:1, :]
                    + ss_ref[1:2, :], 0.0)
    y = jnp.dot(a.astype(jnp.bfloat16), w_ref[...],
                preferred_element_type=jnp.float32)
    o_ref[...] = y.astype(o_ref.dtype)
    stats_ref[...] = _channel_stats(y)


def _bn_residual_relu_kernel(y_ref, ss_ref, res_ref, o_ref):
    """out = relu(bn3(y) + residual): one FMA + add + max per element."""
    y = y_ref[...].astype(jnp.float32) * ss_ref[0:1, :] + ss_ref[1:2, :]
    o_ref[...] = jnp.maximum(y + res_ref[...].astype(jnp.float32),
                             0.0).astype(o_ref.dtype)


# ----------------------------------------------------------------------------
# Wrapper helpers
# ----------------------------------------------------------------------------
def _round_up(x, m):
    return (x + m - 1) // m * m


def _pick_tile_m(m, cap=1024):
    """Largest divisor of m <= cap, preferring wide multiples (512, 256, ...).

    Never returns the full m for large arrays unless m has no multiple-of-8
    divisor <= cap (pathological)."""
    if m <= cap:
        return m
    for pref in (512, 256, 128, 64, 32, 16, 8):
        t = cap - cap % pref
        while t >= pref:
            if m % t == 0:
                return t
            t -= pref
    return m


def _pick_img_block(n, h, w, wp, c=CMID, budget=6 << 20, cap=8):
    """Images per stage-2 grid step: bounded VMEM, divisor of n, grid >= 2."""
    per_img = ((h + 2) * wp * c * 2        # padded bf16 scratch
               + h * wp * 3 * c * 4        # f32 (R, 3C) accumulator
               + 4 * h * w * c * 2 * 2)    # streamed in/out blocks + slack
    cap = max(1, min(cap, budget // max(per_img, 1), max(1, n // 2)))
    for b in range(min(cap, n), 0, -1):
        if n % b == 0:
            return b
    return 1


@functools.lru_cache(maxsize=None)
def _vmem_limit_bytes():
    """Generation-aware scoped-VMEM limit: ~3/4 of physical, capped at 96 MiB."""
    try:
        cap = int(pltpu.get_tpu_info().vmem_capacity_bytes)
    except Exception:
        return 48 << 20  # safe on v5e / v6e / v7x
    return int(min(cap * 3 // 4, 96 << 20))


def _scale_shift(stats, gamma, beta, count):
    """Fold batch sum / sumsq into per-channel scale/shift: y*scale + shift."""
    mean = stats[0] / count
    var = jnp.maximum(stats[1] / count - mean * mean, 0.0)
    scale = gamma * jax.lax.rsqrt(var + EPS)
    shift = beta - mean * scale
    return jnp.stack([scale, shift], axis=0).astype(jnp.float32)


# ----------------------------------------------------------------------------
# Forward pass
# ----------------------------------------------------------------------------
def bottleneck_forward(x_nchw, params, strides=1, tile_m=1024):
    """Pallas forward of Bottlenect (training-mode BN).  x_nchw: (N, C, H, W)."""
    if strides != 1:
        # TODO(synk): the reference forward adds X unconditionally, so strides != 1 has no valid downsample branch to port.
        raise NotImplementedError("Bottlenect residual requires strides == 1")
    N, Cin, H, W = x_nchw.shape
    Cout = params["w3"].shape[1]
    assert Cout == Cin, "Y += X requires num_channels == input_channels"

    M = N * H * W
    TM = _pick_tile_m(M, tile_m)
    Wp = _round_up(W + 2, 8)  # padded width, multiple of 8 -> free reshapes
    cp = pltpu.CompilerParams(dimension_semantics=("parallel",),
                              vmem_limit_bytes=_vmem_limit_bytes())

    # One fused transpose+cast (NCHW f32 -> NHWC bf16) feeds conv1 AND the
    # residual path: no separate cast op, half the transpose bytes.
    x_nhwc = jnp.transpose(x_nchw.astype(jnp.bfloat16), (0, 2, 3, 1))
    x2d = x_nhwc.reshape(M, Cin)
    w1 = params["w1"].astype(jnp.bfloat16)                       # (Cin, 64)
    # conv2 HWIO -> (dy, ci, dx*Cmid + co): dx taps concatenated on output axis.
    w2cat = jnp.transpose(params["w2"], (0, 2, 1, 3)).reshape(3, CMID, 3 * CMID)
    w2cat = w2cat.astype(jnp.bfloat16)
    w3 = params["w3"].astype(jnp.bfloat16)                       # (64, Cout)
    # Conv biases are intentionally dropped: training-mode BN subtracts the
    # per-channel batch mean, which cancels a per-channel bias exactly.

    # -- stage 1: conv1 (1x1, Cin -> 64) + per-step per-channel stats ---------
    G1 = M // TM
    y1raw, st1 = pl.pallas_call(
        functools.partial(_conv1x1_stats_kernel, use_fma=(Cin <= 8)),
        grid=(G1,),
        in_specs=[pl.BlockSpec((TM, Cin), lambda i: (i, 0)),
                  pl.BlockSpec((Cin, CMID), lambda i: (0, 0))],
        out_specs=[pl.BlockSpec((TM, CMID), lambda i: (i, 0)),
                   pl.BlockSpec((1, 2, CMID), lambda i: (i, 0, 0))],
        out_shape=(jax.ShapeDtypeStruct((M, CMID), jnp.bfloat16),
                   jax.ShapeDtypeStruct((G1, 2, CMID), jnp.float32)),
        compiler_params=cp,
    )(x2d, w1)
    ss1 = _scale_shift(jnp.sum(st1, axis=0), params["g1"], params["be1"], M)

    # -- stage 2: fused bn1+ReLU -> 3x3 conv (in-kernel padding) + stats ------
    # TODO(synk): for large feature maps, tile H with a 1-row halo so the padded
    # scratch and the (R, 3C) accumulator stay bounded in VMEM.
    IMGB = _pick_img_block(N, H, W, Wp)
    G2 = N // IMGB
    y2raw, st2 = pl.pallas_call(
        functools.partial(_conv3x3_stats_kernel, H=H, W=W, Wp=Wp, C=CMID),
        grid=(G2,),
        in_specs=[pl.BlockSpec((IMGB, H, W, CMID), lambda n: (n, 0, 0, 0)),
                  pl.BlockSpec((2, CMID), lambda n: (0, 0)),
                  pl.BlockSpec((3, CMID, 3 * CMID), lambda n: (0, 0, 0))],
        out_specs=[pl.BlockSpec((IMGB, H, W, CMID), lambda n: (n, 0, 0, 0)),
                   pl.BlockSpec((1, 2, CMID), lambda n: (n, 0, 0))],
        out_shape=(jax.ShapeDtypeStruct((N, H, W, CMID), jnp.bfloat16),
                   jax.ShapeDtypeStruct((G2, 2, CMID), jnp.float32)),
        scratch_shapes=[pltpu.VMEM((IMGB, H + 2, Wp, CMID), jnp.bfloat16)],
        compiler_params=cp,
    )(y1raw.reshape(N, H, W, CMID), ss1, w2cat)
    ss2 = _scale_shift(jnp.sum(st2, axis=0), params["g2"], params["be2"], M)

    # -- stage 3: fused bn2+ReLU -> conv3 (1x1, 64 -> Cout) + stats -----------
    y3raw, st3 = pl.pallas_call(
        _bnrelu_conv1x1_stats_kernel,
        grid=(G1,),
        in_specs=[pl.BlockSpec((TM, CMID), lambda i: (i, 0)),
                  pl.BlockSpec((2, CMID), lambda i: (0, 0)),
                  pl.BlockSpec((CMID, Cout), lambda i: (0, 0))],
        out_specs=[pl.BlockSpec((TM, Cout), lambda i: (i, 0)),
                   pl.BlockSpec((1, 2, Cout), lambda i: (i, 0, 0))],
        out_shape=(jax.ShapeDtypeStruct((M, Cout), jnp.bfloat16),
                   jax.ShapeDtypeStruct((G1, 2, Cout), jnp.float32)),
        compiler_params=cp,
    )(y2raw.reshape(M, CMID), ss2, w3)
    ss3 = _scale_shift(jnp.sum(st3, axis=0), params["g3"], params["be3"], M)

    # -- stage 4: bn3 + residual add (bf16 residual) + ReLU -------------------
    out2d = pl.pallas_call(
        _bn_residual_relu_kernel,
        grid=(G1,),
        in_specs=[pl.BlockSpec((TM, Cout), lambda i: (i, 0)),
                  pl.BlockSpec((2, Cout), lambda i: (0, 0)),
                  pl.BlockSpec((TM, Cout), lambda i: (i, 0))],
        out_specs=pl.BlockSpec((TM, Cout), lambda i: (i, 0)),
        out_shape=jax.ShapeDtypeStruct((M, Cout), jnp.float32),
        compiler_params=cp,
    )(y3raw, ss3, x2d)

    # TODO(synk): the module interface is NCHW; keeping NHWC end-to-end across
    # the network would drop this transpose and the input one entirely.
    return jnp.transpose(out2d.reshape(N, H, W, Cout), (0, 3, 1, 2))


# ----------------------------------------------------------------------------
# Pure-JAX reference (lax.conv, f32) for correctness checking
# ----------------------------------------------------------------------------
def _reference_forward(x_nchw, params):
    x = jnp.transpose(x_nchw, (0, 2, 3, 1)).astype(jnp.float32)

    def conv(x, w_hwio, b, stride=1, pad=0):
        y = jax.lax.conv_general_dilated(
            x, w_hwio, (stride, stride), [(pad, pad), (pad, pad)],
            dimension_numbers=("NHWC", "HWIO", "NHWC"))
        return y + b

    def bn(y, g, be):
        mean = jnp.mean(y, axis=(0, 1, 2), keepdims=True)
        var = jnp.mean(jnp.square(y - mean), axis=(0, 1, 2), keepdims=True)
        return (y - mean) / jnp.sqrt(var + EPS) * g + be

    y = jax.nn.relu(bn(conv(x, params["w1"][None, None], params["b1"]),
                       params["g1"], params["be1"]))
    y = jax.nn.relu(bn(conv(y, params["w2"], params["b2"], 1, 1),
                       params["g2"], params["be2"]))
    y = bn(conv(y, params["w3"][None, None], params["b3"]),
           params["g3"], params["be3"])
    y = jax.nn.relu(y + x)
    return jnp.transpose(y, (0, 3, 1, 2))


def init_params(key, input_channels, num_channels):
    ks = jax.random.split(key, 6)
    return {
        # conv1: 1x1, Cin -> 64   (stored as (Cin, 64) matmul weight)
        "w1": jax.random.normal(ks[0], (input_channels, 64), jnp.float32) * 0.1,
        "b1": jax.random.normal(ks[1], (64,), jnp.float32) * 0.1,
        # conv2: 3x3, 64 -> 64    (stored as (3, 3, 64, 64) = HWIO)
        "w2": jax.random.normal(ks[2], (3, 3, 64, 64), jnp.float32) * 0.05,
        "b2": jax.random.normal(ks[3], (64,), jnp.float32) * 0.1,
        # conv3: 1x1, 64 -> Cout
        "w3": jax.random.normal(ks[4], (64, num_channels), jnp.float32) * 0.1,
        "b3": jax.random.normal(ks[5], (num_channels,), jnp.float32) * 0.1,
        # BatchNorm affine params at PyTorch default init (gamma=1, beta=0)
        "g1": jnp.ones((64,), jnp.float32), "be1": jnp.zeros((64,), jnp.float32),
        "g2": jnp.ones((64,), jnp.float32), "be2": jnp.zeros((64,), jnp.float32),
        "g3": jnp.ones((num_channels,), jnp.float32),
        "be3": jnp.zeros((num_channels,), jnp.float32),
    }


if __name__ == "__main__":
    key = jax.random.PRNGKey(0)
    k_x, k_p = jax.random.split(key)

    N, C, H, W = 2, 4, 16, 16           # input_channels = num_channels = 4, strides = 1
    x = jax.random.normal(k_x, (N, C, H, W), jnp.float32)
    params = init_params(k_p, input_channels=C, num_channels=C)

    fwd = jax.jit(bottleneck_forward)
    out = jax.block_until_ready(fwd(x, params))

    ref = jax.block_until_ready(_reference_forward(x, params))
    assert out.shape == (N, C, H, W)
    # Tolerance accounts for bf16 MXU operands, bf16 intermediate storage and a
    # bf16 residual versus the all-f32 lax.conv reference.
    max_err = float(jnp.max(jnp.abs(out - ref)))
    assert jnp.allclose(out, ref, atol=7.5e-2, rtol=7.5e-2), (
        f"max abs err {max_err}")

    print("KERNEL_OK")
</pallas_src>

<mosaic_0001>
module attributes {stable_mosaic.version = 11 : i64} {
  func.func @_conv1x1_stats_kernel(%arg0: i32, %arg1: memref<512x4xbf16, #tpu.memory_space<vmem>>, %arg2: memref<4x64xbf16, #tpu.memory_space<vmem>>, %arg3: memref<512x64xbf16, #tpu.memory_space<vmem>>, %arg4: memref<1x2x64xf32, #tpu.memory_space<vmem>>) attributes {dimension_semantics = [#tpu.dimension_semantics<parallel>], iteration_bounds = array<i64: 1>, scalar_prefetch = 0 : i64, scratch_operands = 0 : i64, tpu.core_type = #tpu.core_type<tc>, window_params = [{transform_indices = @transform_0, window_bounds = array<i64: 512, 4>}, {pipeline_mode = #tpu.pipeline_mode<synchronous>, transform_indices = @transform_1, window_bounds = array<i64: 4, 64>}, {transform_indices = @transform_2, window_bounds = array<i64: 512, 64>}, {transform_indices = @transform_3, window_bounds = array<i64: 1, 2, 64>}]} {
    %c0 = arith.constant 0 : index
    %c0_0 = arith.constant 0 : index
    %0 = vector.load %arg1[%c0, %c0_0] : memref<512x4xbf16, #tpu.memory_space<vmem>>, vector<512x4xbf16>
    %1 = arith.extf %0 : vector<512x4xbf16> to vector<512x4xf32>
    %c0_1 = arith.constant 0 : index
    %c0_2 = arith.constant 0 : index
    %2 = vector.load %arg2[%c0_1, %c0_2] : memref<4x64xbf16, #tpu.memory_space<vmem>>, vector<4x64xbf16>
    %3 = arith.extf %2 : vector<4x64xbf16> to vector<4x64xf32>
    %4 = vector.extract_strided_slice %1 {offsets = [0, 0], sizes = [512, 1], strides = [1, 1]} : vector<512x4xf32> to vector<512x1xf32>
    %5 = vector.extract_strided_slice %3 {offsets = [0, 0], sizes = [1, 64], strides = [1, 1]} : vector<4x64xf32> to vector<1x64xf32>
    %6 = vector.broadcast %4 : vector<512x1xf32> to vector<512x64xf32>
    %7 = vector.broadcast %5 : vector<1x64xf32> to vector<512x64xf32>
    %8 = arith.mulf %6, %7 : vector<512x64xf32>
    %9 = vector.extract_strided_slice %1 {offsets = [0, 1], sizes = [512, 1], strides = [1, 1]} : vector<512x4xf32> to vector<512x1xf32>
    %10 = vector.extract_strided_slice %3 {offsets = [1, 0], sizes = [1, 64], strides = [1, 1]} : vector<4x64xf32> to vector<1x64xf32>
    %11 = vector.broadcast %9 : vector<512x1xf32> to vector<512x64xf32>
    %12 = vector.broadcast %10 : vector<1x64xf32> to vector<512x64xf32>
    %13 = arith.mulf %11, %12 : vector<512x64xf32>
    %14 = arith.addf %8, %13 : vector<512x64xf32>
    %15 = vector.extract_strided_slice %1 {offsets = [0, 2], sizes = [512, 1], strides = [1, 1]} : vector<512x4xf32> to vector<512x1xf32>
    %16 = vector.extract_strided_slice %3 {offsets = [2, 0], sizes = [1, 64], strides = [1, 1]} : vector<4x64xf32> to vector<1x64xf32>
    %17 = vector.broadcast %15 : vector<512x1xf32> to vector<512x64xf32>
    %18 = vector.broadcast %16 : vector<1x64xf32> to vector<512x64xf32>
    %19 = arith.mulf %17, %18 : vector<512x64xf32>
    %20 = arith.addf %14, %19 : vector<512x64xf32>
    %21 = vector.extract_strided_slice %1 {offsets = [0, 3], sizes = [512, 1], strides = [1, 1]} : vector<512x4xf32> to vector<512x1xf32>
    %22 = vector.extract_strided_slice %3 {offsets = [3, 0], sizes = [1, 64], strides = [1, 1]} : vector<4x64xf32> to vector<1x64xf32>
    %23 = vector.broadcast %21 : vector<512x1xf32> to vector<512x64xf32>
    %24 = vector.broadcast %22 : vector<1x64xf32> to vector<512x64xf32>
    %25 = arith.mulf %23, %24 : vector<512x64xf32>
    %26 = arith.addf %20, %25 : vector<512x64xf32>
    %27 = arith.truncf %26 : vector<512x64xf32> to vector<512x64xbf16>
    %c0_3 = arith.constant 0 : index
    %c0_4 = arith.constant 0 : index
    %28 = vector.load %arg3[%c0_3, %c0_4] : memref<512x64xbf16, #tpu.memory_space<vmem>>, vector<512x64xbf16>
    tpu.vector_store %arg3[%c0_3, %c0_4], %27 {strides = array<i32>} : memref<512x64xbf16, #tpu.memory_space<vmem>>, vector<512x64xbf16>,
    %29 = arith.mulf %26, %26 : vector<512x64xf32>
    %cst = arith.constant dense<0.000000e+00> : vector<64xf32>
    %30 = vector.multi_reduction <add>, %26, %cst [0] : vector<512x64xf32> to vector<64xf32>
    %31 = vector.shape_cast %30 : vector<64xf32> to vector<1x64xf32>
    %cst_5 = arith.constant dense<0.000000e+00> : vector<64xf32>
    %32 = vector.multi_reduction <add>, %29, %cst_5 [0] : vector<512x64xf32> to vector<64xf32>
    %33 = vector.shape_cast %32 : vector<64xf32> to vector<1x64xf32>
    %34 = tpu.concatenate %31, %33 in 0 : vector<1x64xf32>, vector<1x64xf32> -> vector<2x64xf32>
    %35 = vector.shape_cast %34 : vector<2x64xf32> to vector<1x2x64xf32>
    %c0_6 = arith.constant 0 : index
    %c0_7 = arith.constant 0 : index
    %c0_8 = arith.constant 0 : index
    %36 = vector.load %arg4[%c0_6, %c0_7, %c0_8] : memref<1x2x64xf32, #tpu.memory_space<vmem>>, vector<1x2x64xf32>
    tpu.vector_store %arg4[%c0_6, %c0_7, %c0_8], %35 {strides = array<i32>} : memref<1x2x64xf32, #tpu.memory_space<vmem>>, vector<1x2x64xf32>,
    return
  }
  func.func @transform_0(%arg0: i32) -> (i32, i32) {
    %c0_i32 = arith.constant 0 : i32
    %c0_i32_0 = arith.constant 0 : i32
    return %arg0, %c0_i32 : i32, i32
  }
  func.func @transform_1(%arg0: i32) -> (i32, i32) {
    %c0_i32 = arith.constant 0 : i32
    %c0_i32_0 = arith.constant 0 : i32
    %c0_i32_1 = arith.constant 0 : i32
    return %c0_i32, %c0_i32_0 : i32, i32
  }
  func.func @transform_2(%arg0: i32) -> (i32, i32) {
    %c0_i32 = arith.constant 0 : i32
    %c0_i32_0 = arith.constant 0 : i32
    return %arg0, %c0_i32 : i32, i32
  }
  func.func @transform_3(%arg0: i32) -> (i32, i32, i32) {
    %c0_i32 = arith.constant 0 : i32
    %c0_i32_0 = arith.constant 0 : i32
    %c0_i32_1 = arith.constant 0 : i32
    return %arg0, %c0_i32, %c0_i32_0 : i32, i32, i32
  }
}

module attributes {stable_mosaic.version = 11 : i64} {
  func.func @_conv3x3_stats_kernel(%arg0: i32, %arg1: memref<1x16x16x64xbf16, #tpu.memory_space<vmem>>, %arg2: memref<2x64xf32, #tpu.memory_space<vmem>>, %arg3: memref<3x64x192xbf16, #tpu.memory_space<vmem>>, %arg4: memref<1x16x16x64xbf16, #tpu.memory_space<vmem>>, %arg5: memref<1x2x64xf32, #tpu.memory_space<vmem>>, %arg6: memref<1x18x24x64xbf16, #tpu.memory_space<vmem>>) attributes {dimension_semantics = [#tpu.dimension_semantics<parallel>], iteration_bounds = array<i64: 2>, scalar_prefetch = 0 : i64, scratch_operands = 1 : i64, tpu.core_type = #tpu.core_type<tc>, window_params = [{transform_indices = @transform_0, window_bounds = array<i64: 1, 16, 16, 64>}, {pipeline_mode = #tpu.pipeline_mode<synchronous>, transform_indices = @transform_1, window_bounds = array<i64: 2, 64>}, {pipeline_mode = #tpu.pipeline_mode<synchronous>, transform_indices = @transform_2, window_bounds = array<i64: 3, 64, 192>}, {transform_indices = @transform_3, window_bounds = array<i64: 1, 16, 16, 64>}, {transform_indices = @transform_4, window_bounds = array<i64: 1, 2, 64>}]} {
    %cst = arith.constant 0.000000e+00 : bf16
    %0 = vector.broadcast %cst : bf16 to vector<1x1x24x64xbf16>
    %c0 = arith.constant 0 : index
    %c0_0 = arith.constant 0 : index
    %c0_1 = arith.constant 0 : index
    %c0_2 = arith.constant 0 : index
    %1 = vector.load %arg6[%c0, %c0_0, %c0_1, %c0_2] : memref<1x18x24x64xbf16, #tpu.memory_space<vmem>>, vector<1x1x24x64xbf16>
    tpu.vector_store %arg6[%c0, %c0_0, %c0_1, %c0_2], %0 {strides = array<i32>} : memref<1x18x24x64xbf16, #tpu.memory_space<vmem>>, vector<1x1x24x64xbf16>,
    %c0_3 = arith.constant 0 : index
    %c17 = arith.constant 17 : index
    %c0_4 = arith.constant 0 : index
    %c0_5 = arith.constant 0 : index
    %2 = vector.load %arg6[%c0_3, %c17, %c0_4, %c0_5] : memref<1x18x24x64xbf16, #tpu.memory_space<vmem>>, vector<1x1x24x64xbf16>
    tpu.vector_store %arg6[%c0_3, %c17, %c0_4, %c0_5], %0 {strides = array<i32>} : memref<1x18x24x64xbf16, #tpu.memory_space<vmem>>, vector<1x1x24x64xbf16>,
    %cst_6 = arith.constant 0.000000e+00 : bf16
    %3 = vector.broadcast %cst_6 : bf16 to vector<1x16x1x64xbf16>
    %c0_7 = arith.constant 0 : index
    %c1 = arith.constant 1 : index
    %c0_8 = arith.constant 0 : index
    %c0_9 = arith.constant 0 : index
    %4 = vector.load %arg6[%c0_7, %c1, %c0_8, %c0_9] : memref<1x18x24x64xbf16, #tpu.memory_space<vmem>>, vector<1x16x1x64xbf16>
    tpu.vector_store %arg6[%c0_7, %c1, %c0_8, %c0_9], %3 {strides = array<i32>} : memref<1x18x24x64xbf16, #tpu.memory_space<vmem>>, vector<1x16x1x64xbf16>,
    %c0_10 = arith.constant 0 : index
    %c1_11 = arith.constant 1 : index
    %c17_12 = arith.constant 17 : index
    %c0_13 = arith.constant 0 : index
    %5 = vector.load %arg6[%c0_10, %c1_11, %c17_12, %c0_13] : memref<1x18x24x64xbf16, #tpu.memory_space<vmem>>, vector<1x16x1x64xbf16>
    tpu.vector_store %arg6[%c0_10, %c1_11, %c17_12, %c0_13], %3 {strides = array<i32>} : memref<1x18x24x64xbf16, #tpu.memory_space<vmem>>, vector<1x16x1x64xbf16>,
    %c0_14 = arith.constant 0 : index
    %c0_15 = arith.constant 0 : index
    %c0_16 = arith.constant 0 : index
    %c0_17 = arith.constant 0 : index
    %6 = vector.load %arg1[%c0_14, %c0_15, %c0_16, %c0_17] : memref<1x16x16x64xbf16, #tpu.memory_space<vmem>>, vector<1x16x16x64xbf16>
    %7 = arith.extf %6 : vector<1x16x16x64xbf16> to vector<1x16x16x64xf32>
    %c0_18 = arith.constant 0 : index
    %c0_19 = arith.constant 0 : index
    %8 = vector.load %arg2[%c0_18, %c0_19] : memref<2x64xf32, #tpu.memory_space<vmem>>, vector<1x64xf32>
    %9 = vector.shape_cast %8 : vector<1x64xf32> to vector<1x1x1x64xf32>
    %10 = vector.broadcast %9 : vector<1x1x1x64xf32> to vector<1x16x16x64xf32>
    %11 = arith.mulf %7, %10 : vector<1x16x16x64xf32>
    %c1_20 = arith.constant 1 : index
    %c0_21 = arith.constant 0 : index
    %12 = vector.load %arg2[%c1_20, %c0_21] : memref<2x64xf32, #tpu.memory_space<vmem>>, vector<1x64xf32>
    %13 = vector.shape_cast %12 : vector<1x64xf32> to vector<1x1x1x64xf32>
    %14 = vector.broadcast %13 : vector<1x1x1x64xf32> to vector<1x16x16x64xf32>
    %15 = arith.addf %11, %14 : vector<1x16x16x64xf32>
    %cst_22 = arith.constant 0.000000e+00 : f32
    %16 = vector.broadcast %cst_22 : f32 to vector<1x16x16x64xf32>
    %17 = arith.maximumf %15, %16 : vector<1x16x16x64xf32>
    %18 = arith.truncf %17 : vector<1x16x16x64xf32> to vector<1x16x16x64xbf16>
    %c0_23 = arith.constant 0 : index
    %c1_24 = arith.constant 1 : index
    %c1_25 = arith.constant 1 : index
    %c0_26 = arith.constant 0 : index
    %19 = vector.load %arg6[%c0_23, %c1_24, %c1_25, %c0_26] : memref<1x18x24x64xbf16, #tpu.memory_space<vmem>>, vector<1x16x16x64xbf16>
    tpu.vector_store %arg6[%c0_23, %c1_24, %c1_25, %c0_26], %18 {strides = array<i32>} : memref<1x18x24x64xbf16, #tpu.memory_space<vmem>>, vector<1x16x16x64xbf16>,
    %cst_27 = arith.constant 0.000000e+00 : f32
    %20 = vector.broadcast %cst_27 : f32 to vector<384x192xf32>
    %c0_28 = arith.constant 0 : index
    %c0_29 = arith.constant 0 : index
    %c0_30 = arith.constant 0 : index
    %c0_31 = arith.constant 0 : index
    %21 = vector.load %arg6[%c0_28, %c0_29, %c0_30, %c0_31] : memref<1x18x24x64xbf16, #tpu.memory_space<vmem>>, vector<1x16x24x64xbf16>
    %22 = vector.shape_cast %21 : vector<1x16x24x64xbf16> to vector<384x64xbf16>
    %c0_32 = arith.constant 0 : index
    %c0_33 = arith.constant 0 : index
    %c0_34 = arith.constant 0 : index
    %23 = vector.load %arg3[%c0_32, %c0_33, %c0_34] : memref<3x64x192xbf16, #tpu.memory_space<vmem>>, vector<1x64x192xbf16>
    %24 = vector.shape_cast %23 : vector<1x64x192xbf16> to vector<64x192xbf16>
    %cst_35 = arith.constant dense<0.000000e+00> : vector<384x192xf32>
    %25 = tpu.matmul %22, %24, %cst_35 {dimension_numbers = #tpu.dot_dimension_numbers<[1], [0], [0], [1], [0, 0, 1, 1], [], []>} : vector<384x64xbf16>, vector<64x192xbf16>, vector<384x192xf32> -> vector<384x192xf32>
    %26 = arith.addf %20, %25 : vector<384x192xf32>
    %c0_36 = arith.constant 0 : index
    %c1_37 = arith.constant 1 : index
    %c0_38 = arith.constant 0 : index
    %c0_39 = arith.constant 0 : index
    %27 = vector.load %arg6[%c0_36, %c1_37, %c0_38, %c0_39] : memref<1x18x24x64xbf16, #tpu.memory_space<vmem>>, vector<1x16x24x64xbf16>
    %28 = vector.shape_cast %27 : vector<1x16x24x64xbf16> to vector<384x64xbf16>
    %c1_40 = arith.constant 1 : index
    %c0_41 = arith.constant 0 : index
    %c0_42 = arith.constant 0 : index
    %29 = vector.load %arg3[%c1_40, %c0_41, %c0_42] : memref<3x64x192xbf16, #tpu.memory_space<vmem>>, vector<1x64x192xbf16>
    %30 = vector.shape_cast %29 : vector<1x64x192xbf16> to vector<64x192xbf16>
    %cst_43 = arith.constant dense<0.000000e+00> : vector<384x192xf32>
    %31 = tpu.matmul %28, %30, %cst_43 {dimension_numbers = #tpu.dot_dimension_numbers<[1], [0], [0], [1], [0, 0, 1, 1], [], []>} : vector<384x64xbf16>, vector<64x192xbf16>, vector<384x192xf32> -> vector<384x192xf32>
    %32 = arith.addf %26, %31 : vector<384x192xf32>
    %c0_44 = arith.constant 0 : index
    %c2 = arith.constant 2 : index
    %c0_45 = arith.constant 0 : index
    %c0_46 = arith.constant 0 : index
    %33 = vector.load %arg6[%c0_44, %c2, %c0_45, %c0_46] : memref<1x18x24x64xbf16, #tpu.memory_space<vmem>>, vector<1x16x24x64xbf16>
    %34 = vector.shape_cast %33 : vector<1x16x24x64xbf16> to vector<384x64xbf16>
    %c2_47 = arith.constant 2 : index
    %c0_48 = arith.constant 0 : index
    %c0_49 = arith.constant 0 : index
    %35 = vector.load %arg3[%c2_47, %c0_48, %c0_49] : memref<3x64x192xbf16, #tpu.memory_space<vmem>>, vector<1x64x192xbf16>
    %36 = vector.shape_cast %35 : vector<1x64x192xbf16> to vector<64x192xbf16>
    %cst_50 = arith.constant dense<0.000000e+00> : vector<384x192xf32>
    %37 = tpu.matmul %34, %36, %cst_50 {dimension_numbers = #tpu.dot_dimension_numbers<[1], [0], [0], [1], [0, 0, 1, 1], [], []>} : vector<384x64xbf16>, vector<64x192xbf16>, vector<384x192xf32> -> vector<384x192xf32>
    %38 = arith.addf %32, %37 : vector<384x192xf32>
    %39 = vector.shape_cast %38 : vector<384x192xf32> to vector<1x16x24x192xf32>
    %40 = vector.extract_strided_slice %39 {offsets = [0, 0, 0, 0], sizes = [1, 16, 16, 64], strides = [1, 1, 1, 1]} : vector<1x16x24x192xf32> to vector<1x16x16x64xf32>
    %41 = vector.extract_strided_slice %39 {offsets = [0, 0, 1, 64], sizes = [1, 16, 16, 64], strides = [1, 1, 1, 1]} : vector<1x16x24x192xf32> to vector<1x16x16x64xf32>
    %42 = arith.addf %40, %41 : vector<1x16x16x64xf32>
    %43 = vector.extract_strided_slice %39 {offsets = [0, 0, 2, 128], sizes = [1, 16, 16, 64], strides = [1, 1, 1, 1]} : vector<1x16x24x192xf32> to vector<1x16x16x64xf32>
    %44 = arith.addf %42, %43 : vector<1x16x16x64xf32>
    %45 = arith.truncf %44 : vector<1x16x16x64xf32> to vector<1x16x16x64xbf16>
    %c0_51 = arith.constant 0 : index
    %c0_52 = arith.constant 0 : index
    %c0_53 = arith.constant 0 : index
    %c0_54 = arith.constant 0 : index
    %46 = vector.load %arg4[%c0_51, %c0_52, %c0_53, %c0_54] : memref<1x16x16x64xbf16, #tpu.memory_space<vmem>>, vector<1x16x16x64xbf16>
    tpu.vector_store %arg4[%c0_51, %c0_52, %c0_53, %c0_54], %45 {strides = array<i32>} : memref<1x16x16x64xbf16, #tpu.memory_space<vmem>>, vector<1x16x16x64xbf16>,
    %47 = arith.mulf %44, %44 : vector<1x16x16x64xf32>
    %cst_55 = arith.constant dense<0.000000e+00> : vector<16x16x64xf32>
    %48 = vector.multi_reduction <add>, %44, %cst_55 [0] : vector<1x16x16x64xf32> to vector<16x16x64xf32>
    %cst_56 = arith.constant dense<0.000000e+00> : vector<16x16x64xf32>
    %49 = vector.multi_reduction <add>, %47, %cst_56 [0] : vector<1x16x16x64xf32> to vector<16x16x64xf32>
    %cst_57 = arith.constant dense<0.000000e+00> : vector<16x64xf32>
    %50 = vector.multi_reduction <add>, %48, %cst_57 [0] : vector<16x16x64xf32> to vector<16x64xf32>
    %cst_58 = arith.constant dense<0.000000e+00> : vector<16x64xf32>
    %51 = vector.multi_reduction <add>, %49, %cst_58 [0] : vector<16x16x64xf32> to vector<16x64xf32>
    %cst_59 = arith.constant dense<0.000000e+00> : vector<64xf32>
    %52 = vector.multi_reduction <add>, %50, %cst_59 [0] : vector<16x64xf32> to vector<64xf32>
    %53 = vector.shape_cast %52 : vector<64xf32> to vector<1x64xf32>
    %cst_60 = arith.constant dense<0.000000e+00> : vector<64xf32>
    %54 = vector.multi_reduction <add>, %51, %cst_60 [0] : vector<16x64xf32> to vector<64xf32>
    %55 = vector.shape_cast %54 : vector<64xf32> to vector<1x64xf32>
    %56 = tpu.concatenate %53, %55 in 0 : vector<1x64xf32>, vector<1x64xf32> -> vector<2x64xf32>
    %57 = vector.shape_cast %56 : vector<2x64xf32> to vector<1x2x64xf32>
    %c0_61 = arith.constant 0 : index
    %c0_62 = arith.constant 0 : index
    %c0_63 = arith.constant 0 : index
    %58 = vector.load %arg5[%c0_61, %c0_62, %c0_63] : memref<1x2x64xf32, #tpu.memory_space<vmem>>, vector<1x2x64xf32>
    tpu.vector_store %arg5[%c0_61, %c0_62, %c0_63], %57 {strides = array<i32>} : memref<1x2x64xf32, #tpu.memory_space<vmem>>, vector<1x2x64xf32>,
    return
  }
  func.func @transform_0(%arg0: i32) -> (i32, i32, i32, i32) {
    %c0_i32 = arith.constant 0 : i32
    %c0_i32_0 = arith.constant 0 : i32
    %c0_i32_1 = arith.constant 0 : i32
    %c0_i32_2 = arith.constant 0 : i32
    return %arg0, %c0_i32, %c0_i32_0, %c0_i32_1 : i32, i32, i32, i32
  }
  func.func @transform_1(%arg0: i32) -> (i32, i32) {
    %c0_i32 = arith.constant 0 : i32
    %c0_i32_0 = arith.constant 0 : i32
    %c0_i32_1 = arith.constant 0 : i32
    return %c0_i32, %c0_i32_0 : i32, i32
  }
  func.func @transform_2(%arg0: i32) -> (i32, i32, i32) {
    %c0_i32 = arith.constant 0 : i32
    %c0_i32_0 = arith.constant 0 : i32
    %c0_i32_1 = arith.constant 0 : i32
    %c0_i32_2 = arith.constant 0 : i32
    return %c0_i32, %c0_i32_0, %c0_i32_1 : i32, i32, i32
  }
  func.func @transform_3(%arg0: i32) -> (i32, i32, i32, i32) {
    %c0_i32 = arith.constant 0 : i32
    %c0_i32_0 = arith.constant 0 : i32
    %c0_i32_1 = arith.constant 0 : i32
    %c0_i32_2 = arith.constant 0 : i32
    return %arg0, %c0_i32, %c0_i32_0, %c0_i32_1 : i32, i32, i32, i32
  }
  func.func @transform_4(%arg0: i32) -> (i32, i32, i32) {
    %c0_i32 = arith.constant 0 : i32
    %c0_i32_0 = arith.constant 0 : i32
    %c0_i32_1 = arith.constant 0 : i32
    return %arg0, %c0_i32, %c0_i32_0 : i32, i32, i32
  }
}

module attributes {stable_mosaic.version = 11 : i64} {
  func.func @_bnrelu_conv1x1_stats_kernel(%arg0: i32, %arg1: memref<512x64xbf16, #tpu.memory_space<vmem>>, %arg2: memref<2x64xf32, #tpu.memory_space<vmem>>, %arg3: memref<64x4xbf16, #tpu.memory_space<vmem>>, %arg4: memref<512x4xbf16, #tpu.memory_space<vmem>>, %arg5: memref<1x2x4xf32, #tpu.memory_space<vmem>>) attributes {dimension_semantics = [#tpu.dimension_semantics<parallel>], iteration_bounds = array<i64: 1>, scalar_prefetch = 0 : i64, scratch_operands = 0 : i64, tpu.core_type = #tpu.core_type<tc>, window_params = [{transform_indices = @transform_0, window_bounds = array<i64: 512, 64>}, {pipeline_mode = #tpu.pipeline_mode<synchronous>, transform_indices = @transform_1, window_bounds = array<i64: 2, 64>}, {pipeline_mode = #tpu.pipeline_mode<synchronous>, transform_indices = @transform_2, window_bounds = array<i64: 64, 4>}, {transform_indices = @transform_3, window_bounds = array<i64: 512, 4>}, {transform_indices = @transform_4, window_bounds = array<i64: 1, 2, 4>}]} {
    %c0 = arith.constant 0 : index
    %c0_0 = arith.constant 0 : index
    %0 = vector.load %arg1[%c0, %c0_0] : memref<512x64xbf16, #tpu.memory_space<vmem>>, vector<512x64xbf16>
    %1 = arith.extf %0 : vector<512x64xbf16> to vector<512x64xf32>
    %c0_1 = arith.constant 0 : index
    %c0_2 = arith.constant 0 : index
    %2 = vector.load %arg2[%c0_1, %c0_2] : memref<2x64xf32, #tpu.memory_space<vmem>>, vector<1x64xf32>
    %3 = vector.broadcast %2 : vector<1x64xf32> to vector<512x64xf32>
    %4 = arith.mulf %1, %3 : vector<512x64xf32>
    %c1 = arith.constant 1 : index
    %c0_3 = arith.constant 0 : index
    %5 = vector.load %arg2[%c1, %c0_3] : memref<2x64xf32, #tpu.memory_space<vmem>>, vector<1x64xf32>
    %6 = vector.broadcast %5 : vector<1x64xf32> to vector<512x64xf32>
    %7 = arith.addf %4, %6 : vector<512x64xf32>
    %cst = arith.constant 0.000000e+00 : f32
    %8 = vector.broadcast %cst : f32 to vector<512x64xf32>
    %9 = arith.maximumf %7, %8 : vector<512x64xf32>
    %10 = arith.truncf %9 : vector<512x64xf32> to vector<512x64xbf16>
    %c0_4 = arith.constant 0 : index
    %c0_5 = arith.constant 0 : index
    %11 = vector.load %arg3[%c0_4, %c0_5] : memref<64x4xbf16, #tpu.memory_space<vmem>>, vector<64x4xbf16>
    %cst_6 = arith.constant dense<0.000000e+00> : vector<512x4xf32>
    %12 = tpu.matmul %10, %11, %cst_6 {dimension_numbers = #tpu.dot_dimension_numbers<[1], [0], [0], [1], [0, 0, 1, 1], [], []>} : vector<512x64xbf16>, vector<64x4xbf16>, vector<512x4xf32> -> vector<512x4xf32>
    %13 = arith.truncf %12 : vector<512x4xf32> to vector<512x4xbf16>
    %c0_7 = arith.constant 0 : index
    %c0_8 = arith.constant 0 : index
    %14 = vector.load %arg4[%c0_7, %c0_8] : memref<512x4xbf16, #tpu.memory_space<vmem>>, vector<512x4xbf16>
    tpu.vector_store %arg4[%c0_7, %c0_8], %13 {strides = array<i32>} : memref<512x4xbf16, #tpu.memory_space<vmem>>, vector<512x4xbf16>,
    %15 = arith.mulf %12, %12 : vector<512x4xf32>
    %cst_9 = arith.constant dense<0.000000e+00> : vector<4xf32>
    %16 = vector.multi_reduction <add>, %12, %cst_9 [0] : vector<512x4xf32> to vector<4xf32>
    %17 = vector.shape_cast %16 : vector<4xf32> to vector<1x4xf32>
    %cst_10 = arith.constant dense<0.000000e+00> : vector<4xf32>
    %18 = vector.multi_reduction <add>, %15, %cst_10 [0] : vector<512x4xf32> to vector<4xf32>
    %19 = vector.shape_cast %18 : vector<4xf32> to vector<1x4xf32>
    %20 = tpu.concatenate %17, %19 in 0 : vector<1x4xf32>, vector<1x4xf32> -> vector<2x4xf32>
    %21 = vector.shape_cast %20 : vector<2x4xf32> to vector<1x2x4xf32>
    %c0_11 = arith.constant 0 : index
    %c0_12 = arith.constant 0 : index
    %c0_13 = arith.constant 0 : index
    %22 = vector.load %arg5[%c0_11, %c0_12, %c0_13] : memref<1x2x4xf32, #tpu.memory_space<vmem>>, vector<1x2x4xf32>
    tpu.vector_store %arg5[%c0_11, %c0_12, %c0_13], %21 {strides = array<i32>} : memref<1x2x4xf32, #tpu.memory_space<vmem>>, vector<1x2x4xf32>,
    return
  }
  func.func @transform_0(%arg0: i32) -> (i32, i32) {
    %c0_i32 = arith.constant 0 : i32
    %c0_i32_0 = arith.constant 0 : i32
    return %arg0, %c0_i32 : i32, i32
  }
  func.func @transform_1(%arg0: i32) -> (i32, i32) {
    %c0_i32 = arith.constant 0 : i32
    %c0_i32_0 = arith.constant 0 : i32
    %c0_i32_1 = arith.constant 0 : i32
    return %c0_i32, %c0_i32_0 : i32, i32
  }
  func.func @transform_2(%arg0: i32) -> (i32, i32) {
    %c0_i32 = arith.constant 0 : i32
    %c0_i32_0 = arith.constant 0 : i32
    %c0_i32_1 = arith.constant 0 : i32
    return %c0_i32, %c0_i32_0 : i32, i32
  }
  func.func @transform_3(%arg0: i32) -> (i32, i32) {
    %c0_i32 = arith.constant 0 : i32
    %c0_i32_0 = arith.constant 0 : i32
    return %arg0, %c0_i32 : i32, i32
  }
  func.func @transform_4(%arg0: i32) -> (i32, i32, i32) {
    %c0_i32 = arith.constant 0 : i32
    %c0_i32_0 = arith.constant 0 : i32
    %c0_i32_1 = arith.constant 0 : i32
    return %arg0, %c0_i32, %c0_i32_0 : i32, i32, i32
  }
}

module attributes {stable_mosaic.version = 11 : i64} {
  func.func @_bn_residual_relu_kernel(%arg0: i32, %arg1: memref<512x4xbf16, #tpu.memory_space<vmem>>, %arg2: memref<2x4xf32, #tpu.memory_space<vmem>>, %arg3: memref<512x4xbf16, #tpu.memory_space<vmem>>, %arg4: memref<512x4xf32, #tpu.memory_space<vmem>>) attributes {dimension_semantics = [#tpu.dimension_semantics<parallel>], iteration_bounds = array<i64: 1>, scalar_prefetch = 0 : i64, scratch_operands = 0 : i64, tpu.core_type = #tpu.core_type<tc>, window_params = [{transform_indices = @transform_0, window_bounds = array<i64: 512, 4>}, {pipeline_mode = #tpu.pipeline_mode<synchronous>, transform_indices = @transform_1, window_bounds = array<i64: 2, 4>}, {transform_indices = @transform_2, window_bounds = array<i64: 512, 4>}, {transform_indices = @transform_3, window_bounds = array<i64: 512, 4>}]} {
    %c0 = arith.constant 0 : index
    %c0_0 = arith.constant 0 : index
    %0 = vector.load %arg1[%c0, %c0_0] : memref<512x4xbf16, #tpu.memory_space<vmem>>, vector<512x4xbf16>
    %1 = arith.extf %0 : vector<512x4xbf16> to vector<512x4xf32>
    %c0_1 = arith.constant 0 : index
    %c0_2 = arith.constant 0 : index
    %2 = vector.load %arg2[%c0_1, %c0_2] : memref<2x4xf32, #tpu.memory_space<vmem>>, vector<1x4xf32>
    %3 = vector.broadcast %2 : vector<1x4xf32> to vector<512x4xf32>
    %4 = arith.mulf %1, %3 : vector<512x4xf32>
    %c1 = arith.constant 1 : index
    %c0_3 = arith.constant 0 : index
    %5 = vector.load %arg2[%c1, %c0_3] : memref<2x4xf32, #tpu.memory_space<vmem>>, vector<1x4xf32>
    %6 = vector.broadcast %5 : vector<1x4xf32> to vector<512x4xf32>
    %7 = arith.addf %4, %6 : vector<512x4xf32>
    %c0_4 = arith.constant 0 : index
    %c0_5 = arith.constant 0 : index
    %8 = vector.load %arg3[%c0_4, %c0_5] : memref<512x4xbf16, #tpu.memory_space<vmem>>, vector<512x4xbf16>
    %9 = arith.extf %8 : vector<512x4xbf16> to vector<512x4xf32>
    %10 = arith.addf %7, %9 : vector<512x4xf32>
    %cst = arith.constant 0.000000e+00 : f32
    %11 = vector.broadcast %cst : f32 to vector<512x4xf32>
    %12 = arith.maximumf %10, %11 : vector<512x4xf32>
    %c0_6 = arith.constant 0 : index
    %c0_7 = arith.constant 0 : index
    %13 = vector.load %arg4[%c0_6, %c0_7] : memref<512x4xf32, #tpu.memory_space<vmem>>, vector<512x4xf32>
    tpu.vector_store %arg4[%c0_6, %c0_7], %12 {strides = array<i32>} : memref<512x4xf32, #tpu.memory_space<vmem>>, vector<512x4xf32>,
    return
  }
  func.func @transform_0(%arg0: i32) -> (i32, i32) {
    %c0_i32 = arith.constant 0 : i32
    %c0_i32_0 = arith.constant 0 : i32
    return %arg0, %c0_i32 : i32, i32
  }
  func.func @transform_1(%arg0: i32) -> (i32, i32) {
    %c0_i32 = arith.constant 0 : i32
    %c0_i32_0 = arith.constant 0 : i32
    %c0_i32_1 = arith.constant 0 : i32
    return %c0_i32, %c0_i32_0 : i32, i32
  }
  func.func @transform_2(%arg0: i32) -> (i32, i32) {
    %c0_i32 = arith.constant 0 : i32
    %c0_i32_0 = arith.constant 0 : i32
    return %arg0, %c0_i32 : i32, i32
  }
  func.func @transform_3(%arg0: i32) -> (i32, i32) {
    %c0_i32 = arith.constant 0 : i32
    %c0_i32_0 = arith.constant 0 : i32
    return %arg0, %c0_i32 : i32, i32
  }
}

</mosaic_0001>

<llo_original>
// kernel: bottleneck_forward.4
$region0: #{bottleneck_forward.4}
  #allocation0 [shape = 'u32[]', space=smem, size = 0x4, offset = 0x4, fixed_abs, tag = 'smem constant byte address 0x4 - core index']
  #allocation1 [shape = 'u32[144,128]{1,0:T(1,128)}', space=vmem, size = 0x12000, scoped, tag = 'internal scratch']
  %s0 = inlined_call_operand.vmem [shape: bf16[512,4], index: 0, kind: input, shape index: {}]
  %s1 = inlined_call_operand.vmem [shape: bf16[4,64], index: 1, kind: input, shape index: {}]
  %s2 = inlined_call_operand.vmem [shape: bf16[512,64], index: 2, kind: output, shape index: {0}]
  %s3 = inlined_call_operand.vmem [shape: f32[1,2,64], index: 3, kind: output, shape index: {1}]
  %4 = xla_tuple %s2, %s3
  %s5 = sld [smem:[#allocation0]]
  $region26: #{bottleneck_forward.4} parent=0
    _
  %s7 = ssub.s32 1, %s5
  %s8 = scalar_select 0, %s7, %s5
  // Predicated region
  $region2: #{bottleneck_forward.4} parent=0 // pred_check
    _
  $region3: #{bottleneck_forward.4} parent=0 // pred_check_branch
    %10 = sbr.rel (0) target = $region5
  $region4: #{bottleneck_forward.4} parent=0 // pred_region
    _
  $region5: #{bottleneck_forward.4} parent=0 // pred_fallthru
    _
  // Predicated region
  $region6: #{bottleneck_forward.4} parent=0 // pred_check
    _
  $region7: #{bottleneck_forward.4} parent=0 // pred_check_branch
    %12 = sbr.rel (0) target = $region9
  $region8: #{bottleneck_forward.4} parent=0 // pred_region
    _
  $region9: #{bottleneck_forward.4} parent=0 // pred_fallthru
    _
  %v13 = vld [vmem:[%s0] sm:$0xf]
  %v14 = vld [vmem:[%s0 + $0x4] sm:$0xf]
  %v15 = vld [vmem:[%s0 + $0x8] sm:$0xf]
  %v16 = vld [vmem:[%s0 + $0xc] sm:$0xf]
  %v17 = vld [vmem:[%s0 + $0x10] sm:$0xf]
  %v18 = vld [vmem:[%s0 + $0x14] sm:$0xf]
  %v19 = vld [vmem:[%s0 + $0x18] sm:$0xf]
  %v20 = vld [vmem:[%s0 + $0x1c] sm:$0xf]
  %v21 = vld [vmem:[%s0 + $0x20] sm:$0xf]
  %v22 = vld [vmem:[%s0 + $0x24] sm:$0xf]
  %v23 = vld [vmem:[%s0 + $0x28] sm:$0xf]
  %v24 = vld [vmem:[%s0 + $0x2c] sm:$0xf]
  %v25 = vld [vmem:[%s0 + $0x30] sm:$0xf]
  %v26 = vld [vmem:[%s0 + $0x34] sm:$0xf]
  %v27 = vld [vmem:[%s0 + $0x38] sm:$0xf]
  %v28 = vld [vmem:[%s0 + $0x3c] sm:$0xf]
  %v29 = vld [vmem:[%s0 + $0x40] sm:$0xf]
  %v30 = vld [vmem:[%s0 + $0x44] sm:$0xf]
  %v31 = vld [vmem:[%s0 + $0x48] sm:$0xf]
  %v32 = vld [vmem:[%s0 + $0x4c] sm:$0xf]
  %v33 = vld [vmem:[%s0 + $0x50] sm:$0xf]
  %v34 = vld [vmem:[%s0 + $0x54] sm:$0xf]
  %v35 = vld [vmem:[%s0 + $0x58] sm:$0xf]
  %v36 = vld [vmem:[%s0 + $0x5c] sm:$0xf]
  %v37 = vld [vmem:[%s0 + $0x60] sm:$0xf]
  %v38 = vld [vmem:[%s0 + $0x64] sm:$0xf]
  %v39 = vld [vmem:[%s0 + $0x68] sm:$0xf]
  %v40 = vld [vmem:[%s0 + $0x6c] sm:$0xf]
  %v41 = vld [vmem:[%s0 + $0x70] sm:$0xf]
  %v42 = vld [vmem:[%s0 + $0x74] sm:$0xf]
  %v43 = vld [vmem:[%s0 + $0x78] sm:$0xf]
  %v44 = vld [vmem:[%s0 + $0x7c] sm:$0xf]
  %v45 = vld [vmem:[%s0 + $0x80] sm:$0xf]
  %v46 = vld [vmem:[%s0 + $0x84] sm:$0xf]
  %v47 = vld [vmem:[%s0 + $0x88] sm:$0xf]
  %v48 = vld [vmem:[%s0 + $0x8c] sm:$0xf]
  %v49 = vld [vmem:[%s0 + $0x90] sm:$0xf]
  %v50 = vld [vmem:[%s0 + $0x94] sm:$0xf]
  %v51 = vld [vmem:[%s0 + $0x98] sm:$0xf]
  %v52 = vld [vmem:[%s0 + $0x9c] sm:$0xf]
  %v53 = vld [vmem:[%s0 + $0xa0] sm:$0xf]
  %v54 = vld [vmem:[%s0 + $0xa4] sm:$0xf]
  %v55 = vld [vmem:[%s0 + $0xa8] sm:$0xf]
  %v56 = vld [vmem:[%s0 + $0xac] sm:$0xf]
  %v57 = vld [vmem:[%s0 + $0xb0] sm:$0xf]
  %v58 = vld [vmem:[%s0 + $0xb4] sm:$0xf]
  %v59 = vld [vmem:[%s0 + $0xb8] sm:$0xf]
  %v60 = vld [vmem:[%s0 + $0xbc] sm:$0xf]
  %v61 = vld [vmem:[%s0 + $0xc0] sm:$0xf]
  %v62 = vld [vmem:[%s0 + $0xc4] sm:$0xf]
  %v63 = vld [vmem:[%s0 + $0xc8] sm:$0xf]
  %v64 = vld [vmem:[%s0 + $0xcc] sm:$0xf]
  %v65 = vld [vmem:[%s0 + $0xd0] sm:$0xf]
  %v66 = vld [vmem:[%s0 + $0xd4] sm:$0xf]
  %v67 = vld [vmem:[%s0 + $0xd8] sm:$0xf]
  %v68 = vld [vmem:[%s0 + $0xdc] sm:$0xf]
  %v69 = vld [vmem:[%s0 + $0xe0] sm:$0xf]
  %v70 = vld [vmem:[%s0 + $0xe4] sm:$0xf]
  %v71 = vld [vmem:[%s0 + $0xe8] sm:$0xf]
  %v72 = vld [vmem:[%s0 + $0xec] sm:$0xf]
  %v73 = vld [vmem:[%s0 + $0xf0] sm:$0xf]
  %v74 = vld [vmem:[%s0 + $0xf4] sm:$0xf]
  %v75 = vld [vmem:[%s0 + $0xf8] sm:$0xf]
  %v76 = vld [vmem:[%s0 + $0xfc] sm:$0xf]
  %v77 = vunpack.c.l.bf16 %v13
  %v78 = vunpack.c.l.bf16 %v14
  %v79 = vunpack.c.l.bf16 %v15
  %v80 = vunpack.c.l.bf16 %v16
  %v81 = vunpack.c.l.bf16 %v17
  %v82 = vunpack.c.l.bf16 %v18
  %v83 = vunpack.c.l.bf16 %v19
  %v84 = vunpack.c.l.bf16 %v20
  %v85 = vunpack.c.l.bf16 %v21
  %v86 = vunpack.c.l.bf16 %v22
  %v87 = vunpack.c.l.bf16 %v23
  %v88 = vunpack.c.l.bf16 %v24
  %v89 = vunpack.c.l.bf16 %v25
  %v90 = vunpack.c.l.bf16 %v26
  %v91 = vunpack.c.l.bf16 %v27
  %v92 = vunpack.c.l.bf16 %v28
  %v93 = vunpack.c.l.bf16 %v29
  %v94 = vunpack.c.l.bf16 %v30
  %v95 = vunpack.c.l.bf16 %v31
  %v96 = vunpack.c.l.bf16 %v32
  %v97 = vunpack.c.l.bf16 %v33
  %v98 = vunpack.c.l.bf16 %v34
  %v99 = vunpack.c.l.bf16 %v35
  %v100 = vunpack.c.l.bf16 %v36
  %v101 = vunpack.c.l.bf16 %v37
  %v102 = vunpack.c.l.bf16 %v38
  %v103 = vunpack.c.l.bf16 %v39
  %v104 = vunpack.c.l.bf16 %v40
  %v105 = vunpack.c.l.bf16 %v41
  %v106 = vunpack.c.l.bf16 %v42
  %v107 = vunpack.c.l.bf16 %v43
  %v108 = vunpack.c.l.bf16 %v44
  %v109 = vunpack.c.l.bf16 %v45
  %v110 = vunpack.c.l.bf16 %v46
  %v111 = vunpack.c.l.bf16 %v47
  %v112 = vunpack.c.l.bf16 %v48
  %v113 = vunpack.c.l.bf16 %v49
  %v114 = vunpack.c.l.bf16 %v50
  %v115 = vunpack.c.l.bf16 %v51
  %v116 = vunpack.c.l.bf16 %v52
  %v117 = vunpack.c.l.bf16 %v53
  %v118 = vunpack.c.l.bf16 %v54
  %v119 = vunpack.c.l.bf16 %v55
  %v120 = vunpack.c.l.bf16 %v56
  %v121 = vunpack.c.l.bf16 %v57
  %v122 = vunpack.c.l.bf16 %v58
  %v123 = vunpack.c.l.bf16 %v59
  %v124 = vunpack.c.l.bf16 %v60
  %v125 = vunpack.c.l.bf16 %v61
  %v126 = vunpack.c.l.bf16 %v62
  %v127 = vunpack.c.l.bf16 %v63
  %v128 = vunpack.c.l.bf16 %v64
  %v129 = vunpack.c.l.bf16 %v65
  %v130 = vunpack.c.l.bf16 %v66
  %v131 = vunpack.c.l.bf16 %v67
  %v132 = vunpack.c.l.bf16 %v68
  %v133 = vunpack.c.l.bf16 %v69
  %v134 = vunpack.c.l.bf16 %v70
  %v135 = vunpack.c.l.bf16 %v71
  %v136 = vunpack.c.l.bf16 %v72
  %v137 = vunpack.c.l.bf16 %v73
  %v138 = vunpack.c.l.bf16 %v74
  %v139 = vunpack.c.l.bf16 %v75
  %v140 = vunpack.c.l.bf16 %v76
  %v141 = vld [vmem:[%s1] sm:$0x3]
  %v142 = vunpack.c.l.bf16 %v141
  %144 = vset.pattern.permute.xlu0 0
  %145 = vperm.xlu0 %144, %v77
  %v146 = vpop.permute.xlu0 %145
  %149 = vset.pattern.permute.xlu0 0
  %150 = vperm.xlu0 %149, %v78
  %v151 = vpop.permute.xlu0 %150
  %154 = vset.pattern.permute.xlu0 0
  %155 = vperm.xlu0 %154, %v79
  %v156 = vpop.permute.xlu0 %155
  %159 = vset.pattern.permute.xlu0 0
  %160 = vperm.xlu0 %159, %v80
  %v161 = vpop.permute.xlu0 %160
  %164 = vset.pattern.permute.xlu0 0
  %165 = vperm.xlu0 %164, %v81
  %v166 = vpop.permute.xlu0 %165
  %169 = vset.pattern.permute.xlu0 0
  %170 = vperm.xlu0 %169, %v82
  %v171 = vpop.permute.xlu0 %170
  %174 = vset.pattern.permute.xlu0 0
  %175 = vperm.xlu0 %174, %v83
  %v176 = vpop.permute.xlu0 %175
  %179 = vset.pattern.permute.xlu0 0
  %180 = vperm.xlu0 %179, %v84
  %v181 = vpop.permute.xlu0 %180
  %184 = vset.pattern.permute.xlu0 0
  %185 = vperm.xlu0 %184, %v85
  %v186 = vpop.permute.xlu0 %185
  %189 = vset.pattern.permute.xlu0 0
  %190 = vperm.xlu0 %189, %v86
  %v191 = vpop.permute.xlu0 %190
  %194 = vset.pattern.permute.xlu0 0
  %195 = vperm.xlu0 %194, %v87
  %v196 = vpop.permute.xlu0 %195
  %199 = vset.pattern.permute.xlu0 0
  %200 = vperm.xlu0 %199, %v88
  %v201 = vpop.permute.xlu0 %200
  %204 = vset.pattern.permute.xlu0 0
  %205 = vperm.xlu0 %204, %v89
  %v206 = vpop.permute.xlu0 %205
  %209 = vset.pattern.permute.xlu0 0
  %210 = vperm.xlu0 %209, %v90
  %v211 = vpop.permute.xlu0 %210
  %214 = vset.pattern.permute.xlu0 0
  %215 = vperm.xlu0 %214, %v91
  %v216 = vpop.permute.xlu0 %215
  %219 = vset.pattern.permute.xlu0 0
  %220 = vperm.xlu0 %219, %v92
  %v221 = vpop.permute.xlu0 %220
  %224 = vset.pattern.permute.xlu0 0
  %225 = vperm.xlu0 %224, %v93
  %v226 = vpop.permute.xlu0 %225
  %229 = vset.pattern.permute.xlu0 0
  %230 = vperm.xlu0 %229, %v94
  %v231 = vpop.permute.xlu0 %230
  %234 = vset.pattern.permute.xlu0 0
  %235 = vperm.xlu0 %234, %v95
  %v236 = vpop.permute.xlu0 %235
  %239 = vset.pattern.permute.xlu0 0
  %240 = vperm.xlu0 %239, %v96
  %v241 = vpop.permute.xlu0 %240
  %244 = vset.pattern.permute.xlu0 0
  %245 = vperm.xlu0 %244, %v97
  %v246 = vpop.permute.xlu0 %245
  %249 = vset.pattern.permute.xlu0 0
  %250 = vperm.xlu0 %249, %v98
  %v251 = vpop.permute.xlu0 %250
  %254 = vset.pattern.permute.xlu0 0
  %255 = vperm.xlu0 %254, %v99
  %v256 = vpop.permute.xlu0 %255
  %259 = vset.pattern.permute.xlu0 0
  %260 = vperm.xlu0 %259, %v100
  %v261 = vpop.permute.xlu0 %260
  %264 = vset.pattern.permute.xlu0 0
  %265 = vperm.xlu0 %264, %v101
  %v266 = vpop.permute.xlu0 %265
  %269 = vset.pattern.permute.xlu0 0
  %270 = vperm.xlu0 %269, %v102
  %v271 = vpop.permute.xlu0 %270
  %274 = vset.pattern.permute.xlu0 0
  %275 = vperm.xlu0 %274, %v103
  %v276 = vpop.permute.xlu0 %275
  %279 = vset.pattern.permute.xlu0 0
  %280 = vperm.xlu0 %279, %v104
  %v281 = vpop.permute.xlu0 %280
  %284 = vset.pattern.permute.xlu0 0
  %285 = vperm.xlu0 %284, %v105
  %v286 = vpop.permute.xlu0 %285
  %289 = vset.pattern.permute.xlu0 0
  %290 = vperm.xlu0 %289, %v106
  %v291 = vpop.permute.xlu0 %290
  %294 = vset.pattern.permute.xlu0 0
  %295 = vperm.xlu0 %294, %v107
  %v296 = vpop.permute.xlu0 %295
  %299 = vset.pattern.permute.xlu0 0
  %300 = vperm.xlu0 %299, %v108
  %v301 = vpop.permute.xlu0 %300
  %304 = vset.pattern.permute.xlu0 0
  %305 = vperm.xlu0 %304, %v109
  %v306 = vpop.permute.xlu0 %305
  %309 = vset.pattern.permute.xlu0 0
  %310 = vperm.xlu0 %309, %v110
  %v311 = vpop.permute.xlu0 %310
  %314 = vset.pattern.permute.xlu0 0
  %315 = vperm.xlu0 %314, %v111
  %v316 = vpop.permute.xlu0 %315
  %319 = vset.pattern.permute.xlu0 0
  %320 = vperm.xlu0 %319, %v112
  %v321 = vpop.permute.xlu0 %320
  %324 = vset.pattern.permute.xlu0 0
  %325 = vperm.xlu0 %324, %v113
  %v326 = vpop.permute.xlu0 %325
  %329 = vset.pattern.permute.xlu0 0
  %330 = vperm.xlu0 %329, %v114
  %v331 = vpop.permute.xlu0 %330
  %334 = vset.pattern.permute.xlu0 0
  %335 = vperm.xlu0 %334, %v115
  %v336 = vpop.permute.xlu0 %335
  %339 = vset.pattern.permute.xlu0 0
  %340 = vperm.xlu0 %339, %v116
  %v341 = vpop.permute.xlu0 %340
  %344 = vset.pattern.permute.xlu0 0
  %345 = vperm.xlu0 %344, %v117
  %v346 = vpop.permute.xlu0 %345
  %349 = vset.pattern.permute.xlu0 0
  %350 = vperm.xlu0 %349, %v118
  %v351 = vpop.permute.xlu0 %350
  %354 = vset.pattern.permute.xlu0 0
  %355 = vperm.xlu0 %354, %v119
  %v356 = vpop.permute.xlu0 %355
  %359 = vset.pattern.permute.xlu0 0
  %360 = vperm.xlu0 %359, %v120
  %v361 = vpop.permute.xlu0 %360
  %364 = vset.pattern.permute.xlu0 0
  %365 = vperm.xlu0 %364, %v121
  %v366 = vpop.permute.xlu0 %365
  %369 = vset.pattern.permute.xlu0 0
  %370 = vperm.xlu0 %369, %v122
  %v371 = vpop.permute.xlu0 %370
  %374 = vset.pattern.permute.xlu0 0
  %375 = vperm.xlu0 %374, %v123
  %v376 = vpop.permute.xlu0 %375
  %379 = vset.pattern.permute.xlu0 0
  %380 = vperm.xlu0 %379, %v124
  %v381 = vpop.permute.xlu0 %380
  %384 = vset.pattern.permute.xlu0 0
  %385 = vperm.xlu0 %384, %v125
  %v386 = vpop.permute.xlu0 %385
  %389 = vset.pattern.permute.xlu0 0
  %390 = vperm.xlu0 %389, %v126
  %v391 = vpop.permute.xlu0 %390
  %394 = vset.pattern.permute.xlu0 0
  %395 = vperm.xlu0 %394, %v127
  %v396 = vpop.permute.xlu0 %395
  %399 = vset.pattern.permute.xlu0 0
  %400 = vperm.xlu0 %399, %v128
  %v401 = vpop.permute.xlu0 %400
  %404 = vset.pattern.permute.xlu0 0
  %405 = vperm.xlu0 %404, %v129
  %v406 = vpop.permute.xlu0 %405
  %409 = vset.pattern.permute.xlu0 0
  %410 = vperm.xlu0 %409, %v130
  %v411 = vpop.permute.xlu0 %410
  %414 = vset.pattern.permute.xlu0 0
  %415 = vperm.xlu0 %414, %v131
  %v416 = vpop.permute.xlu0 %415
  %419 = vset.pattern.permute.xlu0 0
  %420 = vperm.xlu0 %419, %v132
  %v421 = vpop.permute.xlu0 %420
  %424 = vset.pattern.permute.xlu0 0
  %425 = vperm.xlu0 %424, %v133
  %v426 = vpop.permute.xlu0 %425
  %429 = vset.pattern.permute.xlu0 0
  %430 = vperm.xlu0 %429, %v134
  %v431 = vpop.permute.xlu0 %430
  %434 = vset.pattern.permute.xlu0 0
  %435 = vperm.xlu0 %434, %v135
  %v436 = vpop.permute.xlu0 %435
  %439 = vset.pattern.permute.xlu0 0
  %440 = vperm.xlu0 %439, %v136
  %v441 = vpop.permute.xlu0 %440
  %444 = vset.pattern.permute.xlu0 0
  %445 = vperm.xlu0 %444, %v137
  %v446 = vpop.permute.xlu0 %445
  %449 = vset.pattern.permute.xlu0 0
  %450 = vperm.xlu0 %449, %v138
  %v451 = vpop.permute.xlu0 %450
  %454 = vset.pattern.permute.xlu0 0
  %455 = vperm.xlu0 %454, %v139
  %v456 = vpop.permute.xlu0 %455
  %459 = vset.pattern.permute.xlu0 0
  %460 = vperm.xlu0 %459, %v140
  %v461 = vpop.permute.xlu0 %460
  %v463 = vlaneseq
  %v464 = vshrl.u32 %v463, 7
  %v465 = vsub.s32 0, %v464
  %v466 = vrot.slane %v142, %v465
  %v467 = vmul.f32 %v146, %v466
  %v468 = vmul.f32 %v151, %v466
  %v469 = vmul.f32 %v156, %v466
  %v470 = vmul.f32 %v161, %v466
  %v471 = vmul.f32 %v166, %v466
  %v472 = vmul.f32 %v171, %v466
  %v473 = vmul.f32 %v176, %v466
  %v474 = vmul.f32 %v181, %v466
  %v475 = vmul.f32 %v186, %v466
  %v476 = vmul.f32 %v191, %v466
  %v477 = vmul.f32 %v196, %v466
  %v478 = vmul.f32 %v201, %v466
  %v479 = vmul.f32 %v206, %v466
  %v480 = vmul.f32 %v211, %v466
  %v481 = vmul.f32 %v216, %v466
  %v482 = vmul.f32 %v221, %v466
  %v483 = vmul.f32 %v226, %v466
  %v484 = vmul.f32 %v231, %v466
  %v485 = vmul.f32 %v236, %v466
  %v486 = vmul.f32 %v241, %v466
  %v487 = vmul.f32 %v246, %v466
  %v488 = vmul.f32 %v251, %v466
  %v489 = vmul.f32 %v256, %v466
  %v490 = vmul.f32 %v261, %v466
  %v491 = vmul.f32 %v266, %v466
  %v492 = vmul.f32 %v271, %v466
  %v493 = vmul.f32 %v276, %v466
  %v494 = vmul.f32 %v281, %v466
  %v495 = vmul.f32 %v286, %v466
  %v496 = vmul.f32 %v291, %v466
  %v497 = vmul.f32 %v296, %v466
  %v498 = vmul.f32 %v301, %v466
  %v499 = vmul.f32 %v306, %v466
  %v500 = vmul.f32 %v311, %v466
  %v501 = vmul.f32 %v316, %v466
  %v502 = vmul.f32 %v321, %v466
  %v503 = vmul.f32 %v326, %v466
  %v504 = vmul.f32 %v331, %v466
  %v505 = vmul.f32 %v336, %v466
  %v506 = vmul.f32 %v341, %v466
  %v507 = vmul.f32 %v346, %v466
  %v508 = vmul.f32 %v351, %v466
  %v509 = vmul.f32 %v356, %v466
  %v510 = vmul.f32 %v361, %v466
  %v511 = vmul.f32 %v366, %v466
  %v512 = vmul.f32 %v371, %v466
  %v513 = vmul.f32 %v376, %v466
  %v514 = vmul.f32 %v381, %v466
  %v515 = vmul.f32 %v386, %v466
  %v516 = vmul.f32 %v391, %v466
  %v517 = vmul.f32 %v396, %v466
  %v518 = vmul.f32 %v401, %v466
  %v519 = vmul.f32 %v406, %v466
  %v520 = vmul.f32 %v411, %v466
  %v521 = vmul.f32 %v416, %v466
  %v522 = vmul.f32 %v421, %v466
  %v523 = vmul.f32 %v426, %v466
  %v524 = vmul.f32 %v431, %v466
  %v525 = vmul.f32 %v436, %v466
  %v526 = vmul.f32 %v441, %v466
  %v527 = vmul.f32 %v446, %v466
  %v528 = vmul.f32 %v451, %v466
  %v529 = vmul.f32 %v456, %v466
  %v530 = vmul.f32 %v461, %v466
  %531 = vset.pattern.permute.xlu0 1
  %532 = vperm.xlu0 %531, %v77
  %v533 = vpop.permute.xlu0 %532
  %535 = vset.pattern.permute.xlu0 1
  %536 = vperm.xlu0 %535, %v78
  %v537 = vpop.permute.xlu0 %536
  %539 = vset.pattern.permute.xlu0 1
  %540 = vperm.xlu0 %539, %v79
  %v541 = vpop.permute.xlu0 %540
  %543 = vset.pattern.permute.xlu0 1
  %544 = vperm.xlu0 %543, %v80
  %v545 = vpop.permute.xlu0 %544
  %547 = vset.pattern.permute.xlu0 1
  %548 = vperm.xlu0 %547, %v81
  %v549 = vpop.permute.xlu0 %548
  %551 = vset.pattern.permute.xlu0 1
  %552 = vperm.xlu0 %551, %v82
  %v553 = vpop.permute.xlu0 %552
  %555 = vset.pattern.permute.xlu0 1
  %556 = vperm.xlu0 %555, %v83
  %v557 = vpop.permute.xlu0 %556
  %559 = vset.pattern.permute.xlu0 1
  %560 = vperm.xlu0 %559, %v84
  %v561 = vpop.permute.xlu0 %560
  %563 = vset.pattern.permute.xlu0 1
  %564 = vperm.xlu0 %563, %v85
  %v565 = vpop.permute.xlu0 %564
  %567 = vset.pattern.permute.xlu0 1
  %568 = vperm.xlu0 %567, %v86
  %v569 = vpop.permute.xlu0 %568
  %571 = vset.pattern.permute.xlu0 1
  %572 = vperm.xlu0 %571, %v87
  %v573 = vpop.permute.xlu0 %572
  %575 = vset.pattern.permute.xlu0 1
  %576 = vperm.xlu0 %575, %v88
  %v577 = vpop.permute.xlu0 %576
  %579 = vset.pattern.permute.xlu0 1
  %580 = vperm.xlu0 %579, %v89
  %v581 = vpop.permute.xlu0 %580
  %583 = vset.pattern.permute.xlu0 1
  %584 = vperm.xlu0 %583, %v90
  %v585 = vpop.permute.xlu0 %584
  %587 = vset.pattern.permute.xlu0 1
  %588 = vperm.xlu0 %587, %v91
  %v589 = vpop.permute.xlu0 %588
  %591 = vset.pattern.permute.xlu0 1
  %592 = vperm.xlu0 %591, %v92
  %v593 = vpop.permute.xlu0 %592
  %595 = vset.pattern.permute.xlu0 1
  %596 = vperm.xlu0 %595, %v93
  %v597 = vpop.permute.xlu0 %596
  %599 = vset.pattern.permute.xlu0 1
  %600 = vperm.xlu0 %599, %v94
  %v601 = vpop.permute.xlu0 %600
  %603 = vset.pattern.permute.xlu0 1
  %604 = vperm.xlu0 %603, %v95
  %v605 = vpop.permute.xlu0 %604
  %607 = vset.pattern.permute.xlu0 1
  %608 = vperm.xlu0 %607, %v96
  %v609 = vpop.permute.xlu0 %608
  %611 = vset.pattern.permute.xlu0 1
  %612 = vperm.xlu0 %611, %v97
  %v613 = vpop.permute.xlu0 %612
  %615 = vset.pattern.permute.xlu0 1
  %616 = vperm.xlu0 %615, %v98
  %v617 = vpop.permute.xlu0 %616
  %619 = vset.pattern.permute.xlu0 1
  %620 = vperm.xlu0 %619, %v99
  %v621 = vpop.permute.xlu0 %620
  %623 = vset.pattern.permute.xlu0 1
  %624 = vperm.xlu0 %623, %v100
  %v625 = vpop.permute.xlu0 %624
  %627 = vset.pattern.permute.xlu0 1
  %628 = vperm.xlu0 %627, %v101
  %v629 = vpop.permute.xlu0 %628
  %631 = vset.pattern.permute.xlu0 1
  %632 = vperm.xlu0 %631, %v102
  %v633 = vpop.permute.xlu0 %632
  %635 = vset.pattern.permute.xlu0 1
  %636 = vperm.xlu0 %635, %v103
  %v637 = vpop.permute.xlu0 %636
  %639 = vset.pattern.permute.xlu0 1
  %640 = vperm.xlu0 %639, %v104
  %v641 = vpop.permute.xlu0 %640
  %643 = vset.pattern.permute.xlu0 1
  %644 = vperm.xlu0 %643, %v105
  %v645 = vpop.permute.xlu0 %644
  %647 = vset.pattern.permute.xlu0 1
  %648 = vperm.xlu0 %647, %v106
  %v649 = vpop.permute.xlu0 %648
  %651 = vset.pattern.permute.xlu0 1
  %652 = vperm.xlu0 %651, %v107
  %v653 = vpop.permute.xlu0 %652
  %655 = vset.pattern.permute.xlu0 1
  %656 = vperm.xlu0 %655, %v108
  %v657 = vpop.permute.xlu0 %656
  %659 = vset.pattern.permute.xlu0 1
  %660 = vperm.xlu0 %659, %v109
  %v661 = vpop.permute.xlu0 %660
  %663 = vset.pattern.permute.xlu0 1
  %664 = vperm.xlu0 %663, %v110
  %v665 = vpop.permute.xlu0 %664
  %667 = vset.pattern.permute.xlu0 1
  %668 = vperm.xlu0 %667, %v111
  %v669 = vpop.permute.xlu0 %668
  %671 = vset.pattern.permute.xlu0 1
  %672 = vperm.xlu0 %671, %v112
  %v673 = vpop.permute.xlu0 %672
  %675 = vset.pattern.permute.xlu0 1
  %676 = vperm.xlu0 %675, %v113
  %v677 = vpop.permute.xlu0 %676
  %679 = vset.pattern.permute.xlu0 1
  %680 = vperm.xlu0 %679, %v114
  %v681 = vpop.permute.xlu0 %680
  %683 = vset.pattern.permute.xlu0 1
  %684 = vperm.xlu0 %683, %v115
  %v685 = vpop.permute.xlu0 %684
  %687 = vset.pattern.permute.xlu0 1
  %688 = vperm.xlu0 %687, %v116
  %v689 = vpop.permute.xlu0 %688
  %691 = vset.pattern.permute.xlu0 1
  %692 = vperm.xlu0 %691, %v117
  %v693 = vpop.permute.xlu0 %692
  %695 = vset.pattern.permute.xlu0 1
  %696 = vperm.xlu0 %695, %v118
  %v697 = vpop.permute.xlu0 %696
  %699 = vset.pattern.permute.xlu0 1
  %700 = vperm.xlu0 %699, %v119
  %v701 = vpop.permute.xlu0 %700
  %703 = vset.pattern.permute.xlu0 1
  %704 = vperm.xlu0 %703, %v120
  %v705 = vpop.permute.xlu0 %704
  %707 = vset.pattern.permute.xlu0 1
  %708 = vperm.xlu0 %707, %v121
  %v709 = vpop.permute.xlu0 %708
  %711 = vset.pattern.permute.xlu0 1
  %712 = vperm.xlu0 %711, %v122
  %v713 = vpop.permute.xlu0 %712
  %715 = vset.pattern.permute.xlu0 1
  %716 = vperm.xlu0 %715, %v123
  %v717 = vpop.permute.xlu0 %716
  %719 = vset.pattern.permute.xlu0 1
  %720 = vperm.xlu0 %719, %v124
  %v721 = vpop.permute.xlu0 %720
  %723 = vset.pattern.permute.xlu0 1
  %724 = vperm.xlu0 %723, %v125
  %v725 = vpop.permute.xlu0 %724
  %727 = vset.pattern.permute.xlu0 1
  %728 = vperm.xlu0 %727, %v126
  %v729 = vpop.permute.xlu0 %728
  %731 = vset.pattern.permute.xlu0 1
  %732 = vperm.xlu0 %731, %v127
  %v733 = vpop.permute.xlu0 %732
  %735 = vset.pattern.permute.xlu0 1
  %736 = vperm.xlu0 %735, %v128
  %v737 = vpop.permute.xlu0 %736
  %739 = vset.pattern.permute.xlu0 1
  %740 = vperm.xlu0 %739, %v129
  %v741 = vpop.permute.xlu0 %740
  %743 = vset.pattern.permute.xlu0 1
  %744 = vperm.xlu0 %743, %v130
  %v745 = vpop.permute.xlu0 %744
  %747 = vset.pattern.permute.xlu0 1
  %748 = vperm.xlu0 %747, %v131
  %v749 = vpop.permute.xlu0 %748
  %751 = vset.pattern.permute.xlu0 1
  %752 = vperm.xlu0 %751, %v132
  %v753 = vpop.permute.xlu0 %752
  %755 = vset.pattern.permute.xlu0 1
  %756 = vperm.xlu0 %755, %v133
  %v757 = vpop.permute.xlu0 %756
  %759 = vset.pattern.permute.xlu0 1
  %760 = vperm.xlu0 %759, %v134
  %v761 = vpop.permute.xlu0 %760
  %763 = vset.pattern.permute.xlu0 1
  %764 = vperm.xlu0 %763, %v135
  %v765 = vpop.permute.xlu0 %764
  %767 = vset.pattern.permute.xlu0 1
  %768 = vperm.xlu0 %767, %v136
  %v769 = vpop.permute.xlu0 %768
  %771 = vset.pattern.permute.xlu0 1
  %772 = vperm.xlu0 %771, %v137
  %v773 = vpop.permute.xlu0 %772
  %775 = vset.pattern.permute.xlu0 1
  %776 = vperm.xlu0 %775, %v138
  %v777 = vpop.permute.xlu0 %776
  %779 = vset.pattern.permute.xlu0 1
  %780 = vperm.xlu0 %779, %v139
  %v781 = vpop.permute.xlu0 %780
  %783 = vset.pattern.permute.xlu0 1
  %784 = vperm.xlu0 %783, %v140
  %v785 = vpop.permute.xlu0 %784
  %v787 = vlaneseq
  %v788 = vshrl.u32 %v787, 7
  %v789 = vsub.s32 1, %v788
  %v790 = vrot.slane %v142, %v789
  %v791 = vmul.f32 %v533, %v790
  %v792 = vmul.f32 %v537, %v790
  %v793 = vmul.f32 %v541, %v790
  %v794 = vmul.f32 %v545, %v790
  %v795 = vmul.f32 %v549, %v790
  %v796 = vmul.f32 %v553, %v790
  %v797 = vmul.f32 %v557, %v790
  %v798 = vmul.f32 %v561, %v790
  %v799 = vmul.f32 %v565, %v790
  %v800 = vmul.f32 %v569, %v790
  %v801 = vmul.f32 %v573, %v790
  %v802 = vmul.f32 %v577, %v790
  %v803 = vmul.f32 %v581, %v790
  %v804 = vmul.f32 %v585, %v790
  %v805 = vmul.f32 %v589, %v790
  %v806 = vmul.f32 %v593, %v790
  %v807 = vmul.f32 %v597, %v790
  %v808 = vmul.f32 %v601, %v790
  %v809 = vmul.f32 %v605, %v790
  %v810 = vmul.f32 %v609, %v790
  %v811 = vmul.f32 %v613, %v790
  %v812 = vmul.f32 %v617, %v790
  %v813 = vmul.f32 %v621, %v790
  %v814 = vmul.f32 %v625, %v790
  %v815 = vmul.f32 %v629, %v790
  %v816 = vmul.f32 %v633, %v790
  %v817 = vmul.f32 %v637, %v790
  %v818 = vmul.f32 %v641, %v790
  %v819 = vmul.f32 %v645, %v790
  %v820 = vmul.f32 %v649, %v790
  %v821 = vmul.f32 %v653, %v790
  %v822 = vmul.f32 %v657, %v790
  %v823 = vmul.f32 %v661, %v790
  %v824 = vmul.f32 %v665, %v790
  %v825 = vmul.f32 %v669, %v790
  %v826 = vmul.f32 %v673, %v790
  %v827 = vmul.f32 %v677, %v790
  %v828 = vmul.f32 %v681, %v790
  %v829 = vmul.f32 %v685, %v790
  %v830 = vmul.f32 %v689, %v790
  %v831 = vmul.f32 %v693, %v790
  %v832 = vmul.f32 %v697, %v790
  %v833 = vmul.f32 %v701, %v790
  %v834 = vmul.f32 %v705, %v790
  %v835 = vmul.f32 %v709, %v790
  %v836 = vmul.f32 %v713, %v790
  %v837 = vmul.f32 %v717, %v790
  %v838 = vmul.f32 %v721, %v790
  %v839 = vmul.f32 %v725, %v790
  %v840 = vmul.f32 %v729, %v790
  %v841 = vmul.f32 %v733, %v790
  %v842 = vmul.f32 %v737, %v790
  %v843 = vmul.f32 %v741, %v790
  %v844 = vmul.f32 %v745, %v790
  %v845 = vmul.f32 %v749, %v790
  %v846 = vmul.f32 %v753, %v790
  %v847 = vmul.f32 %v757, %v790
  %v848 = vmul.f32 %v761, %v790
  %v849 = vmul.f32 %v765, %v790
  %v850 = vmul.f32 %v769, %v790
  %v851 = vmul.f32 %v773, %v790
  %v852 = vmul.f32 %v777, %v790
  %v853 = vmul.f32 %v781, %v790
  %v854 = vmul.f32 %v785, %v790
  %v855 = vadd.f32 %v467, %v791
  %v856 = vadd.f32 %v468, %v792
  %v857 = vadd.f32 %v469, %v793
  %v858 = vadd.f32 %v470, %v794
  %v859 = vadd.f32 %v471, %v795
  %v860 = vadd.f32 %v472, %v796
  %v861 = vadd.f32 %v473, %v797
  %v862 = vadd.f32 %v474, %v798
  %v863 = vadd.f32 %v475, %v799
  %v864 = vadd.f32 %v476, %v800
  %v865 = vadd.f32 %v477, %v801
  %v866 = vadd.f32 %v478, %v802
  %v867 = vadd.f32 %v479, %v803
  %v868 = vadd.f32 %v480, %v804
  %v869 = vadd.f32 %v481, %v805
  %v870 = vadd.f32 %v482, %v806
  %v871 = vadd.f32 %v483, %v807
  %v872 = vadd.f32 %v484, %v808
  %v873 = vadd.f32 %v485, %v809
  %v874 = vadd.f32 %v486, %v810
  %v875 = vadd.f32 %v487, %v811
  %v876 = vadd.f32 %v488, %v812
  %v877 = vadd.f32 %v489, %v813
  %v878 = vadd.f32 %v490, %v814
  %v879 = vadd.f32 %v491, %v815
  %v880 = vadd.f32 %v492, %v816
  %v881 = vadd.f32 %v493, %v817
  %v882 = vadd.f32 %v494, %v818
  %v883 = vadd.f32 %v495, %v819
  %v884 = vadd.f32 %v496, %v820
  %v885 = vadd.f32 %v497, %v821
  %v886 = vadd.f32 %v498, %v822
  %v887 = vadd.f32 %v499, %v823
  %v888 = vadd.f32 %v500, %v824
  %v889 = vadd.f32 %v501, %v825
  %v890 = vadd.f32 %v502, %v826
  %v891 = vadd.f32 %v503, %v827
  %v892 = vadd.f32 %v504, %v828
  %v893 = vadd.f32 %v505, %v829
  %v894 = vadd.f32 %v506, %v830
  %v895 = vadd.f32 %v507, %v831
  %v896 = vadd.f32 %v508, %v832
  %v897 = vadd.f32 %v509, %v833
  %v898 = vadd.f32 %v510, %v834
  %v899 = vadd.f32 %v511, %v835
  %v900 = vadd.f32 %v512, %v836
  %v901 = vadd.f32 %v513, %v837
  %v902 = vadd.f32 %v514, %v838
  %v903 = vadd.f32 %v515, %v839
  %v904 = vadd.f32 %v516, %v840
  %v905 = vadd.f32 %v517, %v841
  %v906 = vadd.f32 %v518, %v842
  %v907 = vadd.f32 %v519, %v843
  %v908 = vadd.f32 %v520, %v844
  %v909 = vadd.f32 %v521, %v845
  %v910 = vadd.f32 %v522, %v846
  %v911 = vadd.f32 %v523, %v847
  %v912 = vadd.f32 %v524, %v848
  %v913 = vadd.f32 %v525, %v849
  %v914 = vadd.f32 %v526, %v850
  %v915 = vadd.f32 %v527, %v851
  %v916 = vadd.f32 %v528, %v852
  %v917 = vadd.f32 %v529, %v853
  %v918 = vadd.f32 %v530, %v854
  %919 = vset.pattern.permute.xlu0 2
  %920 = vperm.xlu0 %919, %v77
  %v921 = vpop.permute.xlu0 %920
  %923 = vset.pattern.permute.xlu0 2
  %924 = vperm.xlu0 %923, %v78
  %v925 = vpop.permute.xlu0 %924
  %927 = vset.pattern.permute.xlu0 2
  %928 = vperm.xlu0 %927, %v79
  %v929 = vpop.permute.xlu0 %928
  %931 = vset.pattern.permute.xlu0 2
  %932 = vperm.xlu0 %931, %v80
  %v933 = vpop.permute.xlu0 %932
  %935 = vset.pattern.permute.xlu0 2
  %936 = vperm.xlu0 %935, %v81
  %v937 = vpop.permute.xlu0 %936
  %939 = vset.pattern.permute.xlu0 2
  %940 = vperm.xlu0 %939, %v82
  %v941 = vpop.permute.xlu0 %940
  %943 = vset.pattern.permute.xlu0 2
  %944 = vperm.xlu0 %943, %v83
  %v945 = vpop.permute.xlu0 %944
  %947 = vset.pattern.permute.xlu0 2
  %948 = vperm.xlu0 %947, %v84
  %v949 = vpop.permute.xlu0 %948
  %951 = vset.pattern.permute.xlu0 2
  %952 = vperm.xlu0 %951, %v85
  %v953 = vpop.permute.xlu0 %952
  %955 = vset.pattern.permute.xlu0 2
  %956 = vperm.xlu0 %955, %v86
  %v957 = vpop.permute.xlu0 %956
  %959 = vset.pattern.permute.xlu0 2
  %960 = vperm.xlu0 %959, %v87
  %v961 = vpop.permute.xlu0 %960
  %963 = vset.pattern.permute.xlu0 2
  %964 = vperm.xlu0 %963, %v88
  %v965 = vpop.permute.xlu0 %964
  %967 = vset.pattern.permute.xlu0 2
  %968 = vperm.xlu0 %967, %v89
  %v969 = vpop.permute.xlu0 %968
  %971 = vset.pattern.permute.xlu0 2
  %972 = vperm.xlu0 %971, %v90
  %v973 = vpop.permute.xlu0 %972
  %975 = vset.pattern.permute.xlu0 2
  %976 = vperm.xlu0 %975, %v91
  %v977 = vpop.permute.xlu0 %976
  %979 = vset.pattern.permute.xlu0 2
  %980 = vperm.xlu0 %979, %v92
  %v981 = vpop.permute.xlu0 %980
  %983 = vset.pattern.permute.xlu0 2
  %984 = vperm.xlu0 %983, %v93
  %v985 = vpop.permute.xlu0 %984
  %987 = vset.pattern.permute.xlu0 2
  %988 = vperm.xlu0 %987, %v94
  %v989 = vpop.permute.xlu0 %988
  %991 = vset.pattern.permute.xlu0 2
  %992 = vperm.xlu0 %991, %v95
  %v993 = vpop.permute.xlu0 %992
  %995 = vset.pattern.permute.xlu0 2
  %996 = vperm.xlu0 %995, %v96
  %v997 = vpop.permute.xlu0 %996
  %999 = vset.pattern.permute.xlu0 2
  %1000 = vperm.xlu0 %999, %v97
  %v1001 = vpop.permute.xlu0 %1000
  %1003 = vset.pattern.permute.xlu0 2
  %1004 = vperm.xlu0 %1003, %v98
  %v1005 = vpop.permute.xlu0 %1004
  %1007 = vset.pattern.permute.xlu0 2
  %1008 = vperm.xlu0 %1007, %v99
  %v1009 = vpop.permute.xlu0 %1008
  %1011 = vset.pattern.permute.xlu0 2
  %1012 = vperm.xlu0 %1011, %v100
  %v1013 = vpop.permute.xlu0 %1012
  %1015 = vset.pattern.permute.xlu0 2
  %1016 = vperm.xlu0 %1015, %v101
  %v1017 = vpop.permute.xlu0 %1016
  %1019 = vset.pattern.permute.xlu0 2
  %1020 = vperm.xlu0 %1019, %v102
  %v1021 = vpop.permute.xlu0 %1020
  %1023 = vset.pattern.permute.xlu0 2
  %1024 = vperm.xlu0 %1023, %v103
  %v1025 = vpop.permute.xlu0 %1024
  %1027 = vset.pattern.permute.xlu0 2
  %1028 = vperm.xlu0 %1027, %v104
  %v1029 = vpop.permute.xlu0 %1028
  %1031 = vset.pattern.permute.xlu0 2
  %1032 = vperm.xlu0 %1031, %v105
  %v1033 = vpop.permute.xlu0 %1032
  %1035 = vset.pattern.permute.xlu0 2
  %1036 = vperm.xlu0 %1035, %v106
  %v1037 = vpop.permute.xlu0 %1036
  %1039 = vset.pattern.permute.xlu0 2
  %1040 = vperm.xlu0 %1039, %v107
  %v1041 = vpop.permute.xlu0 %1040
  %1043 = vset.pattern.permute.xlu0 2
  %1044 = vperm.xlu0 %1043, %v108
  %v1045 = vpop.permute.xlu0 %1044
  %1047 = vset.pattern.permute.xlu0 2
  %1048 = vperm.xlu0 %1047, %v109
  %v1049 = vpop.permute.xlu0 %1048
  %1051 = vset.pattern.permute.xlu0 2
  %1052 = vperm.xlu0 %1051, %v110
  %v1053 = vpop.permute.xlu0 %1052
  %1055 = vset.pattern.permute.xlu0 2
  %1056 = vperm.xlu0 %1055, %v111
  %v1057 = vpop.permute.xlu0 %1056
  %1059 = vset.pattern.permute.xlu0 2
  %1060 = vperm.xlu0 %1059, %v112
  %v1061 = vpop.permute.xlu0 %1060
  %1063 = vset.pattern.permute.xlu0 2
  %1064 = vperm.xlu0 %1063, %v113
  %v1065 = vpop.permute.xlu0 %1064
  %1067 = vset.pattern.permute.xlu0 2
  %1068 = vperm.xlu0 %1067, %v114
  %v1069 = vpop.permute.xlu0 %1068
  %1071 = vset.pattern.permute.xlu0 2
  %1072 = vperm.xlu0 %1071, %v115
  %v1073 = vpop.permute.xlu0 %1072
  %1075 = vset.pattern.permute.xlu0 2
  %1076 = vperm.xlu0 %1075, %v116
  %v1077 = vpop.permute.xlu0 %1076
  %1079 = vset.pattern.permute.xlu0 2
  %1080 = vperm.xlu0 %1079, %v117
  %v1081 = vpop.permute.xlu0 %1080
  %1083 = vset.pattern.permute.xlu0 2
  %1084 = vperm.xlu0 %1083, %v118
  %v1085 = vpop.permute.xlu0 %1084
  %1087 = vset.pattern.permute.xlu0 2
  %1088 = vperm.xlu0 %1087, %v119
  %v1089 = vpop.permute.xlu0 %1088
  %1091 = vset.pattern.permute.xlu0 2
  %1092 = vperm.xlu0 %1091, %v120
  %v1093 = vpop.permute.xlu0 %1092
  %1095 = vset.pattern.permute.xlu0 2
  %1096 = vperm.xlu0 %1095, %v121
  %v1097 = vpop.permute.xlu0 %1096
  %1099 = vset.pattern.permute.xlu0 2
  %1100 = vperm.xlu0 %1099, %v122
  %v1101 = vpop.permute.xlu0 %1100
  %1103 = vset.pattern.permute.xlu0 2
  %1104 = vperm.xlu0 %1103, %v123
  %v1105 = vpop.permute.xlu0 %1104
  %1107 = vset.pattern.permute.xlu0 2
  %1108 = vperm.xlu0 %1107, %v124
  %v1109 = vpop.permute.xlu0 %1108
  %1111 = vset.pattern.permute.xlu0 2
  %1112 = vperm.xlu0 %1111, %v125
  %v1113 = vpop.permute.xlu0 %1112
  %1115 = vset.pattern.permute.xlu0 2
  %1116 = vperm.xlu0 %1115, %v126
  %v1117 = vpop.permute.xlu0 %1116
  %1119 = vset.pattern.permute.xlu0 2
  %1120 = vperm.xlu0 %1119, %v127
  %v1121 = vpop.permute.xlu0 %1120
  %1123 = vset.pattern.permute.xlu0 2
  %1124 = vperm.xlu0 %1123, %v128
  %v1125 = vpop.permute.xlu0 %1124
  %1127 = vset.pattern.permute.xlu0 2
  %1128 = vperm.xlu0 %1127, %v129
  %v1129 = vpop.permute.xlu0 %1128
  %1131 = vset.pattern.permute.xlu0 2
  %1132 = vperm.xlu0 %1131, %v130
  %v1133 = vpop.permute.xlu0 %1132
  %1135 = vset.pattern.permute.xlu0 2
  %1136 = vperm.xlu0 %1135, %v131
  %v1137 = vpop.permute.xlu0 %1136
  %1139 = vset.pattern.permute.xlu0 2
  %1140 = vperm.xlu0 %1139, %v132
  %v1141 = vpop.permute.xlu0 %1140
  %1143 = vset.pattern.permute.xlu0 2
  %1144 = vperm.xlu0 %1143, %v133
  %v1145 = vpop.permute.xlu0 %1144
  %1147 = vset.pattern.permute.xlu0 2
  %1148 = vperm.xlu0 %1147, %v134
  %v1149 = vpop.permute.xlu0 %1148
  %1151 = vset.pattern.permute.xlu0 2
  %1152 = vperm.xlu0 %1151, %v135
  %v1153 = vpop.permute.xlu0 %1152
  %1155 = vset.pattern.permute.xlu0 2
  %1156 = vperm.xlu0 %1155, %v136
  %v1157 = vpop.permute.xlu0 %1156
  %1159 = vset.pattern.permute.xlu0 2
  %1160 = vperm.xlu0 %1159, %v137
  %v1161 = vpop.permute.xlu0 %1160
  %1163 = vset.pattern.permute.xlu0 2
  %1164 = vperm.xlu0 %1163, %v138
  %v1165 = vpop.permute.xlu0 %1164
  %1167 = vset.pattern.permute.xlu0 2
  %1168 = vperm.xlu0 %1167, %v139
  %v1169 = vpop.permute.xlu0 %1168
  %1171 = vset.pattern.permute.xlu0 2
  %1172 = vperm.xlu0 %1171, %v140
  %v1173 = vpop.permute.xlu0 %1172
  %v1175 = vlaneseq
  %v1176 = vshrl.u32 %v1175, 7
  %v1177 = vsub.s32 2, %v1176
  %v1178 = vrot.slane %v142, %v1177
  %v1179 = vmul.f32 %v921, %v1178
  %v1180 = vmul.f32 %v925, %v1178
  %v1181 = vmul.f32 %v929, %v1178
  %v1182 = vmul.f32 %v933, %v1178
  %v1183 = vmul.f32 %v937, %v1178
  %v1184 = vmul.f32 %v941, %v1178
  %v1185 = vmul.f32 %v945, %v1178
  %v1186 = vmul.f32 %v949, %v1178
  %v1187 = vmul.f32 %v953, %v1178
  %v1188 = vmul.f32 %v957, %v1178
  %v1189 = vmul.f32 %v961, %v1178
  %v1190 = vmul.f32 %v965, %v1178
  %v1191 = vmul.f32 %v969, %v1178
  %v1192 = vmul.f32 %v973, %v1178
  %v1193 = vmul.f32 %v977, %v1178
  %v1194 = vmul.f32 %v981, %v1178
  %v1195 = vmul.f32 %v985, %v1178
  %v1196 = vmul.f32 %v989, %v1178
  %v1197 = vmul.f32 %v993, %v1178
  %v1198 = vmul.f32 %v997, %v1178
  %v1199 = vmul.f32 %v1001, %v1178
  %v1200 = vmul.f32 %v1005, %v1178
  %v1201 = vmul.f32 %v1009, %v1178
  %v1202 = vmul.f32 %v1013, %v1178
  %v1203 = vmul.f32 %v1017, %v1178
  %v1204 = vmul.f32 %v1021, %v1178
  %v1205 = vmul.f32 %v1025, %v1178
  %v1206 = vmul.f32 %v1029, %v1178
  %v1207 = vmul.f32 %v1033, %v1178
  %v1208 = vmul.f32 %v1037, %v1178
  %v1209 = vmul.f32 %v1041, %v1178
  %v1210 = vmul.f32 %v1045, %v1178
  %v1211 = vmul.f32 %v1049, %v1178
  %v1212 = vmul.f32 %v1053, %v1178
  %v1213 = vmul.f32 %v1057, %v1178
  %v1214 = vmul.f32 %v1061, %v1178
  %v1215 = vmul.f32 %v1065, %v1178
  %v1216 = vmul.f32 %v1069, %v1178
  %v1217 = vmul.f32 %v1073, %v1178
  %v1218 = vmul.f32 %v1077, %v1178
  %v1219 = vmul.f32 %v1081, %v1178
  %v1220 = vmul.f32 %v1085, %v1178
  %v1221 = vmul.f32 %v1089, %v1178
  %v1222 = vmul.f32 %v1093, %v1178
  %v1223 = vmul.f32 %v1097, %v1178
  %v1224 = vmul.f32 %v1101, %v1178
  %v1225 = vmul.f32 %v1105, %v1178
  %v1226 = vmul.f32 %v1109, %v1178
  %v1227 = vmul.f32 %v1113, %v1178
  %v1228 = vmul.f32 %v1117, %v1178
  %v1229 = vmul.f32 %v1121, %v1178
  %v1230 = vmul.f32 %v1125, %v1178
  %v1231 = vmul.f32 %v1129, %v1178
  %v1232 = vmul.f32 %v1133, %v1178
  %v1233 = vmul.f32 %v1137, %v1178
  %v1234 = vmul.f32 %v1141, %v1178
  %v1235 = vmul.f32 %v1145, %v1178
  %v1236 = vmul.f32 %v1149, %v1178
  %v1237 = vmul.f32 %v1153, %v1178
  %v1238 = vmul.f32 %v1157, %v1178
  %v1239 = vmul.f32 %v1161, %v1178
  %v1240 = vmul.f32 %v1165, %v1178
  %v1241 = vmul.f32 %v1169, %v1178
  %v1242 = vmul.f32 %v1173, %v1178
  %v1243 = vadd.f32 %v855, %v1179
  %v1244 = vadd.f32 %v856, %v1180
  %v1245 = vadd.f32 %v857, %v1181
  %v1246 = vadd.f32 %v858, %v1182
  %v1247 = vadd.f32 %v859, %v1183
  %v1248 = vadd.f32 %v860, %v1184
  %v1249 = vadd.f32 %v861, %v1185
  %v1250 = vadd.f32 %v862, %v1186
  %v1251 = vadd.f32 %v863, %v1187
  %v1252 = vadd.f32 %v864, %v1188
  %v1253 = vadd.f32 %v865, %v1189
  %v1254 = vadd.f32 %v866, %v1190
  %v1255 = vadd.f32 %v867, %v1191
  %v1256 = vadd.f32 %v868, %v1192
  %v1257 = vadd.f32 %v869, %v1193
  %v1258 = vadd.f32 %v870, %v1194
  %v1259 = vadd.f32 %v871, %v1195
  %v1260 = vadd.f32 %v872, %v1196
  %v1261 = vadd.f32 %v873, %v1197
  %v1262 = vadd.f32 %v874, %v1198
  %v1263 = vadd.f32 %v875, %v1199
  %v1264 = vadd.f32 %v876, %v1200
  %v1265 = vadd.f32 %v877, %v1201
  %v1266 = vadd.f32 %v878, %v1202
  %v1267 = vadd.f32 %v879, %v1203
  %v1268 = vadd.f32 %v880, %v1204
  %v1269 = vadd.f32 %v881, %v1205
  %v1270 = vadd.f32 %v882, %v1206
  %v1271 = vadd.f32 %v883, %v1207
  %v1272 = vadd.f32 %v884, %v1208
  %v1273 = vadd.f32 %v885, %v1209
  %v1274 = vadd.f32 %v886, %v1210
  %v1275 = vadd.f32 %v887, %v1211
  %v1276 = vadd.f32 %v888, %v1212
  %v1277 = vadd.f32 %v889, %v1213
  %v1278 = vadd.f32 %v890, %v1214
  %v1279 = vadd.f32 %v891, %v1215
  %v1280 = vadd.f32 %v892, %v1216
  %v1281 = vadd.f32 %v893, %v1217
  %v1282 = vadd.f32 %v894, %v1218
  %v1283 = vadd.f32 %v895, %v1219
  %v1284 = vadd.f32 %v896, %v1220
  %v1285 = vadd.f32 %v897, %v1221
  %v1286 = vadd.f32 %v898, %v1222
  %v1287 = vadd.f32 %v899, %v1223
  %v1288 = vadd.f32 %v900, %v1224
  %v1289 = vadd.f32 %v901, %v1225
  %v1290 = vadd.f32 %v902, %v1226
  %v1291 = vadd.f32 %v903, %v1227
  %v1292 = vadd.f32 %v904, %v1228
  %v1293 = vadd.f32 %v905, %v1229
  %v1294 = vadd.f32 %v906, %v1230
  %v1295 = vadd.f32 %v907, %v1231
  %v1296 = vadd.f32 %v908, %v1232
  %v1297 = vadd.f32 %v909, %v1233
  %v1298 = vadd.f32 %v910, %v1234
  %v1299 = vadd.f32 %v911, %v1235
  %v1300 = vadd.f32 %v912, %v1236
  %v1301 = vadd.f32 %v913, %v1237
  %v1302 = vadd.f32 %v914, %v1238
  %v1303 = vadd.f32 %v915, %v1239
  %v1304 = vadd.f32 %v916, %v1240
  %v1305 = vadd.f32 %v917, %v1241
  %v1306 = vadd.f32 %v918, %v1242
  %1307 = vset.pattern.permute.xlu0 3
  %1308 = vperm.xlu0 %1307, %v77
  %v1309 = vpop.permute.xlu0 %1308
  %1311 = vset.pattern.permute.xlu0 3
  %1312 = vperm.xlu0 %1311, %v78
  %v1313 = vpop.permute.xlu0 %1312
  %1315 = vset.pattern.permute.xlu0 3
  %1316 = vperm.xlu0 %1315, %v79
  %v1317 = vpop.permute.xlu0 %1316
  %1319 = vset.pattern.permute.xlu0 3
  %1320 = vperm.xlu0 %1319, %v80
  %v1321 = vpop.permute.xlu0 %1320
  %1323 = vset.pattern.permute.xlu0 3
  %1324 = vperm.xlu0 %1323, %v81
  %v1325 = vpop.permute.xlu0 %1324
  %1327 = vset.pattern.permute.xlu0 3
  %1328 = vperm.xlu0 %1327, %v82
  %v1329 = vpop.permute.xlu0 %1328
  %1331 = vset.pattern.permute.xlu0 3
  %1332 = vperm.xlu0 %1331, %v83
  %v1333 = vpop.permute.xlu0 %1332
  %1335 = vset.pattern.permute.xlu0 3
  %1336 = vperm.xlu0 %1335, %v84
  %v1337 = vpop.permute.xlu0 %1336
  %1339 = vset.pattern.permute.xlu0 3
  %1340 = vperm.xlu0 %1339, %v85
  %v1341 = vpop.permute.xlu0 %1340
  %1343 = vset.pattern.permute.xlu0 3
  %1344 = vperm.xlu0 %1343, %v86
  %v1345 = vpop.permute.xlu0 %1344
  %1347 = vset.pattern.permute.xlu0 3
  %1348 = vperm.xlu0 %1347, %v87
  %v1349 = vpop.permute.xlu0 %1348
  %1351 = vset.pattern.permute.xlu0 3
  %1352 = vperm.xlu0 %1351, %v88
  %v1353 = vpop.permute.xlu0 %1352
  %1355 = vset.pattern.permute.xlu0 3
  %1356 = vperm.xlu0 %1355, %v89
  %v1357 = vpop.permute.xlu0 %1356
  %1359 = vset.pattern.permute.xlu0 3
  %1360 = vperm.xlu0 %1359, %v90
  %v1361 = vpop.permute.xlu0 %1360
  %1363 = vset.pattern.permute.xlu0 3
  %1364 = vperm.xlu0 %1363, %v91
  %v1365 = vpop.permute.xlu0 %1364
  %1367 = vset.pattern.permute.xlu0 3
  %1368 = vperm.xlu0 %1367, %v92
  %v1369 = vpop.permute.xlu0 %1368
  %1371 = vset.pattern.permute.xlu0 3
  %1372 = vperm.xlu0 %1371, %v93
  %v1373 = vpop.permute.xlu0 %1372
  %1375 = vset.pattern.permute.xlu0 3
  %1376 = vperm.xlu0 %1375, %v94
  %v1377 = vpop.permute.xlu0 %1376
  %1379 = vset.pattern.permute.xlu0 3
  %1380 = vperm.xlu0 %1379, %v95
  %v1381 = vpop.permute.xlu0 %1380
  %1383 = vset.pattern.permute.xlu0 3
  %1384 = vperm.xlu0 %1383, %v96
  %v1385 = vpop.permute.xlu0 %1384
  %1387 = vset.pattern.permute.xlu0 3
  %1388 = vperm.xlu0 %1387, %v97
  %v1389 = vpop.permute.xlu0 %1388
  %1391 = vset.pattern.permute.xlu0 3
  %1392 = vperm.xlu0 %1391, %v98
  %v1393 = vpop.permute.xlu0 %1392
  %1395 = vset.pattern.permute.xlu0 3
  %1396 = vperm.xlu0 %1395, %v99
  %v1397 = vpop.permute.xlu0 %1396
  %1399 = vset.pattern.permute.xlu0 3
  %1400 = vperm.xlu0 %1399, %v100
  %v1401 = vpop.permute.xlu0 %1400
  %1403 = vset.pattern.permute.xlu0 3
  %1404 = vperm.xlu0 %1403, %v101
  %v1405 = vpop.permute.xlu0 %1404
  %1407 = vset.pattern.permute.xlu0 3
  %1408 = vperm.xlu0 %1407, %v102
  %v1409 = vpop.permute.xlu0 %1408
  %1411 = vset.pattern.permute.xlu0 3
  %1412 = vperm.xlu0 %1411, %v103
  %v1413 = vpop.permute.xlu0 %1412
  %1415 = vset.pattern.permute.xlu0 3
  %1416 = vperm.xlu0 %1415, %v104
  %v1417 = vpop.permute.xlu0 %1416
  %1419 = vset.pattern.permute.xlu0 3
  %1420 = vperm.xlu0 %1419, %v105
  %v1421 = vpop.permute.xlu0 %1420
  %1423 = vset.pattern.permute.xlu0 3
  %1424 = vperm.xlu0 %1423, %v106
  %v1425 = vpop.permute.xlu0 %1424
  %1427 = vset.pattern.permute.xlu0 3
  %1428 = vperm.xlu0 %1427, %v107
  %v1429 = vpop.permute.xlu0 %1428
  %1431 = vset.pattern.permute.xlu0 3
  %1432 = vperm.xlu0 %1431, %v108
  %v1433 = vpop.permute.xlu0 %1432
  %1435 = vset.pattern.permute.xlu0 3
  %1436 = vperm.xlu0 %1435, %v109
  %v1437 = vpop.permute.xlu0 %1436
  %1439 = vset.pattern.permute.xlu0 3
  %1440 = vperm.xlu0 %1439, %v110
  %v1441 = vpop.permute.xlu0 %1440
  %1443 = vset.pattern.permute.xlu0 3
  %1444 = vperm.xlu0 %1443, %v111
  %v1445 = vpop.permute.xlu0 %1444
  %1447 = vset.pattern.permute.xlu0 3
  %1448 = vperm.xlu0 %1447, %v112
  %v1449 = vpop.permute.xlu0 %1448
  %1451 = vset.pattern.permute.xlu0 3
  %1452 = vperm.xlu0 %1451, %v113
  %v1453 = vpop.permute.xlu0 %1452
  %1455 = vset.pattern.permute.xlu0 3
  %1456 = vperm.xlu0 %1455, %v114
  %v1457 = vpop.permute.xlu0 %1456
  %1459 = vset.pattern.permute.xlu0 3
  %1460 = vperm.xlu0 %1459, %v115
  %v1461 = vpop.permute.xlu0 %1460
  %1463 = vset.pattern.permute.xlu0 3
  %1464 = vperm.xlu0 %1463, %v116
  %v1465 = vpop.permute.xlu0 %1464
  %1467 = vset.pattern.permute.xlu0 3
  %1468 = vperm.xlu0 %1467, %v117
  %v1469 = vpop.permute.xlu0 %1468
  %1471 = vset.pattern.permute.xlu0 3
  %1472 = vperm.xlu0 %1471, %v118
  %v1473 = vpop.permute.xlu0 %1472
  %1475 = vset.pattern.permute.xlu0 3
  %1476 = vperm.xlu0 %1475, %v119
  %v1477 = vpop.permute.xlu0 %1476
  %1479 = vset.pattern.permute.xlu0 3
  %1480 = vperm.xlu0 %1479, %v120
  %v1481 = vpop.permute.xlu0 %1480
  %1483 = vset.pattern.permute.xlu0 3
  %1484 = vperm.xlu0 %1483, %v121
  %v1485 = vpop.permute.xlu0 %1484
  %1487 = vset.pattern.permute.xlu0 3
  %1488 = vperm.xlu0 %1487, %v122
  %v1489 = vpop.permute.xlu0 %1488
  %1491 = vset.pattern.permute.xlu0 3
  %1492 = vperm.xlu0 %1491, %v123
  %v1493 = vpop.permute.xlu0 %1492
  %1495 = vset.pattern.permute.xlu0 3
  %1496 = vperm.xlu0 %1495, %v124
  %v1497 = vpop.permute.xlu0 %1496
  %1499 = vset.pattern.permute.xlu0 3
  %1500 = vperm.xlu0 %1499, %v125
  %v1501 = vpop.permute.xlu0 %1500
  %1503 = vset.pattern.permute.xlu0 3
  %1504 = vperm.xlu0 %1503, %v126
  %v1505 = vpop.permute.xlu0 %1504
  %1507 = vset.pattern.permute.xlu0 3
  %1508 = vperm.xlu0 %1507, %v127
  %v1509 = vpop.permute.xlu0 %1508
  %1511 = vset.pattern.permute.xlu0 3
  %1512 = vperm.xlu0 %1511, %v128
  %v1513 = vpop.permute.xlu0 %1512
  %1515 = vset.pattern.permute.xlu0 3
  %1516 = vperm.xlu0 %1515, %v129
  %v1517 = vpop.permute.xlu0 %1516
  %1519 = vset.pattern.permute.xlu0 3
  %1520 = vperm.xlu0 %1519, %v130
  %v1521 = vpop.permute.xlu0 %1520
  %1523 = vset.pattern.permute.xlu0 3
  %1524 = vperm.xlu0 %1523, %v131
  %v1525 = vpop.permute.xlu0 %1524
  %1527 = vset.pattern.permute.xlu0 3
  %1528 = vperm.xlu0 %1527, %v132
  %v1529 = vpop.permute.xlu0 %1528
  %1531 = vset.pattern.permute.xlu0 3
  %1532 = vperm.xlu0 %1531, %v133
  %v1533 = vpop.permute.xlu0 %1532
  %1535 = vset.pattern.permute.xlu0 3
  %1536 = vperm.xlu0 %1535, %v134
  %v1537 = vpop.permute.xlu0 %1536
  %1539 = vset.pattern.permute.xlu0 3
  %1540 = vperm.xlu0 %1539, %v135
  %v1541 = vpop.permute.xlu0 %1540
  %1543 = vset.pattern.permute.xlu0 3
  %1544 = vperm.xlu0 %1543, %v136
  %v1545 = vpop.permute.xlu0 %1544
  %1547 = vset.pattern.permute.xlu0 3
  %1548 = vperm.xlu0 %1547, %v137
  %v1549 = vpop.permute.xlu0 %1548
  %1551 = vset.pattern.permute.xlu0 3
  %1552 = vperm.xlu0 %1551, %v138
  %v1553 = vpop.permute.xlu0 %1552
  %1555 = vset.pattern.permute.xlu0 3
  %1556 = vperm.xlu0 %1555, %v139
  %v1557 = vpop.permute.xlu0 %1556
  %1559 = vset.pattern.permute.xlu0 3
  %1560 = vperm.xlu0 %1559, %v140
  %v1561 = vpop.permute.xlu0 %1560
  %v1563 = vlaneseq
  %v1564 = vshrl.u32 %v1563, 7
  %v1565 = vsub.s32 3, %v1564
  %v1566 = vrot.slane %v142, %v1565
  %v1567 = vmul.f32 %v1309, %v1566
  %v1568 = vmul.f32 %v1313, %v1566
  %v1569 = vmul.f32 %v1317, %v1566
  %v1570 = vmul.f32 %v1321, %v1566
  %v1571 = vmul.f32 %v1325, %v1566
  %v1572 = vmul.f32 %v1329, %v1566
  %v1573 = vmul.f32 %v1333, %v1566
  %v1574 = vmul.f32 %v1337, %v1566
  %v1575 = vmul.f32 %v1341, %v1566
  %v1576 = vmul.f32 %v1345, %v1566
  %v1577 = vmul.f32 %v1349, %v1566
  %v1578 = vmul.f32 %v1353, %v1566
  %v1579 = vmul.f32 %v1357, %v1566
  %v1580 = vmul.f32 %v1361, %v1566
  %v1581 = vmul.f32 %v1365, %v1566
  %v1582 = vmul.f32 %v1369, %v1566
  %v1583 = vmul.f32 %v1373, %v1566
  %v1584 = vmul.f32 %v1377, %v1566
  %v1585 = vmul.f32 %v1381, %v1566
  %v1586 = vmul.f32 %v1385, %v1566
  %v1587 = vmul.f32 %v1389, %v1566
  %v1588 = vmul.f32 %v1393, %v1566
  %v1589 = vmul.f32 %v1397, %v1566
  %v1590 = vmul.f32 %v1401, %v1566
  %v1591 = vmul.f32 %v1405, %v1566
  %v1592 = vmul.f32 %v1409, %v1566
  %v1593 = vmul.f32 %v1413, %v1566
  %v1594 = vmul.f32 %v1417, %v1566
  %v1595 = vmul.f32 %v1421, %v1566
  %v1596 = vmul.f32 %v1425, %v1566
  %v1597 = vmul.f32 %v1429, %v1566
  %v1598 = vmul.f32 %v1433, %v1566
  %v1599 = vmul.f32 %v1437, %v1566
  %v1600 = vmul.f32 %v1441, %v1566
  %v1601 = vmul.f32 %v1445, %v1566
  %v1602 = vmul.f32 %v1449, %v1566
  %v1603 = vmul.f32 %v1453, %v1566
  %v1604 = vmul.f32 %v1457, %v1566
  %v1605 = vmul.f32 %v1461, %v1566
  %v1606 = vmul.f32 %v1465, %v1566
  %v1607 = vmul.f32 %v1469, %v1566
  %v1608 = vmul.f32 %v1473, %v1566
  %v1609 = vmul.f32 %v1477, %v1566
  %v1610 = vmul.f32 %v1481, %v1566
  %v1611 = vmul.f32 %v1485, %v1566
  %v1612 = vmul.f32 %v1489, %v1566
  %v1613 = vmul.f32 %v1493, %v1566
  %v1614 = vmul.f32 %v1497, %v1566
  %v1615 = vmul.f32 %v1501, %v1566
  %v1616 = vmul.f32 %v1505, %v1566
  %v1617 = vmul.f32 %v1509, %v1566
  %v1618 = vmul.f32 %v1513, %v1566
  %v1619 = vmul.f32 %v1517, %v1566
  %v1620 = vmul.f32 %v1521, %v1566
  %v1621 = vmul.f32 %v1525, %v1566
  %v1622 = vmul.f32 %v1529, %v1566
  %v1623 = vmul.f32 %v1533, %v1566
  %v1624 = vmul.f32 %v1537, %v1566
  %v1625 = vmul.f32 %v1541, %v1566
  %v1626 = vmul.f32 %v1545, %v1566
  %v1627 = vmul.f32 %v1549, %v1566
  %v1628 = vmul.f32 %v1553, %v1566
  %v1629 = vmul.f32 %v1557, %v1566
  %v1630 = vmul.f32 %v1561, %v1566
  %v1631 = vadd.f32 %v1243, %v1567
  %v1632 = vadd.f32 %v1244, %v1568
  %v1633 = vadd.f32 %v1245, %v1569
  %v1634 = vadd.f32 %v1246, %v1570
  %v1635 = vadd.f32 %v1247, %v1571
  %v1636 = vadd.f32 %v1248, %v1572
  %v1637 = vadd.f32 %v1249, %v1573
  %v1638 = vadd.f32 %v1250, %v1574
  %v1639 = vadd.f32 %v1251, %v1575
  %v1640 = vadd.f32 %v1252, %v1576
  %v1641 = vadd.f32 %v1253, %v1577
  %v1642 = vadd.f32 %v1254, %v1578
  %v1643 = vadd.f32 %v1255, %v1579
  %v1644 = vadd.f32 %v1256, %v1580
  %v1645 = vadd.f32 %v1257, %v1581
  %v1646 = vadd.f32 %v1258, %v1582
  %v1647 = vadd.f32 %v1259, %v1583
  %v1648 = vadd.f32 %v1260, %v1584
  %v1649 = vadd.f32 %v1261, %v1585
  %v1650 = vadd.f32 %v1262, %v1586
  %v1651 = vadd.f32 %v1263, %v1587
  %v1652 = vadd.f32 %v1264, %v1588
  %v1653 = vadd.f32 %v1265, %v1589
  %v1654 = vadd.f32 %v1266, %v1590
  %v1655 = vadd.f32 %v1267, %v1591
  %v1656 = vadd.f32 %v1268, %v1592
  %v1657 = vadd.f32 %v1269, %v1593
  %v1658 = vadd.f32 %v1270, %v1594
  %v1659 = vadd.f32 %v1271, %v1595
  %v1660 = vadd.f32 %v1272, %v1596
  %v1661 = vadd.f32 %v1273, %v1597
  %v1662 = vadd.f32 %v1274, %v1598
  %v1663 = vadd.f32 %v1275, %v1599
  %v1664 = vadd.f32 %v1276, %v1600
  %v1665 = vadd.f32 %v1277, %v1601
  %v1666 = vadd.f32 %v1278, %v1602
  %v1667 = vadd.f32 %v1279, %v1603
  %v1668 = vadd.f32 %v1280, %v1604
  %v1669 = vadd.f32 %v1281, %v1605
  %v1670 = vadd.f32 %v1282, %v1606
  %v1671 = vadd.f32 %v1283, %v1607
  %v1672 = vadd.f32 %v1284, %v1608
  %v1673 = vadd.f32 %v1285, %v1609
  %v1674 = vadd.f32 %v1286, %v1610
  %v1675 = vadd.f32 %v1287, %v1611
  %v1676 = vadd.f32 %v1288, %v1612
  %v1677 = vadd.f32 %v1289, %v1613
  %v1678 = vadd.f32 %v1290, %v1614
  %v1679 = vadd.f32 %v1291, %v1615
  %v1680 = vadd.f32 %v1292, %v1616
  %v1681 = vadd.f32 %v1293, %v1617
  %v1682 = vadd.f32 %v1294, %v1618
  %v1683 = vadd.f32 %v1295, %v1619
  %v1684 = vadd.f32 %v1296, %v1620
  %v1685 = vadd.f32 %v1297, %v1621
  %v1686 = vadd.f32 %v1298, %v1622
  %v1687 = vadd.f32 %v1299, %v1623
  %v1688 = vadd.f32 %v1300, %v1624
  %v1689 = vadd.f32 %v1301, %v1625
  %v1690 = vadd.f32 %v1302, %v1626
  %v1691 = vadd.f32 %v1303, %v1627
  %v1692 = vadd.f32 %v1304, %v1628
  %v1693 = vadd.f32 %v1305, %v1629
  %v1694 = vadd.f32 %v1306, %v1630
  %v1695 = vpack.c.bf16 %v1632, %v1631
  %v1696 = vpack.c.bf16 %v1634, %v1633
  %v1697 = vpack.c.bf16 %v1636, %v1635
  %v1698 = vpack.c.bf16 %v1638, %v1637
  %v1699 = vpack.c.bf16 %v1640, %v1639
  %v1700 = vpack.c.bf16 %v1642, %v1641
  %v1701 = vpack.c.bf16 %v1644, %v1643
  %v1702 = vpack.c.bf16 %v1646, %v1645
  %v1703 = vpack.c.bf16 %v1648, %v1647
  %v1704 = vpack.c.bf16 %v1650, %v1649
  %v1705 = vpack.c.bf16 %v1652, %v1651
  %v1706 = vpack.c.bf16 %v1654, %v1653
  %v1707 = vpack.c.bf16 %v1656, %v1655
  %v1708 = vpack.c.bf16 %v1658, %v1657
  %v1709 = vpack.c.bf16 %v1660, %v1659
  %v1710 = vpack.c.bf16 %v1662, %v1661
  %v1711 = vpack.c.bf16 %v1664, %v1663
  %v1712 = vpack.c.bf16 %v1666, %v1665
  %v1713 = vpack.c.bf16 %v1668, %v1667
  %v1714 = vpack.c.bf16 %v1670, %v1669
  %v1715 = vpack.c.bf16 %v1672, %v1671
  %v1716 = vpack.c.bf16 %v1674, %v1673
  %v1717 = vpack.c.bf16 %v1676, %v1675
  %v1718 = vpack.c.bf16 %v1678, %v1677
  %v1719 = vpack.c.bf16 %v1680, %v1679
  %v1720 = vpack.c.bf16 %v1682, %v1681
  %v1721 = vpack.c.bf16 %v1684, %v1683
  %v1722 = vpack.c.bf16 %v1686, %v1685
  %v1723 = vpack.c.bf16 %v1688, %v1687
  %v1724 = vpack.c.bf16 %v1690, %v1689
  %v1725 = vpack.c.bf16 %v1692, %v1691
  %v1726 = vpack.c.bf16 %v1694, %v1693
  %v1759 = vunpack.c.l.b16 %v1695
  %v1760 = vunpack.c.h.b16 %v1695
  %v1761 = vunpack.c.l.b16 %v1696
  %v1762 = vunpack.c.h.b16 %v1696
  %v1763 = vunpack.c.l.b16 %v1697
  %v1764 = vunpack.c.h.b16 %v1697
  %v1765 = vunpack.c.l.b16 %v1698
  %v1766 = vunpack.c.h.b16 %v1698
  %v1767 = vunpack.c.l.b16 %v1699
  %v1768 = vunpack.c.h.b16 %v1699
  %v1769 = vunpack.c.l.b16 %v1700
  %v1770 = vunpack.c.h.b16 %v1700
  %v1771 = vunpack.c.l.b16 %v1701
  %v1772 = vunpack.c.h.b16 %v1701
  %v1773 = vunpack.c.l.b16 %v1702
  %v1774 = vunpack.c.h.b16 %v1702
  %v1775 = vunpack.c.l.b16 %v1703
  %v1776 = vunpack.c.h.b16 %v1703
  %v1777 = vunpack.c.l.b16 %v1704
  %v1778 = vunpack.c.h.b16 %v1704
  %v1779 = vunpack.c.l.b16 %v1705
  %v1780 = vunpack.c.h.b16 %v1705
  %v1781 = vunpack.c.l.b16 %v1706
  %v1782 = vunpack.c.h.b16 %v1706
  %v1783 = vunpack.c.l.b16 %v1707
  %v1784 = vunpack.c.h.b16 %v1707
  %v1785 = vunpack.c.l.b16 %v1708
  %v1786 = vunpack.c.h.b16 %v1708
  %v1787 = vunpack.c.l.b16 %v1709
  %v1788 = vunpack.c.h.b16 %v1709
  %v1789 = vunpack.c.l.b16 %v1710
  %v1790 = vunpack.c.h.b16 %v1710
  %v1791 = vunpack.c.l.b16 %v1711
  %v1792 = vunpack.c.h.b16 %v1711
  %v1793 = vunpack.c.l.b16 %v1712
  %v1794 = vunpack.c.h.b16 %v1712
  %v1795 = vunpack.c.l.b16 %v1713
  %v1796 = vunpack.c.h.b16 %v1713
  %v1797 = vunpack.c.l.b16 %v1714
  %v1798 = vunpack.c.h.b16 %v1714
  %v1799 = vunpack.c.l.b16 %v1715
  %v1800 = vunpack.c.h.b16 %v1715
  %v1801 = vunpack.c.l.b16 %v1716
  %v1802 = vunpack.c.h.b16 %v1716
  %v1803 = vunpack.c.l.b16 %v1717
  %v1804 = vunpack.c.h.b16 %v1717
  %v1805 = vunpack.c.l.b16 %v1718
  %v1806 = vunpack.c.h.b16 %v1718
  %v1807 = vunpack.c.l.b16 %v1719
  %v1808 = vunpack.c.h.b16 %v1719
  %v1809 = vunpack.c.l.b16 %v1720
  %v1810 = vunpack.c.h.b16 %v1720
  %v1811 = vunpack.c.l.b16 %v1721
  %v1812 = vunpack.c.h.b16 %v1721
  %v1813 = vunpack.c.l.b16 %v1722
  %v1814 = vunpack.c.h.b16 %v1722
  %v1815 = vunpack.c.l.b16 %v1723
  %v1816 = vunpack.c.h.b16 %v1723
  %v1817 = vunpack.c.l.b16 %v1724
  %v1818 = vunpack.c.h.b16 %v1724
  %v1819 = vunpack.c.l.b16 %v1725
  %v1820 = vunpack.c.h.b16 %v1725
  %v1821 = vunpack.c.l.b16 %v1726
  %v1822 = vunpack.c.h.b16 %v1726
  %v1823 = vpack.c.b16 %v1759, %v1759
  %v1824 = vpack.c.b16 %v1760, %v1760
  %v1825 = vpack.c.b16 %v1761, %v1761
  %v1826 = vpack.c.b16 %v1762, %v1762
  %v1827 = vpack.c.b16 %v1763, %v1763
  %v1828 = vpack.c.b16 %v1764, %v1764
  %v1829 = vpack.c.b16 %v1765, %v1765
  %v1830 = vpack.c.b16 %v1766, %v1766
  %v1831 = vpack.c.b16 %v1767, %v1767
  %v1832 = vpack.c.b16 %v1768, %v1768
  %v1833 = vpack.c.b16 %v1769, %v1769
  %v1834 = vpack.c.b16 %v1770, %v1770
  %v1835 = vpack.c.b16 %v1771, %v1771
  %v1836 = vpack.c.b16 %v1772, %v1772
  %v1837 = vpack.c.b16 %v1773, %v1773
  %v1838 = vpack.c.b16 %v1774, %v1774
  %v1839 = vpack.c.b16 %v1775, %v1775
  %v1840 = vpack.c.b16 %v1776, %v1776
  %v1841 = vpack.c.b16 %v1777, %v1777
  %v1842 = vpack.c.b16 %v1778, %v1778
  %v1843 = vpack.c.b16 %v1779, %v1779
  %v1844 = vpack.c.b16 %v1780, %v1780
  %v1845 = vpack.c.b16 %v1781, %v1781
  %v1846 = vpack.c.b16 %v1782, %v1782
  %v1847 = vpack.c.b16 %v1783, %v1783
  %v1848 = vpack.c.b16 %v1784, %v1784
  %v1849 = vpack.c.b16 %v1785, %v1785
  %v1850 = vpack.c.b16 %v1786, %v1786
  %v1851 = vpack.c.b16 %v1787, %v1787
  %v1852 = vpack.c.b16 %v1788, %v1788
  %v1853 = vpack.c.b16 %v1789, %v1789
  %v1854 = vpack.c.b16 %v1790, %v1790
  %v1855 = vpack.c.b16 %v1791, %v1791
  %v1856 = vpack.c.b16 %v1792, %v1792
  %v1857 = vpack.c.b16 %v1793, %v1793
  %v1858 = vpack.c.b16 %v1794, %v1794
  %v1859 = vpack.c.b16 %v1795, %v1795
  %v1860 = vpack.c.b16 %v1796, %v1796
  %v1861 = vpack.c.b16 %v1797, %v1797
  %v1862 = vpack.c.b16 %v1798, %v1798
  %v1863 = vpack.c.b16 %v1799, %v1799
  %v1864 = vpack.c.b16 %v1800, %v1800
  %v1865 = vpack.c.b16 %v1801, %v1801
  %v1866 = vpack.c.b16 %v1802, %v1802
  %v1867 = vpack.c.b16 %v1803, %v1803
  %v1868 = vpack.c.b16 %v1804, %v1804
  %v1869 = vpack.c.b16 %v1805, %v1805
  %v1870 = vpack.c.b16 %v1806, %v1806
  %v1871 = vpack.c.b16 %v1807, %v1807
  %v1872 = vpack.c.b16 %v1808, %v1808
  %v1873 = vpack.c.b16 %v1809, %v1809
  %v1874 = vpack.c.b16 %v1810, %v1810
  %v1875 = vpack.c.b16 %v1811, %v1811
  %v1876 = vpack.c.b16 %v1812, %v1812
  %v1877 = vpack.c.b16 %v1813, %v1813
  %v1878 = vpack.c.b16 %v1814, %v1814
  %v1879 = vpack.c.b16 %v1815, %v1815
  %v1880 = vpack.c.b16 %v1816, %v1816
  %v1881 = vpack.c.b16 %v1817, %v1817
  %v1882 = vpack.c.b16 %v1818, %v1818
  %v1883 = vpack.c.b16 %v1819, %v1819
  %v1884 = vpack.c.b16 %v1820, %v1820
  %v1885 = vpack.c.b16 %v1821, %v1821
  %v1886 = vpack.c.b16 %v1822, %v1822
  %vm1951 = vcmask 519168
  %1952 = vst.msk [vmem:[%s2] sm:$0xf] %vm1951, %v1823
  %1953 = vst.msk [vmem:[%s2 + $0x4] sm:$0xf] %vm1951, %v1824
  %1954 = vst.msk [vmem:[%s2 + $0x8] sm:$0xf] %vm1951, %v1825
  %1955 = vst.msk [vmem:[%s2 + $0xc] sm:$0xf] %vm1951, %v1826
  %1956 = vst.msk [vmem:[%s2 + $0x10] sm:$0xf] %vm1951, %v1827
  %1957 = vst.msk [vmem:[%s2 + $0x14] sm:$0xf] %vm1951, %v1828
  %1958 = vst.msk [vmem:[%s2 + $0x18] sm:$0xf] %vm1951, %v1829
  %1959 = vst.msk [vmem:[%s2 + $0x1c] sm:$0xf] %vm1951, %v1830
  %1960 = vst.msk [vmem:[%s2 + $0x20] sm:$0xf] %vm1951, %v1831
  %1961 = vst.msk [vmem:[%s2 + $0x24] sm:$0xf] %vm1951, %v1832
  %1962 = vst.msk [vmem:[%s2 + $0x28] sm:$0xf] %vm1951, %v1833
  %1963 = vst.msk [vmem:[%s2 + $0x2c] sm:$0xf] %vm1951, %v1834
  %1964 = vst.msk [vmem:[%s2 + $0x30] sm:$0xf] %vm1951, %v1835
  %1965 = vst.msk [vmem:[%s2 + $0x34] sm:$0xf] %vm1951, %v1836
  %1966 = vst.msk [vmem:[%s2 + $0x38] sm:$0xf] %vm1951, %v1837
  %1967 = vst.msk [vmem:[%s2 + $0x3c] sm:$0xf] %vm1951, %v1838
  %1968 = vst.msk [vmem:[%s2 + $0x40] sm:$0xf] %vm1951, %v1839
  %1969 = vst.msk [vmem:[%s2 + $0x44] sm:$0xf] %vm1951, %v1840
  %1970 = vst.msk [vmem:[%s2 + $0x48] sm:$0xf] %vm1951, %v1841
  %1971 = vst.msk [vmem:[%s2 + $0x4c] sm:$0xf] %vm1951, %v1842
  %1972 = vst.msk [vmem:[%s2 + $0x50] sm:$0xf] %vm1951, %v1843
  %1973 = vst.msk [vmem:[%s2 + $0x54] sm:$0xf] %vm1951, %v1844
  %1974 = vst.msk [vmem:[%s2 + $0x58] sm:$0xf] %vm1951, %v1845
  %1975 = vst.msk [vmem:[%s2 + $0x5c] sm:$0xf] %vm1951, %v1846
  %1976 = vst.msk [vmem:[%s2 + $0x60] sm:$0xf] %vm1951, %v1847
  %1977 = vst.msk [vmem:[%s2 + $0x64] sm:$0xf] %vm1951, %v1848
  %1978 = vst.msk [vmem:[%s2 + $0x68] sm:$0xf] %vm1951, %v1849
  %1979 = vst.msk [vmem:[%s2 + $0x6c] sm:$0xf] %vm1951, %v1850
  %1980 = vst.msk [vmem:[%s2 + $0x70] sm:$0xf] %vm1951, %v1851
  %1981 = vst.msk [vmem:[%s2 + $0x74] sm:$0xf] %vm1951, %v1852
  %1982 = vst.msk [vmem:[%s2 + $0x78] sm:$0xf] %vm1951, %v1853
  %1983 = vst.msk [vmem:[%s2 + $0x7c] sm:$0xf] %vm1951, %v1854
  %1984 = vst.msk [vmem:[%s2 + $0x80] sm:$0xf] %vm1951, %v1855
  %1985 = vst.msk [vmem:[%s2 + $0x84] sm:$0xf] %vm1951, %v1856
  %1986 = vst.msk [vmem:[%s2 + $0x88] sm:$0xf] %vm1951, %v1857
  %1987 = vst.msk [vmem:[%s2 + $0x8c] sm:$0xf] %vm1951, %v1858
  %1988 = vst.msk [vmem:[%s2 + $0x90] sm:$0xf] %vm1951, %v1859
  %1989 = vst.msk [vmem:[%s2 + $0x94] sm:$0xf] %vm1951, %v1860
  %1990 = vst.msk [vmem:[%s2 + $0x98] sm:$0xf] %vm1951, %v1861
  %1991 = vst.msk [vmem:[%s2 + $0x9c] sm:$0xf] %vm1951, %v1862
  %1992 = vst.msk [vmem:[%s2 + $0xa0] sm:$0xf] %vm1951, %v1863
  %1993 = vst.msk [vmem:[%s2 + $0xa4] sm:$0xf] %vm1951, %v1864
  %1994 = vst.msk [vmem:[%s2 + $0xa8] sm:$0xf] %vm1951, %v1865
  %1995 = vst.msk [vmem:[%s2 + $0xac] sm:$0xf] %vm1951, %v1866
  %1996 = vst.msk [vmem:[%s2 + $0xb0] sm:$0xf] %vm1951, %v1867
  %1997 = vst.msk [vmem:[%s2 + $0xb4] sm:$0xf] %vm1951, %v1868
  %1998 = vst.msk [vmem:[%s2 + $0xb8] sm:$0xf] %vm1951, %v1869
  %1999 = vst.msk [vmem:[%s2 + $0xbc] sm:$0xf] %vm1951, %v1870
  %2000 = vst.msk [vmem:[%s2 + $0xc0] sm:$0xf] %vm1951, %v1871
  %2001 = vst.msk [vmem:[%s2 + $0xc4] sm:$0xf] %vm1951, %v1872
  %2002 = vst.msk [vmem:[%s2 + $0xc8] sm:$0xf] %vm1951, %v1873
  %2003 = vst.msk [vmem:[%s2 + $0xcc] sm:$0xf] %vm1951, %v1874
  %2004 = vst.msk [vmem:[%s2 + $0xd0] sm:$0xf] %vm1951, %v1875
  %2005 = vst.msk [vmem:[%s2 + $0xd4] sm:$0xf] %vm1951, %v1876
  %2006 = vst.msk [vmem:[%s2 + $0xd8] sm:$0xf] %vm1951, %v1877
  %2007 = vst.msk [vmem:[%s2 + $0xdc] sm:$0xf] %vm1951, %v1878
  %2008 = vst.msk [vmem:[%s2 + $0xe0] sm:$0xf] %vm1951, %v1879
  %2009 = vst.msk [vmem:[%s2 + $0xe4] sm:$0xf] %vm1951, %v1880
  %2010 = vst.msk [vmem:[%s2 + $0xe8] sm:$0xf] %vm1951, %v1881
  %2011 = vst.msk [vmem:[%s2 + $0xec] sm:$0xf] %vm1951, %v1882
  %2012 = vst.msk [vmem:[%s2 + $0xf0] sm:$0xf] %vm1951, %v1883
  %2013 = vst.msk [vmem:[%s2 + $0xf4] sm:$0xf] %vm1951, %v1884
  %2014 = vst.msk [vmem:[%s2 + $0xf8] sm:$0xf] %vm1951, %v1885
  %2015 = vst.msk [vmem:[%s2 + $0xfc] sm:$0xf] %vm1951, %v1886
  %v2016 = vmul.f32 %v1631, %v1631
  %v2017 = vmul.f32 %v1632, %v1632
  %v2018 = vmul.f32 %v1633, %v1633
  %v2019 = vmul.f32 %v1634, %v1634
  %v2020 = vmul.f32 %v1635, %v1635
  %v2021 = vmul.f32 %v1636, %v1636
  %v2022 = vmul.f32 %v1637, %v1637
  %v2023 = vmul.f32 %v1638, %v1638
  %v2024 = vmul.f32 %v1639, %v1639
  %v2025 = vmul.f32 %v1640, %v1640
  %v2026 = vmul.f32 %v1641, %v1641
  %v2027 = vmul.f32 %v1642, %v1642
  %v2028 = vmul.f32 %v1643, %v1643
  %v2029 = vmul.f32 %v1644, %v1644
  %v2030 = vmul.f32 %v1645, %v1645
  %v2031 = vmul.f32 %v1646, %v1646
  %v2032 = vmul.f32 %v1647, %v1647
  %v2033 = vmul.f32 %v1648, %v1648
  %v2034 = vmul.f32 %v1649, %v1649
  %v2035 = vmul.f32 %v1650, %v1650
  %v2036 = vmul.f32 %v1651, %v1651
  %v2037 = vmul.f32 %v1652, %v1652
  %v2038 = vmul.f32 %v1653, %v1653
  %v2039 = vmul.f32 %v1654, %v1654
  %v2040 = vmul.f32 %v1655, %v1655
  %v2041 = vmul.f32 %v1656, %v1656
  %v2042 = vmul.f32 %v1657, %v1657
  %v2043 = vmul.f32 %v1658, %v1658
  %v2044 = vmul.f32 %v1659, %v1659
  %v2045 = vmul.f32 %v1660, %v1660
  %v2046 = vmul.f32 %v1661, %v1661
  %v2047 = vmul.f32 %v1662, %v1662
  %v2048 = vmul.f32 %v1663, %v1663
  %v2049 = vmul.f32 %v1664, %v1664
  %v2050 = vmul.f32 %v1665, %v1665
  %v2051 = vmul.f32 %v1666, %v1666
  %v2052 = vmul.f32 %v1667, %v1667
  %v2053 = vmul.f32 %v1668, %v1668
  %v2054 = vmul.f32 %v1669, %v1669
  %v2055 = vmul.f32 %v1670, %v1670
  %v2056 = vmul.f32 %v1671, %v1671
  %v2057 = vmul.f32 %v1672, %v1672
  %v2058 = vmul.f32 %v1673, %v1673
  %v2059 = vmul.f32 %v1674, %v1674
  %v2060 = vmul.f32 %v1675, %v1675
  %v2061 = vmul.f32 %v1676, %v1676
  %v2062 = vmul.f32 %v1677, %v1677
  %v2063 = vmul.f32 %v1678, %v1678
  %v2064 = vmul.f32 %v1679, %v1679
  %v2065 = vmul.f32 %v1680, %v1680
  %v2066 = vmul.f32 %v1681, %v1681
  %v2067 = vmul.f32 %v1682, %v1682
  %v2068 = vmul.f32 %v1683, %v1683
  %v2069 = vmul.f32 %v1684, %v1684
  %v2070 = vmul.f32 %v1685, %v1685
  %v2071 = vmul.f32 %v1686, %v1686
  %v2072 = vmul.f32 %v1687, %v1687
  %v2073 = vmul.f32 %v1688, %v1688
  %v2074 = vmul.f32 %v1689, %v1689
  %v2075 = vmul.f32 %v1690, %v1690
  %v2076 = vmul.f32 %v1691, %v1691
  %v2077 = vmul.f32 %v1692, %v1692
  %v2078 = vmul.f32 %v1693, %v1693
  %v2079 = vmul.f32 %v1694, %v1694
  %vm2080 = vcmask 523264
  %v2081 = vsel %vm2080, %v1631, 0.0
  %v2082 = vsel %vm2080, %v1632, 0.0
  %v2083 = vadd.f32 %v2081, %v2082
  %v2084 = vsel %vm2080, %v1633, 0.0
  %v2085 = vadd.f32 %v2083, %v2084
  %v2086 = vsel %vm2080, %v1634, 0.0
  %v2087 = vadd.f32 %v2085, %v2086
  %v2088 = vsel %vm2080, %v1635, 0.0
  %v2089 = vadd.f32 %v2087, %v2088
  %v2090 = vsel %vm2080, %v1636, 0.0
  %v2091 = vadd.f32 %v2089, %v2090
  %v2092 = vsel %vm2080, %v1637, 0.0
  %v2093 = vadd.f32 %v2091, %v2092
  %v2094 = vsel %vm2080, %v1638, 0.0
  %v2095 = vadd.f32 %v2093, %v2094
  %v2096 = vsel %vm2080, %v1639, 0.0
  %v2097 = vadd.f32 %v2095, %v2096
  %v2098 = vsel %vm2080, %v1640, 0.0
  %v2099 = vadd.f32 %v2097, %v2098
  %v2100 = vsel %vm2080, %v1641, 0.0
  %v2101 = vadd.f32 %v2099, %v2100
  %v2102 = vsel %vm2080, %v1642, 0.0
  %v2103 = vadd.f32 %v2101, %v2102
  %v2104 = vsel %vm2080, %v1643, 0.0
  %v2105 = vadd.f32 %v2103, %v2104
  %v2106 = vsel %vm2080, %v1644, 0.0
  %v2107 = vadd.f32 %v2105, %v2106
  %v2108 = vsel %vm2080, %v1645, 0.0
  %v2109 = vadd.f32 %v2107, %v2108
  %v2110 = vsel %vm2080, %v1646, 0.0
  %v2111 = vadd.f32 %v2109, %v2110
  %v2112 = vsel %vm2080, %v1647, 0.0
  %v2113 = vadd.f32 %v2111, %v2112
  %v2114 = vsel %vm2080, %v1648, 0.0
  %v2115 = vadd.f32 %v2113, %v2114
  %v2116 = vsel %vm2080, %v1649, 0.0
  %v2117 = vadd.f32 %v2115, %v2116
  %v2118 = vsel %vm2080, %v1650, 0.0
  %v2119 = vadd.f32 %v2117, %v2118
  %v2120 = vsel %vm2080, %v1651, 0.0
  %v2121 = vadd.f32 %v2119, %v2120
  %v2122 = vsel %vm2080, %v1652, 0.0
  %v2123 = vadd.f32 %v2121, %v2122
  %v2124 = vsel %vm2080, %v1653, 0.0
  %v2125 = vadd.f32 %v2123, %v2124
  %v2126 = vsel %vm2080, %v1654, 0.0
  %v2127 = vadd.f32 %v2125, %v2126
  %v2128 = vsel %vm2080, %v1655, 0.0
  %v2129 = vadd.f32 %v2127, %v2128
  %v2130 = vsel %vm2080, %v1656, 0.0
  %v2131 = vadd.f32 %v2129, %v2130
  %v2132 = vsel %vm2080, %v1657, 0.0
  %v2133 = vadd.f32 %v2131, %v2132
  %v2134 = vsel %vm2080, %v1658, 0.0
  %v2135 = vadd.f32 %v2133, %v2134
  %v2136 = vsel %vm2080, %v1659, 0.0
  %v2137 = vadd.f32 %v2135, %v2136
  %v2138 = vsel %vm2080, %v1660, 0.0
  %v2139 = vadd.f32 %v2137, %v2138
  %v2140 = vsel %vm2080, %v1661, 0.0
  %v2141 = vadd.f32 %v2139, %v2140
  %v2142 = vsel %vm2080, %v1662, 0.0
  %v2143 = vadd.f32 %v2141, %v2142
  %v2144 = vsel %vm2080, %v1663, 0.0
  %v2145 = vadd.f32 %v2143, %v2144
  %v2146 = vsel %vm2080, %v1664, 0.0
  %v2147 = vadd.f32 %v2145, %v2146
  %v2148 = vsel %vm2080, %v1665, 0.0
  %v2149 = vadd.f32 %v2147, %v2148
  %v2150 = vsel %vm2080, %v1666, 0.0
  %v2151 = vadd.f32 %v2149, %v2150
  %v2152 = vsel %vm2080, %v1667, 0.0
  %v2153 = vadd.f32 %v2151, %v2152
  %v2154 = vsel %vm2080, %v1668, 0.0
  %v2155 = vadd.f32 %v2153, %v2154
  %v2156 = vsel %vm2080, %v1669, 0.0
  %v2157 = vadd.f32 %v2155, %v2156
  %v2158 = vsel %vm2080, %v1670, 0.0
  %v2159 = vadd.f32 %v2157, %v2158
  %v2160 = vsel %vm2080, %v1671, 0.0
  %v2161 = vadd.f32 %v2159, %v2160
  %v2162 = vsel %vm2080, %v1672, 0.0
  %v2163 = vadd.f32 %v2161, %v2162
  %v2164 = vsel %vm2080, %v1673, 0.0
  %v2165 = vadd.f32 %v2163, %v2164
  %v2166 = vsel %vm2080, %v1674, 0.0
  %v2167 = vadd.f32 %v2165, %v2166
  %v2168 = vsel %vm2080, %v1675, 0.0
  %v2169 = vadd.f32 %v2167, %v2168
  %v2170 = vsel %vm2080, %v1676, 0.0
  %v2171 = vadd.f32 %v2169, %v2170
  %v2172 = vsel %vm2080, %v1677, 0.0
  %v2173 = vadd.f32 %v2171, %v2172
  %v2174 = vsel %vm2080, %v1678, 0.0
  %v2175 = vadd.f32 %v2173, %v2174
  %v2176 = vsel %vm2080, %v1679, 0.0
  %v2177 = vadd.f32 %v2175, %v2176
  %v2178 = vsel %vm2080, %v1680, 0.0
  %v2179 = vadd.f32 %v2177, %v2178
  %v2180 = vsel %vm2080, %v1681, 0.0
  %v2181 = vadd.f32 %v2179, %v2180
  %v2182 = vsel %vm2080, %v1682, 0.0
  %v2183 = vadd.f32 %v2181, %v2182
  %v2184 = vsel %vm2080, %v1683, 0.0
  %v2185 = vadd.f32 %v2183, %v2184
  %v2186 = vsel %vm2080, %v1684, 0.0
  %v2187 = vadd.f32 %v2185, %v2186
  %v2188 = vsel %vm2080, %v1685, 0.0
  %v2189 = vadd.f32 %v2187, %v2188
  %v2190 = vsel %vm2080, %v1686, 0.0
  %v2191 = vadd.f32 %v2189, %v2190
  %v2192 = vsel %vm2080, %v1687, 0.0
  %v2193 = vadd.f32 %v2191, %v2192
  %v2194 = vsel %vm2080, %v1688, 0.0
  %v2195 = vadd.f32 %v2193, %v2194
  %v2196 = vsel %vm2080, %v1689, 0.0
  %v2197 = vadd.f32 %v2195, %v2196
  %v2198 = vsel %vm2080, %v1690, 0.0
  %v2199 = vadd.f32 %v2197, %v2198
  %v2200 = vsel %vm2080, %v1691, 0.0
  %v2201 = vadd.f32 %v2199, %v2200
  %v2202 = vsel %vm2080, %v1692, 0.0
  %v2203 = vadd.f32 %v2201, %v2202
  %v2204 = vsel %vm2080, %v1693, 0.0
  %v2205 = vadd.f32 %v2203, %v2204
  %v2206 = vsel %vm2080, %v1694, 0.0
  %v2207 = vadd.f32 %v2205, %v2206
  %v2208 = vrot.slane %v2207, 4
  %v2209 = vadd.f32 %v2207, %v2208
  %v2210 = vrot.slane %v2209, 2
  %v2211 = vadd.f32 %v2209, %v2210
  %v2212 = vrot.slane %v2211, 1
  %v2213 = vadd.f32 %v2211, %v2212
  %v2214 = vsel %vm2080, %v2016, 0.0
  %v2215 = vsel %vm2080, %v2017, 0.0
  %v2216 = vadd.f32 %v2214, %v2215
  %v2217 = vsel %vm2080, %v2018, 0.0
  %v2218 = vadd.f32 %v2216, %v2217
  %v2219 = vsel %vm2080, %v2019, 0.0
  %v2220 = vadd.f32 %v2218, %v2219
  %v2221 = vsel %vm2080, %v2020, 0.0
  %v2222 = vadd.f32 %v2220, %v2221
  %v2223 = vsel %vm2080, %v2021, 0.0
  %v2224 = vadd.f32 %v2222, %v2223
  %v2225 = vsel %vm2080, %v2022, 0.0
  %v2226 = vadd.f32 %v2224, %v2225
  %v2227 = vsel %vm2080, %v2023, 0.0
  %v2228 = vadd.f32 %v2226, %v2227
  %v2229 = vsel %vm2080, %v2024, 0.0
  %v2230 = vadd.f32 %v2228, %v2229
  %v2231 = vsel %vm2080, %v2025, 0.0
  %v2232 = vadd.f32 %v2230, %v2231
  %v2233 = vsel %vm2080, %v2026, 0.0
  %v2234 = vadd.f32 %v2232, %v2233
  %v2235 = vsel %vm2080, %v2027, 0.0
  %v2236 = vadd.f32 %v2234, %v2235
  %v2237 = vsel %vm2080, %v2028, 0.0
  %v2238 = vadd.f32 %v2236, %v2237
  %v2239 = vsel %vm2080, %v2029, 0.0
  %v2240 = vadd.f32 %v2238, %v2239
  %v2241 = vsel %vm2080, %v2030, 0.0
  %v2242 = vadd.f32 %v2240, %v2241
  %v2243 = vsel %vm2080, %v2031, 0.0
  %v2244 = vadd.f32 %v2242, %v2243
  %v2245 = vsel %vm2080, %v2032, 0.0
  %v2246 = vadd.f32 %v2244, %v2245
  %v2247 = vsel %vm2080, %v2033, 0.0
  %v2248 = vadd.f32 %v2246, %v2247
  %v2249 = vsel %vm2080, %v2034, 0.0
  %v2250 = vadd.f32 %v2248, %v2249
  %v2251 = vsel %vm2080, %v2035, 0.0
  %v2252 = vadd.f32 %v2250, %v2251
  %v2253 = vsel %vm2080, %v2036, 0.0
  %v2254 = vadd.f32 %v2252, %v2253
  %v2255 = vsel %vm2080, %v2037, 0.0
  %v2256 = vadd.f32 %v2254, %v2255
  %v2257 = vsel %vm2080, %v2038, 0.0
  %v2258 = vadd.f32 %v2256, %v2257
  %v2259 = vsel %vm2080, %v2039, 0.0
  %v2260 = vadd.f32 %v2258, %v2259
  %v2261 = vsel %vm2080, %v2040, 0.0
  %v2262 = vadd.f32 %v2260, %v2261
  %v2263 = vsel %vm2080, %v2041, 0.0
  %v2264 = vadd.f32 %v2262, %v2263
  %v2265 = vsel %vm2080, %v2042, 0.0
  %v2266 = vadd.f32 %v2264, %v2265
  %v2267 = vsel %vm2080, %v2043, 0.0
  %v2268 = vadd.f32 %v2266, %v2267
  %v2269 = vsel %vm2080, %v2044, 0.0
  %v2270 = vadd.f32 %v2268, %v2269
  %v2271 = vsel %vm2080, %v2045, 0.0
  %v2272 = vadd.f32 %v2270, %v2271
  %v2273 = vsel %vm2080, %v2046, 0.0
  %v2274 = vadd.f32 %v2272, %v2273
  %v2275 = vsel %vm2080, %v2047, 0.0
  %v2276 = vadd.f32 %v2274, %v2275
  %v2277 = vsel %vm2080, %v2048, 0.0
  %v2278 = vadd.f32 %v2276, %v2277
  %v2279 = vsel %vm2080, %v2049, 0.0
  %v2280 = vadd.f32 %v2278, %v2279
  %v2281 = vsel %vm2080, %v2050, 0.0
  %v2282 = vadd.f32 %v2280, %v2281
  %v2283 = vsel %vm2080, %v2051, 0.0
  %v2284 = vadd.f32 %v2282, %v2283
  %v2285 = vsel %vm2080, %v2052, 0.0
  %v2286 = vadd.f32 %v2284, %v2285
  %v2287 = vsel %vm2080, %v2053, 0.0
  %v2288 = vadd.f32 %v2286, %v2287
  %v2289 = vsel %vm2080, %v2054, 0.0
  %v2290 = vadd.f32 %v2288, %v2289
  %v2291 = vsel %vm2080, %v2055, 0.0
  %v2292 = vadd.f32 %v2290, %v2291
  %v2293 = vsel %vm2080, %v2056, 0.0
  %v2294 = vadd.f32 %v2292, %v2293
  %v2295 = vsel %vm2080, %v2057, 0.0
  %v2296 = vadd.f32 %v2294, %v2295
  %v2297 = vsel %vm2080, %v2058, 0.0
  %v2298 = vadd.f32 %v2296, %v2297
  %v2299 = vsel %vm2080, %v2059, 0.0
  %v2300 = vadd.f32 %v2298, %v2299
  %v2301 = vsel %vm2080, %v2060, 0.0
  %v2302 = vadd.f32 %v2300, %v2301
  %v2303 = vsel %vm2080, %v2061, 0.0
  %v2304 = vadd.f32 %v2302, %v2303
  %v2305 = vsel %vm2080, %v2062, 0.0
  %v2306 = vadd.f32 %v2304, %v2305
  %v2307 = vsel %vm2080, %v2063, 0.0
  %v2308 = vadd.f32 %v2306, %v2307
  %v2309 = vsel %vm2080, %v2064, 0.0
  %v2310 = vadd.f32 %v2308, %v2309
  %v2311 = vsel %vm2080, %v2065, 0.0
  %v2312 = vadd.f32 %v2310, %v2311
  %v2313 = vsel %vm2080, %v2066, 0.0
  %v2314 = vadd.f32 %v2312, %v2313
  %v2315 = vsel %vm2080, %v2067, 0.0
  %v2316 = vadd.f32 %v2314, %v2315
  %v2317 = vsel %vm2080, %v2068, 0.0
  %v2318 = vadd.f32 %v2316, %v2317
  %v2319 = vsel %vm2080, %v2069, 0.0
  %v2320 = vadd.f32 %v2318, %v2319
  %v2321 = vsel %vm2080, %v2070, 0.0
  %v2322 = vadd.f32 %v2320, %v2321
  %v2323 = vsel %vm2080, %v2071, 0.0
  %v2324 = vadd.f32 %v2322, %v2323
  %v2325 = vsel %vm2080, %v2072, 0.0
  %v2326 = vadd.f32 %v2324, %v2325
  %v2327 = vsel %vm2080, %v2073, 0.0
  %v2328 = vadd.f32 %v2326, %v2327
  %v2329 = vsel %vm2080, %v2074, 0.0
  %v2330 = vadd.f32 %v2328, %v2329
  %v2331 = vsel %vm2080, %v2075, 0.0
  %v2332 = vadd.f32 %v2330, %v2331
  %v2333 = vsel %vm2080, %v2076, 0.0
  %v2334 = vadd.f32 %v2332, %v2333
  %v2335 = vsel %vm2080, %v2077, 0.0
  %v2336 = vadd.f32 %v2334, %v2335
  %v2337 = vsel %vm2080, %v2078, 0.0
  %v2338 = vadd.f32 %v2336, %v2337
  %v2339 = vsel %vm2080, %v2079, 0.0
  %v2340 = vadd.f32 %v2338, %v2339
  %v2341 = vrot.slane %v2340, 4
  %v2342 = vadd.f32 %v2340, %v2341
  %v2343 = vrot.slane %v2342, 2
  %v2344 = vadd.f32 %v2342, %v2343
  %v2345 = vrot.slane %v2344, 1
  %v2346 = vadd.f32 %v2344, %v2345
  %vm2347 = vcmask 1040384
  %v2348 = vsel %vm2347, %v2213, %v2346
  %vm2349 = vcmask 517120
  %2350 = vst.msk [vmem:[%s3] sm:$0x3] %vm2349, %v2348
  // Predicated region
  $region10: #{bottleneck_forward.4} parent=0 // pred_check
    _
  $region11: #{bottleneck_forward.4} parent=0 // pred_check_branch
    %2352 = sbr.rel (0) target = $region13
  $region12: #{bottleneck_forward.4} parent=0 // pred_region
    _
  $region13: #{bottleneck_forward.4} parent=0 // pred_fallthru
    _
  // Predicated region
  $region14: #{bottleneck_forward.4} parent=0 // pred_check
    _
  $region15: #{bottleneck_forward.4} parent=0 // pred_check_branch
    %2354 = sbr.rel (0) target = $region17
  $region16: #{bottleneck_forward.4} parent=0 // pred_region
    _
  $region17: #{bottleneck_forward.4} parent=0 // pred_fallthru
    _
  // Predicated region
  $region18: #{bottleneck_forward.4} parent=0 // pred_check
    _
  $region19: #{bottleneck_forward.4} parent=0 // pred_check_branch
    %2356 = sbr.rel (0) target = $region21
  $region20: #{bottleneck_forward.4} parent=0 // pred_region
    _
  $region21: #{bottleneck_forward.4} parent=0 // pred_fallthru
    _
  // Predicated region
  $region22: #{bottleneck_forward.4} parent=0 // pred_check
    _
  $region23: #{bottleneck_forward.4} parent=0 // pred_check_branch
    %2358 = sbr.rel (0) target = $region25
  $region24: #{bottleneck_forward.4} parent=0 // pred_region
    _
  $region25: #{bottleneck_forward.4} parent=0 // pred_fallthru
    _

// kernel: bottleneck_forward.6
$region0: #{bottleneck_forward.6}
  #allocation0 [shape = 'u32[]', space=smem, size = 0x4, offset = 0x4, fixed_abs, tag = 'smem constant byte address 0x4 - core index']
  #allocation1 [shape = 'u32[144,128]{1,0:T(1,128)}', space=vmem, size = 0x12000, scoped, tag = 'internal scratch']
  %s0 = inlined_call_operand.vmem [shape: bf16[512,64], index: 0, kind: input, shape index: {}]
  %s1 = inlined_call_operand.vmem [shape: f32[2,64], index: 1, kind: input, shape index: {}]
  %s2 = inlined_call_operand.vmem [shape: bf16[64,4], index: 2, kind: input, shape index: {}]
  %s3 = inlined_call_operand.vmem [shape: bf16[512,4], index: 3, kind: output, shape index: {0}]
  %s4 = inlined_call_operand.vmem [shape: f32[1,2,4], index: 4, kind: output, shape index: {1}]
  %5 = xla_tuple %s3, %s4
  %s6 = sld [smem:[#allocation0]]
  $region30: #{bottleneck_forward.6} parent=0
    _
  %s8 = ssub.s32 1, %s6
  %s9 = scalar_select 0, %s8, %s6
  // Predicated region
  $region2: #{bottleneck_forward.6} parent=0 // pred_check
    _
  $region3: #{bottleneck_forward.6} parent=0 // pred_check_branch
    %11 = sbr.rel (0) target = $region5
  $region4: #{bottleneck_forward.6} parent=0 // pred_region
    _
  $region5: #{bottleneck_forward.6} parent=0 // pred_fallthru
    _
  // Predicated region
  $region6: #{bottleneck_forward.6} parent=0 // pred_check
    _
  $region7: #{bottleneck_forward.6} parent=0 // pred_check_branch
    %13 = sbr.rel (0) target = $region9
  $region8: #{bottleneck_forward.6} parent=0 // pred_region
    _
  $region9: #{bottleneck_forward.6} parent=0 // pred_fallthru
    _
  // Predicated region
  $region10: #{bottleneck_forward.6} parent=0 // pred_check
    _
  $region11: #{bottleneck_forward.6} parent=0 // pred_check_branch
    %15 = sbr.rel (0) target = $region13
  $region12: #{bottleneck_forward.6} parent=0 // pred_region
    _
  $region13: #{bottleneck_forward.6} parent=0 // pred_fallthru
    _
  %v17 = vld [vmem:[%s0] sm:$0xf]
  %v18 = vld [vmem:[%s0 + $0x4] sm:$0xf]
  %v19 = vld [vmem:[%s0 + $0x8] sm:$0xf]
  %v20 = vld [vmem:[%s0 + $0xc] sm:$0xf]
  %v21 = vld [vmem:[%s0 + $0x10] sm:$0xf]
  %v22 = vld [vmem:[%s0 + $0x14] sm:$0xf]
  %v23 = vld [vmem:[%s0 + $0x18] sm:$0xf]
  %v24 = vld [vmem:[%s0 + $0x1c] sm:$0xf]
  %v25 = vld [vmem:[%s0 + $0x20] sm:$0xf]
  %v26 = vld [vmem:[%s0 + $0x24] sm:$0xf]
  %v27 = vld [vmem:[%s0 + $0x28] sm:$0xf]
  %v28 = vld [vmem:[%s0 + $0x2c] sm:$0xf]
  %v29 = vld [vmem:[%s0 + $0x30] sm:$0xf]
  %v30 = vld [vmem:[%s0 + $0x34] sm:$0xf]
  %v31 = vld [vmem:[%s0 + $0x38] sm:$0xf]
  %v32 = vld [vmem:[%s0 + $0x3c] sm:$0xf]
  %v33 = vld [vmem:[%s0 + $0x40] sm:$0xf]
  %v34 = vld [vmem:[%s0 + $0x44] sm:$0xf]
  %v35 = vld [vmem:[%s0 + $0x48] sm:$0xf]
  %v36 = vld [vmem:[%s0 + $0x4c] sm:$0xf]
  %v37 = vld [vmem:[%s0 + $0x50] sm:$0xf]
  %v38 = vld [vmem:[%s0 + $0x54] sm:$0xf]
  %v39 = vld [vmem:[%s0 + $0x58] sm:$0xf]
  %v40 = vld [vmem:[%s0 + $0x5c] sm:$0xf]
  %v41 = vld [vmem:[%s0 + $0x60] sm:$0xf]
  %v42 = vld [vmem:[%s0 + $0x64] sm:$0xf]
  %v43 = vld [vmem:[%s0 + $0x68] sm:$0xf]
  %v44 = vld [vmem:[%s0 + $0x6c] sm:$0xf]
  %v45 = vld [vmem:[%s0 + $0x70] sm:$0xf]
  %v46 = vld [vmem:[%s0 + $0x74] sm:$0xf]
  %v47 = vld [vmem:[%s0 + $0x78] sm:$0xf]
  %v48 = vld [vmem:[%s0 + $0x7c] sm:$0xf]
  %v49 = vld [vmem:[%s0 + $0x80] sm:$0xf]
  %v50 = vld [vmem:[%s0 + $0x84] sm:$0xf]
  %v51 = vld [vmem:[%s0 + $0x88] sm:$0xf]
  %v52 = vld [vmem:[%s0 + $0x8c] sm:$0xf]
  %v53 = vld [vmem:[%s0 + $0x90] sm:$0xf]
  %v54 = vld [vmem:[%s0 + $0x94] sm:$0xf]
  %v55 = vld [vmem:[%s0 + $0x98] sm:$0xf]
  %v56 = vld [vmem:[%s0 + $0x9c] sm:$0xf]
  %v57 = vld [vmem:[%s0 + $0xa0] sm:$0xf]
  %v58 = vld [vmem:[%s0 + $0xa4] sm:$0xf]
  %v59 = vld [vmem:[%s0 + $0xa8] sm:$0xf]
  %v60 = vld [vmem:[%s0 + $0xac] sm:$0xf]
  %v61 = vld [vmem:[%s0 + $0xb0] sm:$0xf]
  %v62 = vld [vmem:[%s0 + $0xb4] sm:$0xf]
  %v63 = vld [vmem:[%s0 + $0xb8] sm:$0xf]
  %v64 = vld [vmem:[%s0 + $0xbc] sm:$0xf]
  %v65 = vld [vmem:[%s0 + $0xc0] sm:$0xf]
  %v66 = vld [vmem:[%s0 + $0xc4] sm:$0xf]
  %v67 = vld [vmem:[%s0 + $0xc8] sm:$0xf]
  %v68 = vld [vmem:[%s0 + $0xcc] sm:$0xf]
  %v69 = vld [vmem:[%s0 + $0xd0] sm:$0xf]
  %v70 = vld [vmem:[%s0 + $0xd4] sm:$0xf]
  %v71 = vld [vmem:[%s0 + $0xd8] sm:$0xf]
  %v72 = vld [vmem:[%s0 + $0xdc] sm:$0xf]
  %v73 = vld [vmem:[%s0 + $0xe0] sm:$0xf]
  %v74 = vld [vmem:[%s0 + $0xe4] sm:$0xf]
  %v75 = vld [vmem:[%s0 + $0xe8] sm:$0xf]
  %v76 = vld [vmem:[%s0 + $0xec] sm:$0xf]
  %v77 = vld [vmem:[%s0 + $0xf0] sm:$0xf]
  %v78 = vld [vmem:[%s0 + $0xf4] sm:$0xf]
  %v79 = vld [vmem:[%s0 + $0xf8] sm:$0xf]
  %v80 = vld [vmem:[%s0 + $0xfc] sm:$0xf]
  %v81 = vunpack.c.l.bf16 %v17
  %v82 = vunpack.c.l.bf16 %v18
  %v83 = vunpack.c.l.bf16 %v19
  %v84 = vunpack.c.l.bf16 %v20
  %v85 = vunpack.c.l.bf16 %v21
  %v86 = vunpack.c.l.bf16 %v22
  %v87 = vunpack.c.l.bf16 %v23
  %v88 = vunpack.c.l.bf16 %v24
  %v89 = vunpack.c.l.bf16 %v25
  %v90 = vunpack.c.l.bf16 %v26
  %v91 = vunpack.c.l.bf16 %v27
  %v92 = vunpack.c.l.bf16 %v28
  %v93 = vunpack.c.l.bf16 %v29
  %v94 = vunpack.c.l.bf16 %v30
  %v95 = vunpack.c.l.bf16 %v31
  %v96 = vunpack.c.l.bf16 %v32
  %v97 = vunpack.c.l.bf16 %v33
  %v98 = vunpack.c.l.bf16 %v34
  %v99 = vunpack.c.l.bf16 %v35
  %v100 = vunpack.c.l.bf16 %v36
  %v101 = vunpack.c.l.bf16 %v37
  %v102 = vunpack.c.l.bf16 %v38
  %v103 = vunpack.c.l.bf16 %v39
  %v104 = vunpack.c.l.bf16 %v40
  %v105 = vunpack.c.l.bf16 %v41
  %v106 = vunpack.c.l.bf16 %v42
  %v107 = vunpack.c.l.bf16 %v43
  %v108 = vunpack.c.l.bf16 %v44
  %v109 = vunpack.c.l.bf16 %v45
  %v110 = vunpack.c.l.bf16 %v46
  %v111 = vunpack.c.l.bf16 %v47
  %v112 = vunpack.c.l.bf16 %v48
  %v113 = vunpack.c.l.bf16 %v49
  %v114 = vunpack.c.l.bf16 %v50
  %v115 = vunpack.c.l.bf16 %v51
  %v116 = vunpack.c.l.bf16 %v52
  %v117 = vunpack.c.l.bf16 %v53
  %v118 = vunpack.c.l.bf16 %v54
  %v119 = vunpack.c.l.bf16 %v55
  %v120 = vunpack.c.l.bf16 %v56
  %v121 = vunpack.c.l.bf16 %v57
  %v122 = vunpack.c.l.bf16 %v58
  %v123 = vunpack.c.l.bf16 %v59
  %v124 = vunpack.c.l.bf16 %v60
  %v125 = vunpack.c.l.bf16 %v61
  %v126 = vunpack.c.l.bf16 %v62
  %v127 = vunpack.c.l.bf16 %v63
  %v128 = vunpack.c.l.bf16 %v64
  %v129 = vunpack.c.l.bf16 %v65
  %v130 = vunpack.c.l.bf16 %v66
  %v131 = vunpack.c.l.bf16 %v67
  %v132 = vunpack.c.l.bf16 %v68
  %v133 = vunpack.c.l.bf16 %v69
  %v134 = vunpack.c.l.bf16 %v70
  %v135 = vunpack.c.l.bf16 %v71
  %v136 = vunpack.c.l.bf16 %v72
  %v137 = vunpack.c.l.bf16 %v73
  %v138 = vunpack.c.l.bf16 %v74
  %v139 = vunpack.c.l.bf16 %v75
  %v140 = vunpack.c.l.bf16 %v76
  %v141 = vunpack.c.l.bf16 %v77
  %v142 = vunpack.c.l.bf16 %v78
  %v143 = vunpack.c.l.bf16 %v79
  %v144 = vunpack.c.l.bf16 %v80
  %v145 = vld [vmem:[%s1] sm:$0x1]
  %v146 = vlaneseq
  %v147 = vshrl.u32 %v146, 7
  %v148 = vsub.s32 0, %v147
  %v149 = vrot.slane %v145, %v148
  %v150 = vmul.f32 %v81, %v149
  %v151 = vmul.f32 %v82, %v149
  %v152 = vmul.f32 %v83, %v149
  %v153 = vmul.f32 %v84, %v149
  %v154 = vmul.f32 %v85, %v149
  %v155 = vmul.f32 %v86, %v149
  %v156 = vmul.f32 %v87, %v149
  %v157 = vmul.f32 %v88, %v149
  %v158 = vmul.f32 %v89, %v149
  %v159 = vmul.f32 %v90, %v149
  %v160 = vmul.f32 %v91, %v149
  %v161 = vmul.f32 %v92, %v149
  %v162 = vmul.f32 %v93, %v149
  %v163 = vmul.f32 %v94, %v149
  %v164 = vmul.f32 %v95, %v149
  %v165 = vmul.f32 %v96, %v149
  %v166 = vmul.f32 %v97, %v149
  %v167 = vmul.f32 %v98, %v149
  %v168 = vmul.f32 %v99, %v149
  %v169 = vmul.f32 %v100, %v149
  %v170 = vmul.f32 %v101, %v149
  %v171 = vmul.f32 %v102, %v149
  %v172 = vmul.f32 %v103, %v149
  %v173 = vmul.f32 %v104, %v149
  %v174 = vmul.f32 %v105, %v149
  %v175 = vmul.f32 %v106, %v149
  %v176 = vmul.f32 %v107, %v149
  %v177 = vmul.f32 %v108, %v149
  %v178 = vmul.f32 %v109, %v149
  %v179 = vmul.f32 %v110, %v149
  %v180 = vmul.f32 %v111, %v149
  %v181 = vmul.f32 %v112, %v149
  %v182 = vmul.f32 %v113, %v149
  %v183 = vmul.f32 %v114, %v149
  %v184 = vmul.f32 %v115, %v149
  %v185 = vmul.f32 %v116, %v149
  %v186 = vmul.f32 %v117, %v149
  %v187 = vmul.f32 %v118, %v149
  %v188 = vmul.f32 %v119, %v149
  %v189 = vmul.f32 %v120, %v149
  %v190 = vmul.f32 %v121, %v149
  %v191 = vmul.f32 %v122, %v149
  %v192 = vmul.f32 %v123, %v149
  %v193 = vmul.f32 %v124, %v149
  %v194 = vmul.f32 %v125, %v149
  %v195 = vmul.f32 %v126, %v149
  %v196 = vmul.f32 %v127, %v149
  %v197 = vmul.f32 %v128, %v149
  %v198 = vmul.f32 %v129, %v149
  %v199 = vmul.f32 %v130, %v149
  %v200 = vmul.f32 %v131, %v149
  %v201 = vmul.f32 %v132, %v149
  %v202 = vmul.f32 %v133, %v149
  %v203 = vmul.f32 %v134, %v149
  %v204 = vmul.f32 %v135, %v149
  %v205 = vmul.f32 %v136, %v149
  %v206 = vmul.f32 %v137, %v149
  %v207 = vmul.f32 %v138, %v149
  %v208 = vmul.f32 %v139, %v149
  %v209 = vmul.f32 %v140, %v149
  %v210 = vmul.f32 %v141, %v149
  %v211 = vmul.f32 %v142, %v149
  %v212 = vmul.f32 %v143, %v149
  %v213 = vmul.f32 %v144, %v149
  %v214 = vld [vmem:[%s1 + $0x1] sm:$0x1]
  %v215 = vlaneseq
  %v216 = vshrl.u32 %v215, 7
  %v217 = vsub.s32 0, %v216
  %v218 = vrot.slane %v214, %v217
  %v219 = vadd.f32 %v150, %v218
  %v220 = vadd.f32 %v151, %v218
  %v221 = vadd.f32 %v152, %v218
  %v222 = vadd.f32 %v153, %v218
  %v223 = vadd.f32 %v154, %v218
  %v224 = vadd.f32 %v155, %v218
  %v225 = vadd.f32 %v156, %v218
  %v226 = vadd.f32 %v157, %v218
  %v227 = vadd.f32 %v158, %v218
  %v228 = vadd.f32 %v159, %v218
  %v229 = vadd.f32 %v160, %v218
  %v230 = vadd.f32 %v161, %v218
  %v231 = vadd.f32 %v162, %v218
  %v232 = vadd.f32 %v163, %v218
  %v233 = vadd.f32 %v164, %v218
  %v234 = vadd.f32 %v165, %v218
  %v235 = vadd.f32 %v166, %v218
  %v236 = vadd.f32 %v167, %v218
  %v237 = vadd.f32 %v168, %v218
  %v238 = vadd.f32 %v169, %v218
  %v239 = vadd.f32 %v170, %v218
  %v240 = vadd.f32 %v171, %v218
  %v241 = vadd.f32 %v172, %v218
  %v242 = vadd.f32 %v173, %v218
  %v243 = vadd.f32 %v174, %v218
  %v244 = vadd.f32 %v175, %v218
  %v245 = vadd.f32 %v176, %v218
  %v246 = vadd.f32 %v177, %v218
  %v247 = vadd.f32 %v178, %v218
  %v248 = vadd.f32 %v179, %v218
  %v249 = vadd.f32 %v180, %v218
  %v250 = vadd.f32 %v181, %v218
  %v251 = vadd.f32 %v182, %v218
  %v252 = vadd.f32 %v183, %v218
  %v253 = vadd.f32 %v184, %v218
  %v254 = vadd.f32 %v185, %v218
  %v255 = vadd.f32 %v186, %v218
  %v256 = vadd.f32 %v187, %v218
  %v257 = vadd.f32 %v188, %v218
  %v258 = vadd.f32 %v189, %v218
  %v259 = vadd.f32 %v190, %v218
  %v260 = vadd.f32 %v191, %v218
  %v261 = vadd.f32 %v192, %v218
  %v262 = vadd.f32 %v193, %v218
  %v263 = vadd.f32 %v194, %v218
  %v264 = vadd.f32 %v195, %v218
  %v265 = vadd.f32 %v196, %v218
  %v266 = vadd.f32 %v197, %v218
  %v267 = vadd.f32 %v198, %v218
  %v268 = vadd.f32 %v199, %v218
  %v269 = vadd.f32 %v200, %v218
  %v270 = vadd.f32 %v201, %v218
  %v271 = vadd.f32 %v202, %v218
  %v272 = vadd.f32 %v203, %v218
  %v273 = vadd.f32 %v204, %v218
  %v274 = vadd.f32 %v205, %v218
  %v275 = vadd.f32 %v206, %v218
  %v276 = vadd.f32 %v207, %v218
  %v277 = vadd.f32 %v208, %v218
  %v278 = vadd.f32 %v209, %v218
  %v279 = vadd.f32 %v210, %v218
  %v280 = vadd.f32 %v211, %v218
  %v281 = vadd.f32 %v212, %v218
  %v282 = vadd.f32 %v213, %v218
  %v283 = vmax.f32 %v219, 0.0
  %v284 = vmax.f32 %v220, 0.0
  %v285 = vmax.f32 %v221, 0.0
  %v286 = vmax.f32 %v222, 0.0
  %v287 = vmax.f32 %v223, 0.0
  %v288 = vmax.f32 %v224, 0.0
  %v289 = vmax.f32 %v225, 0.0
  %v290 = vmax.f32 %v226, 0.0
  %v291 = vmax.f32 %v227, 0.0
  %v292 = vmax.f32 %v228, 0.0
  %v293 = vmax.f32 %v229, 0.0
  %v294 = vmax.f32 %v230, 0.0
  %v295 = vmax.f32 %v231, 0.0
  %v296 = vmax.f32 %v232, 0.0
  %v297 = vmax.f32 %v233, 0.0
  %v298 = vmax.f32 %v234, 0.0
  %v299 = vmax.f32 %v235, 0.0
  %v300 = vmax.f32 %v236, 0.0
  %v301 = vmax.f32 %v237, 0.0
  %v302 = vmax.f32 %v238, 0.0
  %v303 = vmax.f32 %v239, 0.0
  %v304 = vmax.f32 %v240, 0.0
  %v305 = vmax.f32 %v241, 0.0
  %v306 = vmax.f32 %v242, 0.0
  %v307 = vmax.f32 %v243, 0.0
  %v308 = vmax.f32 %v244, 0.0
  %v309 = vmax.f32 %v245, 0.0
  %v310 = vmax.f32 %v246, 0.0
  %v311 = vmax.f32 %v247, 0.0
  %v312 = vmax.f32 %v248, 0.0
  %v313 = vmax.f32 %v249, 0.0
  %v314 = vmax.f32 %v250, 0.0
  %v315 = vmax.f32 %v251, 0.0
  %v316 = vmax.f32 %v252, 0.0
  %v317 = vmax.f32 %v253, 0.0
  %v318 = vmax.f32 %v254, 0.0
  %v319 = vmax.f32 %v255, 0.0
  %v320 = vmax.f32 %v256, 0.0
  %v321 = vmax.f32 %v257, 0.0
  %v322 = vmax.f32 %v258, 0.0
  %v323 = vmax.f32 %v259, 0.0
  %v324 = vmax.f32 %v260, 0.0
  %v325 = vmax.f32 %v261, 0.0
  %v326 = vmax.f32 %v262, 0.0
  %v327 = vmax.f32 %v263, 0.0
  %v328 = vmax.f32 %v264, 0.0
  %v329 = vmax.f32 %v265, 0.0
  %v330 = vmax.f32 %v266, 0.0
  %v331 = vmax.f32 %v267, 0.0
  %v332 = vmax.f32 %v268, 0.0
  %v333 = vmax.f32 %v269, 0.0
  %v334 = vmax.f32 %v270, 0.0
  %v335 = vmax.f32 %v271, 0.0
  %v336 = vmax.f32 %v272, 0.0
  %v337 = vmax.f32 %v273, 0.0
  %v338 = vmax.f32 %v274, 0.0
  %v339 = vmax.f32 %v275, 0.0
  %v340 = vmax.f32 %v276, 0.0
  %v341 = vmax.f32 %v277, 0.0
  %v342 = vmax.f32 %v278, 0.0
  %v343 = vmax.f32 %v279, 0.0
  %v344 = vmax.f32 %v280, 0.0
  %v345 = vmax.f32 %v281, 0.0
  %v346 = vmax.f32 %v282, 0.0
  %v347 = vpack.c.bf16 %v284, %v283
  %v348 = vpack.c.bf16 %v286, %v285
  %v349 = vpack.c.bf16 %v288, %v287
  %v350 = vpack.c.bf16 %v290, %v289
  %v351 = vpack.c.bf16 %v292, %v291
  %v352 = vpack.c.bf16 %v294, %v293
  %v353 = vpack.c.bf16 %v296, %v295
  %v354 = vpack.c.bf16 %v298, %v297
  %v355 = vpack.c.bf16 %v300, %v299
  %v356 = vpack.c.bf16 %v302, %v301
  %v357 = vpack.c.bf16 %v304, %v303
  %v358 = vpack.c.bf16 %v306, %v305
  %v359 = vpack.c.bf16 %v308, %v307
  %v360 = vpack.c.bf16 %v310, %v309
  %v361 = vpack.c.bf16 %v312, %v311
  %v362 = vpack.c.bf16 %v314, %v313
  %v363 = vpack.c.bf16 %v316, %v315
  %v364 = vpack.c.bf16 %v318, %v317
  %v365 = vpack.c.bf16 %v320, %v319
  %v366 = vpack.c.bf16 %v322, %v321
  %v367 = vpack.c.bf16 %v324, %v323
  %v368 = vpack.c.bf16 %v326, %v325
  %v369 = vpack.c.bf16 %v328, %v327
  %v370 = vpack.c.bf16 %v330, %v329
  %v371 = vpack.c.bf16 %v332, %v331
  %v372 = vpack.c.bf16 %v334, %v333
  %v373 = vpack.c.bf16 %v336, %v335
  %v374 = vpack.c.bf16 %v338, %v337
  %v375 = vpack.c.bf16 %v340, %v339
  %v376 = vpack.c.bf16 %v342, %v341
  %v377 = vpack.c.bf16 %v344, %v343
  %v378 = vpack.c.bf16 %v346, %v345
  %v379 = vld [vmem:[%s2] sm:$0xf]
  %v380 = vld [vmem:[%s2 + $0x4] sm:$0xf]
  %v381 = vld [vmem:[%s2 + $0x8] sm:$0xf]
  %v382 = vld [vmem:[%s2 + $0xc] sm:$0xf]
  %v383 = vld [vmem:[%s2 + $0x10] sm:$0xf]
  %v384 = vld [vmem:[%s2 + $0x14] sm:$0xf]
  %v385 = vld [vmem:[%s2 + $0x18] sm:$0xf]
  %v386 = vld [vmem:[%s2 + $0x1c] sm:$0xf]
  %v395 = vunpack.c.l.b16 %v379
  %v396 = vunpack.c.l.b16 %v380
  %v397 = vunpack.c.l.b16 %v381
  %v398 = vunpack.c.l.b16 %v382
  %v399 = vunpack.c.l.b16 %v383
  %v400 = vunpack.c.l.b16 %v384
  %v401 = vunpack.c.l.b16 %v385
  %v402 = vunpack.c.l.b16 %v386
  %v403 = vpack.c.b16 %v396, %v395
  %v404 = vpack.c.b16 %v398, %v397
  %v405 = vpack.c.b16 %v400, %v399
  %v406 = vpack.c.b16 %v402, %v401
  %vm411 = vcmask 523264
  %v413 = vsel %vm411, %v347, 0
  %v416 = vsel %vm411, %v348, 0
  %v419 = vsel %vm411, %v349, 0
  %v422 = vsel %vm411, %v350, 0
  %v425 = vsel %vm411, %v351, 0
  %v428 = vsel %vm411, %v352, 0
  %v431 = vsel %vm411, %v353, 0
  %v434 = vsel %vm411, %v354, 0
  %v437 = vsel %vm411, %v355, 0
  %v440 = vsel %vm411, %v356, 0
  %v443 = vsel %vm411, %v357, 0
  %v446 = vsel %vm411, %v358, 0
  %v449 = vsel %vm411, %v359, 0
  %v452 = vsel %vm411, %v360, 0
  %v455 = vsel %vm411, %v361, 0
  %v458 = vsel %vm411, %v362, 0
  %v461 = vsel %vm411, %v363, 0
  %v464 = vsel %vm411, %v364, 0
  %v467 = vsel %vm411, %v365, 0
  %v470 = vsel %vm411, %v366, 0
  %v473 = vsel %vm411, %v367, 0
  %v476 = vsel %vm411, %v368, 0
  %v479 = vsel %vm411, %v369, 0
  %v482 = vsel %vm411, %v370, 0
  %v485 = vsel %vm411, %v371, 0
  %v488 = vsel %vm411, %v372, 0
  %v491 = vsel %vm411, %v373, 0
  %v494 = vsel %vm411, %v374, 0
  %v497 = vsel %vm411, %v375, 0
  %v500 = vsel %vm411, %v376, 0
  %v503 = vsel %vm411, %v377, 0
  %v506 = vsel %vm411, %v378, 0
  %508 = vmatprep.subr.bf16.mxu0 0
  %509 = vmatpush1.bf16.msra.mxu0 0
  %510 = vmatprep.subr.bf16.mxu0 0
  %511 = vmatpush1.bf16.msra.mxu0 0
  %512 = vmatprep.subr.bf16.mxu0 0
  %513 = vmatpush1.bf16.msra.mxu0 0
  %514 = vmatprep.subr.bf16.mxu0 0
  %515 = vmatpush1.bf16.msra.mxu0 0
  %516 = vmatprep.subr.bf16.mxu0 0
  %517 = vmatpush1.bf16.msra.mxu0 %v406
  %518 = vmatprep.subr.bf16.mxu0 0
  %519 = vmatpush1.bf16.msra.mxu0 %v405
  %520 = vmatprep.subr.bf16.mxu0 0
  %521 = vmatpush1.bf16.msra.mxu0 %v404
  %522 = vmatprep.subr.bf16.mxu0 0
  %523 = vmatpush1.bf16.msra.mxu0 %v403
  %524 = vmatprep.subr.bf16.mxu0 0
  %525 = vmatpush2.bf16.msra.mxu0 0
  %526 = vmatprep.subr.bf16.mxu0 0
  %527 = vmatpush2.bf16.msra.mxu0 0
  %528 = vmatprep.subr.bf16.mxu0 0
  %529 = vmatpush2.bf16.msra.mxu0 0
  %530 = vmatprep.subr.bf16.mxu0 0
  %531 = vmatpush2.bf16.msra.mxu0 0
  %532 = vmatprep.subr.bf16.mxu0 0
  %533 = vmatpush2.bf16.msra.mxu0 0
  %534 = vmatprep.subr.bf16.mxu0 0
  %535 = vmatpush2.bf16.msra.mxu0 0
  %536 = vmatprep.subr.bf16.mxu0 0
  %537 = vmatpush2.bf16.msra.mxu0 0
  %538 = vmatprep.subr.bf16.mxu0 0
  %539 = vmatpush2.bf16.msra.mxu0 0
  %540 = vmatprep.mubr.bf16.mxu0 0
  %541 = vmatmul.mubr.bf16.gmra.mxu0 %v413
  %v542 = vpop.f32.mrf.mxu0
  %v543 = vadd.f32 0.0, %v542
  %v544 = vpop.f32.mrf.mxu0
  %v545 = vpop.f32.mrf.mxu0
  %v546 = vadd.f32 0.0, %v545
  %v547 = vpop.f32.mrf.mxu0
  %548 = vmatprep.mubr.bf16.mxu0 0
  %549 = vmatmul.mubr.bf16.gmra.mxu0 %v416
  %v550 = vpop.f32.mrf.mxu0
  %v551 = vadd.f32 0.0, %v550
  %v552 = vpop.f32.mrf.mxu0
  %v553 = vpop.f32.mrf.mxu0
  %v554 = vadd.f32 0.0, %v553
  %v555 = vpop.f32.mrf.mxu0
  %556 = vmatprep.mubr.bf16.mxu0 0
  %557 = vmatmul.mubr.bf16.gmra.mxu0 %v419
  %v558 = vpop.f32.mrf.mxu0
  %v559 = vadd.f32 0.0, %v558
  %v560 = vpop.f32.mrf.mxu0
  %v561 = vpop.f32.mrf.mxu0
  %v562 = vadd.f32 0.0, %v561
  %v563 = vpop.f32.mrf.mxu0
  %564 = vmatprep.mubr.bf16.mxu0 0
  %565 = vmatmul.mubr.bf16.gmra.mxu0 %v422
  %v566 = vpop.f32.mrf.mxu0
  %v567 = vadd.f32 0.0, %v566
  %v568 = vpop.f32.mrf.mxu0
  %v569 = vpop.f32.mrf.mxu0
  %v570 = vadd.f32 0.0, %v569
  %v571 = vpop.f32.mrf.mxu0
  %572 = vmatprep.mubr.bf16.mxu0 0
  %573 = vmatmul.mubr.bf16.gmra.mxu0 %v425
  %v574 = vpop.f32.mrf.mxu0
  %v575 = vadd.f32 0.0, %v574
  %v576 = vpop.f32.mrf.mxu0
  %v577 = vpop.f32.mrf.mxu0
  %v578 = vadd.f32 0.0, %v577
  %v579 = vpop.f32.mrf.mxu0
  %580 = vmatprep.mubr.bf16.mxu0 0
  %581 = vmatmul.mubr.bf16.gmra.mxu0 %v428
  %v582 = vpop.f32.mrf.mxu0
  %v583 = vadd.f32 0.0, %v582
  %v584 = vpop.f32.mrf.mxu0
  %v585 = vpop.f32.mrf.mxu0
  %v586 = vadd.f32 0.0, %v585
  %v587 = vpop.f32.mrf.mxu0
  %588 = vmatprep.mubr.bf16.mxu0 0
  %589 = vmatmul.mubr.bf16.gmra.mxu0 %v431
  %v590 = vpop.f32.mrf.mxu0
  %v591 = vadd.f32 0.0, %v590
  %v592 = vpop.f32.mrf.mxu0
  %v593 = vpop.f32.mrf.mxu0
  %v594 = vadd.f32 0.0, %v593
  %v595 = vpop.f32.mrf.mxu0
  %596 = vmatprep.mubr.bf16.mxu0 0
  %597 = vmatmul.mubr.bf16.gmra.mxu0 %v434
  %v598 = vpop.f32.mrf.mxu0
  %v599 = vadd.f32 0.0, %v598
  %v600 = vpop.f32.mrf.mxu0
  %v601 = vpop.f32.mrf.mxu0
  %v602 = vadd.f32 0.0, %v601
  %v603 = vpop.f32.mrf.mxu0
  %604 = vmatprep.mubr.bf16.mxu0 0
  %605 = vmatmul.mubr.bf16.gmra.mxu0 %v437
  %v606 = vpop.f32.mrf.mxu0
  %v607 = vadd.f32 0.0, %v606
  %v608 = vpop.f32.mrf.mxu0
  %v609 = vpop.f32.mrf.mxu0
  %v610 = vadd.f32 0.0, %v609
  %v611 = vpop.f32.mrf.mxu0
  %612 = vmatprep.mubr.bf16.mxu0 0
  %613 = vmatmul.mubr.bf16.gmra.mxu0 %v440
  %v614 = vpop.f32.mrf.mxu0
  %v615 = vadd.f32 0.0, %v614
  %v616 = vpop.f32.mrf.mxu0
  %v617 = vpop.f32.mrf.mxu0
  %v618 = vadd.f32 0.0, %v617
  %v619 = vpop.f32.mrf.mxu0
  %620 = vmatprep.mubr.bf16.mxu0 0
  %621 = vmatmul.mubr.bf16.gmra.mxu0 %v443
  %v622 = vpop.f32.mrf.mxu0
  %v623 = vadd.f32 0.0, %v622
  %v624 = vpop.f32.mrf.mxu0
  %v625 = vpop.f32.mrf.mxu0
  %v626 = vadd.f32 0.0, %v625
  %v627 = vpop.f32.mrf.mxu0
  %628 = vmatprep.mubr.bf16.mxu0 0
  %629 = vmatmul.mubr.bf16.gmra.mxu0 %v446
  %v630 = vpop.f32.mrf.mxu0
  %v631 = vadd.f32 0.0, %v630
  %v632 = vpop.f32.mrf.mxu0
  %v633 = vpop.f32.mrf.mxu0
  %v634 = vadd.f32 0.0, %v633
  %v635 = vpop.f32.mrf.mxu0
  %636 = vmatprep.mubr.bf16.mxu0 0
  %637 = vmatmul.mubr.bf16.gmra.mxu0 %v449
  %v638 = vpop.f32.mrf.mxu0
  %v639 = vadd.f32 0.0, %v638
  %v640 = vpop.f32.mrf.mxu0
  %v641 = vpop.f32.mrf.mxu0
  %v642 = vadd.f32 0.0, %v641
  %v643 = vpop.f32.mrf.mxu0
  %644 = vmatprep.mubr.bf16.mxu0 0
  %645 = vmatmul.mubr.bf16.gmra.mxu0 %v452
  %v646 = vpop.f32.mrf.mxu0
  %v647 = vadd.f32 0.0, %v646
  %v648 = vpop.f32.mrf.mxu0
  %v649 = vpop.f32.mrf.mxu0
  %v650 = vadd.f32 0.0, %v649
  %v651 = vpop.f32.mrf.mxu0
  %652 = vmatprep.mubr.bf16.mxu0 0
  %653 = vmatmul.mubr.bf16.gmra.mxu0 %v455
  %v654 = vpop.f32.mrf.mxu0
  %v655 = vadd.f32 0.0, %v654
  %v656 = vpop.f32.mrf.mxu0
  %v657 = vpop.f32.mrf.mxu0
  %v658 = vadd.f32 0.0, %v657
  %v659 = vpop.f32.mrf.mxu0
  %660 = vmatprep.mubr.bf16.mxu0 0
  %661 = vmatmul.mubr.bf16.gmra.mxu0 %v458
  %v662 = vpop.f32.mrf.mxu0
  %v663 = vadd.f32 0.0, %v662
  %v664 = vpop.f32.mrf.mxu0
  %v665 = vpop.f32.mrf.mxu0
  %v666 = vadd.f32 0.0, %v665
  %v667 = vpop.f32.mrf.mxu0
  %668 = vmatprep.mubr.bf16.mxu0 0
  %669 = vmatmul.mubr.bf16.gmra.mxu0 %v461
  %v670 = vpop.f32.mrf.mxu0
  %v671 = vadd.f32 0.0, %v670
  %v672 = vpop.f32.mrf.mxu0
  %v673 = vpop.f32.mrf.mxu0
  %v674 = vadd.f32 0.0, %v673
  %v675 = vpop.f32.mrf.mxu0
  %676 = vmatprep.mubr.bf16.mxu0 0
  %677 = vmatmul.mubr.bf16.gmra.mxu0 %v464
  %v678 = vpop.f32.mrf.mxu0
  %v679 = vadd.f32 0.0, %v678
  %v680 = vpop.f32.mrf.mxu0
  %v681 = vpop.f32.mrf.mxu0
  %v682 = vadd.f32 0.0, %v681
  %v683 = vpop.f32.mrf.mxu0
  %684 = vmatprep.mubr.bf16.mxu0 0
  %685 = vmatmul.mubr.bf16.gmra.mxu0 %v467
  %v686 = vpop.f32.mrf.mxu0
  %v687 = vadd.f32 0.0, %v686
  %v688 = vpop.f32.mrf.mxu0
  %v689 = vpop.f32.mrf.mxu0
  %v690 = vadd.f32 0.0, %v689
  %v691 = vpop.f32.mrf.mxu0
  %692 = vmatprep.mubr.bf16.mxu0 0
  %693 = vmatmul.mubr.bf16.gmra.mxu0 %v470
  %v694 = vpop.f32.mrf.mxu0
  %v695 = vadd.f32 0.0, %v694
  %v696 = vpop.f32.mrf.mxu0
  %v697 = vpop.f32.mrf.mxu0
  %v698 = vadd.f32 0.0, %v697
  %v699 = vpop.f32.mrf.mxu0
  %700 = vmatprep.mubr.bf16.mxu0 0
  %701 = vmatmul.mubr.bf16.gmra.mxu0 %v473
  %v702 = vpop.f32.mrf.mxu0
  %v703 = vadd.f32 0.0, %v702
  %v704 = vpop.f32.mrf.mxu0
  %v705 = vpop.f32.mrf.mxu0
  %v706 = vadd.f32 0.0, %v705
  %v707 = vpop.f32.mrf.mxu0
  %708 = vmatprep.mubr.bf16.mxu0 0
  %709 = vmatmul.mubr.bf16.gmra.mxu0 %v476
  %v710 = vpop.f32.mrf.mxu0
  %v711 = vadd.f32 0.0, %v710
  %v712 = vpop.f32.mrf.mxu0
  %v713 = vpop.f32.mrf.mxu0
  %v714 = vadd.f32 0.0, %v713
  %v715 = vpop.f32.mrf.mxu0
  %716 = vmatprep.mubr.bf16.mxu0 0
  %717 = vmatmul.mubr.bf16.gmra.mxu0 %v479
  %v718 = vpop.f32.mrf.mxu0
  %v719 = vadd.f32 0.0, %v718
  %v720 = vpop.f32.mrf.mxu0
  %v721 = vpop.f32.mrf.mxu0
  %v722 = vadd.f32 0.0, %v721
  %v723 = vpop.f32.mrf.mxu0
  %724 = vmatprep.mubr.bf16.mxu0 0
  %725 = vmatmul.mubr.bf16.gmra.mxu0 %v482
  %v726 = vpop.f32.mrf.mxu0
  %v727 = vadd.f32 0.0, %v726
  %v728 = vpop.f32.mrf.mxu0
  %v729 = vpop.f32.mrf.mxu0
  %v730 = vadd.f32 0.0, %v729
  %v731 = vpop.f32.mrf.mxu0
  %732 = vmatprep.mubr.bf16.mxu0 0
  %733 = vmatmul.mubr.bf16.gmra.mxu0 %v485
  %v734 = vpop.f32.mrf.mxu0
  %v735 = vadd.f32 0.0, %v734
  %v736 = vpop.f32.mrf.mxu0
  %v737 = vpop.f32.mrf.mxu0
  %v738 = vadd.f32 0.0, %v737
  %v739 = vpop.f32.mrf.mxu0
  %740 = vmatprep.mubr.bf16.mxu0 0
  %741 = vmatmul.mubr.bf16.gmra.mxu0 %v488
  %v742 = vpop.f32.mrf.mxu0
  %v743 = vadd.f32 0.0, %v742
  %v744 = vpop.f32.mrf.mxu0
  %v745 = vpop.f32.mrf.mxu0
  %v746 = vadd.f32 0.0, %v745
  %v747 = vpop.f32.mrf.mxu0
  %748 = vmatprep.mubr.bf16.mxu0 0
  %749 = vmatmul.mubr.bf16.gmra.mxu0 %v491
  %v750 = vpop.f32.mrf.mxu0
  %v751 = vadd.f32 0.0, %v750
  %v752 = vpop.f32.mrf.mxu0
  %v753 = vpop.f32.mrf.mxu0
  %v754 = vadd.f32 0.0, %v753
  %v755 = vpop.f32.mrf.mxu0
  %756 = vmatprep.mubr.bf16.mxu0 0
  %757 = vmatmul.mubr.bf16.gmra.mxu0 %v494
  %v758 = vpop.f32.mrf.mxu0
  %v759 = vadd.f32 0.0, %v758
  %v760 = vpop.f32.mrf.mxu0
  %v761 = vpop.f32.mrf.mxu0
  %v762 = vadd.f32 0.0, %v761
  %v763 = vpop.f32.mrf.mxu0
  %764 = vmatprep.mubr.bf16.mxu0 0
  %765 = vmatmul.mubr.bf16.gmra.mxu0 %v497
  %v766 = vpop.f32.mrf.mxu0
  %v767 = vadd.f32 0.0, %v766
  %v768 = vpop.f32.mrf.mxu0
  %v769 = vpop.f32.mrf.mxu0
  %v770 = vadd.f32 0.0, %v769
  %v771 = vpop.f32.mrf.mxu0
  %772 = vmatprep.mubr.bf16.mxu0 0
  %773 = vmatmul.mubr.bf16.gmra.mxu0 %v500
  %v774 = vpop.f32.mrf.mxu0
  %v775 = vadd.f32 0.0, %v774
  %v776 = vpop.f32.mrf.mxu0
  %v777 = vpop.f32.mrf.mxu0
  %v778 = vadd.f32 0.0, %v777
  %v779 = vpop.f32.mrf.mxu0
  %780 = vmatprep.mubr.bf16.mxu0 0
  %781 = vmatmul.mubr.bf16.gmra.mxu0 %v503
  %v782 = vpop.f32.mrf.mxu0
  %v783 = vadd.f32 0.0, %v782
  %v784 = vpop.f32.mrf.mxu0
  %v785 = vpop.f32.mrf.mxu0
  %v786 = vadd.f32 0.0, %v785
  %v787 = vpop.f32.mrf.mxu0
  %788 = vmatprep.mubr.bf16.mxu0 0
  %789 = vmatmul.mubr.bf16.gmra.mxu0 %v506
  %v790 = vpop.f32.mrf.mxu0
  %v791 = vadd.f32 0.0, %v790
  %v792 = vpop.f32.mrf.mxu0
  %v793 = vpop.f32.mrf.mxu0
  %v794 = vadd.f32 0.0, %v793
  %v795 = vpop.f32.mrf.mxu0
  %796 = vdwg.mxu0
  %v797 = vpack.c.bf16 %v546, %v543
  %v798 = vpack.c.bf16 %v554, %v551
  %v799 = vpack.c.bf16 %v562, %v559
  %v800 = vpack.c.bf16 %v570, %v567
  %v801 = vpack.c.bf16 %v578, %v575
  %v802 = vpack.c.bf16 %v586, %v583
  %v803 = vpack.c.bf16 %v594, %v591
  %v804 = vpack.c.bf16 %v602, %v599
  %v805 = vpack.c.bf16 %v610, %v607
  %v806 = vpack.c.bf16 %v618, %v615
  %v807 = vpack.c.bf16 %v626, %v623
  %v808 = vpack.c.bf16 %v634, %v631
  %v809 = vpack.c.bf16 %v642, %v639
  %v810 = vpack.c.bf16 %v650, %v647
  %v811 = vpack.c.bf16 %v658, %v655
  %v812 = vpack.c.bf16 %v666, %v663
  %v813 = vpack.c.bf16 %v674, %v671
  %v814 = vpack.c.bf16 %v682, %v679
  %v815 = vpack.c.bf16 %v690, %v687
  %v816 = vpack.c.bf16 %v698, %v695
  %v817 = vpack.c.bf16 %v706, %v703
  %v818 = vpack.c.bf16 %v714, %v711
  %v819 = vpack.c.bf16 %v722, %v719
  %v820 = vpack.c.bf16 %v730, %v727
  %v821 = vpack.c.bf16 %v738, %v735
  %v822 = vpack.c.bf16 %v746, %v743
  %v823 = vpack.c.bf16 %v754, %v751
  %v824 = vpack.c.bf16 %v762, %v759
  %v825 = vpack.c.bf16 %v770, %v767
  %v826 = vpack.c.bf16 %v778, %v775
  %v827 = vpack.c.bf16 %v786, %v783
  %v828 = vpack.c.bf16 %v794, %v791
  %v861 = vunpack.c.l.b16 %v797
  %v862 = vunpack.c.h.b16 %v797
  %v863 = vunpack.c.l.b16 %v798
  %v864 = vunpack.c.h.b16 %v798
  %v865 = vunpack.c.l.b16 %v799
  %v866 = vunpack.c.h.b16 %v799
  %v867 = vunpack.c.l.b16 %v800
  %v868 = vunpack.c.h.b16 %v800
  %v869 = vunpack.c.l.b16 %v801
  %v870 = vunpack.c.h.b16 %v801
  %v871 = vunpack.c.l.b16 %v802
  %v872 = vunpack.c.h.b16 %v802
  %v873 = vunpack.c.l.b16 %v803
  %v874 = vunpack.c.h.b16 %v803
  %v875 = vunpack.c.l.b16 %v804
  %v876 = vunpack.c.h.b16 %v804
  %v877 = vunpack.c.l.b16 %v805
  %v878 = vunpack.c.h.b16 %v805
  %v879 = vunpack.c.l.b16 %v806
  %v880 = vunpack.c.h.b16 %v806
  %v881 = vunpack.c.l.b16 %v807
  %v882 = vunpack.c.h.b16 %v807
  %v883 = vunpack.c.l.b16 %v808
  %v884 = vunpack.c.h.b16 %v808
  %v885 = vunpack.c.l.b16 %v809
  %v886 = vunpack.c.h.b16 %v809
  %v887 = vunpack.c.l.b16 %v810
  %v888 = vunpack.c.h.b16 %v810
  %v889 = vunpack.c.l.b16 %v811
  %v890 = vunpack.c.h.b16 %v811
  %v891 = vunpack.c.l.b16 %v812
  %v892 = vunpack.c.h.b16 %v812
  %v893 = vunpack.c.l.b16 %v813
  %v894 = vunpack.c.h.b16 %v813
  %v895 = vunpack.c.l.b16 %v814
  %v896 = vunpack.c.h.b16 %v814
  %v897 = vunpack.c.l.b16 %v815
  %v898 = vunpack.c.h.b16 %v815
  %v899 = vunpack.c.l.b16 %v816
  %v900 = vunpack.c.h.b16 %v816
  %v901 = vunpack.c.l.b16 %v817
  %v902 = vunpack.c.h.b16 %v817
  %v903 = vunpack.c.l.b16 %v818
  %v904 = vunpack.c.h.b16 %v818
  %v905 = vunpack.c.l.b16 %v819
  %v906 = vunpack.c.h.b16 %v819
  %v907 = vunpack.c.l.b16 %v820
  %v908 = vunpack.c.h.b16 %v820
  %v909 = vunpack.c.l.b16 %v821
  %v910 = vunpack.c.h.b16 %v821
  %v911 = vunpack.c.l.b16 %v822
  %v912 = vunpack.c.h.b16 %v822
  %v913 = vunpack.c.l.b16 %v823
  %v914 = vunpack.c.h.b16 %v823
  %v915 = vunpack.c.l.b16 %v824
  %v916 = vunpack.c.h.b16 %v824
  %v917 = vunpack.c.l.b16 %v825
  %v918 = vunpack.c.h.b16 %v825
  %v919 = vunpack.c.l.b16 %v826
  %v920 = vunpack.c.h.b16 %v826
  %v921 = vunpack.c.l.b16 %v827
  %v922 = vunpack.c.h.b16 %v827
  %v923 = vunpack.c.l.b16 %v828
  %v924 = vunpack.c.h.b16 %v828
  %v925 = vpack.c.b16 %v861, %v861
  %v926 = vpack.c.b16 %v862, %v862
  %v927 = vpack.c.b16 %v863, %v863
  %v928 = vpack.c.b16 %v864, %v864
  %v929 = vpack.c.b16 %v865, %v865
  %v930 = vpack.c.b16 %v866, %v866
  %v931 = vpack.c.b16 %v867, %v867
  %v932 = vpack.c.b16 %v868, %v868
  %v933 = vpack.c.b16 %v869, %v869
  %v934 = vpack.c.b16 %v870, %v870
  %v935 = vpack.c.b16 %v871, %v871
  %v936 = vpack.c.b16 %v872, %v872
  %v937 = vpack.c.b16 %v873, %v873
  %v938 = vpack.c.b16 %v874, %v874
  %v939 = vpack.c.b16 %v875, %v875
  %v940 = vpack.c.b16 %v876, %v876
  %v941 = vpack.c.b16 %v877, %v877
  %v942 = vpack.c.b16 %v878, %v878
  %v943 = vpack.c.b16 %v879, %v879
  %v944 = vpack.c.b16 %v880, %v880
  %v945 = vpack.c.b16 %v881, %v881
  %v946 = vpack.c.b16 %v882, %v882
  %v947 = vpack.c.b16 %v883, %v883
  %v948 = vpack.c.b16 %v884, %v884
  %v949 = vpack.c.b16 %v885, %v885
  %v950 = vpack.c.b16 %v886, %v886
  %v951 = vpack.c.b16 %v887, %v887
  %v952 = vpack.c.b16 %v888, %v888
  %v953 = vpack.c.b16 %v889, %v889
  %v954 = vpack.c.b16 %v890, %v890
  %v955 = vpack.c.b16 %v891, %v891
  %v956 = vpack.c.b16 %v892, %v892
  %v957 = vpack.c.b16 %v893, %v893
  %v958 = vpack.c.b16 %v894, %v894
  %v959 = vpack.c.b16 %v895, %v895
  %v960 = vpack.c.b16 %v896, %v896
  %v961 = vpack.c.b16 %v897, %v897
  %v962 = vpack.c.b16 %v898, %v898
  %v963 = vpack.c.b16 %v899, %v899
  %v964 = vpack.c.b16 %v900, %v900
  %v965 = vpack.c.b16 %v901, %v901
  %v966 = vpack.c.b16 %v902, %v902
  %v967 = vpack.c.b16 %v903, %v903
  %v968 = vpack.c.b16 %v904, %v904
  %v969 = vpack.c.b16 %v905, %v905
  %v970 = vpack.c.b16 %v906, %v906
  %v971 = vpack.c.b16 %v907, %v907
  %v972 = vpack.c.b16 %v908, %v908
  %v973 = vpack.c.b16 %v909, %v909
  %v974 = vpack.c.b16 %v910, %v910
  %v975 = vpack.c.b16 %v911, %v911
  %v976 = vpack.c.b16 %v912, %v912
  %v977 = vpack.c.b16 %v913, %v913
  %v978 = vpack.c.b16 %v914, %v914
  %v979 = vpack.c.b16 %v915, %v915
  %v980 = vpack.c.b16 %v916, %v916
  %v981 = vpack.c.b16 %v917, %v917
  %v982 = vpack.c.b16 %v918, %v918
  %v983 = vpack.c.b16 %v919, %v919
  %v984 = vpack.c.b16 %v920, %v920
  %v985 = vpack.c.b16 %v921, %v921
  %v986 = vpack.c.b16 %v922, %v922
  %v987 = vpack.c.b16 %v923, %v923
  %v988 = vpack.c.b16 %v924, %v924
  %vm1053 = vcmask 27648
  %1054 = vst.msk [vmem:[%s3] sm:$0xf] %vm1053, %v925
  %1055 = vst.msk [vmem:[%s3 + $0x4] sm:$0xf] %vm1053, %v926
  %1056 = vst.msk [vmem:[%s3 + $0x8] sm:$0xf] %vm1053, %v927
  %1057 = vst.msk [vmem:[%s3 + $0xc] sm:$0xf] %vm1053, %v928
  %1058 = vst.msk [vmem:[%s3 + $0x10] sm:$0xf] %vm1053, %v929
  %1059 = vst.msk [vmem:[%s3 + $0x14] sm:$0xf] %vm1053, %v930
  %1060 = vst.msk [vmem:[%s3 + $0x18] sm:$0xf] %vm1053, %v931
  %1061 = vst.msk [vmem:[%s3 + $0x1c] sm:$0xf] %vm1053, %v932
  %1062 = vst.msk [vmem:[%s3 + $0x20] sm:$0xf] %vm1053, %v933
  %1063 = vst.msk [vmem:[%s3 + $0x24] sm:$0xf] %vm1053, %v934
  %1064 = vst.msk [vmem:[%s3 + $0x28] sm:$0xf] %vm1053, %v935
  %1065 = vst.msk [vmem:[%s3 + $0x2c] sm:$0xf] %vm1053, %v936
  %1066 = vst.msk [vmem:[%s3 + $0x30] sm:$0xf] %vm1053, %v937
  %1067 = vst.msk [vmem:[%s3 + $0x34] sm:$0xf] %vm1053, %v938
  %1068 = vst.msk [vmem:[%s3 + $0x38] sm:$0xf] %vm1053, %v939
  %1069 = vst.msk [vmem:[%s3 + $0x3c] sm:$0xf] %vm1053, %v940
  %1070 = vst.msk [vmem:[%s3 + $0x40] sm:$0xf] %vm1053, %v941
  %1071 = vst.msk [vmem:[%s3 + $0x44] sm:$0xf] %vm1053, %v942
  %1072 = vst.msk [vmem:[%s3 + $0x48] sm:$0xf] %vm1053, %v943
  %1073 = vst.msk [vmem:[%s3 + $0x4c] sm:$0xf] %vm1053, %v944
  %1074 = vst.msk [vmem:[%s3 + $0x50] sm:$0xf] %vm1053, %v945
  %1075 = vst.msk [vmem:[%s3 + $0x54] sm:$0xf] %vm1053, %v946
  %1076 = vst.msk [vmem:[%s3 + $0x58] sm:$0xf] %vm1053, %v947
  %1077 = vst.msk [vmem:[%s3 + $0x5c] sm:$0xf] %vm1053, %v948
  %1078 = vst.msk [vmem:[%s3 + $0x60] sm:$0xf] %vm1053, %v949
  %1079 = vst.msk [vmem:[%s3 + $0x64] sm:$0xf] %vm1053, %v950
  %1080 = vst.msk [vmem:[%s3 + $0x68] sm:$0xf] %vm1053, %v951
  %1081 = vst.msk [vmem:[%s3 + $0x6c] sm:$0xf] %vm1053, %v952
  %1082 = vst.msk [vmem:[%s3 + $0x70] sm:$0xf] %vm1053, %v953
  %1083 = vst.msk [vmem:[%s3 + $0x74] sm:$0xf] %vm1053, %v954
  %1084 = vst.msk [vmem:[%s3 + $0x78] sm:$0xf] %vm1053, %v955
  %1085 = vst.msk [vmem:[%s3 + $0x7c] sm:$0xf] %vm1053, %v956
  %1086 = vst.msk [vmem:[%s3 + $0x80] sm:$0xf] %vm1053, %v957
  %1087 = vst.msk [vmem:[%s3 + $0x84] sm:$0xf] %vm1053, %v958
  %1088 = vst.msk [vmem:[%s3 + $0x88] sm:$0xf] %vm1053, %v959
  %1089 = vst.msk [vmem:[%s3 + $0x8c] sm:$0xf] %vm1053, %v960
  %1090 = vst.msk [vmem:[%s3 + $0x90] sm:$0xf] %vm1053, %v961
  %1091 = vst.msk [vmem:[%s3 + $0x94] sm:$0xf] %vm1053, %v962
  %1092 = vst.msk [vmem:[%s3 + $0x98] sm:$0xf] %vm1053, %v963
  %1093 = vst.msk [vmem:[%s3 + $0x9c] sm:$0xf] %vm1053, %v964
  %1094 = vst.msk [vmem:[%s3 + $0xa0] sm:$0xf] %vm1053, %v965
  %1095 = vst.msk [vmem:[%s3 + $0xa4] sm:$0xf] %vm1053, %v966
  %1096 = vst.msk [vmem:[%s3 + $0xa8] sm:$0xf] %vm1053, %v967
  %1097 = vst.msk [vmem:[%s3 + $0xac] sm:$0xf] %vm1053, %v968
  %1098 = vst.msk [vmem:[%s3 + $0xb0] sm:$0xf] %vm1053, %v969
  %1099 = vst.msk [vmem:[%s3 + $0xb4] sm:$0xf] %vm1053, %v970
  %1100 = vst.msk [vmem:[%s3 + $0xb8] sm:$0xf] %vm1053, %v971
  %1101 = vst.msk [vmem:[%s3 + $0xbc] sm:$0xf] %vm1053, %v972
  %1102 = vst.msk [vmem:[%s3 + $0xc0] sm:$0xf] %vm1053, %v973
  %1103 = vst.msk [vmem:[%s3 + $0xc4] sm:$0xf] %vm1053, %v974
  %1104 = vst.msk [vmem:[%s3 + $0xc8] sm:$0xf] %vm1053, %v975
  %1105 = vst.msk [vmem:[%s3 + $0xcc] sm:$0xf] %vm1053, %v976
  %1106 = vst.msk [vmem:[%s3 + $0xd0] sm:$0xf] %vm1053, %v977
  %1107 = vst.msk [vmem:[%s3 + $0xd4] sm:$0xf] %vm1053, %v978
  %1108 = vst.msk [vmem:[%s3 + $0xd8] sm:$0xf] %vm1053, %v979
  %1109 = vst.msk [vmem:[%s3 + $0xdc] sm:$0xf] %vm1053, %v980
  %1110 = vst.msk [vmem:[%s3 + $0xe0] sm:$0xf] %vm1053, %v981
  %1111 = vst.msk [vmem:[%s3 + $0xe4] sm:$0xf] %vm1053, %v982
  %1112 = vst.msk [vmem:[%s3 + $0xe8] sm:$0xf] %vm1053, %v983
  %1113 = vst.msk [vmem:[%s3 + $0xec] sm:$0xf] %vm1053, %v984
  %1114 = vst.msk [vmem:[%s3 + $0xf0] sm:$0xf] %vm1053, %v985
  %1115 = vst.msk [vmem:[%s3 + $0xf4] sm:$0xf] %vm1053, %v986
  %1116 = vst.msk [vmem:[%s3 + $0xf8] sm:$0xf] %vm1053, %v987
  %1117 = vst.msk [vmem:[%s3 + $0xfc] sm:$0xf] %vm1053, %v988
  %v1118 = vmul.f32 %v543, %v543
  %v1119 = vmul.f32 %v546, %v546
  %v1120 = vmul.f32 %v551, %v551
  %v1121 = vmul.f32 %v554, %v554
  %v1122 = vmul.f32 %v559, %v559
  %v1123 = vmul.f32 %v562, %v562
  %v1124 = vmul.f32 %v567, %v567
  %v1125 = vmul.f32 %v570, %v570
  %v1126 = vmul.f32 %v575, %v575
  %v1127 = vmul.f32 %v578, %v578
  %v1128 = vmul.f32 %v583, %v583
  %v1129 = vmul.f32 %v586, %v586
  %v1130 = vmul.f32 %v591, %v591
  %v1131 = vmul.f32 %v594, %v594
  %v1132 = vmul.f32 %v599, %v599
  %v1133 = vmul.f32 %v602, %v602
  %v1134 = vmul.f32 %v607, %v607
  %v1135 = vmul.f32 %v610, %v610
  %v1136 = vmul.f32 %v615, %v615
  %v1137 = vmul.f32 %v618, %v618
  %v1138 = vmul.f32 %v623, %v623
  %v1139 = vmul.f32 %v626, %v626
  %v1140 = vmul.f32 %v631, %v631
  %v1141 = vmul.f32 %v634, %v634
  %v1142 = vmul.f32 %v639, %v639
  %v1143 = vmul.f32 %v642, %v642
  %v1144 = vmul.f32 %v647, %v647
  %v1145 = vmul.f32 %v650, %v650
  %v1146 = vmul.f32 %v655, %v655
  %v1147 = vmul.f32 %v658, %v658
  %v1148 = vmul.f32 %v663, %v663
  %v1149 = vmul.f32 %v666, %v666
  %v1150 = vmul.f32 %v671, %v671
  %v1151 = vmul.f32 %v674, %v674
  %v1152 = vmul.f32 %v679, %v679
  %v1153 = vmul.f32 %v682, %v682
  %v1154 = vmul.f32 %v687, %v687
  %v1155 = vmul.f32 %v690, %v690
  %v1156 = vmul.f32 %v695, %v695
  %v1157 = vmul.f32 %v698, %v698
  %v1158 = vmul.f32 %v703, %v703
  %v1159 = vmul.f32 %v706, %v706
  %v1160 = vmul.f32 %v711, %v711
  %v1161 = vmul.f32 %v714, %v714
  %v1162 = vmul.f32 %v719, %v719
  %v1163 = vmul.f32 %v722, %v722
  %v1164 = vmul.f32 %v727, %v727
  %v1165 = vmul.f32 %v730, %v730
  %v1166 = vmul.f32 %v735, %v735
  %v1167 = vmul.f32 %v738, %v738
  %v1168 = vmul.f32 %v743, %v743
  %v1169 = vmul.f32 %v746, %v746
  %v1170 = vmul.f32 %v751, %v751
  %v1171 = vmul.f32 %v754, %v754
  %v1172 = vmul.f32 %v759, %v759
  %v1173 = vmul.f32 %v762, %v762
  %v1174 = vmul.f32 %v767, %v767
  %v1175 = vmul.f32 %v770, %v770
  %v1176 = vmul.f32 %v775, %v775
  %v1177 = vmul.f32 %v778, %v778
  %v1178 = vmul.f32 %v783, %v783
  %v1179 = vmul.f32 %v786, %v786
  %v1180 = vmul.f32 %v791, %v791
  %v1181 = vmul.f32 %v794, %v794
  %vm1182 = vcmask 31744
  %v1183 = vsel %vm1182, %v543, 0.0
  %v1184 = vsel %vm1182, %v546, 0.0
  %v1185 = vadd.f32 %v1183, %v1184
  %v1186 = vsel %vm1182, %v551, 0.0
  %v1187 = vadd.f32 %v1185, %v1186
  %v1188 = vsel %vm1182, %v554, 0.0
  %v1189 = vadd.f32 %v1187, %v1188
  %v1190 = vsel %vm1182, %v559, 0.0
  %v1191 = vadd.f32 %v1189, %v1190
  %v1192 = vsel %vm1182, %v562, 0.0
  %v1193 = vadd.f32 %v1191, %v1192
  %v1194 = vsel %vm1182, %v567, 0.0
  %v1195 = vadd.f32 %v1193, %v1194
  %v1196 = vsel %vm1182, %v570, 0.0
  %v1197 = vadd.f32 %v1195, %v1196
  %v1198 = vsel %vm1182, %v575, 0.0
  %v1199 = vadd.f32 %v1197, %v1198
  %v1200 = vsel %vm1182, %v578, 0.0
  %v1201 = vadd.f32 %v1199, %v1200
  %v1202 = vsel %vm1182, %v583, 0.0
  %v1203 = vadd.f32 %v1201, %v1202
  %v1204 = vsel %vm1182, %v586, 0.0
  %v1205 = vadd.f32 %v1203, %v1204
  %v1206 = vsel %vm1182, %v591, 0.0
  %v1207 = vadd.f32 %v1205, %v1206
  %v1208 = vsel %vm1182, %v594, 0.0
  %v1209 = vadd.f32 %v1207, %v1208
  %v1210 = vsel %vm1182, %v599, 0.0
  %v1211 = vadd.f32 %v1209, %v1210
  %v1212 = vsel %vm1182, %v602, 0.0
  %v1213 = vadd.f32 %v1211, %v1212
  %v1214 = vsel %vm1182, %v607, 0.0
  %v1215 = vadd.f32 %v1213, %v1214
  %v1216 = vsel %vm1182, %v610, 0.0
  %v1217 = vadd.f32 %v1215, %v1216
  %v1218 = vsel %vm1182, %v615, 0.0
  %v1219 = vadd.f32 %v1217, %v1218
  %v1220 = vsel %vm1182, %v618, 0.0
  %v1221 = vadd.f32 %v1219, %v1220
  %v1222 = vsel %vm1182, %v623, 0.0
  %v1223 = vadd.f32 %v1221, %v1222
  %v1224 = vsel %vm1182, %v626, 0.0
  %v1225 = vadd.f32 %v1223, %v1224
  %v1226 = vsel %vm1182, %v631, 0.0
  %v1227 = vadd.f32 %v1225, %v1226
  %v1228 = vsel %vm1182, %v634, 0.0
  %v1229 = vadd.f32 %v1227, %v1228
  %v1230 = vsel %vm1182, %v639, 0.0
  %v1231 = vadd.f32 %v1229, %v1230
  %v1232 = vsel %vm1182, %v642, 0.0
  %v1233 = vadd.f32 %v1231, %v1232
  %v1234 = vsel %vm1182, %v647, 0.0
  %v1235 = vadd.f32 %v1233, %v1234
  %v1236 = vsel %vm1182, %v650, 0.0
  %v1237 = vadd.f32 %v1235, %v1236
  %v1238 = vsel %vm1182, %v655, 0.0
  %v1239 = vadd.f32 %v1237, %v1238
  %v1240 = vsel %vm1182, %v658, 0.0
  %v1241 = vadd.f32 %v1239, %v1240
  %v1242 = vsel %vm1182, %v663, 0.0
  %v1243 = vadd.f32 %v1241, %v1242
  %v1244 = vsel %vm1182, %v666, 0.0
  %v1245 = vadd.f32 %v1243, %v1244
  %v1246 = vsel %vm1182, %v671, 0.0
  %v1247 = vadd.f32 %v1245, %v1246
  %v1248 = vsel %vm1182, %v674, 0.0
  %v1249 = vadd.f32 %v1247, %v1248
  %v1250 = vsel %vm1182, %v679, 0.0
  %v1251 = vadd.f32 %v1249, %v1250
  %v1252 = vsel %vm1182, %v682, 0.0
  %v1253 = vadd.f32 %v1251, %v1252
  %v1254 = vsel %vm1182, %v687, 0.0
  %v1255 = vadd.f32 %v1253, %v1254
  %v1256 = vsel %vm1182, %v690, 0.0
  %v1257 = vadd.f32 %v1255, %v1256
  %v1258 = vsel %vm1182, %v695, 0.0
  %v1259 = vadd.f32 %v1257, %v1258
  %v1260 = vsel %vm1182, %v698, 0.0
  %v1261 = vadd.f32 %v1259, %v1260
  %v1262 = vsel %vm1182, %v703, 0.0
  %v1263 = vadd.f32 %v1261, %v1262
  %v1264 = vsel %vm1182, %v706, 0.0
  %v1265 = vadd.f32 %v1263, %v1264
  %v1266 = vsel %vm1182, %v711, 0.0
  %v1267 = vadd.f32 %v1265, %v1266
  %v1268 = vsel %vm1182, %v714, 0.0
  %v1269 = vadd.f32 %v1267, %v1268
  %v1270 = vsel %vm1182, %v719, 0.0
  %v1271 = vadd.f32 %v1269, %v1270
  %v1272 = vsel %vm1182, %v722, 0.0
  %v1273 = vadd.f32 %v1271, %v1272
  %v1274 = vsel %vm1182, %v727, 0.0
  %v1275 = vadd.f32 %v1273, %v1274
  %v1276 = vsel %vm1182, %v730, 0.0
  %v1277 = vadd.f32 %v1275, %v1276
  %v1278 = vsel %vm1182, %v735, 0.0
  %v1279 = vadd.f32 %v1277, %v1278
  %v1280 = vsel %vm1182, %v738, 0.0
  %v1281 = vadd.f32 %v1279, %v1280
  %v1282 = vsel %vm1182, %v743, 0.0
  %v1283 = vadd.f32 %v1281, %v1282
  %v1284 = vsel %vm1182, %v746, 0.0
  %v1285 = vadd.f32 %v1283, %v1284
  %v1286 = vsel %vm1182, %v751, 0.0
  %v1287 = vadd.f32 %v1285, %v1286
  %v1288 = vsel %vm1182, %v754, 0.0
  %v1289 = vadd.f32 %v1287, %v1288
  %v1290 = vsel %vm1182, %v759, 0.0
  %v1291 = vadd.f32 %v1289, %v1290
  %v1292 = vsel %vm1182, %v762, 0.0
  %v1293 = vadd.f32 %v1291, %v1292
  %v1294 = vsel %vm1182, %v767, 0.0
  %v1295 = vadd.f32 %v1293, %v1294
  %v1296 = vsel %vm1182, %v770, 0.0
  %v1297 = vadd.f32 %v1295, %v1296
  %v1298 = vsel %vm1182, %v775, 0.0
  %v1299 = vadd.f32 %v1297, %v1298
  %v1300 = vsel %vm1182, %v778, 0.0
  %v1301 = vadd.f32 %v1299, %v1300
  %v1302 = vsel %vm1182, %v783, 0.0
  %v1303 = vadd.f32 %v1301, %v1302
  %v1304 = vsel %vm1182, %v786, 0.0
  %v1305 = vadd.f32 %v1303, %v1304
  %v1306 = vsel %vm1182, %v791, 0.0
  %v1307 = vadd.f32 %v1305, %v1306
  %v1308 = vsel %vm1182, %v794, 0.0
  %v1309 = vadd.f32 %v1307, %v1308
  %v1310 = vrot.slane %v1309, 4
  %v1311 = vadd.f32 %v1309, %v1310
  %v1312 = vrot.slane %v1311, 2
  %v1313 = vadd.f32 %v1311, %v1312
  %v1314 = vrot.slane %v1313, 1
  %v1315 = vadd.f32 %v1313, %v1314
  %v1316 = vsel %vm1182, %v1118, 0.0
  %v1317 = vsel %vm1182, %v1119, 0.0
  %v1318 = vadd.f32 %v1316, %v1317
  %v1319 = vsel %vm1182, %v1120, 0.0
  %v1320 = vadd.f32 %v1318, %v1319
  %v1321 = vsel %vm1182, %v1121, 0.0
  %v1322 = vadd.f32 %v1320, %v1321
  %v1323 = vsel %vm1182, %v1122, 0.0
  %v1324 = vadd.f32 %v1322, %v1323
  %v1325 = vsel %vm1182, %v1123, 0.0
  %v1326 = vadd.f32 %v1324, %v1325
  %v1327 = vsel %vm1182, %v1124, 0.0
  %v1328 = vadd.f32 %v1326, %v1327
  %v1329 = vsel %vm1182, %v1125, 0.0
  %v1330 = vadd.f32 %v1328, %v1329
  %v1331 = vsel %vm1182, %v1126, 0.0
  %v1332 = vadd.f32 %v1330, %v1331
  %v1333 = vsel %vm1182, %v1127, 0.0
  %v1334 = vadd.f32 %v1332, %v1333
  %v1335 = vsel %vm1182, %v1128, 0.0
  %v1336 = vadd.f32 %v1334, %v1335
  %v1337 = vsel %vm1182, %v1129, 0.0
  %v1338 = vadd.f32 %v1336, %v1337
  %v1339 = vsel %vm1182, %v1130, 0.0
  %v1340 = vadd.f32 %v1338, %v1339
  %v1341 = vsel %vm1182, %v1131, 0.0
  %v1342 = vadd.f32 %v1340, %v1341
  %v1343 = vsel %vm1182, %v1132, 0.0
  %v1344 = vadd.f32 %v1342, %v1343
  %v1345 = vsel %vm1182, %v1133, 0.0
  %v1346 = vadd.f32 %v1344, %v1345
  %v1347 = vsel %vm1182, %v1134, 0.0
  %v1348 = vadd.f32 %v1346, %v1347
  %v1349 = vsel %vm1182, %v1135, 0.0
  %v1350 = vadd.f32 %v1348, %v1349
  %v1351 = vsel %vm1182, %v1136, 0.0
  %v1352 = vadd.f32 %v1350, %v1351
  %v1353 = vsel %vm1182, %v1137, 0.0
  %v1354 = vadd.f32 %v1352, %v1353
  %v1355 = vsel %vm1182, %v1138, 0.0
  %v1356 = vadd.f32 %v1354, %v1355
  %v1357 = vsel %vm1182, %v1139, 0.0
  %v1358 = vadd.f32 %v1356, %v1357
  %v1359 = vsel %vm1182, %v1140, 0.0
  %v1360 = vadd.f32 %v1358, %v1359
  %v1361 = vsel %vm1182, %v1141, 0.0
  %v1362 = vadd.f32 %v1360, %v1361
  %v1363 = vsel %vm1182, %v1142, 0.0
  %v1364 = vadd.f32 %v1362, %v1363
  %v1365 = vsel %vm1182, %v1143, 0.0
  %v1366 = vadd.f32 %v1364, %v1365
  %v1367 = vsel %vm1182, %v1144, 0.0
  %v1368 = vadd.f32 %v1366, %v1367
  %v1369 = vsel %vm1182, %v1145, 0.0
  %v1370 = vadd.f32 %v1368, %v1369
  %v1371 = vsel %vm1182, %v1146, 0.0
  %v1372 = vadd.f32 %v1370, %v1371
  %v1373 = vsel %vm1182, %v1147, 0.0
  %v1374 = vadd.f32 %v1372, %v1373
  %v1375 = vsel %vm1182, %v1148, 0.0
  %v1376 = vadd.f32 %v1374, %v1375
  %v1377 = vsel %vm1182, %v1149, 0.0
  %v1378 = vadd.f32 %v1376, %v1377
  %v1379 = vsel %vm1182, %v1150, 0.0
  %v1380 = vadd.f32 %v1378, %v1379
  %v1381 = vsel %vm1182, %v1151, 0.0
  %v1382 = vadd.f32 %v1380, %v1381
  %v1383 = vsel %vm1182, %v1152, 0.0
  %v1384 = vadd.f32 %v1382, %v1383
  %v1385 = vsel %vm1182, %v1153, 0.0
  %v1386 = vadd.f32 %v1384, %v1385
  %v1387 = vsel %vm1182, %v1154, 0.0
  %v1388 = vadd.f32 %v1386, %v1387
  %v1389 = vsel %vm1182, %v1155, 0.0
  %v1390 = vadd.f32 %v1388, %v1389
  %v1391 = vsel %vm1182, %v1156, 0.0
  %v1392 = vadd.f32 %v1390, %v1391
  %v1393 = vsel %vm1182, %v1157, 0.0
  %v1394 = vadd.f32 %v1392, %v1393
  %v1395 = vsel %vm1182, %v1158, 0.0
  %v1396 = vadd.f32 %v1394, %v1395
  %v1397 = vsel %vm1182, %v1159, 0.0
  %v1398 = vadd.f32 %v1396, %v1397
  %v1399 = vsel %vm1182, %v1160, 0.0
  %v1400 = vadd.f32 %v1398, %v1399
  %v1401 = vsel %vm1182, %v1161, 0.0
  %v1402 = vadd.f32 %v1400, %v1401
  %v1403 = vsel %vm1182, %v1162, 0.0
  %v1404 = vadd.f32 %v1402, %v1403
  %v1405 = vsel %vm1182, %v1163, 0.0
  %v1406 = vadd.f32 %v1404, %v1405
  %v1407 = vsel %vm1182, %v1164, 0.0
  %v1408 = vadd.f32 %v1406, %v1407
  %v1409 = vsel %vm1182, %v1165, 0.0
  %v1410 = vadd.f32 %v1408, %v1409
  %v1411 = vsel %vm1182, %v1166, 0.0
  %v1412 = vadd.f32 %v1410, %v1411
  %v1413 = vsel %vm1182, %v1167, 0.0
  %v1414 = vadd.f32 %v1412, %v1413
  %v1415 = vsel %vm1182, %v1168, 0.0
  %v1416 = vadd.f32 %v1414, %v1415
  %v1417 = vsel %vm1182, %v1169, 0.0
  %v1418 = vadd.f32 %v1416, %v1417
  %v1419 = vsel %vm1182, %v1170, 0.0
  %v1420 = vadd.f32 %v1418, %v1419
  %v1421 = vsel %vm1182, %v1171, 0.0
  %v1422 = vadd.f32 %v1420, %v1421
  %v1423 = vsel %vm1182, %v1172, 0.0
  %v1424 = vadd.f32 %v1422, %v1423
  %v1425 = vsel %vm1182, %v1173, 0.0
  %v1426 = vadd.f32 %v1424, %v1425
  %v1427 = vsel %vm1182, %v1174, 0.0
  %v1428 = vadd.f32 %v1426, %v1427
  %v1429 = vsel %vm1182, %v1175, 0.0
  %v1430 = vadd.f32 %v1428, %v1429
  %v1431 = vsel %vm1182, %v1176, 0.0
  %v1432 = vadd.f32 %v1430, %v1431
  %v1433 = vsel %vm1182, %v1177, 0.0
  %v1434 = vadd.f32 %v1432, %v1433
  %v1435 = vsel %vm1182, %v1178, 0.0
  %v1436 = vadd.f32 %v1434, %v1435
  %v1437 = vsel %vm1182, %v1179, 0.0
  %v1438 = vadd.f32 %v1436, %v1437
  %v1439 = vsel %vm1182, %v1180, 0.0
  %v1440 = vadd.f32 %v1438, %v1439
  %v1441 = vsel %vm1182, %v1181, 0.0
  %v1442 = vadd.f32 %v1440, %v1441
  %v1443 = vrot.slane %v1442, 4
  %v1444 = vadd.f32 %v1442, %v1443
  %v1445 = vrot.slane %v1444, 2
  %v1446 = vadd.f32 %v1444, %v1445
  %v1447 = vrot.slane %v1446, 1
  %v1448 = vadd.f32 %v1446, %v1447
  %vm1449 = vcmask 1040384
  %v1450 = vsel %vm1449, %v1315, %v1448
  %vm1451 = vcmask 25600
  %1452 = vst.msk [vmem:[%s4] sm:$0x3] %vm1451, %v1450
  // Predicated region
  $region14: #{bottleneck_forward.6} parent=0 // pred_check
    _
  $region15: #{bottleneck_forward.6} parent=0 // pred_check_branch
    %1454 = sbr.rel (0) target = $region17
  $region16: #{bottleneck_forward.6} parent=0 // pred_region
    _
  $region17: #{bottleneck_forward.6} parent=0 // pred_fallthru
    _
  // Predicated region
  $region18: #{bottleneck_forward.6} parent=0 // pred_check
    _
  $region19: #{bottleneck_forward.6} parent=0 // pred_check_branch
    %1456 = sbr.rel (0) target = $region21
  $region20: #{bottleneck_forward.6} parent=0 // pred_region
    _
  $region21: #{bottleneck_forward.6} parent=0 // pred_fallthru
    _
  // Predicated region
  $region22: #{bottleneck_forward.6} parent=0 // pred_check
    _
  $region23: #{bottleneck_forward.6} parent=0 // pred_check_branch
    %1458 = sbr.rel (0) target = $region25
  $region24: #{bottleneck_forward.6} parent=0 // pred_region
    _
  $region25: #{bottleneck_forward.6} parent=0 // pred_fallthru
    _
  // Predicated region
  $region26: #{bottleneck_forward.6} parent=0 // pred_check
    _
  $region27: #{bottleneck_forward.6} parent=0 // pred_check_branch
    %1460 = sbr.rel (0) target = $region29
  $region28: #{bottleneck_forward.6} parent=0 // pred_region
    _
  $region29: #{bottleneck_forward.6} parent=0 // pred_fallthru
    _

// kernel: bottleneck_forward.7
$region0: #{bottleneck_forward.7}
  #allocation0 [shape = 'u32[]', space=smem, size = 0x4, offset = 0x4, fixed_abs, tag = 'smem constant byte address 0x4 - core index']
  #allocation1 [shape = 'u32[144,128]{1,0:T(1,128)}', space=vmem, size = 0x12000, scoped, tag = 'internal scratch']
  %s0 = inlined_call_operand.vmem [shape: bf16[512,4], index: 0, kind: input, shape index: {}]
  %s1 = inlined_call_operand.vmem [shape: f32[2,4], index: 1, kind: input, shape index: {}]
  %s2 = inlined_call_operand.vmem [shape: bf16[512,4], index: 2, kind: input, shape index: {}]
  %s3 = inlined_call_operand.vmem [shape: f32[512,4], index: 3, kind: output, shape index: {}]
  %s4 = sld [smem:[#allocation0]]
  $region22: #{bottleneck_forward.7} parent=0
    _
  %s6 = ssub.s32 1, %s4
  %s7 = scalar_select 0, %s6, %s4
  // Predicated region
  $region2: #{bottleneck_forward.7} parent=0 // pred_check
    _
  $region3: #{bottleneck_forward.7} parent=0 // pred_check_branch
    %9 = sbr.rel (0) target = $region5
  $region4: #{bottleneck_forward.7} parent=0 // pred_region
    _
  $region5: #{bottleneck_forward.7} parent=0 // pred_fallthru
    _
  // Predicated region
  $region6: #{bottleneck_forward.7} parent=0 // pred_check
    _
  $region7: #{bottleneck_forward.7} parent=0 // pred_check_branch
    %11 = sbr.rel (0) target = $region9
  $region8: #{bottleneck_forward.7} parent=0 // pred_region
    _
  $region9: #{bottleneck_forward.7} parent=0 // pred_fallthru
    _
  // Predicated region
  $region10: #{bottleneck_forward.7} parent=0 // pred_check
    _
  $region11: #{bottleneck_forward.7} parent=0 // pred_check_branch
    %13 = sbr.rel (0) target = $region13
  $region12: #{bottleneck_forward.7} parent=0 // pred_region
    _
  $region13: #{bottleneck_forward.7} parent=0 // pred_fallthru
    _
  %v14 = vld [vmem:[%s0] sm:$0xf]
  %v15 = vld [vmem:[%s0 + $0x4] sm:$0xf]
  %v16 = vld [vmem:[%s0 + $0x8] sm:$0xf]
  %v17 = vld [vmem:[%s0 + $0xc] sm:$0xf]
  %v18 = vld [vmem:[%s0 + $0x10] sm:$0xf]
  %v19 = vld [vmem:[%s0 + $0x14] sm:$0xf]
  %v20 = vld [vmem:[%s0 + $0x18] sm:$0xf]
  %v21 = vld [vmem:[%s0 + $0x1c] sm:$0xf]
  %v22 = vld [vmem:[%s0 + $0x20] sm:$0xf]
  %v23 = vld [vmem:[%s0 + $0x24] sm:$0xf]
  %v24 = vld [vmem:[%s0 + $0x28] sm:$0xf]
  %v25 = vld [vmem:[%s0 + $0x2c] sm:$0xf]
  %v26 = vld [vmem:[%s0 + $0x30] sm:$0xf]
  %v27 = vld [vmem:[%s0 + $0x34] sm:$0xf]
  %v28 = vld [vmem:[%s0 + $0x38] sm:$0xf]
  %v29 = vld [vmem:[%s0 + $0x3c] sm:$0xf]
  %v30 = vld [vmem:[%s0 + $0x40] sm:$0xf]
  %v31 = vld [vmem:[%s0 + $0x44] sm:$0xf]
  %v32 = vld [vmem:[%s0 + $0x48] sm:$0xf]
  %v33 = vld [vmem:[%s0 + $0x4c] sm:$0xf]
  %v34 = vld [vmem:[%s0 + $0x50] sm:$0xf]
  %v35 = vld [vmem:[%s0 + $0x54] sm:$0xf]
  %v36 = vld [vmem:[%s0 + $0x58] sm:$0xf]
  %v37 = vld [vmem:[%s0 + $0x5c] sm:$0xf]
  %v38 = vld [vmem:[%s0 + $0x60] sm:$0xf]
  %v39 = vld [vmem:[%s0 + $0x64] sm:$0xf]
  %v40 = vld [vmem:[%s0 + $0x68] sm:$0xf]
  %v41 = vld [vmem:[%s0 + $0x6c] sm:$0xf]
  %v42 = vld [vmem:[%s0 + $0x70] sm:$0xf]
  %v43 = vld [vmem:[%s0 + $0x74] sm:$0xf]
  %v44 = vld [vmem:[%s0 + $0x78] sm:$0xf]
  %v45 = vld [vmem:[%s0 + $0x7c] sm:$0xf]
  %v46 = vld [vmem:[%s0 + $0x80] sm:$0xf]
  %v47 = vld [vmem:[%s0 + $0x84] sm:$0xf]
  %v48 = vld [vmem:[%s0 + $0x88] sm:$0xf]
  %v49 = vld [vmem:[%s0 + $0x8c] sm:$0xf]
  %v50 = vld [vmem:[%s0 + $0x90] sm:$0xf]
  %v51 = vld [vmem:[%s0 + $0x94] sm:$0xf]
  %v52 = vld [vmem:[%s0 + $0x98] sm:$0xf]
  %v53 = vld [vmem:[%s0 + $0x9c] sm:$0xf]
  %v54 = vld [vmem:[%s0 + $0xa0] sm:$0xf]
  %v55 = vld [vmem:[%s0 + $0xa4] sm:$0xf]
  %v56 = vld [vmem:[%s0 + $0xa8] sm:$0xf]
  %v57 = vld [vmem:[%s0 + $0xac] sm:$0xf]
  %v58 = vld [vmem:[%s0 + $0xb0] sm:$0xf]
  %v59 = vld [vmem:[%s0 + $0xb4] sm:$0xf]
  %v60 = vld [vmem:[%s0 + $0xb8] sm:$0xf]
  %v61 = vld [vmem:[%s0 + $0xbc] sm:$0xf]
  %v62 = vld [vmem:[%s0 + $0xc0] sm:$0xf]
  %v63 = vld [vmem:[%s0 + $0xc4] sm:$0xf]
  %v64 = vld [vmem:[%s0 + $0xc8] sm:$0xf]
  %v65 = vld [vmem:[%s0 + $0xcc] sm:$0xf]
  %v66 = vld [vmem:[%s0 + $0xd0] sm:$0xf]
  %v67 = vld [vmem:[%s0 + $0xd4] sm:$0xf]
  %v68 = vld [vmem:[%s0 + $0xd8] sm:$0xf]
  %v69 = vld [vmem:[%s0 + $0xdc] sm:$0xf]
  %v70 = vld [vmem:[%s0 + $0xe0] sm:$0xf]
  %v71 = vld [vmem:[%s0 + $0xe4] sm:$0xf]
  %v72 = vld [vmem:[%s0 + $0xe8] sm:$0xf]
  %v73 = vld [vmem:[%s0 + $0xec] sm:$0xf]
  %v74 = vld [vmem:[%s0 + $0xf0] sm:$0xf]
  %v75 = vld [vmem:[%s0 + $0xf4] sm:$0xf]
  %v76 = vld [vmem:[%s0 + $0xf8] sm:$0xf]
  %v77 = vld [vmem:[%s0 + $0xfc] sm:$0xf]
  %v78 = vunpack.c.l.bf16 %v14
  %v79 = vunpack.c.l.bf16 %v15
  %v80 = vunpack.c.l.bf16 %v16
  %v81 = vunpack.c.l.bf16 %v17
  %v82 = vunpack.c.l.bf16 %v18
  %v83 = vunpack.c.l.bf16 %v19
  %v84 = vunpack.c.l.bf16 %v20
  %v85 = vunpack.c.l.bf16 %v21
  %v86 = vunpack.c.l.bf16 %v22
  %v87 = vunpack.c.l.bf16 %v23
  %v88 = vunpack.c.l.bf16 %v24
  %v89 = vunpack.c.l.bf16 %v25
  %v90 = vunpack.c.l.bf16 %v26
  %v91 = vunpack.c.l.bf16 %v27
  %v92 = vunpack.c.l.bf16 %v28
  %v93 = vunpack.c.l.bf16 %v29
  %v94 = vunpack.c.l.bf16 %v30
  %v95 = vunpack.c.l.bf16 %v31
  %v96 = vunpack.c.l.bf16 %v32
  %v97 = vunpack.c.l.bf16 %v33
  %v98 = vunpack.c.l.bf16 %v34
  %v99 = vunpack.c.l.bf16 %v35
  %v100 = vunpack.c.l.bf16 %v36
  %v101 = vunpack.c.l.bf16 %v37
  %v102 = vunpack.c.l.bf16 %v38
  %v103 = vunpack.c.l.bf16 %v39
  %v104 = vunpack.c.l.bf16 %v40
  %v105 = vunpack.c.l.bf16 %v41
  %v106 = vunpack.c.l.bf16 %v42
  %v107 = vunpack.c.l.bf16 %v43
  %v108 = vunpack.c.l.bf16 %v44
  %v109 = vunpack.c.l.bf16 %v45
  %v110 = vunpack.c.l.bf16 %v46
  %v111 = vunpack.c.l.bf16 %v47
  %v112 = vunpack.c.l.bf16 %v48
  %v113 = vunpack.c.l.bf16 %v49
  %v114 = vunpack.c.l.bf16 %v50
  %v115 = vunpack.c.l.bf16 %v51
  %v116 = vunpack.c.l.bf16 %v52
  %v117 = vunpack.c.l.bf16 %v53
  %v118 = vunpack.c.l.bf16 %v54
  %v119 = vunpack.c.l.bf16 %v55
  %v120 = vunpack.c.l.bf16 %v56
  %v121 = vunpack.c.l.bf16 %v57
  %v122 = vunpack.c.l.bf16 %v58
  %v123 = vunpack.c.l.bf16 %v59
  %v124 = vunpack.c.l.bf16 %v60
  %v125 = vunpack.c.l.bf16 %v61
  %v126 = vunpack.c.l.bf16 %v62
  %v127 = vunpack.c.l.bf16 %v63
  %v128 = vunpack.c.l.bf16 %v64
  %v129 = vunpack.c.l.bf16 %v65
  %v130 = vunpack.c.l.bf16 %v66
  %v131 = vunpack.c.l.bf16 %v67
  %v132 = vunpack.c.l.bf16 %v68
  %v133 = vunpack.c.l.bf16 %v69
  %v134 = vunpack.c.l.bf16 %v70
  %v135 = vunpack.c.l.bf16 %v71
  %v136 = vunpack.c.l.bf16 %v72
  %v137 = vunpack.c.l.bf16 %v73
  %v138 = vunpack.c.l.bf16 %v74
  %v139 = vunpack.c.l.bf16 %v75
  %v140 = vunpack.c.l.bf16 %v76
  %v141 = vunpack.c.l.bf16 %v77
  %v142 = vld [vmem:[%s1] sm:$0x1]
  %v143 = vlaneseq
  %v144 = vshrl.u32 %v143, 7
  %v145 = vsub.s32 0, %v144
  %v146 = vrot.slane %v142, %v145
  %v147 = vmul.f32 %v78, %v146
  %v148 = vmul.f32 %v79, %v146
  %v149 = vmul.f32 %v80, %v146
  %v150 = vmul.f32 %v81, %v146
  %v151 = vmul.f32 %v82, %v146
  %v152 = vmul.f32 %v83, %v146
  %v153 = vmul.f32 %v84, %v146
  %v154 = vmul.f32 %v85, %v146
  %v155 = vmul.f32 %v86, %v146
  %v156 = vmul.f32 %v87, %v146
  %v157 = vmul.f32 %v88, %v146
  %v158 = vmul.f32 %v89, %v146
  %v159 = vmul.f32 %v90, %v146
  %v160 = vmul.f32 %v91, %v146
  %v161 = vmul.f32 %v92, %v146
  %v162 = vmul.f32 %v93, %v146
  %v163 = vmul.f32 %v94, %v146
  %v164 = vmul.f32 %v95, %v146
  %v165 = vmul.f32 %v96, %v146
  %v166 = vmul.f32 %v97, %v146
  %v167 = vmul.f32 %v98, %v146
  %v168 = vmul.f32 %v99, %v146
  %v169 = vmul.f32 %v100, %v146
  %v170 = vmul.f32 %v101, %v146
  %v171 = vmul.f32 %v102, %v146
  %v172 = vmul.f32 %v103, %v146
  %v173 = vmul.f32 %v104, %v146
  %v174 = vmul.f32 %v105, %v146
  %v175 = vmul.f32 %v106, %v146
  %v176 = vmul.f32 %v107, %v146
  %v177 = vmul.f32 %v108, %v146
  %v178 = vmul.f32 %v109, %v146
  %v179 = vmul.f32 %v110, %v146
  %v180 = vmul.f32 %v111, %v146
  %v181 = vmul.f32 %v112, %v146
  %v182 = vmul.f32 %v113, %v146
  %v183 = vmul.f32 %v114, %v146
  %v184 = vmul.f32 %v115, %v146
  %v185 = vmul.f32 %v116, %v146
  %v186 = vmul.f32 %v117, %v146
  %v187 = vmul.f32 %v118, %v146
  %v188 = vmul.f32 %v119, %v146
  %v189 = vmul.f32 %v120, %v146
  %v190 = vmul.f32 %v121, %v146
  %v191 = vmul.f32 %v122, %v146
  %v192 = vmul.f32 %v123, %v146
  %v193 = vmul.f32 %v124, %v146
  %v194 = vmul.f32 %v125, %v146
  %v195 = vmul.f32 %v126, %v146
  %v196 = vmul.f32 %v127, %v146
  %v197 = vmul.f32 %v128, %v146
  %v198 = vmul.f32 %v129, %v146
  %v199 = vmul.f32 %v130, %v146
  %v200 = vmul.f32 %v131, %v146
  %v201 = vmul.f32 %v132, %v146
  %v202 = vmul.f32 %v133, %v146
  %v203 = vmul.f32 %v134, %v146
  %v204 = vmul.f32 %v135, %v146
  %v205 = vmul.f32 %v136, %v146
  %v206 = vmul.f32 %v137, %v146
  %v207 = vmul.f32 %v138, %v146
  %v208 = vmul.f32 %v139, %v146
  %v209 = vmul.f32 %v140, %v146
  %v210 = vmul.f32 %v141, %v146
  %v211 = vld [vmem:[%s1 + $0x1] sm:$0x1]
  %v212 = vlaneseq
  %v213 = vshrl.u32 %v212, 7
  %v214 = vsub.s32 0, %v213
  %v215 = vrot.slane %v211, %v214
  %v216 = vadd.f32 %v147, %v215
  %v217 = vadd.f32 %v148, %v215
  %v218 = vadd.f32 %v149, %v215
  %v219 = vadd.f32 %v150, %v215
  %v220 = vadd.f32 %v151, %v215
  %v221 = vadd.f32 %v152, %v215
  %v222 = vadd.f32 %v153, %v215
  %v223 = vadd.f32 %v154, %v215
  %v224 = vadd.f32 %v155, %v215
  %v225 = vadd.f32 %v156, %v215
  %v226 = vadd.f32 %v157, %v215
  %v227 = vadd.f32 %v158, %v215
  %v228 = vadd.f32 %v159, %v215
  %v229 = vadd.f32 %v160, %v215
  %v230 = vadd.f32 %v161, %v215
  %v231 = vadd.f32 %v162, %v215
  %v232 = vadd.f32 %v163, %v215
  %v233 = vadd.f32 %v164, %v215
  %v234 = vadd.f32 %v165, %v215
  %v235 = vadd.f32 %v166, %v215
  %v236 = vadd.f32 %v167, %v215
  %v237 = vadd.f32 %v168, %v215
  %v238 = vadd.f32 %v169, %v215
  %v239 = vadd.f32 %v170, %v215
  %v240 = vadd.f32 %v171, %v215
  %v241 = vadd.f32 %v172, %v215
  %v242 = vadd.f32 %v173, %v215
  %v243 = vadd.f32 %v174, %v215
  %v244 = vadd.f32 %v175, %v215
  %v245 = vadd.f32 %v176, %v215
  %v246 = vadd.f32 %v177, %v215
  %v247 = vadd.f32 %v178, %v215
  %v248 = vadd.f32 %v179, %v215
  %v249 = vadd.f32 %v180, %v215
  %v250 = vadd.f32 %v181, %v215
  %v251 = vadd.f32 %v182, %v215
  %v252 = vadd.f32 %v183, %v215
  %v253 = vadd.f32 %v184, %v215
  %v254 = vadd.f32 %v185, %v215
  %v255 = vadd.f32 %v186, %v215
  %v256 = vadd.f32 %v187, %v215
  %v257 = vadd.f32 %v188, %v215
  %v258 = vadd.f32 %v189, %v215
  %v259 = vadd.f32 %v190, %v215
  %v260 = vadd.f32 %v191, %v215
  %v261 = vadd.f32 %v192, %v215
  %v262 = vadd.f32 %v193, %v215
  %v263 = vadd.f32 %v194, %v215
  %v264 = vadd.f32 %v195, %v215
  %v265 = vadd.f32 %v196, %v215
  %v266 = vadd.f32 %v197, %v215
  %v267 = vadd.f32 %v198, %v215
  %v268 = vadd.f32 %v199, %v215
  %v269 = vadd.f32 %v200, %v215
  %v270 = vadd.f32 %v201, %v215
  %v271 = vadd.f32 %v202, %v215
  %v272 = vadd.f32 %v203, %v215
  %v273 = vadd.f32 %v204, %v215
  %v274 = vadd.f32 %v205, %v215
  %v275 = vadd.f32 %v206, %v215
  %v276 = vadd.f32 %v207, %v215
  %v277 = vadd.f32 %v208, %v215
  %v278 = vadd.f32 %v209, %v215
  %v279 = vadd.f32 %v210, %v215
  %v280 = vld [vmem:[%s2] sm:$0xf]
  %v281 = vld [vmem:[%s2 + $0x4] sm:$0xf]
  %v282 = vld [vmem:[%s2 + $0x8] sm:$0xf]
  %v283 = vld [vmem:[%s2 + $0xc] sm:$0xf]
  %v284 = vld [vmem:[%s2 + $0x10] sm:$0xf]
  %v285 = vld [vmem:[%s2 + $0x14] sm:$0xf]
  %v286 = vld [vmem:[%s2 + $0x18] sm:$0xf]
  %v287 = vld [vmem:[%s2 + $0x1c] sm:$0xf]
  %v288 = vld [vmem:[%s2 + $0x20] sm:$0xf]
  %v289 = vld [vmem:[%s2 + $0x24] sm:$0xf]
  %v290 = vld [vmem:[%s2 + $0x28] sm:$0xf]
  %v291 = vld [vmem:[%s2 + $0x2c] sm:$0xf]
  %v292 = vld [vmem:[%s2 + $0x30] sm:$0xf]
  %v293 = vld [vmem:[%s2 + $0x34] sm:$0xf]
  %v294 = vld [vmem:[%s2 + $0x38] sm:$0xf]
  %v295 = vld [vmem:[%s2 + $0x3c] sm:$0xf]
  %v296 = vld [vmem:[%s2 + $0x40] sm:$0xf]
  %v297 = vld [vmem:[%s2 + $0x44] sm:$0xf]
  %v298 = vld [vmem:[%s2 + $0x48] sm:$0xf]
  %v299 = vld [vmem:[%s2 + $0x4c] sm:$0xf]
  %v300 = vld [vmem:[%s2 + $0x50] sm:$0xf]
  %v301 = vld [vmem:[%s2 + $0x54] sm:$0xf]
  %v302 = vld [vmem:[%s2 + $0x58] sm:$0xf]
  %v303 = vld [vmem:[%s2 + $0x5c] sm:$0xf]
  %v304 = vld [vmem:[%s2 + $0x60] sm:$0xf]
  %v305 = vld [vmem:[%s2 + $0x64] sm:$0xf]
  %v306 = vld [vmem:[%s2 + $0x68] sm:$0xf]
  %v307 = vld [vmem:[%s2 + $0x6c] sm:$0xf]
  %v308 = vld [vmem:[%s2 + $0x70] sm:$0xf]
  %v309 = vld [vmem:[%s2 + $0x74] sm:$0xf]
  %v310 = vld [vmem:[%s2 + $0x78] sm:$0xf]
  %v311 = vld [vmem:[%s2 + $0x7c] sm:$0xf]
  %v312 = vld [vmem:[%s2 + $0x80] sm:$0xf]
  %v313 = vld [vmem:[%s2 + $0x84] sm:$0xf]
  %v314 = vld [vmem:[%s2 + $0x88] sm:$0xf]
  %v315 = vld [vmem:[%s2 + $0x8c] sm:$0xf]
  %v316 = vld [vmem:[%s2 + $0x90] sm:$0xf]
  %v317 = vld [vmem:[%s2 + $0x94] sm:$0xf]
  %v318 = vld [vmem:[%s2 + $0x98] sm:$0xf]
  %v319 = vld [vmem:[%s2 + $0x9c] sm:$0xf]
  %v320 = vld [vmem:[%s2 + $0xa0] sm:$0xf]
  %v321 = vld [vmem:[%s2 + $0xa4] sm:$0xf]
  %v322 = vld [vmem:[%s2 + $0xa8] sm:$0xf]
  %v323 = vld [vmem:[%s2 + $0xac] sm:$0xf]
  %v324 = vld [vmem:[%s2 + $0xb0] sm:$0xf]
  %v325 = vld [vmem:[%s2 + $0xb4] sm:$0xf]
  %v326 = vld [vmem:[%s2 + $0xb8] sm:$0xf]
  %v327 = vld [vmem:[%s2 + $0xbc] sm:$0xf]
  %v328 = vld [vmem:[%s2 + $0xc0] sm:$0xf]
  %v329 = vld [vmem:[%s2 + $0xc4] sm:$0xf]
  %v330 = vld [vmem:[%s2 + $0xc8] sm:$0xf]
  %v331 = vld [vmem:[%s2 + $0xcc] sm:$0xf]
  %v332 = vld [vmem:[%s2 + $0xd0] sm:$0xf]
  %v333 = vld [vmem:[%s2 + $0xd4] sm:$0xf]
  %v334 = vld [vmem:[%s2 + $0xd8] sm:$0xf]
  %v335 = vld [vmem:[%s2 + $0xdc] sm:$0xf]
  %v336 = vld [vmem:[%s2 + $0xe0] sm:$0xf]
  %v337 = vld [vmem:[%s2 + $0xe4] sm:$0xf]
  %v338 = vld [vmem:[%s2 + $0xe8] sm:$0xf]
  %v339 = vld [vmem:[%s2 + $0xec] sm:$0xf]
  %v340 = vld [vmem:[%s2 + $0xf0] sm:$0xf]
  %v341 = vld [vmem:[%s2 + $0xf4] sm:$0xf]
  %v342 = vld [vmem:[%s2 + $0xf8] sm:$0xf]
  %v343 = vld [vmem:[%s2 + $0xfc] sm:$0xf]
  %v344 = vunpack.c.l.bf16 %v280
  %v345 = vunpack.c.l.bf16 %v281
  %v346 = vunpack.c.l.bf16 %v282
  %v347 = vunpack.c.l.bf16 %v283
  %v348 = vunpack.c.l.bf16 %v284
  %v349 = vunpack.c.l.bf16 %v285
  %v350 = vunpack.c.l.bf16 %v286
  %v351 = vunpack.c.l.bf16 %v287
  %v352 = vunpack.c.l.bf16 %v288
  %v353 = vunpack.c.l.bf16 %v289
  %v354 = vunpack.c.l.bf16 %v290
  %v355 = vunpack.c.l.bf16 %v291
  %v356 = vunpack.c.l.bf16 %v292
  %v357 = vunpack.c.l.bf16 %v293
  %v358 = vunpack.c.l.bf16 %v294
  %v359 = vunpack.c.l.bf16 %v295
  %v360 = vunpack.c.l.bf16 %v296
  %v361 = vunpack.c.l.bf16 %v297
  %v362 = vunpack.c.l.bf16 %v298
  %v363 = vunpack.c.l.bf16 %v299
  %v364 = vunpack.c.l.bf16 %v300
  %v365 = vunpack.c.l.bf16 %v301
  %v366 = vunpack.c.l.bf16 %v302
  %v367 = vunpack.c.l.bf16 %v303
  %v368 = vunpack.c.l.bf16 %v304
  %v369 = vunpack.c.l.bf16 %v305
  %v370 = vunpack.c.l.bf16 %v306
  %v371 = vunpack.c.l.bf16 %v307
  %v372 = vunpack.c.l.bf16 %v308
  %v373 = vunpack.c.l.bf16 %v309
  %v374 = vunpack.c.l.bf16 %v310
  %v375 = vunpack.c.l.bf16 %v311
  %v376 = vunpack.c.l.bf16 %v312
  %v377 = vunpack.c.l.bf16 %v313
  %v378 = vunpack.c.l.bf16 %v314
  %v379 = vunpack.c.l.bf16 %v315
  %v380 = vunpack.c.l.bf16 %v316
  %v381 = vunpack.c.l.bf16 %v317
  %v382 = vunpack.c.l.bf16 %v318
  %v383 = vunpack.c.l.bf16 %v319
  %v384 = vunpack.c.l.bf16 %v320
  %v385 = vunpack.c.l.bf16 %v321
  %v386 = vunpack.c.l.bf16 %v322
  %v387 = vunpack.c.l.bf16 %v323
  %v388 = vunpack.c.l.bf16 %v324
  %v389 = vunpack.c.l.bf16 %v325
  %v390 = vunpack.c.l.bf16 %v326
  %v391 = vunpack.c.l.bf16 %v327
  %v392 = vunpack.c.l.bf16 %v328
  %v393 = vunpack.c.l.bf16 %v329
  %v394 = vunpack.c.l.bf16 %v330
  %v395 = vunpack.c.l.bf16 %v331
  %v396 = vunpack.c.l.bf16 %v332
  %v397 = vunpack.c.l.bf16 %v333
  %v398 = vunpack.c.l.bf16 %v334
  %v399 = vunpack.c.l.bf16 %v335
  %v400 = vunpack.c.l.bf16 %v336
  %v401 = vunpack.c.l.bf16 %v337
  %v402 = vunpack.c.l.bf16 %v338
  %v403 = vunpack.c.l.bf16 %v339
  %v404 = vunpack.c.l.bf16 %v340
  %v405 = vunpack.c.l.bf16 %v341
  %v406 = vunpack.c.l.bf16 %v342
  %v407 = vunpack.c.l.bf16 %v343
  %v408 = vadd.f32 %v216, %v344
  %v409 = vadd.f32 %v217, %v345
  %v410 = vadd.f32 %v218, %v346
  %v411 = vadd.f32 %v219, %v347
  %v412 = vadd.f32 %v220, %v348
  %v413 = vadd.f32 %v221, %v349
  %v414 = vadd.f32 %v222, %v350
  %v415 = vadd.f32 %v223, %v351
  %v416 = vadd.f32 %v224, %v352
  %v417 = vadd.f32 %v225, %v353
  %v418 = vadd.f32 %v226, %v354
  %v419 = vadd.f32 %v227, %v355
  %v420 = vadd.f32 %v228, %v356
  %v421 = vadd.f32 %v229, %v357
  %v422 = vadd.f32 %v230, %v358
  %v423 = vadd.f32 %v231, %v359
  %v424 = vadd.f32 %v232, %v360
  %v425 = vadd.f32 %v233, %v361
  %v426 = vadd.f32 %v234, %v362
  %v427 = vadd.f32 %v235, %v363
  %v428 = vadd.f32 %v236, %v364
  %v429 = vadd.f32 %v237, %v365
  %v430 = vadd.f32 %v238, %v366
  %v431 = vadd.f32 %v239, %v367
  %v432 = vadd.f32 %v240, %v368
  %v433 = vadd.f32 %v241, %v369
  %v434 = vadd.f32 %v242, %v370
  %v435 = vadd.f32 %v243, %v371
  %v436 = vadd.f32 %v244, %v372
  %v437 = vadd.f32 %v245, %v373
  %v438 = vadd.f32 %v246, %v374
  %v439 = vadd.f32 %v247, %v375
  %v440 = vadd.f32 %v248, %v376
  %v441 = vadd.f32 %v249, %v377
  %v442 = vadd.f32 %v250, %v378
  %v443 = vadd.f32 %v251, %v379
  %v444 = vadd.f32 %v252, %v380
  %v445 = vadd.f32 %v253, %v381
  %v446 = vadd.f32 %v254, %v382
  %v447 = vadd.f32 %v255, %v383
  %v448 = vadd.f32 %v256, %v384
  %v449 = vadd.f32 %v257, %v385
  %v450 = vadd.f32 %v258, %v386
  %v451 = vadd.f32 %v259, %v387
  %v452 = vadd.f32 %v260, %v388
  %v453 = vadd.f32 %v261, %v389
  %v454 = vadd.f32 %v262, %v390
  %v455 = vadd.f32 %v263, %v391
  %v456 = vadd.f32 %v264, %v392
  %v457 = vadd.f32 %v265, %v393
  %v458 = vadd.f32 %v266, %v394
  %v459 = vadd.f32 %v267, %v395
  %v460 = vadd.f32 %v268, %v396
  %v461 = vadd.f32 %v269, %v397
  %v462 = vadd.f32 %v270, %v398
  %v463 = vadd.f32 %v271, %v399
  %v464 = vadd.f32 %v272, %v400
  %v465 = vadd.f32 %v273, %v401
  %v466 = vadd.f32 %v274, %v402
  %v467 = vadd.f32 %v275, %v403
  %v468 = vadd.f32 %v276, %v404
  %v469 = vadd.f32 %v277, %v405
  %v470 = vadd.f32 %v278, %v406
  %v471 = vadd.f32 %v279, %v407
  %v472 = vmax.f32 %v408, 0.0
  %v473 = vmax.f32 %v409, 0.0
  %v474 = vmax.f32 %v410, 0.0
  %v475 = vmax.f32 %v411, 0.0
  %v476 = vmax.f32 %v412, 0.0
  %v477 = vmax.f32 %v413, 0.0
  %v478 = vmax.f32 %v414, 0.0
  %v479 = vmax.f32 %v415, 0.0
  %v480 = vmax.f32 %v416, 0.0
  %v481 = vmax.f32 %v417, 0.0
  %v482 = vmax.f32 %v418, 0.0
  %v483 = vmax.f32 %v419, 0.0
  %v484 = vmax.f32 %v420, 0.0
  %v485 = vmax.f32 %v421, 0.0
  %v486 = vmax.f32 %v422, 0.0
  %v487 = vmax.f32 %v423, 0.0
  %v488 = vmax.f32 %v424, 0.0
  %v489 = vmax.f32 %v425, 0.0
  %v490 = vmax.f32 %v426, 0.0
  %v491 = vmax.f32 %v427, 0.0
  %v492 = vmax.f32 %v428, 0.0
  %v493 = vmax.f32 %v429, 0.0
  %v494 = vmax.f32 %v430, 0.0
  %v495 = vmax.f32 %v431, 0.0
  %v496 = vmax.f32 %v432, 0.0
  %v497 = vmax.f32 %v433, 0.0
  %v498 = vmax.f32 %v434, 0.0
  %v499 = vmax.f32 %v435, 0.0
  %v500 = vmax.f32 %v436, 0.0
  %v501 = vmax.f32 %v437, 0.0
  %v502 = vmax.f32 %v438, 0.0
  %v503 = vmax.f32 %v439, 0.0
  %v504 = vmax.f32 %v440, 0.0
  %v505 = vmax.f32 %v441, 0.0
  %v506 = vmax.f32 %v442, 0.0
  %v507 = vmax.f32 %v443, 0.0
  %v508 = vmax.f32 %v444, 0.0
  %v509 = vmax.f32 %v445, 0.0
  %v510 = vmax.f32 %v446, 0.0
  %v511 = vmax.f32 %v447, 0.0
  %v512 = vmax.f32 %v448, 0.0
  %v513 = vmax.f32 %v449, 0.0
  %v514 = vmax.f32 %v450, 0.0
  %v515 = vmax.f32 %v451, 0.0
  %v516 = vmax.f32 %v452, 0.0
  %v517 = vmax.f32 %v453, 0.0
  %v518 = vmax.f32 %v454, 0.0
  %v519 = vmax.f32 %v455, 0.0
  %v520 = vmax.f32 %v456, 0.0
  %v521 = vmax.f32 %v457, 0.0
  %v522 = vmax.f32 %v458, 0.0
  %v523 = vmax.f32 %v459, 0.0
  %v524 = vmax.f32 %v460, 0.0
  %v525 = vmax.f32 %v461, 0.0
  %v526 = vmax.f32 %v462, 0.0
  %v527 = vmax.f32 %v463, 0.0
  %v528 = vmax.f32 %v464, 0.0
  %v529 = vmax.f32 %v465, 0.0
  %v530 = vmax.f32 %v466, 0.0
  %v531 = vmax.f32 %v467, 0.0
  %v532 = vmax.f32 %v468, 0.0
  %v533 = vmax.f32 %v469, 0.0
  %v534 = vmax.f32 %v470, 0.0
  %v535 = vmax.f32 %v471, 0.0
  %vm536 = vcmask 31744
  %537 = vst.msk [vmem:[%s3] sm:$0xff] %vm536, %v472
  %538 = vst.msk [vmem:[%s3 + $0x8] sm:$0xff] %vm536, %v473
  %539 = vst.msk [vmem:[%s3 + $0x10] sm:$0xff] %vm536, %v474
  %540 = vst.msk [vmem:[%s3 + $0x18] sm:$0xff] %vm536, %v475
  %541 = vst.msk [vmem:[%s3 + $0x20] sm:$0xff] %vm536, %v476
  %542 = vst.msk [vmem:[%s3 + $0x28] sm:$0xff] %vm536, %v477
  %543 = vst.msk [vmem:[%s3 + $0x30] sm:$0xff] %vm536, %v478
  %544 = vst.msk [vmem:[%s3 + $0x38] sm:$0xff] %vm536, %v479
  %545 = vst.msk [vmem:[%s3 + $0x40] sm:$0xff] %vm536, %v480
  %546 = vst.msk [vmem:[%s3 + $0x48] sm:$0xff] %vm536, %v481
  %547 = vst.msk [vmem:[%s3 + $0x50] sm:$0xff] %vm536, %v482
  %548 = vst.msk [vmem:[%s3 + $0x58] sm:$0xff] %vm536, %v483
  %549 = vst.msk [vmem:[%s3 + $0x60] sm:$0xff] %vm536, %v484
  %550 = vst.msk [vmem:[%s3 + $0x68] sm:$0xff] %vm536, %v485
  %551 = vst.msk [vmem:[%s3 + $0x70] sm:$0xff] %vm536, %v486
  %552 = vst.msk [vmem:[%s3 + $0x78] sm:$0xff] %vm536, %v487
  %553 = vst.msk [vmem:[%s3 + $0x80] sm:$0xff] %vm536, %v488
  %554 = vst.msk [vmem:[%s3 + $0x88] sm:$0xff] %vm536, %v489
  %555 = vst.msk [vmem:[%s3 + $0x90] sm:$0xff] %vm536, %v490
  %556 = vst.msk [vmem:[%s3 + $0x98] sm:$0xff] %vm536, %v491
  %557 = vst.msk [vmem:[%s3 + $0xa0] sm:$0xff] %vm536, %v492
  %558 = vst.msk [vmem:[%s3 + $0xa8] sm:$0xff] %vm536, %v493
  %559 = vst.msk [vmem:[%s3 + $0xb0] sm:$0xff] %vm536, %v494
  %560 = vst.msk [vmem:[%s3 + $0xb8] sm:$0xff] %vm536, %v495
  %561 = vst.msk [vmem:[%s3 + $0xc0] sm:$0xff] %vm536, %v496
  %562 = vst.msk [vmem:[%s3 + $0xc8] sm:$0xff] %vm536, %v497
  %563 = vst.msk [vmem:[%s3 + $0xd0] sm:$0xff] %vm536, %v498
  %564 = vst.msk [vmem:[%s3 + $0xd8] sm:$0xff] %vm536, %v499
  %565 = vst.msk [vmem:[%s3 + $0xe0] sm:$0xff] %vm536, %v500
  %566 = vst.msk [vmem:[%s3 + $0xe8] sm:$0xff] %vm536, %v501
  %567 = vst.msk [vmem:[%s3 + $0xf0] sm:$0xff] %vm536, %v502
  %568 = vst.msk [vmem:[%s3 + $0xf8] sm:$0xff] %vm536, %v503
  %569 = vst.msk [vmem:[%s3 + $0x100] sm:$0xff] %vm536, %v504
  %570 = vst.msk [vmem:[%s3 + $0x108] sm:$0xff] %vm536, %v505
  %571 = vst.msk [vmem:[%s3 + $0x110] sm:$0xff] %vm536, %v506
  %572 = vst.msk [vmem:[%s3 + $0x118] sm:$0xff] %vm536, %v507
  %573 = vst.msk [vmem:[%s3 + $0x120] sm:$0xff] %vm536, %v508
  %574 = vst.msk [vmem:[%s3 + $0x128] sm:$0xff] %vm536, %v509
  %575 = vst.msk [vmem:[%s3 + $0x130] sm:$0xff] %vm536, %v510
  %576 = vst.msk [vmem:[%s3 + $0x138] sm:$0xff] %vm536, %v511
  %577 = vst.msk [vmem:[%s3 + $0x140] sm:$0xff] %vm536, %v512
  %578 = vst.msk [vmem:[%s3 + $0x148] sm:$0xff] %vm536, %v513
  %579 = vst.msk [vmem:[%s3 + $0x150] sm:$0xff] %vm536, %v514
  %580 = vst.msk [vmem:[%s3 + $0x158] sm:$0xff] %vm536, %v515
  %581 = vst.msk [vmem:[%s3 + $0x160] sm:$0xff] %vm536, %v516
  %582 = vst.msk [vmem:[%s3 + $0x168] sm:$0xff] %vm536, %v517
  %583 = vst.msk [vmem:[%s3 + $0x170] sm:$0xff] %vm536, %v518
  %584 = vst.msk [vmem:[%s3 + $0x178] sm:$0xff] %vm536, %v519
  %585 = vst.msk [vmem:[%s3 + $0x180] sm:$0xff] %vm536, %v520
  %586 = vst.msk [vmem:[%s3 + $0x188] sm:$0xff] %vm536, %v521
  %587 = vst.msk [vmem:[%s3 + $0x190] sm:$0xff] %vm536, %v522
  %588 = vst.msk [vmem:[%s3 + $0x198] sm:$0xff] %vm536, %v523
  %589 = vst.msk [vmem:[%s3 + $0x1a0] sm:$0xff] %vm536, %v524
  %590 = vst.msk [vmem:[%s3 + $0x1a8] sm:$0xff] %vm536, %v525
  %591 = vst.msk [vmem:[%s3 + $0x1b0] sm:$0xff] %vm536, %v526
  %592 = vst.msk [vmem:[%s3 + $0x1b8] sm:$0xff] %vm536, %v527
  %593 = vst.msk [vmem:[%s3 + $0x1c0] sm:$0xff] %vm536, %v528
  %594 = vst.msk [vmem:[%s3 + $0x1c8] sm:$0xff] %vm536, %v529
  %595 = vst.msk [vmem:[%s3 + $0x1d0] sm:$0xff] %vm536, %v530
  %596 = vst.msk [vmem:[%s3 + $0x1d8] sm:$0xff] %vm536, %v531
  %597 = vst.msk [vmem:[%s3 + $0x1e0] sm:$0xff] %vm536, %v532
  %598 = vst.msk [vmem:[%s3 + $0x1e8] sm:$0xff] %vm536, %v533
  %599 = vst.msk [vmem:[%s3 + $0x1f0] sm:$0xff] %vm536, %v534
  %600 = vst.msk [vmem:[%s3 + $0x1f8] sm:$0xff] %vm536, %v535
  // Predicated region
  $region14: #{bottleneck_forward.7} parent=0 // pred_check
    _
  $region15: #{bottleneck_forward.7} parent=0 // pred_check_branch
    %602 = sbr.rel (0) target = $region17
  $region16: #{bottleneck_forward.7} parent=0 // pred_region
    _
  $region17: #{bottleneck_forward.7} parent=0 // pred_fallthru
    _
  // Predicated region
  $region18: #{bottleneck_forward.7} parent=0 // pred_check
    _
  $region19: #{bottleneck_forward.7} parent=0 // pred_check_branch
    %604 = sbr.rel (0) target = $region21
  $region20: #{bottleneck_forward.7} parent=0 // pred_region
    _
  $region21: #{bottleneck_forward.7} parent=0 // pred_fallthru
    _

// kernel: bottleneck_forward.5
$region0: #{bottleneck_forward.5}
  #allocation0 [shape = 'u32[]', space=smem, size = 0x4, offset = 0x4, fixed_abs, tag = 'smem constant byte address 0x4 - core index']
  #allocation1 [shape = 'u32[144,128]{1,0:T(1,128)}', space=vmem, size = 0x12000, scoped, tag = 'internal scratch']
  #allocation2 [shape = 'bf16[1,18,24,64]{3,2,1,0:T(8,128)(2,1)}', space=vmem, size = 0x1b000, scoped, tag = 'scratch operand']
  %s0 = inlined_call_operand.vmem [shape: bf16[2,16,16,64], index: 0, kind: input, shape index: {}]
  %s1 = inlined_call_operand.vmem [shape: f32[2,64], index: 1, kind: input, shape index: {}]
  %s2 = inlined_call_operand.vmem [shape: bf16[3,64,192], index: 2, kind: input, shape index: {}]
  %s3 = inlined_call_operand.vmem [shape: bf16[2,16,16,64], index: 3, kind: output, shape index: {0}]
  %s4 = inlined_call_operand.vmem [shape: f32[2,2,64], index: 4, kind: output, shape index: {1}]
  %5 = xla_tuple %s3, %s4
  %s6 = sld [smem:[#allocation0]]
  $region53: #{bottleneck_forward.5} parent=0
    _
  %s8 = ssub.s32 1, %s6
  %s9 = scalar_select 0, %s8, %s6
  loop: start=0, step=1, limit=4
  $region2: #{bottleneck_forward.5} parent=0 // loop_pre_header
    _
  $region3: #{bottleneck_forward.5} parent=0 // loop_header
    %s11 = sphi 0, %s15
    %p12 = scmp.ge.s32.totalorder %s11, 4
    %s21 = sphi 0, %s23
    %s24 = sphi 0, %s21
    %s25 = sphi 0, %s24
    %s41 = sphi 0, %s25
    %s45 = sphi 0, %s45
    %s47 = sphi 0, %s45
    %s48 = sphi 0, %s47
    %s62 = sphi 0, %s48
    %s66 = sphi 0, %s66
    %s68 = sphi 0, %s66
    %s69 = sphi 0, %s68
    %s83 = sphi 0, %s69
    %s89 = sphi 0, %s91
    %s92 = sphi 0, %s89
    %s93 = sphi 0, %s92
    %s109 = sphi 0, %s93
    %s115 = sphi 0, %s117
    %s118 = sphi 0, %s115
    %s119 = sphi 0, %s118
    %s135 = sphi 0, %s119
  $region4: #{bottleneck_forward.5} parent=0 // loop_header_branch
    %14 = sbr.rel (%p12) target = $region8
  $region5: #{bottleneck_forward.5} parent=0 // loop_body
    %s16 = ssub.s32 %s11, 1
    %s17 = ssub.s32 %s11, 2
    %s18 = sadd.s32 %s11, 1
    %s19 = ssub.s32 %s11, %s18
    %p20 = scmp.eq.s32.totalorder %s19, 0
    %s22 = sadd.s32 %s21, 1
    %s23 = scalar_select %p20, %s21, %s22
    %p26 = pneg %p20
    %p27 = scmp.eq.s32.totalorder %s11, 1
    %p28 = por %p26, %p27
    %p29 = scmp.ne.s32.totalorder %s21, %s24
    %p30 = scmp.eq.s32.totalorder %s11, 0
    %p31 = por %p29, %p30
    %p32 = scmp.ne.s32.totalorder %s21, %s24
    %p33 = scmp.eq.s32.totalorder %s16, 1
    %p34 = por %p32, %p33
    %p35 = scmp.ne.s32.totalorder %s24, %s25
    %p36 = scmp.eq.s32.totalorder %s16, 0
    %p37 = por %p35, %p36
    %p38 = scmp.ne.s32.totalorder %s24, %s25
    %p39 = scmp.eq.s32.totalorder %s17, 1
    %p40 = por %p38, %p39
    %p42 = scmp.ne.s32.totalorder %s25, %s41
    %p43 = scmp.eq.s32.totalorder %s17, 0
    %p44 = por %p42, %p43
    %s46 = sadd.s32 %s45, 1
    %p49 = scmp.eq.s32.totalorder %s11, 1
    %p50 = scmp.ne.s32.totalorder %s45, %s47
    %p51 = scmp.eq.s32.totalorder %s11, 0
    %p52 = por %p50, %p51
    %p53 = scmp.ne.s32.totalorder %s45, %s47
    %p54 = scmp.eq.s32.totalorder %s16, 1
    %p55 = por %p53, %p54
    %p56 = scmp.ne.s32.totalorder %s47, %s48
    %p57 = scmp.eq.s32.totalorder %s16, 0
    %p58 = por %p56, %p57
    %p59 = scmp.ne.s32.totalorder %s47, %s48
    %p60 = scmp.eq.s32.totalorder %s17, 1
    %p61 = por %p59, %p60
    %p63 = scmp.ne.s32.totalorder %s48, %s62
    %p64 = scmp.eq.s32.totalorder %s17, 0
    %p65 = por %p63, %p64
    %s67 = sadd.s32 %s66, 1
    %p70 = scmp.eq.s32.totalorder %s11, 1
    %p71 = scmp.ne.s32.totalorder %s66, %s68
    %p72 = scmp.eq.s32.totalorder %s11, 0
    %p73 = por %p71, %p72
    %p74 = scmp.ne.s32.totalorder %s66, %s68
    %p75 = scmp.eq.s32.totalorder %s16, 1
    %p76 = por %p74, %p75
    %p77 = scmp.ne.s32.totalorder %s68, %s69
    %p78 = scmp.eq.s32.totalorder %s16, 0
    %p79 = por %p77, %p78
    %p80 = scmp.ne.s32.totalorder %s68, %s69
    %p81 = scmp.eq.s32.totalorder %s17, 1
    %p82 = por %p80, %p81
    %p84 = scmp.ne.s32.totalorder %s69, %s83
    %p85 = scmp.eq.s32.totalorder %s17, 0
    %p86 = por %p84, %p85
    %s87 = ssub.s32 %s11, %s18
    %p88 = scmp.eq.s32.totalorder %s87, 0
    %s90 = sadd.s32 %s89, 1
    %s91 = scalar_select %p88, %s89, %s90
    %p94 = pneg %p88
    %p95 = scmp.eq.s32.totalorder %s11, 1
    %p96 = por %p94, %p95
    %p97 = scmp.ne.s32.totalorder %s89, %s92
    %p98 = scmp.eq.s32.totalorder %s11, 0
    %p99 = por %p97, %p98
    %p100 = scmp.ne.s32.totalorder %s89, %s92
    %p101 = scmp.eq.s32.totalorder %s16, 1
    %p102 = por %p100, %p101
    %p103 = scmp.ne.s32.totalorder %s92, %s93
    %p104 = scmp.eq.s32.totalorder %s16, 0
    %p105 = por %p103, %p104
    %p106 = scmp.ne.s32.totalorder %s92, %s93
    %p107 = scmp.eq.s32.totalorder %s17, 1
    %p108 = por %p106, %p107
    %p110 = scmp.ne.s32.totalorder %s93, %s109
    %p111 = scmp.eq.s32.totalorder %s17, 0
    %p112 = por %p110, %p111
    %s113 = ssub.s32 %s11, %s18
    %p114 = scmp.eq.s32.totalorder %s113, 0
    %s116 = sadd.s32 %s115, 1
    %s117 = scalar_select %p114, %s115, %s116
    %p120 = pneg %p114
    %p121 = scmp.eq.s32.totalorder %s11, 1
    %p122 = por %p120, %p121
    %p123 = scmp.ne.s32.totalorder %s115, %s118
    %p124 = scmp.eq.s32.totalorder %s11, 0
    %p125 = por %p123, %p124
    %p126 = scmp.ne.s32.totalorder %s115, %s118
    %p127 = scmp.eq.s32.totalorder %s16, 1
    %p128 = por %p126, %p127
    %p129 = scmp.ne.s32.totalorder %s118, %s119
    %p130 = scmp.eq.s32.totalorder %s16, 0
    %p131 = por %p129, %p130
    %p132 = scmp.ne.s32.totalorder %s118, %s119
    %p133 = scmp.eq.s32.totalorder %s17, 1
    %p134 = por %p132, %p133
    %p136 = scmp.ne.s32.totalorder %s119, %s135
    %p137 = scmp.eq.s32.totalorder %s17, 0
    %p138 = por %p136, %p137
    %p139 = scmp.le.s32.totalorder 1, %s11
    %p140 = scmp.lt.s32.totalorder %s11, 3
    %p141 = pnand %p139, %p140
    %p142 = pneg %p141
    // Predicated region
    $region9: #{bottleneck_forward.5} parent=5 // pred_check
      _
    $region10: #{bottleneck_forward.5} parent=5 // pred_check_branch
      %144 = sbr.rel (%p141) target = $region12
    $region11: #{bottleneck_forward.5} parent=5 // pred_region
      %s145 = ssub.s32 %s11, 1
      // Predicated region
      $region13: #{bottleneck_forward.5} parent=11 // pred_check
        %p146 = pneg %p58
      $region14: #{bottleneck_forward.5} parent=11 // pred_check_branch
        %148 = sbr.rel (%p146) target = $region16
      $region15: #{bottleneck_forward.5} parent=11 // pred_region
        _
      $region16: #{bottleneck_forward.5} parent=11 // pred_fallthru
        _
      // Predicated region
      $region17: #{bottleneck_forward.5} parent=11 // pred_check
        %p149 = pneg %p79
      $region18: #{bottleneck_forward.5} parent=11 // pred_check_branch
        %151 = sbr.rel (%p149) target = $region20
      $region19: #{bottleneck_forward.5} parent=11 // pred_region
        _
      $region20: #{bottleneck_forward.5} parent=11 // pred_fallthru
        _
    $region12: #{bottleneck_forward.5} parent=5 // pred_fallthru
      _
    %p152 = scmp.lt.s32.totalorder %s11, 2
    // Predicated region
    $region21: #{bottleneck_forward.5} parent=5 // pred_check
      %p153 = pneg %p152
    $region22: #{bottleneck_forward.5} parent=5 // pred_check_branch
      %155 = sbr.rel (%p153) target = $region24
    $region23: #{bottleneck_forward.5} parent=5 // pred_region
      // Predicated region
      $region25: #{bottleneck_forward.5} parent=23 // pred_check
        %p156 = pneg %p31
      $region26: #{bottleneck_forward.5} parent=23 // pred_check_branch
        %158 = sbr.rel (%p156) target = $region28
      $region27: #{bottleneck_forward.5} parent=23 // pred_region
        %p159 = scmp.lt.s32.totalorder %s11, 1
        %s160 = scalar_select %p159, %s11, 1
        %s161 = smul.addr %s160, 32
        %s162 = smul.addr %s161, 4
        %s163 = scalar_lea.vmem %s0, %s162
      $region28: #{bottleneck_forward.5} parent=23 // pred_fallthru
        _
    $region24: #{bottleneck_forward.5} parent=5 // pred_fallthru
      _
    %p164 = scmp.le.s32.totalorder 1, %s11
    %p165 = scmp.lt.s32.totalorder %s11, 3
    %p166 = pnand %p164, %p165
    %p167 = pneg %p166
    // Predicated region
    $region29: #{bottleneck_forward.5} parent=5 // pred_check
      _
    $region30: #{bottleneck_forward.5} parent=5 // pred_check_branch
      %169 = sbr.rel (%p166) target = $region32
    $region31: #{bottleneck_forward.5} parent=5 // pred_region
      %s170 = ssub.s32 %s11, 1
      %p171 = scmp.lt.s32.totalorder %s16, 1
      %s172 = scalar_select %p171, %s16, 1
      %s173 = smul.addr %s172, 32
      %s174 = smul.addr %s173, 4
      %s175 = scalar_lea.vmem %s0, %s174
      %p176 = pneg %p37
      %p177 = pneg %p34
      %p178 = pneg %p58
      %p179 = pneg %p55
      %p180 = pneg %p79
      %p181 = pneg %p76
      %p182 = pneg %p105
      %p183 = pneg %p102
      %p184 = scmp.lt.s32.totalorder %s16, 1
      %s185 = scalar_select %p184, %s16, 1
      %s186 = smul.addr %s185, 32
      %s187 = smul.addr %s186, 4
      %s188 = scalar_lea.vmem %s3, %s187
      %p189 = pneg %p131
      %p190 = pneg %p128
      %p191 = scmp.lt.s32.totalorder %s16, 1
      %s192 = scalar_select %p191, %s16, 1
      %s193 = smul.addr %s192, 2
      %s194 = scalar_lea.vmem %s4, %s193
      %p195 = scmp.lt.s32.totalorder %s16, 1
      %s196 = scalar_select %p195, %s16, 1
      %s197 = smul.addr %s196, 32
      %s198 = smul.addr %s197, 4
      %s199 = scalar_lea.vmem %s0, %s198
      %p200 = scmp.lt.s32.totalorder %s16, 1
      %s201 = scalar_select %p200, %s16, 1
      %s202 = smul.addr %s201, 32
      %s203 = smul.addr %s202, 4
      %s204 = scalar_lea.vmem %s3, %s203
      %p205 = scmp.lt.s32.totalorder %s16, 1
      %s206 = scalar_select %p205, %s16, 1
      %s207 = smul.addr %s206, 2
      %s208 = scalar_lea.vmem %s4, %s207
      %vm210 = vcmask 519168
      %211 = vst.msk [vmem:[#allocation2] sm:$0xf] %vm210, 0
      %212 = vst.msk [vmem:[#allocation2 + $0x4] sm:$0xf] %vm210, 0
      %213 = vst.msk [vmem:[#allocation2 + $0x8] sm:$0xf] %vm210, 0
      %s214 = scalar_lea.vmem [#allocation2], 204
      %215 = vst.msk [vmem:[%s214] sm:$0xf] %vm210, 0
      %216 = vst.msk [vmem:[%s214 + $0x4] sm:$0xf] %vm210, 0
      %217 = vst.msk [vmem:[%s214 + $0x8] sm:$0xf] %vm210, 0
      %s218 = scalar_lea.vmem [#allocation2], 12
      %vm219 = vcmask 516096
      %vm220 = vsmask.f32 256
      %vm221 = vmand %vm219, %vm220
      %v222 = vld [vmem:[%s218] sm:$0x1]
      %v223 = vsel %vm221, 0, %v222
      %224 = vst [vmem:[%s218] sm:$0x1] %v223
      %v225 = vld [vmem:[%s218 + $0xc] sm:$0x1]
      %v226 = vsel %vm221, 0, %v225
      %227 = vst [vmem:[%s218 + $0xc] sm:$0x1] %v226
      %v228 = vld [vmem:[%s218 + $0x18] sm:$0x1]
      %v229 = vsel %vm221, 0, %v228
      %230 = vst [vmem:[%s218 + $0x18] sm:$0x1] %v229
      %v231 = vld [vmem:[%s218 + $0x24] sm:$0x1]
      %v232 = vsel %vm221, 0, %v231
      %233 = vst [vmem:[%s218 + $0x24] sm:$0x1] %v232
      %v234 = vld [vmem:[%s218 + $0x30] sm:$0x1]
      %v235 = vsel %vm221, 0, %v234
      %236 = vst [vmem:[%s218 + $0x30] sm:$0x1] %v235
      %v237 = vld [vmem:[%s218 + $0x3c] sm:$0x1]
      %v238 = vsel %vm221, 0, %v237
      %239 = vst [vmem:[%s218 + $0x3c] sm:$0x1] %v238
      %v240 = vld [vmem:[%s218 + $0x48] sm:$0x1]
      %v241 = vsel %vm221, 0, %v240
      %242 = vst [vmem:[%s218 + $0x48] sm:$0x1] %v241
      %v243 = vld [vmem:[%s218 + $0x54] sm:$0x1]
      %v244 = vsel %vm221, 0, %v243
      %245 = vst [vmem:[%s218 + $0x54] sm:$0x1] %v244
      %v246 = vld [vmem:[%s218 + $0x60] sm:$0x1]
      %v247 = vsel %vm221, 0, %v246
      %248 = vst [vmem:[%s218 + $0x60] sm:$0x1] %v247
      %v249 = vld [vmem:[%s218 + $0x6c] sm:$0x1]
      %v250 = vsel %vm221, 0, %v249
      %251 = vst [vmem:[%s218 + $0x6c] sm:$0x1] %v250
      %v252 = vld [vmem:[%s218 + $0x78] sm:$0x1]
      %v253 = vsel %vm221, 0, %v252
      %254 = vst [vmem:[%s218 + $0x78] sm:$0x1] %v253
      %v255 = vld [vmem:[%s218 + $0x84] sm:$0x1]
      %v256 = vsel %vm221, 0, %v255
      %257 = vst [vmem:[%s218 + $0x84] sm:$0x1] %v256
      %v258 = vld [vmem:[%s218 + $0x90] sm:$0x1]
      %v259 = vsel %vm221, 0, %v258
      %260 = vst [vmem:[%s218 + $0x90] sm:$0x1] %v259
      %v261 = vld [vmem:[%s218 + $0x9c] sm:$0x1]
      %v262 = vsel %vm221, 0, %v261
      %263 = vst [vmem:[%s218 + $0x9c] sm:$0x1] %v262
      %v264 = vld [vmem:[%s218 + $0xa8] sm:$0x1]
      %v265 = vsel %vm221, 0, %v264
      %266 = vst [vmem:[%s218 + $0xa8] sm:$0x1] %v265
      %v267 = vld [vmem:[%s218 + $0xb4] sm:$0x1]
      %v268 = vsel %vm221, 0, %v267
      %269 = vst [vmem:[%s218 + $0xb4] sm:$0x1] %v268
      %vm270 = vsmask.f32 7938
      %vm271 = vmand %vm219, %vm270
      %v272 = vld [vmem:[%s218 + $0x8] sm:$0x1]
      %v273 = vsel %vm271, 0, %v272
      %274 = vst [vmem:[%s218 + $0x8] sm:$0x1] %v273
      %v275 = vld [vmem:[%s218 + $0x14] sm:$0x1]
      %v276 = vsel %vm271, 0, %v275
      %277 = vst [vmem:[%s218 + $0x14] sm:$0x1] %v276
      %v278 = vld [vmem:[%s218 + $0x20] sm:$0x1]
      %v279 = vsel %vm271, 0, %v278
      %280 = vst [vmem:[%s218 + $0x20] sm:$0x1] %v279
      %v281 = vld [vmem:[%s218 + $0x2c] sm:$0x1]
      %v282 = vsel %vm271, 0, %v281
      %283 = vst [vmem:[%s218 + $0x2c] sm:$0x1] %v282
      %v284 = vld [vmem:[%s218 + $0x38] sm:$0x1]
      %v285 = vsel %vm271, 0, %v284
      %286 = vst [vmem:[%s218 + $0x38] sm:$0x1] %v285
      %v287 = vld [vmem:[%s218 + $0x44] sm:$0x1]
      %v288 = vsel %vm271, 0, %v287
      %289 = vst [vmem:[%s218 + $0x44] sm:$0x1] %v288
      %v290 = vld [vmem:[%s218 + $0x50] sm:$0x1]
      %v291 = vsel %vm271, 0, %v290
      %292 = vst [vmem:[%s218 + $0x50] sm:$0x1] %v291
      %v293 = vld [vmem:[%s218 + $0x5c] sm:$0x1]
      %v294 = vsel %vm271, 0, %v293
      %295 = vst [vmem:[%s218 + $0x5c] sm:$0x1] %v294
      %v296 = vld [vmem:[%s218 + $0x68] sm:$0x1]
      %v297 = vsel %vm271, 0, %v296
      %298 = vst [vmem:[%s218 + $0x68] sm:$0x1] %v297
      %v299 = vld [vmem:[%s218 + $0x74] sm:$0x1]
      %v300 = vsel %vm271, 0, %v299
      %301 = vst [vmem:[%s218 + $0x74] sm:$0x1] %v300
      %v302 = vld [vmem:[%s218 + $0x80] sm:$0x1]
      %v303 = vsel %vm271, 0, %v302
      %304 = vst [vmem:[%s218 + $0x80] sm:$0x1] %v303
      %v305 = vld [vmem:[%s218 + $0x8c] sm:$0x1]
      %v306 = vsel %vm271, 0, %v305
      %307 = vst [vmem:[%s218 + $0x8c] sm:$0x1] %v306
      %v308 = vld [vmem:[%s218 + $0x98] sm:$0x1]
      %v309 = vsel %vm271, 0, %v308
      %310 = vst [vmem:[%s218 + $0x98] sm:$0x1] %v309
      %v311 = vld [vmem:[%s218 + $0xa4] sm:$0x1]
      %v312 = vsel %vm271, 0, %v311
      %313 = vst [vmem:[%s218 + $0xa4] sm:$0x1] %v312
      %v314 = vld [vmem:[%s218 + $0xb0] sm:$0x1]
      %v315 = vsel %vm271, 0, %v314
      %316 = vst [vmem:[%s218 + $0xb0] sm:$0x1] %v315
      %v317 = vld [vmem:[%s218 + $0xbc] sm:$0x1]
      %v318 = vsel %vm271, 0, %v317
      %319 = vst [vmem:[%s218 + $0xbc] sm:$0x1] %v318
      %v320 = vld [vmem:[%s199] sm:$0xf]
      %v321 = vld [vmem:[%s199 + $0x4] sm:$0xf]
      %v322 = vld [vmem:[%s199 + $0x8] sm:$0xf]
      %v323 = vld [vmem:[%s199 + $0xc] sm:$0xf]
      %v324 = vld [vmem:[%s199 + $0x10] sm:$0xf]
      %v325 = vld [vmem:[%s199 + $0x14] sm:$0xf]
      %v326 = vld [vmem:[%s199 + $0x18] sm:$0xf]
      %v327 = vld [vmem:[%s199 + $0x1c] sm:$0xf]
      %v328 = vld [vmem:[%s199 + $0x20] sm:$0xf]
      %v329 = vld [vmem:[%s199 + $0x24] sm:$0xf]
      %v330 = vld [vmem:[%s199 + $0x28] sm:$0xf]
      %v331 = vld [vmem:[%s199 + $0x2c] sm:$0xf]
      %v332 = vld [vmem:[%s199 + $0x30] sm:$0xf]
      %v333 = vld [vmem:[%s199 + $0x34] sm:$0xf]
      %v334 = vld [vmem:[%s199 + $0x38] sm:$0xf]
      %v335 = vld [vmem:[%s199 + $0x3c] sm:$0xf]
      %v336 = vld [vmem:[%s199 + $0x40] sm:$0xf]
      %v337 = vld [vmem:[%s199 + $0x44] sm:$0xf]
      %v338 = vld [vmem:[%s199 + $0x48] sm:$0xf]
      %v339 = vld [vmem:[%s199 + $0x4c] sm:$0xf]
      %v340 = vld [vmem:[%s199 + $0x50] sm:$0xf]
      %v341 = vld [vmem:[%s199 + $0x54] sm:$0xf]
      %v342 = vld [vmem:[%s199 + $0x58] sm:$0xf]
      %v343 = vld [vmem:[%s199 + $0x5c] sm:$0xf]
      %v344 = vld [vmem:[%s199 + $0x60] sm:$0xf]
      %v345 = vld [vmem:[%s199 + $0x64] sm:$0xf]
      %v346 = vld [vmem:[%s199 + $0x68] sm:$0xf]
      %v347 = vld [vmem:[%s199 + $0x6c] sm:$0xf]
      %v348 = vld [vmem:[%s199 + $0x70] sm:$0xf]
      %v349 = vld [vmem:[%s199 + $0x74] sm:$0xf]
      %v350 = vld [vmem:[%s199 + $0x78] sm:$0xf]
      %v351 = vld [vmem:[%s199 + $0x7c] sm:$0xf]
      %v352 = vunpack.c.l.bf16 %v320
      %v353 = vunpack.c.l.bf16 %v321
      %v354 = vunpack.c.l.bf16 %v322
      %v355 = vunpack.c.l.bf16 %v323
      %v356 = vunpack.c.l.bf16 %v324
      %v357 = vunpack.c.l.bf16 %v325
      %v358 = vunpack.c.l.bf16 %v326
      %v359 = vunpack.c.l.bf16 %v327
      %v360 = vunpack.c.l.bf16 %v328
      %v361 = vunpack.c.l.bf16 %v329
      %v362 = vunpack.c.l.bf16 %v330
      %v363 = vunpack.c.l.bf16 %v331
      %v364 = vunpack.c.l.bf16 %v332
      %v365 = vunpack.c.l.bf16 %v333
      %v366 = vunpack.c.l.bf16 %v334
      %v367 = vunpack.c.l.bf16 %v335
      %v368 = vunpack.c.l.bf16 %v336
      %v369 = vunpack.c.l.bf16 %v337
      %v370 = vunpack.c.l.bf16 %v338
      %v371 = vunpack.c.l.bf16 %v339
      %v372 = vunpack.c.l.bf16 %v340
      %v373 = vunpack.c.l.bf16 %v341
      %v374 = vunpack.c.l.bf16 %v342
      %v375 = vunpack.c.l.bf16 %v343
      %v376 = vunpack.c.l.bf16 %v344
      %v377 = vunpack.c.l.bf16 %v345
      %v378 = vunpack.c.l.bf16 %v346
      %v379 = vunpack.c.l.bf16 %v347
      %v380 = vunpack.c.l.bf16 %v348
      %v381 = vunpack.c.l.bf16 %v349
      %v382 = vunpack.c.l.bf16 %v350
      %v383 = vunpack.c.l.bf16 %v351
      %v384 = vld [vmem:[%s1] sm:$0x1]
      %v385 = vlaneseq
      %v386 = vshrl.u32 %v385, 7
      %v387 = vsub.s32 0, %v386
      %v388 = vrot.slane %v384, %v387
      %v389 = vmul.f32 %v352, %v388
      %v390 = vmul.f32 %v353, %v388
      %v391 = vmul.f32 %v354, %v388
      %v392 = vmul.f32 %v355, %v388
      %v393 = vmul.f32 %v356, %v388
      %v394 = vmul.f32 %v357, %v388
      %v395 = vmul.f32 %v358, %v388
      %v396 = vmul.f32 %v359, %v388
      %v397 = vmul.f32 %v360, %v388
      %v398 = vmul.f32 %v361, %v388
      %v399 = vmul.f32 %v362, %v388
      %v400 = vmul.f32 %v363, %v388
      %v401 = vmul.f32 %v364, %v388
      %v402 = vmul.f32 %v365, %v388
      %v403 = vmul.f32 %v366, %v388
      %v404 = vmul.f32 %v367, %v388
      %v405 = vmul.f32 %v368, %v388
      %v406 = vmul.f32 %v369, %v388
      %v407 = vmul.f32 %v370, %v388
      %v408 = vmul.f32 %v371, %v388
      %v409 = vmul.f32 %v372, %v388
      %v410 = vmul.f32 %v373, %v388
      %v411 = vmul.f32 %v374, %v388
      %v412 = vmul.f32 %v375, %v388
      %v413 = vmul.f32 %v376, %v388
      %v414 = vmul.f32 %v377, %v388
      %v415 = vmul.f32 %v378, %v388
      %v416 = vmul.f32 %v379, %v388
      %v417 = vmul.f32 %v380, %v388
      %v418 = vmul.f32 %v381, %v388
      %v419 = vmul.f32 %v382, %v388
      %v420 = vmul.f32 %v383, %v388
      %v421 = vld [vmem:[%s1 + $0x1] sm:$0x1]
      %v422 = vlaneseq
      %v423 = vshrl.u32 %v422, 7
      %v424 = vsub.s32 0, %v423
      %v425 = vrot.slane %v421, %v424
      %v426 = vadd.f32 %v389, %v425
      %v427 = vadd.f32 %v390, %v425
      %v428 = vadd.f32 %v391, %v425
      %v429 = vadd.f32 %v392, %v425
      %v430 = vadd.f32 %v393, %v425
      %v431 = vadd.f32 %v394, %v425
      %v432 = vadd.f32 %v395, %v425
      %v433 = vadd.f32 %v396, %v425
      %v434 = vadd.f32 %v397, %v425
      %v435 = vadd.f32 %v398, %v425
      %v436 = vadd.f32 %v399, %v425
      %v437 = vadd.f32 %v400, %v425
      %v438 = vadd.f32 %v401, %v425
      %v439 = vadd.f32 %v402, %v425
      %v440 = vadd.f32 %v403, %v425
      %v441 = vadd.f32 %v404, %v425
      %v442 = vadd.f32 %v405, %v425
      %v443 = vadd.f32 %v406, %v425
      %v444 = vadd.f32 %v407, %v425
      %v445 = vadd.f32 %v408, %v425
      %v446 = vadd.f32 %v409, %v425
      %v447 = vadd.f32 %v410, %v425
      %v448 = vadd.f32 %v411, %v425
      %v449 = vadd.f32 %v412, %v425
      %v450 = vadd.f32 %v413, %v425
      %v451 = vadd.f32 %v414, %v425
      %v452 = vadd.f32 %v415, %v425
      %v453 = vadd.f32 %v416, %v425
      %v454 = vadd.f32 %v417, %v425
      %v455 = vadd.f32 %v418, %v425
      %v456 = vadd.f32 %v419, %v425
      %v457 = vadd.f32 %v420, %v425
      %v458 = vmax.f32 %v426, 0.0
      %v459 = vmax.f32 %v427, 0.0
      %v460 = vmax.f32 %v428, 0.0
      %v461 = vmax.f32 %v429, 0.0
      %v462 = vmax.f32 %v430, 0.0
      %v463 = vmax.f32 %v431, 0.0
      %v464 = vmax.f32 %v432, 0.0
      %v465 = vmax.f32 %v433, 0.0
      %v466 = vmax.f32 %v434, 0.0
      %v467 = vmax.f32 %v435, 0.0
      %v468 = vmax.f32 %v436, 0.0
      %v469 = vmax.f32 %v437, 0.0
      %v470 = vmax.f32 %v438, 0.0
      %v471 = vmax.f32 %v439, 0.0
      %v472 = vmax.f32 %v440, 0.0
      %v473 = vmax.f32 %v441, 0.0
      %v474 = vmax.f32 %v442, 0.0
      %v475 = vmax.f32 %v443, 0.0
      %v476 = vmax.f32 %v444, 0.0
      %v477 = vmax.f32 %v445, 0.0
      %v478 = vmax.f32 %v446, 0.0
      %v479 = vmax.f32 %v447, 0.0
      %v480 = vmax.f32 %v448, 0.0
      %v481 = vmax.f32 %v449, 0.0
      %v482 = vmax.f32 %v450, 0.0
      %v483 = vmax.f32 %v451, 0.0
      %v484 = vmax.f32 %v452, 0.0
      %v485 = vmax.f32 %v453, 0.0
      %v486 = vmax.f32 %v454, 0.0
      %v487 = vmax.f32 %v455, 0.0
      %v488 = vmax.f32 %v456, 0.0
      %v489 = vmax.f32 %v457, 0.0
      %v490 = vpack.c.bf16 %v459, %v458
      %v491 = vpack.c.bf16 %v461, %v460
      %v492 = vpack.c.bf16 %v463, %v462
      %v493 = vpack.c.bf16 %v465, %v464
      %v494 = vpack.c.bf16 %v467, %v466
      %v495 = vpack.c.bf16 %v469, %v468
      %v496 = vpack.c.bf16 %v471, %v470
      %v497 = vpack.c.bf16 %v473, %v472
      %v498 = vpack.c.bf16 %v475, %v474
      %v499 = vpack.c.bf16 %v477, %v476
      %v500 = vpack.c.bf16 %v479, %v478
      %v501 = vpack.c.bf16 %v481, %v480
      %v502 = vpack.c.bf16 %v483, %v482
      %v503 = vpack.c.bf16 %v485, %v484
      %v504 = vpack.c.bf16 %v487, %v486
      %v505 = vpack.c.bf16 %v489, %v488
      %v522 = vunpack.c.l.b16 %v490
      %v523 = vunpack.c.h.b16 %v490
      %v524 = vunpack.c.l.b16 %v491
      %v525 = vunpack.c.h.b16 %v491
      %v526 = vunpack.c.l.b16 %v492
      %v527 = vunpack.c.h.b16 %v492
      %v528 = vunpack.c.l.b16 %v493
      %v529 = vunpack.c.h.b16 %v493
      %v530 = vunpack.c.l.b16 %v494
      %v531 = vunpack.c.h.b16 %v494
      %v532 = vunpack.c.l.b16 %v495
      %v533 = vunpack.c.h.b16 %v495
      %v534 = vunpack.c.l.b16 %v496
      %v535 = vunpack.c.h.b16 %v496
      %v536 = vunpack.c.l.b16 %v497
      %v537 = vunpack.c.h.b16 %v497
      %v538 = vunpack.c.l.b16 %v498
      %v539 = vunpack.c.h.b16 %v498
      %v540 = vunpack.c.l.b16 %v499
      %v541 = vunpack.c.h.b16 %v499
      %v542 = vunpack.c.l.b16 %v500
      %v543 = vunpack.c.h.b16 %v500
      %v544 = vunpack.c.l.b16 %v501
      %v545 = vunpack.c.h.b16 %v501
      %v546 = vunpack.c.l.b16 %v502
      %v547 = vunpack.c.h.b16 %v502
      %v548 = vunpack.c.l.b16 %v503
      %v549 = vunpack.c.h.b16 %v503
      %v550 = vunpack.c.l.b16 %v504
      %v551 = vunpack.c.h.b16 %v504
      %v552 = vunpack.c.l.b16 %v505
      %v553 = vunpack.c.h.b16 %v505
      %v554 = vpack.c.b16 %v522, %v522
      %v555 = vpack.c.b16 %v523, %v523
      %v556 = vpack.c.b16 %v524, %v524
      %v557 = vpack.c.b16 %v525, %v525
      %v558 = vpack.c.b16 %v526, %v526
      %v559 = vpack.c.b16 %v527, %v527
      %v560 = vpack.c.b16 %v528, %v528
      %v561 = vpack.c.b16 %v529, %v529
      %v562 = vpack.c.b16 %v530, %v530
      %v563 = vpack.c.b16 %v531, %v531
      %v564 = vpack.c.b16 %v532, %v532
      %v565 = vpack.c.b16 %v533, %v533
      %v566 = vpack.c.b16 %v534, %v534
      %v567 = vpack.c.b16 %v535, %v535
      %v568 = vpack.c.b16 %v536, %v536
      %v569 = vpack.c.b16 %v537, %v537
      %v570 = vpack.c.b16 %v538, %v538
      %v571 = vpack.c.b16 %v539, %v539
      %v572 = vpack.c.b16 %v540, %v540
      %v573 = vpack.c.b16 %v541, %v541
      %v574 = vpack.c.b16 %v542, %v542
      %v575 = vpack.c.b16 %v543, %v543
      %v576 = vpack.c.b16 %v544, %v544
      %v577 = vpack.c.b16 %v545, %v545
      %v578 = vpack.c.b16 %v546, %v546
      %v579 = vpack.c.b16 %v547, %v547
      %v580 = vpack.c.b16 %v548, %v548
      %v581 = vpack.c.b16 %v549, %v549
      %v582 = vpack.c.b16 %v550, %v550
      %v583 = vpack.c.b16 %v551, %v551
      %v584 = vpack.c.b16 %v552, %v552
      %v585 = vpack.c.b16 %v553, %v553
      %vm586 = vsmask.f32 4368
      %vm587 = vmor %vm220, %vm586
      %v589 = vshrl.u32 %v554, 16
      %v591 = vrot.slane %v589, 7
      %v592 = vshll.u32 %v554, 16
      %v594 = vor.u32 %v591, %v592
      %v595 = vrot.slane %v591, 4
      %v597 = vshrl.u32 %v555, 16
      %v599 = vrot.slane %v597, 7
      %v600 = vshll.u32 %v555, 16
      %v602 = vor.u32 %v599, %v600
      %v603 = vsel %vm587, %v595, %v602
      %v604 = vrot.slane %v599, 4
      %v606 = vshrl.u32 %v556, 16
      %v608 = vrot.slane %v606, 7
      %v609 = vshll.u32 %v556, 16
      %v611 = vor.u32 %v608, %v609
      %v612 = vrot.slane %v608, 4
      %v614 = vshrl.u32 %v557, 16
      %v616 = vrot.slane %v614, 7
      %v617 = vshll.u32 %v557, 16
      %v619 = vor.u32 %v616, %v617
      %v620 = vsel %vm587, %v612, %v619
      %v621 = vrot.slane %v616, 4
      %v623 = vshrl.u32 %v558, 16
      %v625 = vrot.slane %v623, 7
      %v626 = vshll.u32 %v558, 16
      %v628 = vor.u32 %v625, %v626
      %v629 = vrot.slane %v625, 4
      %v631 = vshrl.u32 %v559, 16
      %v633 = vrot.slane %v631, 7
      %v634 = vshll.u32 %v559, 16
      %v636 = vor.u32 %v633, %v634
      %v637 = vsel %vm587, %v629, %v636
      %v638 = vrot.slane %v633, 4
      %v640 = vshrl.u32 %v560, 16
      %v642 = vrot.slane %v640, 7
      %v643 = vshll.u32 %v560, 16
      %v645 = vor.u32 %v642, %v643
      %v646 = vrot.slane %v642, 4
      %v648 = vshrl.u32 %v561, 16
      %v650 = vrot.slane %v648, 7
      %v651 = vshll.u32 %v561, 16
      %v653 = vor.u32 %v650, %v651
      %v654 = vsel %vm587, %v646, %v653
      %v655 = vrot.slane %v650, 4
      %v657 = vshrl.u32 %v562, 16
      %v659 = vrot.slane %v657, 7
      %v660 = vshll.u32 %v562, 16
      %v662 = vor.u32 %v659, %v660
      %v663 = vrot.slane %v659, 4
      %v665 = vshrl.u32 %v563, 16
      %v667 = vrot.slane %v665, 7
      %v668 = vshll.u32 %v563, 16
      %v670 = vor.u32 %v667, %v668
      %v671 = vsel %vm587, %v663, %v670
      %v672 = vrot.slane %v667, 4
      %v674 = vshrl.u32 %v564, 16
      %v676 = vrot.slane %v674, 7
      %v677 = vshll.u32 %v564, 16
      %v679 = vor.u32 %v676, %v677
      %v680 = vrot.slane %v676, 4
      %v682 = vshrl.u32 %v565, 16
      %v684 = vrot.slane %v682, 7
      %v685 = vshll.u32 %v565, 16
      %v687 = vor.u32 %v684, %v685
      %v688 = vsel %vm587, %v680, %v687
      %v689 = vrot.slane %v684, 4
      %v691 = vshrl.u32 %v566, 16
      %v693 = vrot.slane %v691, 7
      %v694 = vshll.u32 %v566, 16
      %v696 = vor.u32 %v693, %v694
      %v697 = vrot.slane %v693, 4
      %v699 = vshrl.u32 %v567, 16
      %v701 = vrot.slane %v699, 7
      %v702 = vshll.u32 %v567, 16
      %v704 = vor.u32 %v701, %v702
      %v705 = vsel %vm587, %v697, %v704
      %v706 = vrot.slane %v701, 4
      %v708 = vshrl.u32 %v568, 16
      %v710 = vrot.slane %v708, 7
      %v711 = vshll.u32 %v568, 16
      %v713 = vor.u32 %v710, %v711
      %v714 = vrot.slane %v710, 4
      %v716 = vshrl.u32 %v569, 16
      %v718 = vrot.slane %v716, 7
      %v719 = vshll.u32 %v569, 16
      %v721 = vor.u32 %v718, %v719
      %v722 = vsel %vm587, %v714, %v721
      %v723 = vrot.slane %v718, 4
      %v725 = vshrl.u32 %v570, 16
      %v727 = vrot.slane %v725, 7
      %v728 = vshll.u32 %v570, 16
      %v730 = vor.u32 %v727, %v728
      %v731 = vrot.slane %v727, 4
      %v733 = vshrl.u32 %v571, 16
      %v735 = vrot.slane %v733, 7
      %v736 = vshll.u32 %v571, 16
      %v738 = vor.u32 %v735, %v736
      %v739 = vsel %vm587, %v731, %v738
      %v740 = vrot.slane %v735, 4
      %v742 = vshrl.u32 %v572, 16
      %v744 = vrot.slane %v742, 7
      %v745 = vshll.u32 %v572, 16
      %v747 = vor.u32 %v744, %v745
      %v748 = vrot.slane %v744, 4
      %v750 = vshrl.u32 %v573, 16
      %v752 = vrot.slane %v750, 7
      %v753 = vshll.u32 %v573, 16
      %v755 = vor.u32 %v752, %v753
      %v756 = vsel %vm587, %v748, %v755
      %v757 = vrot.slane %v752, 4
      %v759 = vshrl.u32 %v574, 16
      %v761 = vrot.slane %v759, 7
      %v762 = vshll.u32 %v574, 16
      %v764 = vor.u32 %v761, %v762
      %v765 = vrot.slane %v761, 4
      %v767 = vshrl.u32 %v575, 16
      %v769 = vrot.slane %v767, 7
      %v770 = vshll.u32 %v575, 16
      %v772 = vor.u32 %v769, %v770
      %v773 = vsel %vm587, %v765, %v772
      %v774 = vrot.slane %v769, 4
      %v776 = vshrl.u32 %v576, 16
      %v778 = vrot.slane %v776, 7
      %v779 = vshll.u32 %v576, 16
      %v781 = vor.u32 %v778, %v779
      %v782 = vrot.slane %v778, 4
      %v784 = vshrl.u32 %v577, 16
      %v786 = vrot.slane %v784, 7
      %v787 = vshll.u32 %v577, 16
      %v789 = vor.u32 %v786, %v787
      %v790 = vsel %vm587, %v782, %v789
      %v791 = vrot.slane %v786, 4
      %v793 = vshrl.u32 %v578, 16
      %v795 = vrot.slane %v793, 7
      %v796 = vshll.u32 %v578, 16
      %v798 = vor.u32 %v795, %v796
      %v799 = vrot.slane %v795, 4
      %v801 = vshrl.u32 %v579, 16
      %v803 = vrot.slane %v801, 7
      %v804 = vshll.u32 %v579, 16
      %v806 = vor.u32 %v803, %v804
      %v807 = vsel %vm587, %v799, %v806
      %v808 = vrot.slane %v803, 4
      %v810 = vshrl.u32 %v580, 16
      %v812 = vrot.slane %v810, 7
      %v813 = vshll.u32 %v580, 16
      %v815 = vor.u32 %v812, %v813
      %v816 = vrot.slane %v812, 4
      %v818 = vshrl.u32 %v581, 16
      %v820 = vrot.slane %v818, 7
      %v821 = vshll.u32 %v581, 16
      %v823 = vor.u32 %v820, %v821
      %v824 = vsel %vm587, %v816, %v823
      %v825 = vrot.slane %v820, 4
      %v827 = vshrl.u32 %v582, 16
      %v829 = vrot.slane %v827, 7
      %v830 = vshll.u32 %v582, 16
      %v832 = vor.u32 %v829, %v830
      %v833 = vrot.slane %v829, 4
      %v835 = vshrl.u32 %v583, 16
      %v837 = vrot.slane %v835, 7
      %v838 = vshll.u32 %v583, 16
      %v840 = vor.u32 %v837, %v838
      %v841 = vsel %vm587, %v833, %v840
      %v842 = vrot.slane %v837, 4
      %v844 = vshrl.u32 %v584, 16
      %v846 = vrot.slane %v844, 7
      %v847 = vshll.u32 %v584, 16
      %v849 = vor.u32 %v846, %v847
      %v850 = vrot.slane %v846, 4
      %v852 = vshrl.u32 %v585, 16
      %v854 = vrot.slane %v852, 7
      %v855 = vshll.u32 %v585, 16
      %v857 = vor.u32 %v854, %v855
      %v858 = vsel %vm587, %v850, %v857
      %v859 = vrot.slane %v854, 4
      %vm908 = vcmask 519168
      %vm909 = vmand %vm908, %vm270
      %v910 = vld [vmem:[%s218] sm:$0xf]
      %v911 = vsel %vm909, %v594, %v910
      %912 = vst [vmem:[%s218] sm:$0xf] %v911
      %913 = vst.msk [vmem:[%s218 + $0x4] sm:$0xf] %vm210, %v603
      %v914 = vld [vmem:[%s218 + $0x8] sm:$0x1]
      %v915 = vsel %vm221, %v604, %v914
      %916 = vst [vmem:[%s218 + $0x8] sm:$0x1] %v915
      %v917 = vld [vmem:[%s218 + $0xc] sm:$0xf]
      %v918 = vsel %vm909, %v611, %v917
      %919 = vst [vmem:[%s218 + $0xc] sm:$0xf] %v918
      %920 = vst.msk [vmem:[%s218 + $0x10] sm:$0xf] %vm210, %v620
      %v921 = vld [vmem:[%s218 + $0x14] sm:$0x1]
      %v922 = vsel %vm221, %v621, %v921
      %923 = vst [vmem:[%s218 + $0x14] sm:$0x1] %v922
      %v924 = vld [vmem:[%s218 + $0x18] sm:$0xf]
      %v925 = vsel %vm909, %v628, %v924
      %926 = vst [vmem:[%s218 + $0x18] sm:$0xf] %v925
      %927 = vst.msk [vmem:[%s218 + $0x1c] sm:$0xf] %vm210, %v637
      %v928 = vld [vmem:[%s218 + $0x20] sm:$0x1]
      %v929 = vsel %vm221, %v638, %v928
      %930 = vst [vmem:[%s218 + $0x20] sm:$0x1] %v929
      %v931 = vld [vmem:[%s218 + $0x24] sm:$0xf]
      %v932 = vsel %vm909, %v645, %v931
      %933 = vst [vmem:[%s218 + $0x24] sm:$0xf] %v932
      %934 = vst.msk [vmem:[%s218 + $0x28] sm:$0xf] %vm210, %v654
      %v935 = vld [vmem:[%s218 + $0x2c] sm:$0x1]
      %v936 = vsel %vm221, %v655, %v935
      %937 = vst [vmem:[%s218 + $0x2c] sm:$0x1] %v936
      %v938 = vld [vmem:[%s218 + $0x30] sm:$0xf]
      %v939 = vsel %vm909, %v662, %v938
      %940 = vst [vmem:[%s218 + $0x30] sm:$0xf] %v939
      %941 = vst.msk [vmem:[%s218 + $0x34] sm:$0xf] %vm210, %v671
      %v942 = vld [vmem:[%s218 + $0x38] sm:$0x1]
      %v943 = vsel %vm221, %v672, %v942
      %944 = vst [vmem:[%s218 + $0x38] sm:$0x1] %v943
      %v945 = vld [vmem:[%s218 + $0x3c] sm:$0xf]
      %v946 = vsel %vm909, %v679, %v945
      %947 = vst [vmem:[%s218 + $0x3c] sm:$0xf] %v946
      %948 = vst.msk [vmem:[%s218 + $0x40] sm:$0xf] %vm210, %v688
      %v949 = vld [vmem:[%s218 + $0x44] sm:$0x1]
      %v950 = vsel %vm221, %v689, %v949
      %951 = vst [vmem:[%s218 + $0x44] sm:$0x1] %v950
      %v952 = vld [vmem:[%s218 + $0x48] sm:$0xf]
      %v953 = vsel %vm909, %v696, %v952
      %954 = vst [vmem:[%s218 + $0x48] sm:$0xf] %v953
      %955 = vst.msk [vmem:[%s218 + $0x4c] sm:$0xf] %vm210, %v705
      %v956 = vld [vmem:[%s218 + $0x50] sm:$0x1]
      %v957 = vsel %vm221, %v706, %v956
      %958 = vst [vmem:[%s218 + $0x50] sm:$0x1] %v957
      %v959 = vld [vmem:[%s218 + $0x54] sm:$0xf]
      %v960 = vsel %vm909, %v713, %v959
      %961 = vst [vmem:[%s218 + $0x54] sm:$0xf] %v960
      %962 = vst.msk [vmem:[%s218 + $0x58] sm:$0xf] %vm210, %v722
      %v963 = vld [vmem:[%s218 + $0x5c] sm:$0x1]
      %v964 = vsel %vm221, %v723, %v963
      %965 = vst [vmem:[%s218 + $0x5c] sm:$0x1] %v964
      %v966 = vld [vmem:[%s218 + $0x60] sm:$0xf]
      %v967 = vsel %vm909, %v730, %v966
      %968 = vst [vmem:[%s218 + $0x60] sm:$0xf] %v967
      %969 = vst.msk [vmem:[%s218 + $0x64] sm:$0xf] %vm210, %v739
      %v970 = vld [vmem:[%s218 + $0x68] sm:$0x1]
      %v971 = vsel %vm221, %v740, %v970
      %972 = vst [vmem:[%s218 + $0x68] sm:$0x1] %v971
      %v973 = vld [vmem:[%s218 + $0x6c] sm:$0xf]
      %v974 = vsel %vm909, %v747, %v973
      %975 = vst [vmem:[%s218 + $0x6c] sm:$0xf] %v974
      %976 = vst.msk [vmem:[%s218 + $0x70] sm:$0xf] %vm210, %v756
      %v977 = vld [vmem:[%s218 + $0x74] sm:$0x1]
      %v978 = vsel %vm221, %v757, %v977
      %979 = vst [vmem:[%s218 + $0x74] sm:$0x1] %v978
      %v980 = vld [vmem:[%s218 + $0x78] sm:$0xf]
      %v981 = vsel %vm909, %v764, %v980
      %982 = vst [vmem:[%s218 + $0x78] sm:$0xf] %v981
      %983 = vst.msk [vmem:[%s218 + $0x7c] sm:$0xf] %vm210, %v773
      %v984 = vld [vmem:[%s218 + $0x80] sm:$0x1]
      %v985 = vsel %vm221, %v774, %v984
      %986 = vst [vmem:[%s218 + $0x80] sm:$0x1] %v985
      %v987 = vld [vmem:[%s218 + $0x84] sm:$0xf]
      %v988 = vsel %vm909, %v781, %v987
      %989 = vst [vmem:[%s218 + $0x84] sm:$0xf] %v988
      %990 = vst.msk [vmem:[%s218 + $0x88] sm:$0xf] %vm210, %v790
      %v991 = vld [vmem:[%s218 + $0x8c] sm:$0x1]
      %v992 = vsel %vm221, %v791, %v991
      %993 = vst [vmem:[%s218 + $0x8c] sm:$0x1] %v992
      %v994 = vld [vmem:[%s218 + $0x90] sm:$0xf]
      %v995 = vsel %vm909, %v798, %v994
      %996 = vst [vmem:[%s218 + $0x90] sm:$0xf] %v995
      %997 = vst.msk [vmem:[%s218 + $0x94] sm:$0xf] %vm210, %v807
      %v998 = vld [vmem:[%s218 + $0x98] sm:$0x1]
      %v999 = vsel %vm221, %v808, %v998
      %1000 = vst [vmem:[%s218 + $0x98] sm:$0x1] %v999
      %v1001 = vld [vmem:[%s218 + $0x9c] sm:$0xf]
      %v1002 = vsel %vm909, %v815, %v1001
      %1003 = vst [vmem:[%s218 + $0x9c] sm:$0xf] %v1002
      %1004 = vst.msk [vmem:[%s218 + $0xa0] sm:$0xf] %vm210, %v824
      %v1005 = vld [vmem:[%s218 + $0xa4] sm:$0x1]
      %v1006 = vsel %vm221, %v825, %v1005
      %1007 = vst [vmem:[%s218 + $0xa4] sm:$0x1] %v1006
      %v1008 = vld [vmem:[%s218 + $0xa8] sm:$0xf]
      %v1009 = vsel %vm909, %v832, %v1008
      %1010 = vst [vmem:[%s218 + $0xa8] sm:$0xf] %v1009
      %1011 = vst.msk [vmem:[%s218 + $0xac] sm:$0xf] %vm210, %v841
      %v1012 = vld [vmem:[%s218 + $0xb0] sm:$0x1]
      %v1013 = vsel %vm221, %v842, %v1012
      %1014 = vst [vmem:[%s218 + $0xb0] sm:$0x1] %v1013
      %v1015 = vld [vmem:[%s218 + $0xb4] sm:$0xf]
      %v1016 = vsel %vm909, %v849, %v1015
      %1017 = vst [vmem:[%s218 + $0xb4] sm:$0xf] %v1016
      %1018 = vst.msk [vmem:[%s218 + $0xb8] sm:$0xf] %vm210, %v858
      %v1019 = vld [vmem:[%s218 + $0xbc] sm:$0x1]
      %v1020 = vsel %vm221, %v859, %v1019
      %1021 = vst [vmem:[%s218 + $0xbc] sm:$0x1] %v1020
      %v1022 = vld [vmem:[#allocation2] sm:$0xf]
      %v1023 = vld [vmem:[#allocation2 + $0x4] sm:$0xf]
      %v1024 = vld [vmem:[#allocation2 + $0x8] sm:$0xf]
      %v1025 = vld [vmem:[#allocation2 + $0xc] sm:$0xf]
      %v1026 = vld [vmem:[#allocation2 + $0x10] sm:$0xf]
      %v1027 = vld [vmem:[#allocation2 + $0x14] sm:$0xf]
      %v1028 = vld [vmem:[#allocation2 + $0x18] sm:$0xf]
      %v1029 = vld [vmem:[#allocation2 + $0x1c] sm:$0xf]
      %v1030 = vld [vmem:[#allocation2 + $0x20] sm:$0xf]
      %v1031 = vld [vmem:[#allocation2 + $0x24] sm:$0xf]
      %v1032 = vld [vmem:[#allocation2 + $0x28] sm:$0xf]
      %v1033 = vld [vmem:[#allocation2 + $0x2c] sm:$0xf]
      %v1034 = vld [vmem:[#allocation2 + $0x30] sm:$0xf]
      %v1035 = vld [vmem:[#allocation2 + $0x34] sm:$0xf]
      %v1036 = vld [vmem:[#allocation2 + $0x38] sm:$0xf]
      %v1037 = vld [vmem:[#allocation2 + $0x3c] sm:$0xf]
      %v1038 = vld [vmem:[#allocation2 + $0x40] sm:$0xf]
      %v1039 = vld [vmem:[#allocation2 + $0x44] sm:$0xf]
      %v1040 = vld [vmem:[#allocation2 + $0x48] sm:$0xf]
      %v1041 = vld [vmem:[#allocation2 + $0x4c] sm:$0xf]
      %v1042 = vld [vmem:[#allocation2 + $0x50] sm:$0xf]
      %v1043 = vld [vmem:[#allocation2 + $0x54] sm:$0xf]
      %v1044 = vld [vmem:[#allocation2 + $0x58] sm:$0xf]
      %v1045 = vld [vmem:[#allocation2 + $0x5c] sm:$0xf]
      %v1046 = vld [vmem:[#allocation2 + $0x60] sm:$0xf]
      %v1047 = vld [vmem:[#allocation2 + $0x64] sm:$0xf]
      %v1048 = vld [vmem:[#allocation2 + $0x68] sm:$0xf]
      %v1049 = vld [vmem:[#allocation2 + $0x6c] sm:$0xf]
      %v1050 = vld [vmem:[#allocation2 + $0x70] sm:$0xf]
      %v1051 = vld [vmem:[#allocation2 + $0x74] sm:$0xf]
      %v1052 = vld [vmem:[#allocation2 + $0x78] sm:$0xf]
      %v1053 = vld [vmem:[#allocation2 + $0x7c] sm:$0xf]
      %v1054 = vld [vmem:[#allocation2 + $0x80] sm:$0xf]
      %v1055 = vld [vmem:[#allocation2 + $0x84] sm:$0xf]
      %v1056 = vld [vmem:[#allocation2 + $0x88] sm:$0xf]
      %v1057 = vld [vmem:[#allocation2 + $0x8c] sm:$0xf]
      %v1058 = vld [vmem:[#allocation2 + $0x90] sm:$0xf]
      %v1059 = vld [vmem:[#allocation2 + $0x94] sm:$0xf]
      %v1060 = vld [vmem:[#allocation2 + $0x98] sm:$0xf]
      %v1061 = vld [vmem:[#allocation2 + $0x9c] sm:$0xf]
      %v1062 = vld [vmem:[#allocation2 + $0xa0] sm:$0xf]
      %v1063 = vld [vmem:[#allocation2 + $0xa4] sm:$0xf]
      %v1064 = vld [vmem:[#allocation2 + $0xa8] sm:$0xf]
      %v1065 = vld [vmem:[#allocation2 + $0xac] sm:$0xf]
      %v1066 = vld [vmem:[#allocation2 + $0xb0] sm:$0xf]
      %v1067 = vld [vmem:[#allocation2 + $0xb4] sm:$0xf]
      %v1068 = vld [vmem:[#allocation2 + $0xb8] sm:$0xf]
      %v1069 = vld [vmem:[#allocation2 + $0xbc] sm:$0xf]
      %v1070 = vld [vmem:[%s2] sm:$0xff]
      %v1071 = vld [vmem:[%s2 + $0x8] sm:$0xff]
      %v1072 = vld [vmem:[%s2 + $0x10] sm:$0xff]
      %v1073 = vld [vmem:[%s2 + $0x18] sm:$0xff]
      %v1074 = vld [vmem:[%s2 + $0x20] sm:$0xff]
      %v1075 = vld [vmem:[%s2 + $0x28] sm:$0xff]
      %v1076 = vld [vmem:[%s2 + $0x30] sm:$0xff]
      %v1077 = vld [vmem:[%s2 + $0x38] sm:$0xff]
      %v1078 = vld [vmem:[%s218] sm:$0xf]
      %v1079 = vld [vmem:[%s218 + $0x4] sm:$0xf]
      %v1080 = vld [vmem:[%s218 + $0x8] sm:$0xf]
      %v1081 = vld [vmem:[%s218 + $0xc] sm:$0xf]
      %v1082 = vld [vmem:[%s218 + $0x10] sm:$0xf]
      %v1083 = vld [vmem:[%s218 + $0x14] sm:$0xf]
      %v1084 = vld [vmem:[%s218 + $0x18] sm:$0xf]
      %v1085 = vld [vmem:[%s218 + $0x1c] sm:$0xf]
      %v1086 = vld [vmem:[%s218 + $0x20] sm:$0xf]
      %v1087 = vld [vmem:[%s218 + $0x24] sm:$0xf]
      %v1088 = vld [vmem:[%s218 + $0x28] sm:$0xf]
      %v1089 = vld [vmem:[%s218 + $0x2c] sm:$0xf]
      %v1090 = vld [vmem:[%s218 + $0x30] sm:$0xf]
      %v1091 = vld [vmem:[%s218 + $0x34] sm:$0xf]
      %v1092 = vld [vmem:[%s218 + $0x38] sm:$0xf]
      %v1093 = vld [vmem:[%s218 + $0x3c] sm:$0xf]
      %v1094 = vld [vmem:[%s218 + $0x40] sm:$0xf]
      %v1095 = vld [vmem:[%s218 + $0x44] sm:$0xf]
      %v1096 = vld [vmem:[%s218 + $0x48] sm:$0xf]
      %v1097 = vld [vmem:[%s218 + $0x4c] sm:$0xf]
      %v1098 = vld [vmem:[%s218 + $0x50] sm:$0xf]
      %v1099 = vld [vmem:[%s218 + $0x54] sm:$0xf]
      %v1100 = vld [vmem:[%s218 + $0x58] sm:$0xf]
      %v1101 = vld [vmem:[%s218 + $0x5c] sm:$0xf]
      %v1102 = vld [vmem:[%s218 + $0x60] sm:$0xf]
      %v1103 = vld [vmem:[%s218 + $0x64] sm:$0xf]
      %v1104 = vld [vmem:[%s218 + $0x68] sm:$0xf]
      %v1105 = vld [vmem:[%s218 + $0x6c] sm:$0xf]
      %v1106 = vld [vmem:[%s218 + $0x70] sm:$0xf]
      %v1107 = vld [vmem:[%s218 + $0x74] sm:$0xf]
      %v1108 = vld [vmem:[%s218 + $0x78] sm:$0xf]
      %v1109 = vld [vmem:[%s218 + $0x7c] sm:$0xf]
      %v1110 = vld [vmem:[%s218 + $0x80] sm:$0xf]
      %v1111 = vld [vmem:[%s218 + $0x84] sm:$0xf]
      %v1112 = vld [vmem:[%s218 + $0x88] sm:$0xf]
      %v1113 = vld [vmem:[%s218 + $0x8c] sm:$0xf]
      %v1114 = vld [vmem:[%s218 + $0x90] sm:$0xf]
      %v1115 = vld [vmem:[%s218 + $0x94] sm:$0xf]
      %v1116 = vld [vmem:[%s218 + $0x98] sm:$0xf]
      %v1117 = vld [vmem:[%s218 + $0x9c] sm:$0xf]
      %v1118 = vld [vmem:[%s218 + $0xa0] sm:$0xf]
      %v1119 = vld [vmem:[%s218 + $0xa4] sm:$0xf]
      %v1120 = vld [vmem:[%s218 + $0xa8] sm:$0xf]
      %v1121 = vld [vmem:[%s218 + $0xac] sm:$0xf]
      %v1122 = vld [vmem:[%s218 + $0xb0] sm:$0xf]
      %v1123 = vld [vmem:[%s218 + $0xb4] sm:$0xf]
      %v1124 = vld [vmem:[%s218 + $0xb8] sm:$0xf]
      %v1125 = vld [vmem:[%s218 + $0xbc] sm:$0xf]
      %s1126 = scalar_lea.vmem %s2, 64
      %v1127 = vld [vmem:[%s1126] sm:$0xff]
      %v1128 = vld [vmem:[%s1126 + $0x8] sm:$0xff]
      %v1129 = vld [vmem:[%s1126 + $0x10] sm:$0xff]
      %v1130 = vld [vmem:[%s1126 + $0x18] sm:$0xff]
      %v1131 = vld [vmem:[%s1126 + $0x20] sm:$0xff]
      %v1132 = vld [vmem:[%s1126 + $0x28] sm:$0xff]
      %v1133 = vld [vmem:[%s1126 + $0x30] sm:$0xff]
      %v1134 = vld [vmem:[%s1126 + $0x38] sm:$0xff]
      %v1183 = vunpack.c.l.b16 %v1078
      %v1184 = vunpack.c.l.b16 %v1079
      %v1185 = vunpack.c.l.b16 %v1080
      %v1186 = vunpack.c.l.b16 %v1081
      %v1187 = vunpack.c.l.b16 %v1082
      %v1188 = vunpack.c.l.b16 %v1083
      %v1189 = vunpack.c.l.b16 %v1084
      %v1190 = vunpack.c.l.b16 %v1085
      %v1191 = vunpack.c.l.b16 %v1086
      %v1192 = vunpack.c.l.b16 %v1087
      %v1193 = vunpack.c.l.b16 %v1088
      %v1194 = vunpack.c.l.b16 %v1089
      %v1195 = vunpack.c.l.b16 %v1090
      %v1196 = vunpack.c.l.b16 %v1091
      %v1197 = vunpack.c.l.b16 %v1092
      %v1198 = vunpack.c.l.b16 %v1093
      %v1199 = vunpack.c.l.b16 %v1094
      %v1200 = vunpack.c.l.b16 %v1095
      %v1201 = vunpack.c.l.b16 %v1096
      %v1202 = vunpack.c.l.b16 %v1097
      %v1203 = vunpack.c.l.b16 %v1098
      %v1204 = vunpack.c.l.b16 %v1099
      %v1205 = vunpack.c.l.b16 %v1100
      %v1206 = vunpack.c.l.b16 %v1101
      %v1207 = vunpack.c.l.b16 %v1102
      %v1208 = vunpack.c.l.b16 %v1103
      %v1209 = vunpack.c.l.b16 %v1104
      %v1210 = vunpack.c.l.b16 %v1105
      %v1211 = vunpack.c.l.b16 %v1106
      %v1212 = vunpack.c.l.b16 %v1107
      %v1213 = vunpack.c.l.b16 %v1108
      %v1214 = vunpack.c.l.b16 %v1109
      %v1215 = vunpack.c.l.b16 %v1110
      %v1216 = vunpack.c.l.b16 %v1111
      %v1217 = vunpack.c.l.b16 %v1112
      %v1218 = vunpack.c.l.b16 %v1113
      %v1219 = vunpack.c.l.b16 %v1114
      %v1220 = vunpack.c.l.b16 %v1115
      %v1221 = vunpack.c.l.b16 %v1116
      %v1222 = vunpack.c.l.b16 %v1117
      %v1223 = vunpack.c.l.b16 %v1118
      %v1224 = vunpack.c.l.b16 %v1119
      %v1225 = vunpack.c.l.b16 %v1120
      %v1226 = vunpack.c.l.b16 %v1121
      %v1227 = vunpack.c.l.b16 %v1122
      %v1228 = vunpack.c.l.b16 %v1123
      %v1229 = vunpack.c.l.b16 %v1124
      %v1230 = vunpack.c.l.b16 %v1125
      %v1231 = vpack.c.b16 %v1184, %v1183
      %v1232 = vpack.c.b16 %v1186, %v1185
      %v1233 = vpack.c.b16 %v1188, %v1187
      %v1234 = vpack.c.b16 %v1190, %v1189
      %v1235 = vpack.c.b16 %v1192, %v1191
      %v1236 = vpack.c.b16 %v1194, %v1193
      %v1237 = vpack.c.b16 %v1196, %v1195
      %v1238 = vpack.c.b16 %v1198, %v1197
      %v1239 = vpack.c.b16 %v1200, %v1199
      %v1240 = vpack.c.b16 %v1202, %v1201
      %v1241 = vpack.c.b16 %v1204, %v1203
      %v1242 = vpack.c.b16 %v1206, %v1205
      %v1243 = vpack.c.b16 %v1208, %v1207
      %v1244 = vpack.c.b16 %v1210, %v1209
      %v1245 = vpack.c.b16 %v1212, %v1211
      %v1246 = vpack.c.b16 %v1214, %v1213
      %v1247 = vpack.c.b16 %v1216, %v1215
      %v1248 = vpack.c.b16 %v1218, %v1217
      %v1249 = vpack.c.b16 %v1220, %v1219
      %v1250 = vpack.c.b16 %v1222, %v1221
      %v1251 = vpack.c.b16 %v1224, %v1223
      %v1252 = vpack.c.b16 %v1226, %v1225
      %v1253 = vpack.c.b16 %v1228, %v1227
      %v1254 = vpack.c.b16 %v1230, %v1229
      %v1263 = vunpack.c.l.b16 %v1127
      %v1264 = vunpack.c.h.b16 %v1127
      %v1265 = vunpack.c.l.b16 %v1128
      %v1266 = vunpack.c.h.b16 %v1128
      %v1267 = vunpack.c.l.b16 %v1129
      %v1268 = vunpack.c.h.b16 %v1129
      %v1269 = vunpack.c.l.b16 %v1130
      %v1270 = vunpack.c.h.b16 %v1130
      %v1271 = vunpack.c.l.b16 %v1131
      %v1272 = vunpack.c.h.b16 %v1131
      %v1273 = vunpack.c.l.b16 %v1132
      %v1274 = vunpack.c.h.b16 %v1132
      %v1275 = vunpack.c.l.b16 %v1133
      %v1276 = vunpack.c.h.b16 %v1133
      %v1277 = vunpack.c.l.b16 %v1134
      %v1278 = vunpack.c.h.b16 %v1134
      %v1279 = vpack.c.b16 %v1265, %v1263
      %v1280 = vpack.c.b16 %v1266, %v1264
      %v1281 = vpack.c.b16 %v1269, %v1267
      %v1282 = vpack.c.b16 %v1270, %v1268
      %v1283 = vpack.c.b16 %v1273, %v1271
      %v1284 = vpack.c.b16 %v1274, %v1272
      %v1285 = vpack.c.b16 %v1277, %v1275
      %v1286 = vpack.c.b16 %v1278, %v1276
      %vm1295 = vcmask 523264
      %v1297 = vsel %vm1295, %v1231, 0
      %v1300 = vsel %vm1295, %v1232, 0
      %v1303 = vsel %vm1295, %v1233, 0
      %v1306 = vsel %vm1295, %v1234, 0
      %v1309 = vsel %vm1295, %v1235, 0
      %v1312 = vsel %vm1295, %v1236, 0
      %v1315 = vsel %vm1295, %v1237, 0
      %v1318 = vsel %vm1295, %v1238, 0
      %v1321 = vsel %vm1295, %v1239, 0
      %v1324 = vsel %vm1295, %v1240, 0
      %v1327 = vsel %vm1295, %v1241, 0
      %v1330 = vsel %vm1295, %v1242, 0
      %v1333 = vsel %vm1295, %v1243, 0
      %v1336 = vsel %vm1295, %v1244, 0
      %v1339 = vsel %vm1295, %v1245, 0
      %v1342 = vsel %vm1295, %v1246, 0
      %v1345 = vsel %vm1295, %v1247, 0
      %v1348 = vsel %vm1295, %v1248, 0
      %v1351 = vsel %vm1295, %v1249, 0
      %v1354 = vsel %vm1295, %v1250, 0
      %v1357 = vsel %vm1295, %v1251, 0
      %v1360 = vsel %vm1295, %v1252, 0
      %v1363 = vsel %vm1295, %v1253, 0
      %v1366 = vsel %vm1295, %v1254, 0
      %1368 = vmatprep.subr.bf16.mxu0 0
      %1369 = vmatpush1.bf16.msra.mxu0 0
      %1370 = vmatprep.subr.bf16.mxu0 0
      %1371 = vmatpush1.bf16.msra.mxu0 0
      %1372 = vmatprep.subr.bf16.mxu0 0
      %1373 = vmatpush1.bf16.msra.mxu0 0
      %1374 = vmatprep.subr.bf16.mxu0 0
      %1375 = vmatpush1.bf16.msra.mxu0 0
      %1376 = vmatprep.subr.bf16.mxu0 %v1286
      %1377 = vmatpush1.bf16.msra.mxu0 %v1285
      %1378 = vmatprep.subr.bf16.mxu0 %v1284
      %1379 = vmatpush1.bf16.msra.mxu0 %v1283
      %1380 = vmatprep.subr.bf16.mxu0 %v1282
      %1381 = vmatpush1.bf16.msra.mxu0 %v1281
      %1382 = vmatprep.subr.bf16.mxu0 %v1280
      %1383 = vmatpush1.bf16.msra.mxu0 %v1279
      %1384 = vmatprep.subr.bf16.mxu0 0
      %1385 = vmatpush2.bf16.msra.mxu0 0
      %1386 = vmatprep.subr.bf16.mxu0 0
      %1387 = vmatpush2.bf16.msra.mxu0 0
      %1388 = vmatprep.subr.bf16.mxu0 0
      %1389 = vmatpush2.bf16.msra.mxu0 0
      %1390 = vmatprep.subr.bf16.mxu0 0
      %1391 = vmatpush2.bf16.msra.mxu0 0
      %1392 = vmatprep.subr.bf16.mxu0 0
      %1393 = vmatpush2.bf16.msra.mxu0 0
      %1394 = vmatprep.subr.bf16.mxu0 0
      %1395 = vmatpush2.bf16.msra.mxu0 0
      %1396 = vmatprep.subr.bf16.mxu0 0
      %1397 = vmatpush2.bf16.msra.mxu0 0
      %1398 = vmatprep.subr.bf16.mxu0 0
      %1399 = vmatpush2.bf16.msra.mxu0 0
      %1400 = vmatprep.mubr.bf16.mxu0 0
      %1401 = vmatmul.mubr.bf16.gmra.mxu0 %v1297
      %v1402 = vpop.f32.mrf.mxu0
      %v1403 = vadd.f32 0.0, %v1402
      %v1404 = vpop.f32.mrf.mxu0
      %v1405 = vadd.f32 0.0, %v1404
      %v1406 = vpop.f32.mrf.mxu0
      %v1407 = vadd.f32 0.0, %v1406
      %v1408 = vpop.f32.mrf.mxu0
      %v1409 = vadd.f32 0.0, %v1408
      %1410 = vmatprep.mubr.bf16.mxu0 0
      %1411 = vmatmul.mubr.bf16.gmra.mxu0 %v1300
      %v1412 = vpop.f32.mrf.mxu0
      %v1413 = vadd.f32 0.0, %v1412
      %v1414 = vpop.f32.mrf.mxu0
      %v1415 = vadd.f32 0.0, %v1414
      %v1416 = vpop.f32.mrf.mxu0
      %v1417 = vadd.f32 0.0, %v1416
      %v1418 = vpop.f32.mrf.mxu0
      %v1419 = vadd.f32 0.0, %v1418
      %1420 = vmatprep.mubr.bf16.mxu0 0
      %1421 = vmatmul.mubr.bf16.gmra.mxu0 %v1303
      %v1422 = vpop.f32.mrf.mxu0
      %v1423 = vadd.f32 0.0, %v1422
      %v1424 = vpop.f32.mrf.mxu0
      %v1425 = vadd.f32 0.0, %v1424
      %v1426 = vpop.f32.mrf.mxu0
      %v1427 = vadd.f32 0.0, %v1426
      %v1428 = vpop.f32.mrf.mxu0
      %v1429 = vadd.f32 0.0, %v1428
      %1430 = vmatprep.mubr.bf16.mxu0 0
      %1431 = vmatmul.mubr.bf16.gmra.mxu0 %v1306
      %v1432 = vpop.f32.mrf.mxu0
      %v1433 = vadd.f32 0.0, %v1432
      %v1434 = vpop.f32.mrf.mxu0
      %v1435 = vadd.f32 0.0, %v1434
      %v1436 = vpop.f32.mrf.mxu0
      %v1437 = vadd.f32 0.0, %v1436
      %v1438 = vpop.f32.mrf.mxu0
      %v1439 = vadd.f32 0.0, %v1438
      %1440 = vmatprep.mubr.bf16.mxu0 0
      %1441 = vmatmul.mubr.bf16.gmra.mxu0 %v1309
      %v1442 = vpop.f32.mrf.mxu0
      %v1443 = vadd.f32 0.0, %v1442
      %v1444 = vpop.f32.mrf.mxu0
      %v1445 = vadd.f32 0.0, %v1444
      %v1446 = vpop.f32.mrf.mxu0
      %v1447 = vadd.f32 0.0, %v1446
      %v1448 = vpop.f32.mrf.mxu0
      %v1449 = vadd.f32 0.0, %v1448
      %1450 = vmatprep.mubr.bf16.mxu0 0
      %1451 = vmatmul.mubr.bf16.gmra.mxu0 %v1312
      %v1452 = vpop.f32.mrf.mxu0
      %v1453 = vadd.f32 0.0, %v1452
      %v1454 = vpop.f32.mrf.mxu0
      %v1455 = vadd.f32 0.0, %v1454
      %v1456 = vpop.f32.mrf.mxu0
      %v1457 = vadd.f32 0.0, %v1456
      %v1458 = vpop.f32.mrf.mxu0
      %v1459 = vadd.f32 0.0, %v1458
      %1460 = vmatprep.mubr.bf16.mxu0 0
      %1461 = vmatmul.mubr.bf16.gmra.mxu0 %v1315
      %v1462 = vpop.f32.mrf.mxu0
      %v1463 = vadd.f32 0.0, %v1462
      %v1464 = vpop.f32.mrf.mxu0
      %v1465 = vadd.f32 0.0, %v1464
      %v1466 = vpop.f32.mrf.mxu0
      %v1467 = vadd.f32 0.0, %v1466
      %v1468 = vpop.f32.mrf.mxu0
      %v1469 = vadd.f32 0.0, %v1468
      %1470 = vmatprep.mubr.bf16.mxu0 0
      %1471 = vmatmul.mubr.bf16.gmra.mxu0 %v1318
      %v1472 = vpop.f32.mrf.mxu0
      %v1473 = vadd.f32 0.0, %v1472
      %v1474 = vpop.f32.mrf.mxu0
      %v1475 = vadd.f32 0.0, %v1474
      %v1476 = vpop.f32.mrf.mxu0
      %v1477 = vadd.f32 0.0, %v1476
      %v1478 = vpop.f32.mrf.mxu0
      %v1479 = vadd.f32 0.0, %v1478
      %1480 = vmatprep.mubr.bf16.mxu0 0
      %1481 = vmatmul.mubr.bf16.gmra.mxu0 %v1321
      %v1482 = vpop.f32.mrf.mxu0
      %v1483 = vadd.f32 0.0, %v1482
      %v1484 = vpop.f32.mrf.mxu0
      %v1485 = vadd.f32 0.0, %v1484
      %v1486 = vpop.f32.mrf.mxu0
      %v1487 = vadd.f32 0.0, %v1486
      %v1488 = vpop.f32.mrf.mxu0
      %v1489 = vadd.f32 0.0, %v1488
      %1490 = vmatprep.mubr.bf16.mxu0 0
      %1491 = vmatmul.mubr.bf16.gmra.mxu0 %v1324
      %v1492 = vpop.f32.mrf.mxu0
      %v1493 = vadd.f32 0.0, %v1492
      %v1494 = vpop.f32.mrf.mxu0
      %v1495 = vadd.f32 0.0, %v1494
      %v1496 = vpop.f32.mrf.mxu0
      %v1497 = vadd.f32 0.0, %v1496
      %v1498 = vpop.f32.mrf.mxu0
      %v1499 = vadd.f32 0.0, %v1498
      %1500 = vmatprep.mubr.bf16.mxu0 0
      %1501 = vmatmul.mubr.bf16.gmra.mxu0 %v1327
      %v1502 = vpop.f32.mrf.mxu0
      %v1503 = vadd.f32 0.0, %v1502
      %v1504 = vpop.f32.mrf.mxu0
      %v1505 = vadd.f32 0.0, %v1504
      %v1506 = vpop.f32.mrf.mxu0
      %v1507 = vadd.f32 0.0, %v1506
      %v1508 = vpop.f32.mrf.mxu0
      %v1509 = vadd.f32 0.0, %v1508
      %1510 = vmatprep.mubr.bf16.mxu0 0
      %1511 = vmatmul.mubr.bf16.gmra.mxu0 %v1330
      %v1512 = vpop.f32.mrf.mxu0
      %v1513 = vadd.f32 0.0, %v1512
      %v1514 = vpop.f32.mrf.mxu0
      %v1515 = vadd.f32 0.0, %v1514
      %v1516 = vpop.f32.mrf.mxu0
      %v1517 = vadd.f32 0.0, %v1516
      %v1518 = vpop.f32.mrf.mxu0
      %v1519 = vadd.f32 0.0, %v1518
      %1520 = vmatprep.mubr.bf16.mxu0 0
      %1521 = vmatmul.mubr.bf16.gmra.mxu0 %v1333
      %v1522 = vpop.f32.mrf.mxu0
      %v1523 = vadd.f32 0.0, %v1522
      %v1524 = vpop.f32.mrf.mxu0
      %v1525 = vadd.f32 0.0, %v1524
      %v1526 = vpop.f32.mrf.mxu0
      %v1527 = vadd.f32 0.0, %v1526
      %v1528 = vpop.f32.mrf.mxu0
      %v1529 = vadd.f32 0.0, %v1528
      %1530 = vmatprep.mubr.bf16.mxu0 0
      %1531 = vmatmul.mubr.bf16.gmra.mxu0 %v1336
      %v1532 = vpop.f32.mrf.mxu0
      %v1533 = vadd.f32 0.0, %v1532
      %v1534 = vpop.f32.mrf.mxu0
      %v1535 = vadd.f32 0.0, %v1534
      %v1536 = vpop.f32.mrf.mxu0
      %v1537 = vadd.f32 0.0, %v1536
      %v1538 = vpop.f32.mrf.mxu0
      %v1539 = vadd.f32 0.0, %v1538
      %1540 = vmatprep.mubr.bf16.mxu0 0
      %1541 = vmatmul.mubr.bf16.gmra.mxu0 %v1339
      %v1542 = vpop.f32.mrf.mxu0
      %v1543 = vadd.f32 0.0, %v1542
      %v1544 = vpop.f32.mrf.mxu0
      %v1545 = vadd.f32 0.0, %v1544
      %v1546 = vpop.f32.mrf.mxu0
      %v1547 = vadd.f32 0.0, %v1546
      %v1548 = vpop.f32.mrf.mxu0
      %v1549 = vadd.f32 0.0, %v1548
      %1550 = vmatprep.mubr.bf16.mxu0 0
      %1551 = vmatmul.mubr.bf16.gmra.mxu0 %v1342
      %v1552 = vpop.f32.mrf.mxu0
      %v1553 = vadd.f32 0.0, %v1552
      %v1554 = vpop.f32.mrf.mxu0
      %v1555 = vadd.f32 0.0, %v1554
      %v1556 = vpop.f32.mrf.mxu0
      %v1557 = vadd.f32 0.0, %v1556
      %v1558 = vpop.f32.mrf.mxu0
      %v1559 = vadd.f32 0.0, %v1558
      %1560 = vmatprep.mubr.bf16.mxu0 0
      %1561 = vmatmul.mubr.bf16.gmra.mxu0 %v1345
      %v1562 = vpop.f32.mrf.mxu0
      %v1563 = vadd.f32 0.0, %v1562
      %v1564 = vpop.f32.mrf.mxu0
      %v1565 = vadd.f32 0.0, %v1564
      %v1566 = vpop.f32.mrf.mxu0
      %v1567 = vadd.f32 0.0, %v1566
      %v1568 = vpop.f32.mrf.mxu0
      %v1569 = vadd.f32 0.0, %v1568
      %1570 = vmatprep.mubr.bf16.mxu0 0
      %1571 = vmatmul.mubr.bf16.gmra.mxu0 %v1348
      %v1572 = vpop.f32.mrf.mxu0
      %v1573 = vadd.f32 0.0, %v1572
      %v1574 = vpop.f32.mrf.mxu0
      %v1575 = vadd.f32 0.0, %v1574
      %v1576 = vpop.f32.mrf.mxu0
      %v1577 = vadd.f32 0.0, %v1576
      %v1578 = vpop.f32.mrf.mxu0
      %v1579 = vadd.f32 0.0, %v1578
      %1580 = vmatprep.mubr.bf16.mxu0 0
      %1581 = vmatmul.mubr.bf16.gmra.mxu0 %v1351
      %v1582 = vpop.f32.mrf.mxu0
      %v1583 = vadd.f32 0.0, %v1582
      %v1584 = vpop.f32.mrf.mxu0
      %v1585 = vadd.f32 0.0, %v1584
      %v1586 = vpop.f32.mrf.mxu0
      %v1587 = vadd.f32 0.0, %v1586
      %v1588 = vpop.f32.mrf.mxu0
      %v1589 = vadd.f32 0.0, %v1588
      %1590 = vmatprep.mubr.bf16.mxu0 0
      %1591 = vmatmul.mubr.bf16.gmra.mxu0 %v1354
      %v1592 = vpop.f32.mrf.mxu0
      %v1593 = vadd.f32 0.0, %v1592
      %v1594 = vpop.f32.mrf.mxu0
      %v1595 = vadd.f32 0.0, %v1594
      %v1596 = vpop.f32.mrf.mxu0
      %v1597 = vadd.f32 0.0, %v1596
      %v1598 = vpop.f32.mrf.mxu0
      %v1599 = vadd.f32 0.0, %v1598
      %1600 = vmatprep.mubr.bf16.mxu0 0
      %1601 = vmatmul.mubr.bf16.gmra.mxu0 %v1357
      %v1602 = vpop.f32.mrf.mxu0
      %v1603 = vadd.f32 0.0, %v1602
      %v1604 = vpop.f32.mrf.mxu0
      %v1605 = vadd.f32 0.0, %v1604
      %v1606 = vpop.f32.mrf.mxu0
      %v1607 = vadd.f32 0.0, %v1606
      %v1608 = vpop.f32.mrf.mxu0
      %v1609 = vadd.f32 0.0, %v1608
      %1610 = vmatprep.mubr.bf16.mxu0 0
      %1611 = vmatmul.mubr.bf16.gmra.mxu0 %v1360
      %v1612 = vpop.f32.mrf.mxu0
      %v1613 = vadd.f32 0.0, %v1612
      %v1614 = vpop.f32.mrf.mxu0
      %v1615 = vadd.f32 0.0, %v1614
      %v1616 = vpop.f32.mrf.mxu0
      %v1617 = vadd.f32 0.0, %v1616
      %v1618 = vpop.f32.mrf.mxu0
      %v1619 = vadd.f32 0.0, %v1618
      %1620 = vmatprep.mubr.bf16.mxu0 0
      %1621 = vmatmul.mubr.bf16.gmra.mxu0 %v1363
      %v1622 = vpop.f32.mrf.mxu0
      %v1623 = vadd.f32 0.0, %v1622
      %v1624 = vpop.f32.mrf.mxu0
      %v1625 = vadd.f32 0.0, %v1624
      %v1626 = vpop.f32.mrf.mxu0
      %v1627 = vadd.f32 0.0, %v1626
      %v1628 = vpop.f32.mrf.mxu0
      %v1629 = vadd.f32 0.0, %v1628
      %1630 = vmatprep.mubr.bf16.mxu0 0
      %1631 = vmatmul.mubr.bf16.gmra.mxu0 %v1366
      %v1632 = vpop.f32.mrf.mxu0
      %v1633 = vadd.f32 0.0, %v1632
      %v1634 = vpop.f32.mrf.mxu0
      %v1635 = vadd.f32 0.0, %v1634
      %v1636 = vpop.f32.mrf.mxu0
      %v1637 = vadd.f32 0.0, %v1636
      %v1638 = vpop.f32.mrf.mxu0
      %v1639 = vadd.f32 0.0, %v1638
      %1640 = vdwg.mxu0
      %v1689 = vunpack.c.l.b16 %v1022
      %v1690 = vunpack.c.l.b16 %v1023
      %v1691 = vunpack.c.l.b16 %v1024
      %v1692 = vunpack.c.l.b16 %v1025
      %v1693 = vunpack.c.l.b16 %v1026
      %v1694 = vunpack.c.l.b16 %v1027
      %v1695 = vunpack.c.l.b16 %v1028
      %v1696 = vunpack.c.l.b16 %v1029
      %v1697 = vunpack.c.l.b16 %v1030
      %v1698 = vunpack.c.l.b16 %v1031
      %v1699 = vunpack.c.l.b16 %v1032
      %v1700 = vunpack.c.l.b16 %v1033
      %v1701 = vunpack.c.l.b16 %v1034
      %v1702 = vunpack.c.l.b16 %v1035
      %v1703 = vunpack.c.l.b16 %v1036
      %v1704 = vunpack.c.l.b16 %v1037
      %v1705 = vunpack.c.l.b16 %v1038
      %v1706 = vunpack.c.l.b16 %v1039
      %v1707 = vunpack.c.l.b16 %v1040
      %v1708 = vunpack.c.l.b16 %v1041
      %v1709 = vunpack.c.l.b16 %v1042
      %v1710 = vunpack.c.l.b16 %v1043
      %v1711 = vunpack.c.l.b16 %v1044
      %v1712 = vunpack.c.l.b16 %v1045
      %v1713 = vunpack.c.l.b16 %v1046
      %v1714 = vunpack.c.l.b16 %v1047
      %v1715 = vunpack.c.l.b16 %v1048
      %v1716 = vunpack.c.l.b16 %v1049
      %v1717 = vunpack.c.l.b16 %v1050
      %v1718 = vunpack.c.l.b16 %v1051
      %v1719 = vunpack.c.l.b16 %v1052
      %v1720 = vunpack.c.l.b16 %v1053
      %v1721 = vunpack.c.l.b16 %v1054
      %v1722 = vunpack.c.l.b16 %v1055
      %v1723 = vunpack.c.l.b16 %v1056
      %v1724 = vunpack.c.l.b16 %v1057
      %v1725 = vunpack.c.l.b16 %v1058
      %v1726 = vunpack.c.l.b16 %v1059
      %v1727 = vunpack.c.l.b16 %v1060
      %v1728 = vunpack.c.l.b16 %v1061
      %v1729 = vunpack.c.l.b16 %v1062
      %v1730 = vunpack.c.l.b16 %v1063
      %v1731 = vunpack.c.l.b16 %v1064
      %v1732 = vunpack.c.l.b16 %v1065
      %v1733 = vunpack.c.l.b16 %v1066
      %v1734 = vunpack.c.l.b16 %v1067
      %v1735 = vunpack.c.l.b16 %v1068
      %v1736 = vunpack.c.l.b16 %v1069
      %v1737 = vpack.c.b16 %v1690, %v1689
      %v1738 = vpack.c.b16 %v1692, %v1691
      %v1739 = vpack.c.b16 %v1694, %v1693
      %v1740 = vpack.c.b16 %v1696, %v1695
      %v1741 = vpack.c.b16 %v1698, %v1697
      %v1742 = vpack.c.b16 %v1700, %v1699
      %v1743 = vpack.c.b16 %v1702, %v1701
      %v1744 = vpack.c.b16 %v1704, %v1703
      %v1745 = vpack.c.b16 %v1706, %v1705
      %v1746 = vpack.c.b16 %v1708, %v1707
      %v1747 = vpack.c.b16 %v1710, %v1709
      %v1748 = vpack.c.b16 %v1712, %v1711
      %v1749 = vpack.c.b16 %v1714, %v1713
      %v1750 = vpack.c.b16 %v1716, %v1715
      %v1751 = vpack.c.b16 %v1718, %v1717
      %v1752 = vpack.c.b16 %v1720, %v1719
      %v1753 = vpack.c.b16 %v1722, %v1721
      %v1754 = vpack.c.b16 %v1724, %v1723
      %v1755 = vpack.c.b16 %v1726, %v1725
      %v1756 = vpack.c.b16 %v1728, %v1727
      %v1757 = vpack.c.b16 %v1730, %v1729
      %v1758 = vpack.c.b16 %v1732, %v1731
      %v1759 = vpack.c.b16 %v1734, %v1733
      %v1760 = vpack.c.b16 %v1736, %v1735
      %v1769 = vunpack.c.l.b16 %v1070
      %v1770 = vunpack.c.h.b16 %v1070
      %v1771 = vunpack.c.l.b16 %v1071
      %v1772 = vunpack.c.h.b16 %v1071
      %v1773 = vunpack.c.l.b16 %v1072
      %v1774 = vunpack.c.h.b16 %v1072
      %v1775 = vunpack.c.l.b16 %v1073
      %v1776 = vunpack.c.h.b16 %v1073
      %v1777 = vunpack.c.l.b16 %v1074
      %v1778 = vunpack.c.h.b16 %v1074
      %v1779 = vunpack.c.l.b16 %v1075
      %v1780 = vunpack.c.h.b16 %v1075
      %v1781 = vunpack.c.l.b16 %v1076
      %v1782 = vunpack.c.h.b16 %v1076
      %v1783 = vunpack.c.l.b16 %v1077
      %v1784 = vunpack.c.h.b16 %v1077
      %v1785 = vpack.c.b16 %v1771, %v1769
      %v1786 = vpack.c.b16 %v1772, %v1770
      %v1787 = vpack.c.b16 %v1775, %v1773
      %v1788 = vpack.c.b16 %v1776, %v1774
      %v1789 = vpack.c.b16 %v1779, %v1777
      %v1790 = vpack.c.b16 %v1780, %v1778
      %v1791 = vpack.c.b16 %v1783, %v1781
      %v1792 = vpack.c.b16 %v1784, %v1782
      %v1802 = vsel %vm1295, %v1737, 0
      %v1805 = vsel %vm1295, %v1738, 0
      %v1808 = vsel %vm1295, %v1739, 0
      %v1811 = vsel %vm1295, %v1740, 0
      %v1814 = vsel %vm1295, %v1741, 0
      %v1817 = vsel %vm1295, %v1742, 0
      %v1820 = vsel %vm1295, %v1743, 0
      %v1823 = vsel %vm1295, %v1744, 0
      %v1826 = vsel %vm1295, %v1745, 0
      %v1829 = vsel %vm1295, %v1746, 0
      %v1832 = vsel %vm1295, %v1747, 0
      %v1835 = vsel %vm1295, %v1748, 0
      %v1838 = vsel %vm1295, %v1749, 0
      %v1841 = vsel %vm1295, %v1750, 0
      %v1844 = vsel %vm1295, %v1751, 0
      %v1847 = vsel %vm1295, %v1752, 0
      %v1850 = vsel %vm1295, %v1753, 0
      %v1853 = vsel %vm1295, %v1754, 0
      %v1856 = vsel %vm1295, %v1755, 0
      %v1859 = vsel %vm1295, %v1756, 0
      %v1862 = vsel %vm1295, %v1757, 0
      %v1865 = vsel %vm1295, %v1758, 0
      %v1868 = vsel %vm1295, %v1759, 0
      %v1871 = vsel %vm1295, %v1760, 0
      %1873 = vmatprep.subr.bf16.mxu0 0
      %1874 = vmatpush1.bf16.msra.mxu0 0
      %1875 = vmatprep.subr.bf16.mxu0 0
      %1876 = vmatpush1.bf16.msra.mxu0 0
      %1877 = vmatprep.subr.bf16.mxu0 0
      %1878 = vmatpush1.bf16.msra.mxu0 0
      %1879 = vmatprep.subr.bf16.mxu0 0
      %1880 = vmatpush1.bf16.msra.mxu0 0
      %1881 = vmatprep.subr.bf16.mxu0 %v1792
      %1882 = vmatpush1.bf16.msra.mxu0 %v1791
      %1883 = vmatprep.subr.bf16.mxu0 %v1790
      %1884 = vmatpush1.bf16.msra.mxu0 %v1789
      %1885 = vmatprep.subr.bf16.mxu0 %v1788
      %1886 = vmatpush1.bf16.msra.mxu0 %v1787
      %1887 = vmatprep.subr.bf16.mxu0 %v1786
      %1888 = vmatpush1.bf16.msra.mxu0 %v1785
      %1889 = vmatprep.subr.bf16.mxu0 0
      %1890 = vmatpush2.bf16.msra.mxu0 0
      %1891 = vmatprep.subr.bf16.mxu0 0
      %1892 = vmatpush2.bf16.msra.mxu0 0
      %1893 = vmatprep.subr.bf16.mxu0 0
      %1894 = vmatpush2.bf16.msra.mxu0 0
      %1895 = vmatprep.subr.bf16.mxu0 0
      %1896 = vmatpush2.bf16.msra.mxu0 0
      %1897 = vmatprep.subr.bf16.mxu0 0
      %1898 = vmatpush2.bf16.msra.mxu0 0
      %1899 = vmatprep.subr.bf16.mxu0 0
      %1900 = vmatpush2.bf16.msra.mxu0 0
      %1901 = vmatprep.subr.bf16.mxu0 0
      %1902 = vmatpush2.bf16.msra.mxu0 0
      %1903 = vmatprep.subr.bf16.mxu0 0
      %1904 = vmatpush2.bf16.msra.mxu0 0
      %1905 = vmatprep.mubr.bf16.mxu0 0
      %1906 = vmatmul.mubr.bf16.gmra.mxu0 %v1802
      %v1907 = vpop.f32.mrf.mxu0
      %v1908 = vadd.f32 %v1403, %v1907
      %v1909 = vpop.f32.mrf.mxu0
      %v1910 = vadd.f32 %v1405, %v1909
      %v1911 = vpop.f32.mrf.mxu0
      %v1912 = vadd.f32 %v1407, %v1911
      %v1913 = vpop.f32.mrf.mxu0
      %v1914 = vadd.f32 %v1409, %v1913
      %1915 = vmatprep.mubr.bf16.mxu0 0
      %1916 = vmatmul.mubr.bf16.gmra.mxu0 %v1805
      %v1917 = vpop.f32.mrf.mxu0
      %v1918 = vadd.f32 %v1413, %v1917
      %v1919 = vpop.f32.mrf.mxu0
      %v1920 = vadd.f32 %v1415, %v1919
      %v1921 = vpop.f32.mrf.mxu0
      %v1922 = vadd.f32 %v1417, %v1921
      %v1923 = vpop.f32.mrf.mxu0
      %v1924 = vadd.f32 %v1419, %v1923
      %1925 = vmatprep.mubr.bf16.mxu0 0
      %1926 = vmatmul.mubr.bf16.gmra.mxu0 %v1808
      %v1927 = vpop.f32.mrf.mxu0
      %v1928 = vadd.f32 %v1423, %v1927
      %v1929 = vpop.f32.mrf.mxu0
      %v1930 = vadd.f32 %v1425, %v1929
      %v1931 = vpop.f32.mrf.mxu0
      %v1932 = vadd.f32 %v1427, %v1931
      %v1933 = vpop.f32.mrf.mxu0
      %v1934 = vadd.f32 %v1429, %v1933
      %1935 = vmatprep.mubr.bf16.mxu0 0
      %1936 = vmatmul.mubr.bf16.gmra.mxu0 %v1811
      %v1937 = vpop.f32.mrf.mxu0
      %v1938 = vadd.f32 %v1433, %v1937
      %v1939 = vpop.f32.mrf.mxu0
      %v1940 = vadd.f32 %v1435, %v1939
      %v1941 = vpop.f32.mrf.mxu0
      %v1942 = vadd.f32 %v1437, %v1941
      %v1943 = vpop.f32.mrf.mxu0
      %v1944 = vadd.f32 %v1439, %v1943
      %1945 = vmatprep.mubr.bf16.mxu0 0
      %1946 = vmatmul.mubr.bf16.gmra.mxu0 %v1814
      %v1947 = vpop.f32.mrf.mxu0
      %v1948 = vadd.f32 %v1443, %v1947
      %v1949 = vpop.f32.mrf.mxu0
      %v1950 = vadd.f32 %v1445, %v1949
      %v1951 = vpop.f32.mrf.mxu0
      %v1952 = vadd.f32 %v1447, %v1951
      %v1953 = vpop.f32.mrf.mxu0
      %v1954 = vadd.f32 %v1449, %v1953
      %1955 = vmatprep.mubr.bf16.mxu0 0
      %1956 = vmatmul.mubr.bf16.gmra.mxu0 %v1817
      %v1957 = vpop.f32.mrf.mxu0
      %v1958 = vadd.f32 %v1453, %v1957
      %v1959 = vpop.f32.mrf.mxu0
      %v1960 = vadd.f32 %v1455, %v1959
      %v1961 = vpop.f32.mrf.mxu0
      %v1962 = vadd.f32 %v1457, %v1961
      %v1963 = vpop.f32.mrf.mxu0
      %v1964 = vadd.f32 %v1459, %v1963
      %1965 = vmatprep.mubr.bf16.mxu0 0
      %1966 = vmatmul.mubr.bf16.gmra.mxu0 %v1820
      %v1967 = vpop.f32.mrf.mxu0
      %v1968 = vadd.f32 %v1463, %v1967
      %v1969 = vpop.f32.mrf.mxu0
      %v1970 = vadd.f32 %v1465, %v1969
      %v1971 = vpop.f32.mrf.mxu0
      %v1972 = vadd.f32 %v1467, %v1971
      %v1973 = vpop.f32.mrf.mxu0
      %v1974 = vadd.f32 %v1469, %v1973
      %1975 = vmatprep.mubr.bf16.mxu0 0
      %1976 = vmatmul.mubr.bf16.gmra.mxu0 %v1823
      %v1977 = vpop.f32.mrf.mxu0
      %v1978 = vadd.f32 %v1473, %v1977
      %v1979 = vpop.f32.mrf.mxu0
      %v1980 = vadd.f32 %v1475, %v1979
      %v1981 = vpop.f32.mrf.mxu0
      %v1982 = vadd.f32 %v1477, %v1981
      %v1983 = vpop.f32.mrf.mxu0
      %v1984 = vadd.f32 %v1479, %v1983
      %1985 = vmatprep.mubr.bf16.mxu0 0
      %1986 = vmatmul.mubr.bf16.gmra.mxu0 %v1826
      %v1987 = vpop.f32.mrf.mxu0
      %v1988 = vadd.f32 %v1483, %v1987
      %v1989 = vpop.f32.mrf.mxu0
      %v1990 = vadd.f32 %v1485, %v1989
      %v1991 = vpop.f32.mrf.mxu0
      %v1992 = vadd.f32 %v1487, %v1991
      %v1993 = vpop.f32.mrf.mxu0
      %v1994 = vadd.f32 %v1489, %v1993
      %1995 = vmatprep.mubr.bf16.mxu0 0
      %1996 = vmatmul.mubr.bf16.gmra.mxu0 %v1829
      %v1997 = vpop.f32.mrf.mxu0
      %v1998 = vadd.f32 %v1493, %v1997
      %v1999 = vpop.f32.mrf.mxu0
      %v2000 = vadd.f32 %v1495, %v1999
      %v2001 = vpop.f32.mrf.mxu0
      %v2002 = vadd.f32 %v1497, %v2001
      %v2003 = vpop.f32.mrf.mxu0
      %v2004 = vadd.f32 %v1499, %v2003
      %2005 = vmatprep.mubr.bf16.mxu0 0
      %2006 = vmatmul.mubr.bf16.gmra.mxu0 %v1832
      %v2007 = vpop.f32.mrf.mxu0
      %v2008 = vadd.f32 %v1503, %v2007
      %v2009 = vpop.f32.mrf.mxu0
      %v2010 = vadd.f32 %v1505, %v2009
      %v2011 = vpop.f32.mrf.mxu0
      %v2012 = vadd.f32 %v1507, %v2011
      %v2013 = vpop.f32.mrf.mxu0
      %v2014 = vadd.f32 %v1509, %v2013
      %2015 = vmatprep.mubr.bf16.mxu0 0
      %2016 = vmatmul.mubr.bf16.gmra.mxu0 %v1835
      %v2017 = vpop.f32.mrf.mxu0
      %v2018 = vadd.f32 %v1513, %v2017
      %v2019 = vpop.f32.mrf.mxu0
      %v2020 = vadd.f32 %v1515, %v2019
      %v2021 = vpop.f32.mrf.mxu0
      %v2022 = vadd.f32 %v1517, %v2021
      %v2023 = vpop.f32.mrf.mxu0
      %v2024 = vadd.f32 %v1519, %v2023
      %2025 = vmatprep.mubr.bf16.mxu0 0
      %2026 = vmatmul.mubr.bf16.gmra.mxu0 %v1838
      %v2027 = vpop.f32.mrf.mxu0
      %v2028 = vadd.f32 %v1523, %v2027
      %v2029 = vpop.f32.mrf.mxu0
      %v2030 = vadd.f32 %v1525, %v2029
      %v2031 = vpop.f32.mrf.mxu0
      %v2032 = vadd.f32 %v1527, %v2031
      %v2033 = vpop.f32.mrf.mxu0
      %v2034 = vadd.f32 %v1529, %v2033
      %2035 = vmatprep.mubr.bf16.mxu0 0
      %2036 = vmatmul.mubr.bf16.gmra.mxu0 %v1841
      %v2037 = vpop.f32.mrf.mxu0
      %v2038 = vadd.f32 %v1533, %v2037
      %v2039 = vpop.f32.mrf.mxu0
      %v2040 = vadd.f32 %v1535, %v2039
      %v2041 = vpop.f32.mrf.mxu0
      %v2042 = vadd.f32 %v1537, %v2041
      %v2043 = vpop.f32.mrf.mxu0
      %v2044 = vadd.f32 %v1539, %v2043
      %2045 = vmatprep.mubr.bf16.mxu0 0
      %2046 = vmatmul.mubr.bf16.gmra.mxu0 %v1844
      %v2047 = vpop.f32.mrf.mxu0
      %v2048 = vadd.f32 %v1543, %v2047
      %v2049 = vpop.f32.mrf.mxu0
      %v2050 = vadd.f32 %v1545, %v2049
      %v2051 = vpop.f32.mrf.mxu0
      %v2052 = vadd.f32 %v1547, %v2051
      %v2053 = vpop.f32.mrf.mxu0
      %v2054 = vadd.f32 %v1549, %v2053
      %2055 = vmatprep.mubr.bf16.mxu0 0
      %2056 = vmatmul.mubr.bf16.gmra.mxu0 %v1847
      %v2057 = vpop.f32.mrf.mxu0
      %v2058 = vadd.f32 %v1553, %v2057
      %v2059 = vpop.f32.mrf.mxu0
      %v2060 = vadd.f32 %v1555, %v2059
      %v2061 = vpop.f32.mrf.mxu0
      %v2062 = vadd.f32 %v1557, %v2061
      %v2063 = vpop.f32.mrf.mxu0
      %v2064 = vadd.f32 %v1559, %v2063
      %2065 = vmatprep.mubr.bf16.mxu0 0
      %2066 = vmatmul.mubr.bf16.gmra.mxu0 %v1850
      %v2067 = vpop.f32.mrf.mxu0
      %v2068 = vadd.f32 %v1563, %v2067
      %v2069 = vpop.f32.mrf.mxu0
      %v2070 = vadd.f32 %v1565, %v2069
      %v2071 = vpop.f32.mrf.mxu0
      %v2072 = vadd.f32 %v1567, %v2071
      %v2073 = vpop.f32.mrf.mxu0
      %v2074 = vadd.f32 %v1569, %v2073
      %2075 = vmatprep.mubr.bf16.mxu0 0
      %2076 = vmatmul.mubr.bf16.gmra.mxu0 %v1853
      %v2077 = vpop.f32.mrf.mxu0
      %v2078 = vadd.f32 %v1573, %v2077
      %v2079 = vpop.f32.mrf.mxu0
      %v2080 = vadd.f32 %v1575, %v2079
      %v2081 = vpop.f32.mrf.mxu0
      %v2082 = vadd.f32 %v1577, %v2081
      %v2083 = vpop.f32.mrf.mxu0
      %v2084 = vadd.f32 %v1579, %v2083
      %2085 = vmatprep.mubr.bf16.mxu0 0
      %2086 = vmatmul.mubr.bf16.gmra.mxu0 %v1856
      %v2087 = vpop.f32.mrf.mxu0
      %v2088 = vadd.f32 %v1583, %v2087
      %v2089 = vpop.f32.mrf.mxu0
      %v2090 = vadd.f32 %v1585, %v2089
      %v2091 = vpop.f32.mrf.mxu0
      %v2092 = vadd.f32 %v1587, %v2091
      %v2093 = vpop.f32.mrf.mxu0
      %v2094 = vadd.f32 %v1589, %v2093
      %2095 = vmatprep.mubr.bf16.mxu0 0
      %2096 = vmatmul.mubr.bf16.gmra.mxu0 %v1859
      %v2097 = vpop.f32.mrf.mxu0
      %v2098 = vadd.f32 %v1593, %v2097
      %v2099 = vpop.f32.mrf.mxu0
      %v2100 = vadd.f32 %v1595, %v2099
      %v2101 = vpop.f32.mrf.mxu0
      %v2102 = vadd.f32 %v1597, %v2101
      %v2103 = vpop.f32.mrf.mxu0
      %v2104 = vadd.f32 %v1599, %v2103
      %2105 = vmatprep.mubr.bf16.mxu0 0
      %2106 = vmatmul.mubr.bf16.gmra.mxu0 %v1862
      %v2107 = vpop.f32.mrf.mxu0
      %v2108 = vadd.f32 %v1603, %v2107
      %v2109 = vpop.f32.mrf.mxu0
      %v2110 = vadd.f32 %v1605, %v2109
      %v2111 = vpop.f32.mrf.mxu0
      %v2112 = vadd.f32 %v1607, %v2111
      %v2113 = vpop.f32.mrf.mxu0
      %v2114 = vadd.f32 %v1609, %v2113
      %2115 = vmatprep.mubr.bf16.mxu0 0
      %2116 = vmatmul.mubr.bf16.gmra.mxu0 %v1865
      %v2117 = vpop.f32.mrf.mxu0
      %v2118 = vadd.f32 %v1613, %v2117
      %v2119 = vpop.f32.mrf.mxu0
      %v2120 = vadd.f32 %v1615, %v2119
      %v2121 = vpop.f32.mrf.mxu0
      %v2122 = vadd.f32 %v1617, %v2121
      %v2123 = vpop.f32.mrf.mxu0
      %v2124 = vadd.f32 %v1619, %v2123
      %2125 = vmatprep.mubr.bf16.mxu0 0
      %2126 = vmatmul.mubr.bf16.gmra.mxu0 %v1868
      %v2127 = vpop.f32.mrf.mxu0
      %v2128 = vadd.f32 %v1623, %v2127
      %v2129 = vpop.f32.mrf.mxu0
      %v2130 = vadd.f32 %v1625, %v2129
      %v2131 = vpop.f32.mrf.mxu0
      %v2132 = vadd.f32 %v1627, %v2131
      %v2133 = vpop.f32.mrf.mxu0
      %v2134 = vadd.f32 %v1629, %v2133
      %2135 = vmatprep.mubr.bf16.mxu0 0
      %2136 = vmatmul.mubr.bf16.gmra.mxu0 %v1871
      %v2137 = vpop.f32.mrf.mxu0
      %v2138 = vadd.f32 %v1633, %v2137
      %v2139 = vpop.f32.mrf.mxu0
      %v2140 = vadd.f32 %v1635, %v2139
      %v2141 = vpop.f32.mrf.mxu0
      %v2142 = vadd.f32 %v1637, %v2141
      %v2143 = vpop.f32.mrf.mxu0
      %v2144 = vadd.f32 %v1639, %v2143
      %2145 = vdwg.mxu0
      %s2146 = scalar_lea.vmem [#allocation2], 24
      %v2147 = vld [vmem:[%s2146] sm:$0xf]
      %v2148 = vld [vmem:[%s2146 + $0x4] sm:$0xf]
      %v2149 = vld [vmem:[%s2146 + $0x8] sm:$0xf]
      %v2150 = vld [vmem:[%s2146 + $0xc] sm:$0xf]
      %v2151 = vld [vmem:[%s2146 + $0x10] sm:$0xf]
      %v2152 = vld [vmem:[%s2146 + $0x14] sm:$0xf]
      %v2153 = vld [vmem:[%s2146 + $0x18] sm:$0xf]
      %v2154 = vld [vmem:[%s2146 + $0x1c] sm:$0xf]
      %v2155 = vld [vmem:[%s2146 + $0x20] sm:$0xf]
      %v2156 = vld [vmem:[%s2146 + $0x24] sm:$0xf]
      %v2157 = vld [vmem:[%s2146 + $0x28] sm:$0xf]
      %v2158 = vld [vmem:[%s2146 + $0x2c] sm:$0xf]
      %v2159 = vld [vmem:[%s2146 + $0x30] sm:$0xf]
      %v2160 = vld [vmem:[%s2146 + $0x34] sm:$0xf]
      %v2161 = vld [vmem:[%s2146 + $0x38] sm:$0xf]
      %v2162 = vld [vmem:[%s2146 + $0x3c] sm:$0xf]
      %v2163 = vld [vmem:[%s2146 + $0x40] sm:$0xf]
      %v2164 = vld [vmem:[%s2146 + $0x44] sm:$0xf]
      %v2165 = vld [vmem:[%s2146 + $0x48] sm:$0xf]
      %v2166 = vld [vmem:[%s2146 + $0x4c] sm:$0xf]
      %v2167 = vld [vmem:[%s2146 + $0x50] sm:$0xf]
      %v2168 = vld [vmem:[%s2146 + $0x54] sm:$0xf]
      %v2169 = vld [vmem:[%s2146 + $0x58] sm:$0xf]
      %v2170 = vld [vmem:[%s2146 + $0x5c] sm:$0xf]
      %v2171 = vld [vmem:[%s2146 + $0x60] sm:$0xf]
      %v2172 = vld [vmem:[%s2146 + $0x64] sm:$0xf]
      %v2173 = vld [vmem:[%s2146 + $0x68] sm:$0xf]
      %v2174 = vld [vmem:[%s2146 + $0x6c] sm:$0xf]
      %v2175 = vld [vmem:[%s2146 + $0x70] sm:$0xf]
      %v2176 = vld [vmem:[%s2146 + $0x74] sm:$0xf]
      %v2177 = vld [vmem:[%s2146 + $0x78] sm:$0xf]
      %v2178 = vld [vmem:[%s2146 + $0x7c] sm:$0xf]
      %v2179 = vld [vmem:[%s2146 + $0x80] sm:$0xf]
      %v2180 = vld [vmem:[%s2146 + $0x84] sm:$0xf]
      %v2181 = vld [vmem:[%s2146 + $0x88] sm:$0xf]
      %v2182 = vld [vmem:[%s2146 + $0x8c] sm:$0xf]
      %v2183 = vld [vmem:[%s2146 + $0x90] sm:$0xf]
      %v2184 = vld [vmem:[%s2146 + $0x94] sm:$0xf]
      %v2185 = vld [vmem:[%s2146 + $0x98] sm:$0xf]
      %v2186 = vld [vmem:[%s2146 + $0x9c] sm:$0xf]
      %v2187 = vld [vmem:[%s2146 + $0xa0] sm:$0xf]
      %v2188 = vld [vmem:[%s2146 + $0xa4] sm:$0xf]
      %v2189 = vld [vmem:[%s2146 + $0xa8] sm:$0xf]
      %v2190 = vld [vmem:[%s2146 + $0xac] sm:$0xf]
      %v2191 = vld [vmem:[%s2146 + $0xb0] sm:$0xf]
      %v2192 = vld [vmem:[%s2146 + $0xb4] sm:$0xf]
      %v2193 = vld [vmem:[%s2146 + $0xb8] sm:$0xf]
      %v2194 = vld [vmem:[%s2146 + $0xbc] sm:$0xf]
      %s2195 = scalar_lea.vmem %s2, 128
      %v2196 = vld [vmem:[%s2195] sm:$0xff]
      %v2197 = vld [vmem:[%s2195 + $0x8] sm:$0xff]
      %v2198 = vld [vmem:[%s2195 + $0x10] sm:$0xff]
      %v2199 = vld [vmem:[%s2195 + $0x18] sm:$0xff]
      %v2200 = vld [vmem:[%s2195 + $0x20] sm:$0xff]
      %v2201 = vld [vmem:[%s2195 + $0x28] sm:$0xff]
      %v2202 = vld [vmem:[%s2195 + $0x30] sm:$0xff]
      %v2203 = vld [vmem:[%s2195 + $0x38] sm:$0xff]
      %v2252 = vunpack.c.l.b16 %v2147
      %v2253 = vunpack.c.l.b16 %v2148
      %v2254 = vunpack.c.l.b16 %v2149
      %v2255 = vunpack.c.l.b16 %v2150
      %v2256 = vunpack.c.l.b16 %v2151
      %v2257 = vunpack.c.l.b16 %v2152
      %v2258 = vunpack.c.l.b16 %v2153
      %v2259 = vunpack.c.l.b16 %v2154
      %v2260 = vunpack.c.l.b16 %v2155
      %v2261 = vunpack.c.l.b16 %v2156
      %v2262 = vunpack.c.l.b16 %v2157
      %v2263 = vunpack.c.l.b16 %v2158
      %v2264 = vunpack.c.l.b16 %v2159
      %v2265 = vunpack.c.l.b16 %v2160
      %v2266 = vunpack.c.l.b16 %v2161
      %v2267 = vunpack.c.l.b16 %v2162
      %v2268 = vunpack.c.l.b16 %v2163
      %v2269 = vunpack.c.l.b16 %v2164
      %v2270 = vunpack.c.l.b16 %v2165
      %v2271 = vunpack.c.l.b16 %v2166
      %v2272 = vunpack.c.l.b16 %v2167
      %v2273 = vunpack.c.l.b16 %v2168
      %v2274 = vunpack.c.l.b16 %v2169
      %v2275 = vunpack.c.l.b16 %v2170
      %v2276 = vunpack.c.l.b16 %v2171
      %v2277 = vunpack.c.l.b16 %v2172
      %v2278 = vunpack.c.l.b16 %v2173
      %v2279 = vunpack.c.l.b16 %v2174
      %v2280 = vunpack.c.l.b16 %v2175
      %v2281 = vunpack.c.l.b16 %v2176
      %v2282 = vunpack.c.l.b16 %v2177
      %v2283 = vunpack.c.l.b16 %v2178
      %v2284 = vunpack.c.l.b16 %v2179
      %v2285 = vunpack.c.l.b16 %v2180
      %v2286 = vunpack.c.l.b16 %v2181
      %v2287 = vunpack.c.l.b16 %v2182
      %v2288 = vunpack.c.l.b16 %v2183
      %v2289 = vunpack.c.l.b16 %v2184
      %v2290 = vunpack.c.l.b16 %v2185
      %v2291 = vunpack.c.l.b16 %v2186
      %v2292 = vunpack.c.l.b16 %v2187
      %v2293 = vunpack.c.l.b16 %v2188
      %v2294 = vunpack.c.l.b16 %v2189
      %v2295 = vunpack.c.l.b16 %v2190
      %v2296 = vunpack.c.l.b16 %v2191
      %v2297 = vunpack.c.l.b16 %v2192
      %v2298 = vunpack.c.l.b16 %v2193
      %v2299 = vunpack.c.l.b16 %v2194
      %v2300 = vpack.c.b16 %v2253, %v2252
      %v2301 = vpack.c.b16 %v2255, %v2254
      %v2302 = vpack.c.b16 %v2257, %v2256
      %v2303 = vpack.c.b16 %v2259, %v2258
      %v2304 = vpack.c.b16 %v2261, %v2260
      %v2305 = vpack.c.b16 %v2263, %v2262
      %v2306 = vpack.c.b16 %v2265, %v2264
      %v2307 = vpack.c.b16 %v2267, %v2266
      %v2308 = vpack.c.b16 %v2269, %v2268
      %v2309 = vpack.c.b16 %v2271, %v2270
      %v2310 = vpack.c.b16 %v2273, %v2272
      %v2311 = vpack.c.b16 %v2275, %v2274
      %v2312 = vpack.c.b16 %v2277, %v2276
      %v2313 = vpack.c.b16 %v2279, %v2278
      %v2314 = vpack.c.b16 %v2281, %v2280
      %v2315 = vpack.c.b16 %v2283, %v2282
      %v2316 = vpack.c.b16 %v2285, %v2284
      %v2317 = vpack.c.b16 %v2287, %v2286
      %v2318 = vpack.c.b16 %v2289, %v2288
      %v2319 = vpack.c.b16 %v2291, %v2290
      %v2320 = vpack.c.b16 %v2293, %v2292
      %v2321 = vpack.c.b16 %v2295, %v2294
      %v2322 = vpack.c.b16 %v2297, %v2296
      %v2323 = vpack.c.b16 %v2299, %v2298
      %v2332 = vunpack.c.l.b16 %v2196
      %v2333 = vunpack.c.h.b16 %v2196
      %v2334 = vunpack.c.l.b16 %v2197
      %v2335 = vunpack.c.h.b16 %v2197
      %v2336 = vunpack.c.l.b16 %v2198
      %v2337 = vunpack.c.h.b16 %v2198
      %v2338 = vunpack.c.l.b16 %v2199
      %v2339 = vunpack.c.h.b16 %v2199
      %v2340 = vunpack.c.l.b16 %v2200
      %v2341 = vunpack.c.h.b16 %v2200
      %v2342 = vunpack.c.l.b16 %v2201
      %v2343 = vunpack.c.h.b16 %v2201
      %v2344 = vunpack.c.l.b16 %v2202
      %v2345 = vunpack.c.h.b16 %v2202
      %v2346 = vunpack.c.l.b16 %v2203
      %v2347 = vunpack.c.h.b16 %v2203
      %v2348 = vpack.c.b16 %v2334, %v2332
      %v2349 = vpack.c.b16 %v2335, %v2333
      %v2350 = vpack.c.b16 %v2338, %v2336
      %v2351 = vpack.c.b16 %v2339, %v2337
      %v2352 = vpack.c.b16 %v2342, %v2340
      %v2353 = vpack.c.b16 %v2343, %v2341
      %v2354 = vpack.c.b16 %v2346, %v2344
      %v2355 = vpack.c.b16 %v2347, %v2345
      %v2365 = vsel %vm1295, %v2300, 0
      %v2368 = vsel %vm1295, %v2301, 0
      %v2371 = vsel %vm1295, %v2302, 0
      %v2374 = vsel %vm1295, %v2303, 0
      %v2377 = vsel %vm1295, %v2304, 0
      %v2380 = vsel %vm1295, %v2305, 0
      %v2383 = vsel %vm1295, %v2306, 0
      %v2386 = vsel %vm1295, %v2307, 0
      %v2389 = vsel %vm1295, %v2308, 0
      %v2392 = vsel %vm1295, %v2309, 0
      %v2395 = vsel %vm1295, %v2310, 0
      %v2398 = vsel %vm1295, %v2311, 0
      %v2401 = vsel %vm1295, %v2312, 0
      %v2404 = vsel %vm1295, %v2313, 0
      %v2407 = vsel %vm1295, %v2314, 0
      %v2410 = vsel %vm1295, %v2315, 0
      %v2413 = vsel %vm1295, %v2316, 0
      %v2416 = vsel %vm1295, %v2317, 0
      %v2419 = vsel %vm1295, %v2318, 0
      %v2422 = vsel %vm1295, %v2319, 0
      %v2425 = vsel %vm1295, %v2320, 0
      %v2428 = vsel %vm1295, %v2321, 0
      %v2431 = vsel %vm1295, %v2322, 0
      %v2434 = vsel %vm1295, %v2323, 0
      %2436 = vmatprep.subr.bf16.mxu0 0
      %2437 = vmatpush1.bf16.msra.mxu0 0
      %2438 = vmatprep.subr.bf16.mxu0 0
      %2439 = vmatpush1.bf16.msra.mxu0 0
      %2440 = vmatprep.subr.bf16.mxu0 0
      %2441 = vmatpush1.bf16.msra.mxu0 0
      %2442 = vmatprep.subr.bf16.mxu0 0
      %2443 = vmatpush1.bf16.msra.mxu0 0
      %2444 = vmatprep.subr.bf16.mxu0 %v2355
      %2445 = vmatpush1.bf16.msra.mxu0 %v2354
      %2446 = vmatprep.subr.bf16.mxu0 %v2353
      %2447 = vmatpush1.bf16.msra.mxu0 %v2352
      %2448 = vmatprep.subr.bf16.mxu0 %v2351
      %2449 = vmatpush1.bf16.msra.mxu0 %v2350
      %2450 = vmatprep.subr.bf16.mxu0 %v2349
      %2451 = vmatpush1.bf16.msra.mxu0 %v2348
      %2452 = vmatprep.subr.bf16.mxu0 0
      %2453 = vmatpush2.bf16.msra.mxu0 0
      %2454 = vmatprep.subr.bf16.mxu0 0
      %2455 = vmatpush2.bf16.msra.mxu0 0
      %2456 = vmatprep.subr.bf16.mxu0 0
      %2457 = vmatpush2.bf16.msra.mxu0 0
      %2458 = vmatprep.subr.bf16.mxu0 0
      %2459 = vmatpush2.bf16.msra.mxu0 0
      %2460 = vmatprep.subr.bf16.mxu0 0
      %2461 = vmatpush2.bf16.msra.mxu0 0
      %2462 = vmatprep.subr.bf16.mxu0 0
      %2463 = vmatpush2.bf16.msra.mxu0 0
      %2464 = vmatprep.subr.bf16.mxu0 0
      %2465 = vmatpush2.bf16.msra.mxu0 0
      %2466 = vmatprep.subr.bf16.mxu0 0
      %2467 = vmatpush2.bf16.msra.mxu0 0
      %2468 = vmatprep.mubr.bf16.mxu0 0
      %2469 = vmatmul.mubr.bf16.gmra.mxu0 %v2365
      %v2470 = vpop.f32.mrf.mxu0
      %v2471 = vadd.f32 0.0, %v2470
      %v2472 = vpop.f32.mrf.mxu0
      %v2473 = vadd.f32 0.0, %v2472
      %v2474 = vpop.f32.mrf.mxu0
      %v2475 = vadd.f32 0.0, %v2474
      %v2476 = vpop.f32.mrf.mxu0
      %v2477 = vadd.f32 0.0, %v2476
      %2478 = vmatprep.mubr.bf16.mxu0 0
      %2479 = vmatmul.mubr.bf16.gmra.mxu0 %v2368
      %v2480 = vpop.f32.mrf.mxu0
      %v2481 = vadd.f32 0.0, %v2480
      %v2482 = vpop.f32.mrf.mxu0
      %v2483 = vadd.f32 0.0, %v2482
      %v2484 = vpop.f32.mrf.mxu0
      %v2485 = vadd.f32 0.0, %v2484
      %v2486 = vpop.f32.mrf.mxu0
      %v2487 = vadd.f32 0.0, %v2486
      %2488 = vmatprep.mubr.bf16.mxu0 0
      %2489 = vmatmul.mubr.bf16.gmra.mxu0 %v2371
      %v2490 = vpop.f32.mrf.mxu0
      %v2491 = vadd.f32 0.0, %v2490
      %v2492 = vpop.f32.mrf.mxu0
      %v2493 = vadd.f32 0.0, %v2492
      %v2494 = vpop.f32.mrf.mxu0
      %v2495 = vadd.f32 0.0, %v2494
      %v2496 = vpop.f32.mrf.mxu0
      %v2497 = vadd.f32 0.0, %v2496
      %2498 = vmatprep.mubr.bf16.mxu0 0
      %2499 = vmatmul.mubr.bf16.gmra.mxu0 %v2374
      %v2500 = vpop.f32.mrf.mxu0
      %v2501 = vadd.f32 0.0, %v2500
      %v2502 = vpop.f32.mrf.mxu0
      %v2503 = vadd.f32 0.0, %v2502
      %v2504 = vpop.f32.mrf.mxu0
      %v2505 = vadd.f32 0.0, %v2504
      %v2506 = vpop.f32.mrf.mxu0
      %v2507 = vadd.f32 0.0, %v2506
      %2508 = vmatprep.mubr.bf16.mxu0 0
      %2509 = vmatmul.mubr.bf16.gmra.mxu0 %v2377
      %v2510 = vpop.f32.mrf.mxu0
      %v2511 = vadd.f32 0.0, %v2510
      %v2512 = vpop.f32.mrf.mxu0
      %v2513 = vadd.f32 0.0, %v2512
      %v2514 = vpop.f32.mrf.mxu0
      %v2515 = vadd.f32 0.0, %v2514
      %v2516 = vpop.f32.mrf.mxu0
      %v2517 = vadd.f32 0.0, %v2516
      %2518 = vmatprep.mubr.bf16.mxu0 0
      %2519 = vmatmul.mubr.bf16.gmra.mxu0 %v2380
      %v2520 = vpop.f32.mrf.mxu0
      %v2521 = vadd.f32 0.0, %v2520
      %v2522 = vpop.f32.mrf.mxu0
      %v2523 = vadd.f32 0.0, %v2522
      %v2524 = vpop.f32.mrf.mxu0
      %v2525 = vadd.f32 0.0, %v2524
      %v2526 = vpop.f32.mrf.mxu0
      %v2527 = vadd.f32 0.0, %v2526
      %2528 = vmatprep.mubr.bf16.mxu0 0
      %2529 = vmatmul.mubr.bf16.gmra.mxu0 %v2383
      %v2530 = vpop.f32.mrf.mxu0
      %v2531 = vadd.f32 0.0, %v2530
      %v2532 = vpop.f32.mrf.mxu0
      %v2533 = vadd.f32 0.0, %v2532
      %v2534 = vpop.f32.mrf.mxu0
      %v2535 = vadd.f32 0.0, %v2534
      %v2536 = vpop.f32.mrf.mxu0
      %v2537 = vadd.f32 0.0, %v2536
      %2538 = vmatprep.mubr.bf16.mxu0 0
      %2539 = vmatmul.mubr.bf16.gmra.mxu0 %v2386
      %v2540 = vpop.f32.mrf.mxu0
      %v2541 = vadd.f32 0.0, %v2540
      %v2542 = vpop.f32.mrf.mxu0
      %v2543 = vadd.f32 0.0, %v2542
      %v2544 = vpop.f32.mrf.mxu0
      %v2545 = vadd.f32 0.0, %v2544
      %v2546 = vpop.f32.mrf.mxu0
      %v2547 = vadd.f32 0.0, %v2546
      %2548 = vmatprep.mubr.bf16.mxu0 0
      %2549 = vmatmul.mubr.bf16.gmra.mxu0 %v2389
      %v2550 = vpop.f32.mrf.mxu0
      %v2551 = vadd.f32 0.0, %v2550
      %v2552 = vpop.f32.mrf.mxu0
      %v2553 = vadd.f32 0.0, %v2552
      %v2554 = vpop.f32.mrf.mxu0
      %v2555 = vadd.f32 0.0, %v2554
      %v2556 = vpop.f32.mrf.mxu0
      %v2557 = vadd.f32 0.0, %v2556
      %2558 = vmatprep.mubr.bf16.mxu0 0
      %2559 = vmatmul.mubr.bf16.gmra.mxu0 %v2392
      %v2560 = vpop.f32.mrf.mxu0
      %v2561 = vadd.f32 0.0, %v2560
      %v2562 = vpop.f32.mrf.mxu0
      %v2563 = vadd.f32 0.0, %v2562
      %v2564 = vpop.f32.mrf.mxu0
      %v2565 = vadd.f32 0.0, %v2564
      %v2566 = vpop.f32.mrf.mxu0
      %v2567 = vadd.f32 0.0, %v2566
      %2568 = vmatprep.mubr.bf16.mxu0 0
      %2569 = vmatmul.mubr.bf16.gmra.mxu0 %v2395
      %v2570 = vpop.f32.mrf.mxu0
      %v2571 = vadd.f32 0.0, %v2570
      %v2572 = vpop.f32.mrf.mxu0
      %v2573 = vadd.f32 0.0, %v2572
      %v2574 = vpop.f32.mrf.mxu0
      %v2575 = vadd.f32 0.0, %v2574
      %v2576 = vpop.f32.mrf.mxu0
      %v2577 = vadd.f32 0.0, %v2576
      %2578 = vmatprep.mubr.bf16.mxu0 0
      %2579 = vmatmul.mubr.bf16.gmra.mxu0 %v2398
      %v2580 = vpop.f32.mrf.mxu0
      %v2581 = vadd.f32 0.0, %v2580
      %v2582 = vpop.f32.mrf.mxu0
      %v2583 = vadd.f32 0.0, %v2582
      %v2584 = vpop.f32.mrf.mxu0
      %v2585 = vadd.f32 0.0, %v2584
      %v2586 = vpop.f32.mrf.mxu0
      %v2587 = vadd.f32 0.0, %v2586
      %2588 = vmatprep.mubr.bf16.mxu0 0
      %2589 = vmatmul.mubr.bf16.gmra.mxu0 %v2401
      %v2590 = vpop.f32.mrf.mxu0
      %v2591 = vadd.f32 0.0, %v2590
      %v2592 = vpop.f32.mrf.mxu0
      %v2593 = vadd.f32 0.0, %v2592
      %v2594 = vpop.f32.mrf.mxu0
      %v2595 = vadd.f32 0.0, %v2594
      %v2596 = vpop.f32.mrf.mxu0
      %v2597 = vadd.f32 0.0, %v2596
      %2598 = vmatprep.mubr.bf16.mxu0 0
      %2599 = vmatmul.mubr.bf16.gmra.mxu0 %v2404
      %v2600 = vpop.f32.mrf.mxu0
      %v2601 = vadd.f32 0.0, %v2600
      %v2602 = vpop.f32.mrf.mxu0
      %v2603 = vadd.f32 0.0, %v2602
      %v2604 = vpop.f32.mrf.mxu0
      %v2605 = vadd.f32 0.0, %v2604
      %v2606 = vpop.f32.mrf.mxu0
      %v2607 = vadd.f32 0.0, %v2606
      %2608 = vmatprep.mubr.bf16.mxu0 0
      %2609 = vmatmul.mubr.bf16.gmra.mxu0 %v2407
      %v2610 = vpop.f32.mrf.mxu0
      %v2611 = vadd.f32 0.0, %v2610
      %v2612 = vpop.f32.mrf.mxu0
      %v2613 = vadd.f32 0.0, %v2612
      %v2614 = vpop.f32.mrf.mxu0
      %v2615 = vadd.f32 0.0, %v2614
      %v2616 = vpop.f32.mrf.mxu0
      %v2617 = vadd.f32 0.0, %v2616
      %2618 = vmatprep.mubr.bf16.mxu0 0
      %2619 = vmatmul.mubr.bf16.gmra.mxu0 %v2410
      %v2620 = vpop.f32.mrf.mxu0
      %v2621 = vadd.f32 0.0, %v2620
      %v2622 = vpop.f32.mrf.mxu0
      %v2623 = vadd.f32 0.0, %v2622
      %v2624 = vpop.f32.mrf.mxu0
      %v2625 = vadd.f32 0.0, %v2624
      %v2626 = vpop.f32.mrf.mxu0
      %v2627 = vadd.f32 0.0, %v2626
      %2628 = vmatprep.mubr.bf16.mxu0 0
      %2629 = vmatmul.mubr.bf16.gmra.mxu0 %v2413
      %v2630 = vpop.f32.mrf.mxu0
      %v2631 = vadd.f32 0.0, %v2630
      %v2632 = vpop.f32.mrf.mxu0
      %v2633 = vadd.f32 0.0, %v2632
      %v2634 = vpop.f32.mrf.mxu0
      %v2635 = vadd.f32 0.0, %v2634
      %v2636 = vpop.f32.mrf.mxu0
      %v2637 = vadd.f32 0.0, %v2636
      %2638 = vmatprep.mubr.bf16.mxu0 0
      %2639 = vmatmul.mubr.bf16.gmra.mxu0 %v2416
      %v2640 = vpop.f32.mrf.mxu0
      %v2641 = vadd.f32 0.0, %v2640
      %v2642 = vpop.f32.mrf.mxu0
      %v2643 = vadd.f32 0.0, %v2642
      %v2644 = vpop.f32.mrf.mxu0
      %v2645 = vadd.f32 0.0, %v2644
      %v2646 = vpop.f32.mrf.mxu0
      %v2647 = vadd.f32 0.0, %v2646
      %2648 = vmatprep.mubr.bf16.mxu0 0
      %2649 = vmatmul.mubr.bf16.gmra.mxu0 %v2419
      %v2650 = vpop.f32.mrf.mxu0
      %v2651 = vadd.f32 0.0, %v2650
      %v2652 = vpop.f32.mrf.mxu0
      %v2653 = vadd.f32 0.0, %v2652
      %v2654 = vpop.f32.mrf.mxu0
      %v2655 = vadd.f32 0.0, %v2654
      %v2656 = vpop.f32.mrf.mxu0
      %v2657 = vadd.f32 0.0, %v2656
      %2658 = vmatprep.mubr.bf16.mxu0 0
      %2659 = vmatmul.mubr.bf16.gmra.mxu0 %v2422
      %v2660 = vpop.f32.mrf.mxu0
      %v2661 = vadd.f32 0.0, %v2660
      %v2662 = vpop.f32.mrf.mxu0
      %v2663 = vadd.f32 0.0, %v2662
      %v2664 = vpop.f32.mrf.mxu0
      %v2665 = vadd.f32 0.0, %v2664
      %v2666 = vpop.f32.mrf.mxu0
      %v2667 = vadd.f32 0.0, %v2666
      %2668 = vmatprep.mubr.bf16.mxu0 0
      %2669 = vmatmul.mubr.bf16.gmra.mxu0 %v2425
      %v2670 = vpop.f32.mrf.mxu0
      %v2671 = vadd.f32 0.0, %v2670
      %v2672 = vpop.f32.mrf.mxu0
      %v2673 = vadd.f32 0.0, %v2672
      %v2674 = vpop.f32.mrf.mxu0
      %v2675 = vadd.f32 0.0, %v2674
      %v2676 = vpop.f32.mrf.mxu0
      %v2677 = vadd.f32 0.0, %v2676
      %2678 = vmatprep.mubr.bf16.mxu0 0
      %2679 = vmatmul.mubr.bf16.gmra.mxu0 %v2428
      %v2680 = vpop.f32.mrf.mxu0
      %v2681 = vadd.f32 0.0, %v2680
      %v2682 = vpop.f32.mrf.mxu0
      %v2683 = vadd.f32 0.0, %v2682
      %v2684 = vpop.f32.mrf.mxu0
      %v2685 = vadd.f32 0.0, %v2684
      %v2686 = vpop.f32.mrf.mxu0
      %v2687 = vadd.f32 0.0, %v2686
      %2688 = vmatprep.mubr.bf16.mxu0 0
      %2689 = vmatmul.mubr.bf16.gmra.mxu0 %v2431
      %v2690 = vpop.f32.mrf.mxu0
      %v2691 = vadd.f32 0.0, %v2690
      %v2692 = vpop.f32.mrf.mxu0
      %v2693 = vadd.f32 0.0, %v2692
      %v2694 = vpop.f32.mrf.mxu0
      %v2695 = vadd.f32 0.0, %v2694
      %v2696 = vpop.f32.mrf.mxu0
      %v2697 = vadd.f32 0.0, %v2696
      %2698 = vmatprep.mubr.bf16.mxu0 0
      %2699 = vmatmul.mubr.bf16.gmra.mxu0 %v2434
      %v2700 = vpop.f32.mrf.mxu0
      %v2701 = vadd.f32 0.0, %v2700
      %v2702 = vpop.f32.mrf.mxu0
      %v2703 = vadd.f32 0.0, %v2702
      %v2704 = vpop.f32.mrf.mxu0
      %v2705 = vadd.f32 0.0, %v2704
      %v2706 = vpop.f32.mrf.mxu0
      %v2707 = vadd.f32 0.0, %v2706
      %2708 = vdwg.mxu0
      %v2709 = vadd.f32 %v1908, %v2471
      %v2710 = vadd.f32 %v1910, %v2473
      %v2711 = vadd.f32 %v1912, %v2475
      %v2712 = vadd.f32 %v1914, %v2477
      %v2713 = vadd.f32 %v1918, %v2481
      %v2714 = vadd.f32 %v1920, %v2483
      %v2715 = vadd.f32 %v1922, %v2485
      %v2716 = vadd.f32 %v1924, %v2487
      %v2717 = vadd.f32 %v1928, %v2491
      %v2718 = vadd.f32 %v1930, %v2493
      %v2719 = vadd.f32 %v1932, %v2495
      %v2720 = vadd.f32 %v1934, %v2497
      %v2721 = vadd.f32 %v1938, %v2501
      %v2722 = vadd.f32 %v1940, %v2503
      %v2723 = vadd.f32 %v1942, %v2505
      %v2724 = vadd.f32 %v1944, %v2507
      %v2725 = vadd.f32 %v1948, %v2511
      %v2726 = vadd.f32 %v1950, %v2513
      %v2727 = vadd.f32 %v1952, %v2515
      %v2728 = vadd.f32 %v1954, %v2517
      %v2729 = vadd.f32 %v1958, %v2521
      %v2730 = vadd.f32 %v1960, %v2523
      %v2731 = vadd.f32 %v1962, %v2525
      %v2732 = vadd.f32 %v1964, %v2527
      %v2733 = vadd.f32 %v1968, %v2531
      %v2734 = vadd.f32 %v1970, %v2533
      %v2735 = vadd.f32 %v1972, %v2535
      %v2736 = vadd.f32 %v1974, %v2537
      %v2737 = vadd.f32 %v1978, %v2541
      %v2738 = vadd.f32 %v1980, %v2543
      %v2739 = vadd.f32 %v1982, %v2545
      %v2740 = vadd.f32 %v1984, %v2547
      %v2741 = vadd.f32 %v1988, %v2551
      %v2742 = vadd.f32 %v1990, %v2553
      %v2743 = vadd.f32 %v1992, %v2555
      %v2744 = vadd.f32 %v1994, %v2557
      %v2745 = vadd.f32 %v1998, %v2561
      %v2746 = vadd.f32 %v2000, %v2563
      %v2747 = vadd.f32 %v2002, %v2565
      %v2748 = vadd.f32 %v2004, %v2567
      %v2749 = vadd.f32 %v2008, %v2571
      %v2750 = vadd.f32 %v2010, %v2573
      %v2751 = vadd.f32 %v2012, %v2575
      %v2752 = vadd.f32 %v2014, %v2577
      %v2753 = vadd.f32 %v2018, %v2581
      %v2754 = vadd.f32 %v2020, %v2583
      %v2755 = vadd.f32 %v2022, %v2585
      %v2756 = vadd.f32 %v2024, %v2587
      %v2757 = vadd.f32 %v2028, %v2591
      %v2758 = vadd.f32 %v2030, %v2593
      %v2759 = vadd.f32 %v2032, %v2595
      %v2760 = vadd.f32 %v2034, %v2597
      %v2761 = vadd.f32 %v2038, %v2601
      %v2762 = vadd.f32 %v2040, %v2603
      %v2763 = vadd.f32 %v2042, %v2605
      %v2764 = vadd.f32 %v2044, %v2607
      %v2765 = vadd.f32 %v2048, %v2611
      %v2766 = vadd.f32 %v2050, %v2613
      %v2767 = vadd.f32 %v2052, %v2615
      %v2768 = vadd.f32 %v2054, %v2617
      %v2769 = vadd.f32 %v2058, %v2621
      %v2770 = vadd.f32 %v2060, %v2623
      %v2771 = vadd.f32 %v2062, %v2625
      %v2772 = vadd.f32 %v2064, %v2627
      %v2773 = vadd.f32 %v2068, %v2631
      %v2774 = vadd.f32 %v2070, %v2633
      %v2775 = vadd.f32 %v2072, %v2635
      %v2776 = vadd.f32 %v2074, %v2637
      %v2777 = vadd.f32 %v2078, %v2641
      %v2778 = vadd.f32 %v2080, %v2643
      %v2779 = vadd.f32 %v2082, %v2645
      %v2780 = vadd.f32 %v2084, %v2647
      %v2781 = vadd.f32 %v2088, %v2651
      %v2782 = vadd.f32 %v2090, %v2653
      %v2783 = vadd.f32 %v2092, %v2655
      %v2784 = vadd.f32 %v2094, %v2657
      %v2785 = vadd.f32 %v2098, %v2661
      %v2786 = vadd.f32 %v2100, %v2663
      %v2787 = vadd.f32 %v2102, %v2665
      %v2788 = vadd.f32 %v2104, %v2667
      %v2789 = vadd.f32 %v2108, %v2671
      %v2790 = vadd.f32 %v2110, %v2673
      %v2791 = vadd.f32 %v2112, %v2675
      %v2792 = vadd.f32 %v2114, %v2677
      %v2793 = vadd.f32 %v2118, %v2681
      %v2794 = vadd.f32 %v2120, %v2683
      %v2795 = vadd.f32 %v2122, %v2685
      %v2796 = vadd.f32 %v2124, %v2687
      %v2797 = vadd.f32 %v2128, %v2691
      %v2798 = vadd.f32 %v2130, %v2693
      %v2799 = vadd.f32 %v2132, %v2695
      %v2800 = vadd.f32 %v2134, %v2697
      %v2801 = vadd.f32 %v2138, %v2701
      %v2802 = vadd.f32 %v2140, %v2703
      %v2803 = vadd.f32 %v2142, %v2705
      %v2804 = vadd.f32 %v2144, %v2707
      %vm2853 = vcmask 1046528
      %v2854 = vrot.slane %v2709, 1
      %v2855 = vrot.slane %v2711, 1
      %v2856 = vsel %vm2853, %v2854, %v2855
      %v2857 = vrot.slane %v2713, 1
      %v2858 = vsel %vm2853, %v2855, %v2857
      %v2859 = vrot.slane %v2715, 1
      %v2860 = vrot.slane %v2717, 1
      %v2861 = vsel %vm2853, %v2859, %v2860
      %v2862 = vrot.slane %v2719, 1
      %v2863 = vsel %vm2853, %v2860, %v2862
      %v2864 = vrot.slane %v2721, 1
      %v2865 = vrot.slane %v2723, 1
      %v2866 = vsel %vm2853, %v2864, %v2865
      %v2867 = vrot.slane %v2725, 1
      %v2868 = vsel %vm2853, %v2865, %v2867
      %v2869 = vrot.slane %v2727, 1
      %v2870 = vrot.slane %v2729, 1
      %v2871 = vsel %vm2853, %v2869, %v2870
      %v2872 = vrot.slane %v2731, 1
      %v2873 = vsel %vm2853, %v2870, %v2872
      %v2874 = vrot.slane %v2733, 1
      %v2875 = vrot.slane %v2735, 1
      %v2876 = vsel %vm2853, %v2874, %v2875
      %v2877 = vrot.slane %v2737, 1
      %v2878 = vsel %vm2853, %v2875, %v2877
      %v2879 = vrot.slane %v2739, 1
      %v2880 = vrot.slane %v2741, 1
      %v2881 = vsel %vm2853, %v2879, %v2880
      %v2882 = vrot.slane %v2743, 1
      %v2883 = vsel %vm2853, %v2880, %v2882
      %v2884 = vrot.slane %v2745, 1
      %v2885 = vrot.slane %v2747, 1
      %v2886 = vsel %vm2853, %v2884, %v2885
      %v2887 = vrot.slane %v2749, 1
      %v2888 = vsel %vm2853, %v2885, %v2887
      %v2889 = vrot.slane %v2751, 1
      %v2890 = vrot.slane %v2753, 1
      %v2891 = vsel %vm2853, %v2889, %v2890
      %v2892 = vrot.slane %v2755, 1
      %v2893 = vsel %vm2853, %v2890, %v2892
      %v2894 = vrot.slane %v2757, 1
      %v2895 = vrot.slane %v2759, 1
      %v2896 = vsel %vm2853, %v2894, %v2895
      %v2897 = vrot.slane %v2761, 1
      %v2898 = vsel %vm2853, %v2895, %v2897
      %v2899 = vrot.slane %v2763, 1
      %v2900 = vrot.slane %v2765, 1
      %v2901 = vsel %vm2853, %v2899, %v2900
      %v2902 = vrot.slane %v2767, 1
      %v2903 = vsel %vm2853, %v2900, %v2902
      %v2904 = vrot.slane %v2769, 1
      %v2905 = vrot.slane %v2771, 1
      %v2906 = vsel %vm2853, %v2904, %v2905
      %v2907 = vrot.slane %v2773, 1
      %v2908 = vsel %vm2853, %v2905, %v2907
      %v2909 = vrot.slane %v2775, 1
      %v2910 = vrot.slane %v2777, 1
      %v2911 = vsel %vm2853, %v2909, %v2910
      %v2912 = vrot.slane %v2779, 1
      %v2913 = vsel %vm2853, %v2910, %v2912
      %v2914 = vrot.slane %v2781, 1
      %v2915 = vrot.slane %v2783, 1
      %v2916 = vsel %vm2853, %v2914, %v2915
      %v2917 = vrot.slane %v2785, 1
      %v2918 = vsel %vm2853, %v2915, %v2917
      %v2919 = vrot.slane %v2787, 1
      %v2920 = vrot.slane %v2789, 1
      %v2921 = vsel %vm2853, %v2919, %v2920
      %v2922 = vrot.slane %v2791, 1
      %v2923 = vsel %vm2853, %v2920, %v2922
      %v2924 = vrot.slane %v2793, 1
      %v2925 = vrot.slane %v2795, 1
      %v2926 = vsel %vm2853, %v2924, %v2925
      %v2927 = vrot.slane %v2797, 1
      %v2928 = vsel %vm2853, %v2925, %v2927
      %v2929 = vrot.slane %v2799, 1
      %v2930 = vrot.slane %v2801, 1
      %v2931 = vsel %vm2853, %v2929, %v2930
      %v2932 = vrot.slane %v2803, 1
      %v2933 = vsel %vm2853, %v2930, %v2932
      %2934 = vrot.lane.b32.xlu0 %v2856, 64
      %v2935 = vpop.permute.xlu0 %2934
      %2936 = vrot.lane.b32.xlu0 %v2858, 64
      %v2937 = vpop.permute.xlu0 %2936
      %2938 = vrot.lane.b32.xlu0 %v2861, 64
      %v2939 = vpop.permute.xlu0 %2938
      %2940 = vrot.lane.b32.xlu0 %v2863, 64
      %v2941 = vpop.permute.xlu0 %2940
      %2942 = vrot.lane.b32.xlu0 %v2866, 64
      %v2943 = vpop.permute.xlu0 %2942
      %2944 = vrot.lane.b32.xlu0 %v2868, 64
      %v2945 = vpop.permute.xlu0 %2944
      %2946 = vrot.lane.b32.xlu0 %v2871, 64
      %v2947 = vpop.permute.xlu0 %2946
      %2948 = vrot.lane.b32.xlu0 %v2873, 64
      %v2949 = vpop.permute.xlu0 %2948
      %2950 = vrot.lane.b32.xlu0 %v2876, 64
      %v2951 = vpop.permute.xlu0 %2950
      %2952 = vrot.lane.b32.xlu0 %v2878, 64
      %v2953 = vpop.permute.xlu0 %2952
      %2954 = vrot.lane.b32.xlu0 %v2881, 64
      %v2955 = vpop.permute.xlu0 %2954
      %2956 = vrot.lane.b32.xlu0 %v2883, 64
      %v2957 = vpop.permute.xlu0 %2956
      %2958 = vrot.lane.b32.xlu0 %v2886, 64
      %v2959 = vpop.permute.xlu0 %2958
      %2960 = vrot.lane.b32.xlu0 %v2888, 64
      %v2961 = vpop.permute.xlu0 %2960
      %2962 = vrot.lane.b32.xlu0 %v2891, 64
      %v2963 = vpop.permute.xlu0 %2962
      %2964 = vrot.lane.b32.xlu0 %v2893, 64
      %v2965 = vpop.permute.xlu0 %2964
      %2966 = vrot.lane.b32.xlu0 %v2896, 64
      %v2967 = vpop.permute.xlu0 %2966
      %2968 = vrot.lane.b32.xlu0 %v2898, 64
      %v2969 = vpop.permute.xlu0 %2968
      %2970 = vrot.lane.b32.xlu0 %v2901, 64
      %v2971 = vpop.permute.xlu0 %2970
      %2972 = vrot.lane.b32.xlu0 %v2903, 64
      %v2973 = vpop.permute.xlu0 %2972
      %2974 = vrot.lane.b32.xlu0 %v2906, 64
      %v2975 = vpop.permute.xlu0 %2974
      %2976 = vrot.lane.b32.xlu0 %v2908, 64
      %v2977 = vpop.permute.xlu0 %2976
      %2978 = vrot.lane.b32.xlu0 %v2911, 64
      %v2979 = vpop.permute.xlu0 %2978
      %2980 = vrot.lane.b32.xlu0 %v2913, 64
      %v2981 = vpop.permute.xlu0 %2980
      %2982 = vrot.lane.b32.xlu0 %v2916, 64
      %v2983 = vpop.permute.xlu0 %2982
      %2984 = vrot.lane.b32.xlu0 %v2918, 64
      %v2985 = vpop.permute.xlu0 %2984
      %2986 = vrot.lane.b32.xlu0 %v2921, 64
      %v2987 = vpop.permute.xlu0 %2986
      %2988 = vrot.lane.b32.xlu0 %v2923, 64
      %v2989 = vpop.permute.xlu0 %2988
      %2990 = vrot.lane.b32.xlu0 %v2926, 64
      %v2991 = vpop.permute.xlu0 %2990
      %2992 = vrot.lane.b32.xlu0 %v2928, 64
      %v2993 = vpop.permute.xlu0 %2992
      %2994 = vrot.lane.b32.xlu0 %v2931, 64
      %v2995 = vpop.permute.xlu0 %2994
      %2996 = vrot.lane.b32.xlu0 %v2933, 64
      %v2997 = vpop.permute.xlu0 %2996
      %v3030 = vadd.f32 %v2709, %v2935
      %v3031 = vadd.f32 %v2711, %v2937
      %v3032 = vadd.f32 %v2715, %v2939
      %v3033 = vadd.f32 %v2717, %v2941
      %v3034 = vadd.f32 %v2721, %v2943
      %v3035 = vadd.f32 %v2723, %v2945
      %v3036 = vadd.f32 %v2727, %v2947
      %v3037 = vadd.f32 %v2729, %v2949
      %v3038 = vadd.f32 %v2733, %v2951
      %v3039 = vadd.f32 %v2735, %v2953
      %v3040 = vadd.f32 %v2739, %v2955
      %v3041 = vadd.f32 %v2741, %v2957
      %v3042 = vadd.f32 %v2745, %v2959
      %v3043 = vadd.f32 %v2747, %v2961
      %v3044 = vadd.f32 %v2751, %v2963
      %v3045 = vadd.f32 %v2753, %v2965
      %v3046 = vadd.f32 %v2757, %v2967
      %v3047 = vadd.f32 %v2759, %v2969
      %v3048 = vadd.f32 %v2763, %v2971
      %v3049 = vadd.f32 %v2765, %v2973
      %v3050 = vadd.f32 %v2769, %v2975
      %v3051 = vadd.f32 %v2771, %v2977
      %v3052 = vadd.f32 %v2775, %v2979
      %v3053 = vadd.f32 %v2777, %v2981
      %v3054 = vadd.f32 %v2781, %v2983
      %v3055 = vadd.f32 %v2783, %v2985
      %v3056 = vadd.f32 %v2787, %v2987
      %v3057 = vadd.f32 %v2789, %v2989
      %v3058 = vadd.f32 %v2793, %v2991
      %v3059 = vadd.f32 %v2795, %v2993
      %v3060 = vadd.f32 %v2799, %v2995
      %v3061 = vadd.f32 %v2801, %v2997
      %vm3110 = vcmask 1045504
      %v3111 = vrot.slane %v2710, 2
      %v3112 = vrot.slane %v2712, 2
      %v3113 = vsel %vm3110, %v3111, %v3112
      %v3114 = vrot.slane %v2714, 2
      %v3115 = vsel %vm3110, %v3112, %v3114
      %v3116 = vrot.slane %v2716, 2
      %v3117 = vrot.slane %v2718, 2
      %v3118 = vsel %vm3110, %v3116, %v3117
      %v3119 = vrot.slane %v2720, 2
      %v3120 = vsel %vm3110, %v3117, %v3119
      %v3121 = vrot.slane %v2722, 2
      %v3122 = vrot.slane %v2724, 2
      %v3123 = vsel %vm3110, %v3121, %v3122
      %v3124 = vrot.slane %v2726, 2
      %v3125 = vsel %vm3110, %v3122, %v3124
      %v3126 = vrot.slane %v2728, 2
      %v3127 = vrot.slane %v2730, 2
      %v3128 = vsel %vm3110, %v3126, %v3127
      %v3129 = vrot.slane %v2732, 2
      %v3130 = vsel %vm3110, %v3127, %v3129
      %v3131 = vrot.slane %v2734, 2
      %v3132 = vrot.slane %v2736, 2
      %v3133 = vsel %vm3110, %v3131, %v3132
      %v3134 = vrot.slane %v2738, 2
      %v3135 = vsel %vm3110, %v3132, %v3134
      %v3136 = vrot.slane %v2740, 2
      %v3137 = vrot.slane %v2742, 2
      %v3138 = vsel %vm3110, %v3136, %v3137
      %v3139 = vrot.slane %v2744, 2
      %v3140 = vsel %vm3110, %v3137, %v3139
      %v3141 = vrot.slane %v2746, 2
      %v3142 = vrot.slane %v2748, 2
      %v3143 = vsel %vm3110, %v3141, %v3142
      %v3144 = vrot.slane %v2750, 2
      %v3145 = vsel %vm3110, %v3142, %v3144
      %v3146 = vrot.slane %v2752, 2
      %v3147 = vrot.slane %v2754, 2
      %v3148 = vsel %vm3110, %v3146, %v3147
      %v3149 = vrot.slane %v2756, 2
      %v3150 = vsel %vm3110, %v3147, %v3149
      %v3151 = vrot.slane %v2758, 2
      %v3152 = vrot.slane %v2760, 2
      %v3153 = vsel %vm3110, %v3151, %v3152
      %v3154 = vrot.slane %v2762, 2
      %v3155 = vsel %vm3110, %v3152, %v3154
      %v3156 = vrot.slane %v2764, 2
      %v3157 = vrot.slane %v2766, 2
      %v3158 = vsel %vm3110, %v3156, %v3157
      %v3159 = vrot.slane %v2768, 2
      %v3160 = vsel %vm3110, %v3157, %v3159
      %v3161 = vrot.slane %v2770, 2
      %v3162 = vrot.slane %v2772, 2
      %v3163 = vsel %vm3110, %v3161, %v3162
      %v3164 = vrot.slane %v2774, 2
      %v3165 = vsel %vm3110, %v3162, %v3164
      %v3166 = vrot.slane %v2776, 2
      %v3167 = vrot.slane %v2778, 2
      %v3168 = vsel %vm3110, %v3166, %v3167
      %v3169 = vrot.slane %v2780, 2
      %v3170 = vsel %vm3110, %v3167, %v3169
      %v3171 = vrot.slane %v2782, 2
      %v3172 = vrot.slane %v2784, 2
      %v3173 = vsel %vm3110, %v3171, %v3172
      %v3174 = vrot.slane %v2786, 2
      %v3175 = vsel %vm3110, %v3172, %v3174
      %v3176 = vrot.slane %v2788, 2
      %v3177 = vrot.slane %v2790, 2
      %v3178 = vsel %vm3110, %v3176, %v3177
      %v3179 = vrot.slane %v2792, 2
      %v3180 = vsel %vm3110, %v3177, %v3179
      %v3181 = vrot.slane %v2794, 2
      %v3182 = vrot.slane %v2796, 2
      %v3183 = vsel %vm3110, %v3181, %v3182
      %v3184 = vrot.slane %v2798, 2
      %v3185 = vsel %vm3110, %v3182, %v3184
      %v3186 = vrot.slane %v2800, 2
      %v3187 = vrot.slane %v2802, 2
      %v3188 = vsel %vm3110, %v3186, %v3187
      %v3189 = vrot.slane %v2804, 2
      %v3190 = vsel %vm3110, %v3187, %v3189
      %v3223 = vadd.f32 %v3030, %v3113
      %v3224 = vadd.f32 %v3031, %v3115
      %v3225 = vadd.f32 %v3032, %v3118
      %v3226 = vadd.f32 %v3033, %v3120
      %v3227 = vadd.f32 %v3034, %v3123
      %v3228 = vadd.f32 %v3035, %v3125
      %v3229 = vadd.f32 %v3036, %v3128
      %v3230 = vadd.f32 %v3037, %v3130
      %v3231 = vadd.f32 %v3038, %v3133
      %v3232 = vadd.f32 %v3039, %v3135
      %v3233 = vadd.f32 %v3040, %v3138
      %v3234 = vadd.f32 %v3041, %v3140
      %v3235 = vadd.f32 %v3042, %v3143
      %v3236 = vadd.f32 %v3043, %v3145
      %v3237 = vadd.f32 %v3044, %v3148
      %v3238 = vadd.f32 %v3045, %v3150
      %v3239 = vadd.f32 %v3046, %v3153
      %v3240 = vadd.f32 %v3047, %v3155
      %v3241 = vadd.f32 %v3048, %v3158
      %v3242 = vadd.f32 %v3049, %v3160
      %v3243 = vadd.f32 %v3050, %v3163
      %v3244 = vadd.f32 %v3051, %v3165
      %v3245 = vadd.f32 %v3052, %v3168
      %v3246 = vadd.f32 %v3053, %v3170
      %v3247 = vadd.f32 %v3054, %v3173
      %v3248 = vadd.f32 %v3055, %v3175
      %v3249 = vadd.f32 %v3056, %v3178
      %v3250 = vadd.f32 %v3057, %v3180
      %v3251 = vadd.f32 %v3058, %v3183
      %v3252 = vadd.f32 %v3059, %v3185
      %v3253 = vadd.f32 %v3060, %v3188
      %v3254 = vadd.f32 %v3061, %v3190
      %v3255 = vpack.c.bf16 %v3224, %v3223
      %v3256 = vpack.c.bf16 %v3226, %v3225
      %v3257 = vpack.c.bf16 %v3228, %v3227
      %v3258 = vpack.c.bf16 %v3230, %v3229
      %v3259 = vpack.c.bf16 %v3232, %v3231
      %v3260 = vpack.c.bf16 %v3234, %v3233
      %v3261 = vpack.c.bf16 %v3236, %v3235
      %v3262 = vpack.c.bf16 %v3238, %v3237
      %v3263 = vpack.c.bf16 %v3240, %v3239
      %v3264 = vpack.c.bf16 %v3242, %v3241
      %v3265 = vpack.c.bf16 %v3244, %v3243
      %v3266 = vpack.c.bf16 %v3246, %v3245
      %v3267 = vpack.c.bf16 %v3248, %v3247
      %v3268 = vpack.c.bf16 %v3250, %v3249
      %v3269 = vpack.c.bf16 %v3252, %v3251
      %v3270 = vpack.c.bf16 %v3254, %v3253
      %v3287 = vunpack.c.l.b16 %v3255
      %v3288 = vunpack.c.h.b16 %v3255
      %v3289 = vunpack.c.l.b16 %v3256
      %v3290 = vunpack.c.h.b16 %v3256
      %v3291 = vunpack.c.l.b16 %v3257
      %v3292 = vunpack.c.h.b16 %v3257
      %v3293 = vunpack.c.l.b16 %v3258
      %v3294 = vunpack.c.h.b16 %v3258
      %v3295 = vunpack.c.l.b16 %v3259
      %v3296 = vunpack.c.h.b16 %v3259
      %v3297 = vunpack.c.l.b16 %v3260
      %v3298 = vunpack.c.h.b16 %v3260
      %v3299 = vunpack.c.l.b16 %v3261
      %v3300 = vunpack.c.h.b16 %v3261
      %v3301 = vunpack.c.l.b16 %v3262
      %v3302 = vunpack.c.h.b16 %v3262
      %v3303 = vunpack.c.l.b16 %v3263
      %v3304 = vunpack.c.h.b16 %v3263
      %v3305 = vunpack.c.l.b16 %v3264
      %v3306 = vunpack.c.h.b16 %v3264
      %v3307 = vunpack.c.l.b16 %v3265
      %v3308 = vunpack.c.h.b16 %v3265
      %v3309 = vunpack.c.l.b16 %v3266
      %v3310 = vunpack.c.h.b16 %v3266
      %v3311 = vunpack.c.l.b16 %v3267
      %v3312 = vunpack.c.h.b16 %v3267
      %v3313 = vunpack.c.l.b16 %v3268
      %v3314 = vunpack.c.h.b16 %v3268
      %v3315 = vunpack.c.l.b16 %v3269
      %v3316 = vunpack.c.h.b16 %v3269
      %v3317 = vunpack.c.l.b16 %v3270
      %v3318 = vunpack.c.h.b16 %v3270
      %v3319 = vpack.c.b16 %v3287, %v3287
      %v3320 = vpack.c.b16 %v3288, %v3288
      %v3321 = vpack.c.b16 %v3289, %v3289
      %v3322 = vpack.c.b16 %v3290, %v3290
      %v3323 = vpack.c.b16 %v3291, %v3291
      %v3324 = vpack.c.b16 %v3292, %v3292
      %v3325 = vpack.c.b16 %v3293, %v3293
      %v3326 = vpack.c.b16 %v3294, %v3294
      %v3327 = vpack.c.b16 %v3295, %v3295
      %v3328 = vpack.c.b16 %v3296, %v3296
      %v3329 = vpack.c.b16 %v3297, %v3297
      %v3330 = vpack.c.b16 %v3298, %v3298
      %v3331 = vpack.c.b16 %v3299, %v3299
      %v3332 = vpack.c.b16 %v3300, %v3300
      %v3333 = vpack.c.b16 %v3301, %v3301
      %v3334 = vpack.c.b16 %v3302, %v3302
      %v3335 = vpack.c.b16 %v3303, %v3303
      %v3336 = vpack.c.b16 %v3304, %v3304
      %v3337 = vpack.c.b16 %v3305, %v3305
      %v3338 = vpack.c.b16 %v3306, %v3306
      %v3339 = vpack.c.b16 %v3307, %v3307
      %v3340 = vpack.c.b16 %v3308, %v3308
      %v3341 = vpack.c.b16 %v3309, %v3309
      %v3342 = vpack.c.b16 %v3310, %v3310
      %v3343 = vpack.c.b16 %v3311, %v3311
      %v3344 = vpack.c.b16 %v3312, %v3312
      %v3345 = vpack.c.b16 %v3313, %v3313
      %v3346 = vpack.c.b16 %v3314, %v3314
      %v3347 = vpack.c.b16 %v3315, %v3315
      %v3348 = vpack.c.b16 %v3316, %v3316
      %v3349 = vpack.c.b16 %v3317, %v3317
      %v3350 = vpack.c.b16 %v3318, %v3318
      %3383 = vst.msk [vmem:[%s204] sm:$0xf] %vm210, %v3319
      %3384 = vst.msk [vmem:[%s204 + $0x4] sm:$0xf] %vm210, %v3320
      %3385 = vst.msk [vmem:[%s204 + $0x8] sm:$0xf] %vm210, %v3321
      %3386 = vst.msk [vmem:[%s204 + $0xc] sm:$0xf] %vm210, %v3322
      %3387 = vst.msk [vmem:[%s204 + $0x10] sm:$0xf] %vm210, %v3323
      %3388 = vst.msk [vmem:[%s204 + $0x14] sm:$0xf] %vm210, %v3324
      %3389 = vst.msk [vmem:[%s204 + $0x18] sm:$0xf] %vm210, %v3325
      %3390 = vst.msk [vmem:[%s204 + $0x1c] sm:$0xf] %vm210, %v3326
      %3391 = vst.msk [vmem:[%s204 + $0x20] sm:$0xf] %vm210, %v3327
      %3392 = vst.msk [vmem:[%s204 + $0x24] sm:$0xf] %vm210, %v3328
      %3393 = vst.msk [vmem:[%s204 + $0x28] sm:$0xf] %vm210, %v3329
      %3394 = vst.msk [vmem:[%s204 + $0x2c] sm:$0xf] %vm210, %v3330
      %3395 = vst.msk [vmem:[%s204 + $0x30] sm:$0xf] %vm210, %v3331
      %3396 = vst.msk [vmem:[%s204 + $0x34] sm:$0xf] %vm210, %v3332
      %3397 = vst.msk [vmem:[%s204 + $0x38] sm:$0xf] %vm210, %v3333
      %3398 = vst.msk [vmem:[%s204 + $0x3c] sm:$0xf] %vm210, %v3334
      %3399 = vst.msk [vmem:[%s204 + $0x40] sm:$0xf] %vm210, %v3335
      %3400 = vst.msk [vmem:[%s204 + $0x44] sm:$0xf] %vm210, %v3336
      %3401 = vst.msk [vmem:[%s204 + $0x48] sm:$0xf] %vm210, %v3337
      %3402 = vst.msk [vmem:[%s204 + $0x4c] sm:$0xf] %vm210, %v3338
      %3403 = vst.msk [vmem:[%s204 + $0x50] sm:$0xf] %vm210, %v3339
      %3404 = vst.msk [vmem:[%s204 + $0x54] sm:$0xf] %vm210, %v3340
      %3405 = vst.msk [vmem:[%s204 + $0x58] sm:$0xf] %vm210, %v3341
      %3406 = vst.msk [vmem:[%s204 + $0x5c] sm:$0xf] %vm210, %v3342
      %3407 = vst.msk [vmem:[%s204 + $0x60] sm:$0xf] %vm210, %v3343
      %3408 = vst.msk [vmem:[%s204 + $0x64] sm:$0xf] %vm210, %v3344
      %3409 = vst.msk [vmem:[%s204 + $0x68] sm:$0xf] %vm210, %v3345
      %3410 = vst.msk [vmem:[%s204 + $0x6c] sm:$0xf] %vm210, %v3346
      %3411 = vst.msk [vmem:[%s204 + $0x70] sm:$0xf] %vm210, %v3347
      %3412 = vst.msk [vmem:[%s204 + $0x74] sm:$0xf] %vm210, %v3348
      %3413 = vst.msk [vmem:[%s204 + $0x78] sm:$0xf] %vm210, %v3349
      %3414 = vst.msk [vmem:[%s204 + $0x7c] sm:$0xf] %vm210, %v3350
      %v3415 = vmul.f32 %v3223, %v3223
      %v3416 = vmul.f32 %v3224, %v3224
      %v3417 = vmul.f32 %v3225, %v3225
      %v3418 = vmul.f32 %v3226, %v3226
      %v3419 = vmul.f32 %v3227, %v3227
      %v3420 = vmul.f32 %v3228, %v3228
      %v3421 = vmul.f32 %v3229, %v3229
      %v3422 = vmul.f32 %v3230, %v3230
      %v3423 = vmul.f32 %v3231, %v3231
      %v3424 = vmul.f32 %v3232, %v3232
      %v3425 = vmul.f32 %v3233, %v3233
      %v3426 = vmul.f32 %v3234, %v3234
      %v3427 = vmul.f32 %v3235, %v3235
      %v3428 = vmul.f32 %v3236, %v3236
      %v3429 = vmul.f32 %v3237, %v3237
      %v3430 = vmul.f32 %v3238, %v3238
      %v3431 = vmul.f32 %v3239, %v3239
      %v3432 = vmul.f32 %v3240, %v3240
      %v3433 = vmul.f32 %v3241, %v3241
      %v3434 = vmul.f32 %v3242, %v3242
      %v3435 = vmul.f32 %v3243, %v3243
      %v3436 = vmul.f32 %v3244, %v3244
      %v3437 = vmul.f32 %v3245, %v3245
      %v3438 = vmul.f32 %v3246, %v3246
      %v3439 = vmul.f32 %v3247, %v3247
      %v3440 = vmul.f32 %v3248, %v3248
      %v3441 = vmul.f32 %v3249, %v3249
      %v3442 = vmul.f32 %v3250, %v3250
      %v3443 = vmul.f32 %v3251, %v3251
      %v3444 = vmul.f32 %v3252, %v3252
      %v3445 = vmul.f32 %v3253, %v3253
      %v3446 = vmul.f32 %v3254, %v3254
      %v3447 = vadd.f32 %v3223, 0.0
      %v3448 = vadd.f32 %v3224, 0.0
      %v3449 = vadd.f32 %v3225, 0.0
      %v3450 = vadd.f32 %v3226, 0.0
      %v3451 = vadd.f32 %v3227, 0.0
      %v3452 = vadd.f32 %v3228, 0.0
      %v3453 = vadd.f32 %v3229, 0.0
      %v3454 = vadd.f32 %v3230, 0.0
      %v3455 = vadd.f32 %v3231, 0.0
      %v3456 = vadd.f32 %v3232, 0.0
      %v3457 = vadd.f32 %v3233, 0.0
      %v3458 = vadd.f32 %v3234, 0.0
      %v3459 = vadd.f32 %v3235, 0.0
      %v3460 = vadd.f32 %v3236, 0.0
      %v3461 = vadd.f32 %v3237, 0.0
      %v3462 = vadd.f32 %v3238, 0.0
      %v3463 = vadd.f32 %v3239, 0.0
      %v3464 = vadd.f32 %v3240, 0.0
      %v3465 = vadd.f32 %v3241, 0.0
      %v3466 = vadd.f32 %v3242, 0.0
      %v3467 = vadd.f32 %v3243, 0.0
      %v3468 = vadd.f32 %v3244, 0.0
      %v3469 = vadd.f32 %v3245, 0.0
      %v3470 = vadd.f32 %v3246, 0.0
      %v3471 = vadd.f32 %v3247, 0.0
      %v3472 = vadd.f32 %v3248, 0.0
      %v3473 = vadd.f32 %v3249, 0.0
      %v3474 = vadd.f32 %v3250, 0.0
      %v3475 = vadd.f32 %v3251, 0.0
      %v3476 = vadd.f32 %v3252, 0.0
      %v3477 = vadd.f32 %v3253, 0.0
      %v3478 = vadd.f32 %v3254, 0.0
      %v3479 = vadd.f32 %v3415, 0.0
      %v3480 = vadd.f32 %v3416, 0.0
      %v3481 = vadd.f32 %v3417, 0.0
      %v3482 = vadd.f32 %v3418, 0.0
      %v3483 = vadd.f32 %v3419, 0.0
      %v3484 = vadd.f32 %v3420, 0.0
      %v3485 = vadd.f32 %v3421, 0.0
      %v3486 = vadd.f32 %v3422, 0.0
      %v3487 = vadd.f32 %v3423, 0.0
      %v3488 = vadd.f32 %v3424, 0.0
      %v3489 = vadd.f32 %v3425, 0.0
      %v3490 = vadd.f32 %v3426, 0.0
      %v3491 = vadd.f32 %v3427, 0.0
      %v3492 = vadd.f32 %v3428, 0.0
      %v3493 = vadd.f32 %v3429, 0.0
      %v3494 = vadd.f32 %v3430, 0.0
      %v3495 = vadd.f32 %v3431, 0.0
      %v3496 = vadd.f32 %v3432, 0.0
      %v3497 = vadd.f32 %v3433, 0.0
      %v3498 = vadd.f32 %v3434, 0.0
      %v3499 = vadd.f32 %v3435, 0.0
      %v3500 = vadd.f32 %v3436, 0.0
      %v3501 = vadd.f32 %v3437, 0.0
      %v3502 = vadd.f32 %v3438, 0.0
      %v3503 = vadd.f32 %v3439, 0.0
      %v3504 = vadd.f32 %v3440, 0.0
      %v3505 = vadd.f32 %v3441, 0.0
      %v3506 = vadd.f32 %v3442, 0.0
      %v3507 = vadd.f32 %v3443, 0.0
      %v3508 = vadd.f32 %v3444, 0.0
      %v3509 = vadd.f32 %v3445, 0.0
      %v3510 = vadd.f32 %v3446, 0.0
      %v3511 = vsel %vm1295, %v3447, 0.0
      %v3512 = vsel %vm1295, %v3449, 0.0
      %v3513 = vadd.f32 %v3511, %v3512
      %v3514 = vsel %vm1295, %v3451, 0.0
      %v3515 = vadd.f32 %v3513, %v3514
      %v3516 = vsel %vm1295, %v3453, 0.0
      %v3517 = vadd.f32 %v3515, %v3516
      %v3518 = vsel %vm1295, %v3455, 0.0
      %v3519 = vadd.f32 %v3517, %v3518
      %v3520 = vsel %vm1295, %v3457, 0.0
      %v3521 = vadd.f32 %v3519, %v3520
      %v3522 = vsel %vm1295, %v3459, 0.0
      %v3523 = vadd.f32 %v3521, %v3522
      %v3524 = vsel %vm1295, %v3461, 0.0
      %v3525 = vadd.f32 %v3523, %v3524
      %v3526 = vsel %vm1295, %v3463, 0.0
      %v3527 = vadd.f32 %v3525, %v3526
      %v3528 = vsel %vm1295, %v3465, 0.0
      %v3529 = vadd.f32 %v3527, %v3528
      %v3530 = vsel %vm1295, %v3467, 0.0
      %v3531 = vadd.f32 %v3529, %v3530
      %v3532 = vsel %vm1295, %v3469, 0.0
      %v3533 = vadd.f32 %v3531, %v3532
      %v3534 = vsel %vm1295, %v3471, 0.0
      %v3535 = vadd.f32 %v3533, %v3534
      %v3536 = vsel %vm1295, %v3473, 0.0
      %v3537 = vadd.f32 %v3535, %v3536
      %v3538 = vsel %vm1295, %v3475, 0.0
      %v3539 = vadd.f32 %v3537, %v3538
      %v3540 = vsel %vm1295, %v3477, 0.0
      %v3541 = vadd.f32 %v3539, %v3540
      %v3542 = vsel %vm1295, %v3448, 0.0
      %v3543 = vsel %vm1295, %v3450, 0.0
      %v3544 = vadd.f32 %v3542, %v3543
      %v3545 = vsel %vm1295, %v3452, 0.0
      %v3546 = vadd.f32 %v3544, %v3545
      %v3547 = vsel %vm1295, %v3454, 0.0
      %v3548 = vadd.f32 %v3546, %v3547
      %v3549 = vsel %vm1295, %v3456, 0.0
      %v3550 = vadd.f32 %v3548, %v3549
      %v3551 = vsel %vm1295, %v3458, 0.0
      %v3552 = vadd.f32 %v3550, %v3551
      %v3553 = vsel %vm1295, %v3460, 0.0
      %v3554 = vadd.f32 %v3552, %v3553
      %v3555 = vsel %vm1295, %v3462, 0.0
      %v3556 = vadd.f32 %v3554, %v3555
      %v3557 = vsel %vm1295, %v3464, 0.0
      %v3558 = vadd.f32 %v3556, %v3557
      %v3559 = vsel %vm1295, %v3466, 0.0
      %v3560 = vadd.f32 %v3558, %v3559
      %v3561 = vsel %vm1295, %v3468, 0.0
      %v3562 = vadd.f32 %v3560, %v3561
      %v3563 = vsel %vm1295, %v3470, 0.0
      %v3564 = vadd.f32 %v3562, %v3563
      %v3565 = vsel %vm1295, %v3472, 0.0
      %v3566 = vadd.f32 %v3564, %v3565
      %v3567 = vsel %vm1295, %v3474, 0.0
      %v3568 = vadd.f32 %v3566, %v3567
      %v3569 = vsel %vm1295, %v3476, 0.0
      %v3570 = vadd.f32 %v3568, %v3569
      %v3571 = vsel %vm1295, %v3478, 0.0
      %v3572 = vadd.f32 %v3570, %v3571
      %v3573 = vsel %vm1295, %v3479, 0.0
      %v3574 = vsel %vm1295, %v3481, 0.0
      %v3575 = vadd.f32 %v3573, %v3574
      %v3576 = vsel %vm1295, %v3483, 0.0
      %v3577 = vadd.f32 %v3575, %v3576
      %v3578 = vsel %vm1295, %v3485, 0.0
      %v3579 = vadd.f32 %v3577, %v3578
      %v3580 = vsel %vm1295, %v3487, 0.0
      %v3581 = vadd.f32 %v3579, %v3580
      %v3582 = vsel %vm1295, %v3489, 0.0
      %v3583 = vadd.f32 %v3581, %v3582
      %v3584 = vsel %vm1295, %v3491, 0.0
      %v3585 = vadd.f32 %v3583, %v3584
      %v3586 = vsel %vm1295, %v3493, 0.0
      %v3587 = vadd.f32 %v3585, %v3586
      %v3588 = vsel %vm1295, %v3495, 0.0
      %v3589 = vadd.f32 %v3587, %v3588
      %v3590 = vsel %vm1295, %v3497, 0.0
      %v3591 = vadd.f32 %v3589, %v3590
      %v3592 = vsel %vm1295, %v3499, 0.0
      %v3593 = vadd.f32 %v3591, %v3592
      %v3594 = vsel %vm1295, %v3501, 0.0
      %v3595 = vadd.f32 %v3593, %v3594
      %v3596 = vsel %vm1295, %v3503, 0.0
      %v3597 = vadd.f32 %v3595, %v3596
      %v3598 = vsel %vm1295, %v3505, 0.0
      %v3599 = vadd.f32 %v3597, %v3598
      %v3600 = vsel %vm1295, %v3507, 0.0
      %v3601 = vadd.f32 %v3599, %v3600
      %v3602 = vsel %vm1295, %v3509, 0.0
      %v3603 = vadd.f32 %v3601, %v3602
      %v3604 = vsel %vm1295, %v3480, 0.0
      %v3605 = vsel %vm1295, %v3482, 0.0
      %v3606 = vadd.f32 %v3604, %v3605
      %v3607 = vsel %vm1295, %v3484, 0.0
      %v3608 = vadd.f32 %v3606, %v3607
      %v3609 = vsel %vm1295, %v3486, 0.0
      %v3610 = vadd.f32 %v3608, %v3609
      %v3611 = vsel %vm1295, %v3488, 0.0
      %v3612 = vadd.f32 %v3610, %v3611
      %v3613 = vsel %vm1295, %v3490, 0.0
      %v3614 = vadd.f32 %v3612, %v3613
      %v3615 = vsel %vm1295, %v3492, 0.0
      %v3616 = vadd.f32 %v3614, %v3615
      %v3617 = vsel %vm1295, %v3494, 0.0
      %v3618 = vadd.f32 %v3616, %v3617
      %v3619 = vsel %vm1295, %v3496, 0.0
      %v3620 = vadd.f32 %v3618, %v3619
      %v3621 = vsel %vm1295, %v3498, 0.0
      %v3622 = vadd.f32 %v3620, %v3621
      %v3623 = vsel %vm1295, %v3500, 0.0
      %v3624 = vadd.f32 %v3622, %v3623
      %v3625 = vsel %vm1295, %v3502, 0.0
      %v3626 = vadd.f32 %v3624, %v3625
      %v3627 = vsel %vm1295, %v3504, 0.0
      %v3628 = vadd.f32 %v3626, %v3627
      %v3629 = vsel %vm1295, %v3506, 0.0
      %v3630 = vadd.f32 %v3628, %v3629
      %v3631 = vsel %vm1295, %v3508, 0.0
      %v3632 = vadd.f32 %v3630, %v3631
      %v3633 = vsel %vm1295, %v3510, 0.0
      %v3634 = vadd.f32 %v3632, %v3633
      %v3635 = vsel %vm1295, %v3541, 0.0
      %v3636 = vsel %vm1295, %v3572, 0.0
      %v3637 = vadd.f32 %v3635, %v3636
      %v3638 = vrot.slane %v3637, 4
      %v3639 = vadd.f32 %v3637, %v3638
      %v3640 = vrot.slane %v3639, 2
      %v3641 = vadd.f32 %v3639, %v3640
      %v3642 = vrot.slane %v3641, 1
      %v3643 = vadd.f32 %v3641, %v3642
      %v3644 = vsel %vm1295, %v3603, 0.0
      %v3645 = vsel %vm1295, %v3634, 0.0
      %v3646 = vadd.f32 %v3644, %v3645
      %v3647 = vrot.slane %v3646, 4
      %v3648 = vadd.f32 %v3646, %v3647
      %v3649 = vrot.slane %v3648, 2
      %v3650 = vadd.f32 %v3648, %v3649
      %v3651 = vrot.slane %v3650, 1
      %v3652 = vadd.f32 %v3650, %v3651
      %vm3653 = vcmask 1040384
      %v3654 = vsel %vm3653, %v3643, %v3652
      %vm3655 = vcmask 517120
      %3656 = vst.msk [vmem:[%s208] sm:$0x3] %vm3655, %v3654
      %p3657 = scmp.lt.s32.totalorder %s16, 1
      %s3658 = scalar_select %p3657, %s16, 1
      %s3659 = smul.addr %s3658, 32
      %s3660 = smul.addr %s3659, 4
      %s3661 = scalar_lea.vmem %s3, %s3660
      %p3662 = scmp.lt.s32.totalorder %s16, 1
      %s3663 = scalar_select %p3662, %s16, 1
      %s3664 = smul.addr %s3663, 2
      %s3665 = scalar_lea.vmem %s4, %s3664
      // Predicated region
      $region33: #{bottleneck_forward.5} parent=31 // pred_check
        %p3666 = pneg %p102
      $region34: #{bottleneck_forward.5} parent=31 // pred_check_branch
        %3668 = sbr.rel (%p3666) target = $region36
      $region35: #{bottleneck_forward.5} parent=31 // pred_region
        _
      $region36: #{bottleneck_forward.5} parent=31 // pred_fallthru
        _
      // Predicated region
      $region37: #{bottleneck_forward.5} parent=31 // pred_check
        %p3669 = pneg %p128
      $region38: #{bottleneck_forward.5} parent=31 // pred_check_branch
        %3671 = sbr.rel (%p3669) target = $region40
      $region39: #{bottleneck_forward.5} parent=31 // pred_region
        _
      $region40: #{bottleneck_forward.5} parent=31 // pred_fallthru
        _
    $region32: #{bottleneck_forward.5} parent=5 // pred_fallthru
      _
    %p3672 = scmp.le.s32.totalorder 2, %s11
    // Predicated region
    $region41: #{bottleneck_forward.5} parent=5 // pred_check
      %p3673 = pneg %p3672
    $region42: #{bottleneck_forward.5} parent=5 // pred_check_branch
      %3675 = sbr.rel (%p3673) target = $region44
    $region43: #{bottleneck_forward.5} parent=5 // pred_region
      %s3676 = ssub.s32 %s11, 2
      // Predicated region
      $region45: #{bottleneck_forward.5} parent=43 // pred_check
        %p3677 = pneg %p108
      $region46: #{bottleneck_forward.5} parent=43 // pred_check_branch
        %3679 = sbr.rel (%p3677) target = $region48
      $region47: #{bottleneck_forward.5} parent=43 // pred_region
        %p3680 = scmp.lt.s32.totalorder %s17, 1
        %s3681 = scalar_select %p3680, %s17, 1
        %s3682 = smul.addr %s3681, 32
        %s3683 = smul.addr %s3682, 4
        %s3684 = scalar_lea.vmem %s3, %s3683
      $region48: #{bottleneck_forward.5} parent=43 // pred_fallthru
        _
      // Predicated region
      $region49: #{bottleneck_forward.5} parent=43 // pred_check
        %p3685 = pneg %p134
      $region50: #{bottleneck_forward.5} parent=43 // pred_check_branch
        %3687 = sbr.rel (%p3685) target = $region52
      $region51: #{bottleneck_forward.5} parent=43 // pred_region
        %p3688 = scmp.lt.s32.totalorder %s17, 1
        %s3689 = scalar_select %p3688, %s17, 1
        %s3690 = smul.addr %s3689, 2
        %s3691 = scalar_lea.vmem %s4, %s3690
      $region52: #{bottleneck_forward.5} parent=43 // pred_fallthru
        _
    $region44: #{bottleneck_forward.5} parent=5 // pred_fallthru
      _
  $region6: #{bottleneck_forward.5} parent=0 // loop_footer
    %s15 = sadd.s32 1, %s11
  $region7: #{bottleneck_forward.5} parent=0 // loop_footer_branch
    %10 = sbr.rel target = $region3
  $region8: #{bottleneck_forward.5} parent=0 // loop_exit
    _

</llo_original>
